<compile_context>
chip_gen: v5e
topology: v5e:2x2
jax: 0.10.0
libtpu: 0.0.40
codegen_flags: <defaults>
</compile_context>

<pallas_src>
import functools

import jax
import jax.numpy as jnp
import numpy as np
from jax import lax
from jax.experimental import pallas as pl
from jax.experimental.pallas import tpu as pltpu


# ----------------------------- Pallas kernel ------------------------------

def _conv_bn_relu_kernel(x_ref, w_ref, shift_ref, o_ref, acc_ref, *,
                         kh, kw, sh, sw, Ho, Wo, relu):
    """One grid step = (batch n, output depth slice do, depth tap a).

    x_ref:     (Hp, Wp, Cin)       bf16  padded input depth-slice (VMEM)
    w_ref:     (kh*kw, Cin, Cout)  bf16  BN-scale-folded weights, this depth tap
    shift_ref: (1, Cout)           f32   folded BN shift
    o_ref:     (Ho*Wo, Cout)       out dtype
    acc_ref:   (Ho*Wo, Cout)       f32   VMEM scratch accumulator
    """
    a = pl.program_id(2)

    @pl.when(a == 0)
    def _init():
        acc_ref[...] = jnp.zeros_like(acc_ref)

    acc = acc_ref[...]
    # In-VMEM "im2col": slide the kh*kw taps over the resident slab and
    # accumulate kh*kw small MXU dots (no HBM duplication).
    for b in range(kh):
        for c in range(kw):
            if sh == 1 and sw == 1:
                xt = x_ref[b:b + Ho, c:c + Wo, :]
            else:
                xt = x_ref[pl.ds(b, Ho, stride=sh),
                           pl.ds(c, Wo, stride=sw), :]
            xt = xt.reshape(Ho * Wo, xt.shape[-1])
            acc = acc + jnp.dot(xt, w_ref[b * kw + c],
                                preferred_element_type=jnp.float32)
    acc_ref[...] = acc

    @pl.when(a == pl.num_programs(2) - 1)
    def _finalize():
        y = acc_ref[...] + shift_ref[...]
        if relu:
            y = jnp.maximum(y, 0.0)
        o_ref[...] = y.astype(o_ref.dtype)


# ------------------------------ wrapper ------------------------------------

def conv3d_bn_relu(x, w, scale, shift, stride, padding, *, relu=True,
                   out_dtype=jnp.float32):
    """Fused Conv3d(bias=False) + BatchNorm3d(eval) + optional ReLU.

    x:          [N, D, H, W, Cin]  (cast to bf16 for the MXU)
    w:          PyTorch layout [Cout, Cin, kd, kh, kw]
    scale/shift: folded BN per-channel scale/shift, f32 [Cout]
    Returns [N, Do, Ho, Wo, Cout] in `out_dtype`.
    """
    cout, cin, kd, kh, kw = w.shape
    sd, sh, sw = stride
    pd, ph, pw = padding
    N, D, H, W, _ = x.shape
    Do = (D + 2 * pd - kd) // sd + 1
    Ho = (H + 2 * ph - kh) // sh + 1
    Wo = (W + 2 * pw - kw) // sw + 1
    Hp, Wp = H + 2 * ph, W + 2 * pw

    # Spatial zero-pad once in HBM (bf16) -- the only full-tensor glue pass.
    x_pad = jnp.pad(x.astype(jnp.bfloat16),
                    ((0, 0), (pd, pd), (ph, ph), (pw, pw), (0, 0)))

    # Fold BN scale into the weights; rearrange to (kd, kh*kw, Cin, Cout).
    w_f = w * scale[:, None, None, None, None]
    w_f = jnp.transpose(w_f, (2, 3, 4, 1, 0)).reshape(kd, kh * kw, cin, cout)
    w_f = w_f.astype(jnp.bfloat16)
    shift2 = shift.reshape(1, cout).astype(jnp.float32)

    # VMEM budget: double-buffered x / w / out blocks + f32 accumulator.
    out_isz = jnp.dtype(out_dtype).itemsize
    blk_bytes = (2 * Hp * Wp * cin * 2            # x block, bf16, 2 buffers
                 + 2 * kh * kw * cin * cout * 2   # w block, bf16, 2 buffers
                 + 2 * Ho * Wo * cout * out_isz   # out block, 2 buffers
                 + Ho * Wo * cout * 4             # f32 accumulator
                 + 4 * cout)
    vmem_limit = int(min(max(3 * blk_bytes, 16 * 2**20), 48 * 2**20))

    kernel = functools.partial(_conv_bn_relu_kernel, kh=kh, kw=kw,
                               sh=sh, sw=sw, Ho=Ho, Wo=Wo, relu=relu)

    out = pl.pallas_call(
        kernel,
        out_shape=jax.ShapeDtypeStruct((N, Do, Ho * Wo, cout), out_dtype),
        grid_spec=pltpu.PrefetchScalarGridSpec(
            num_scalar_prefetch=0,
            grid=(N, Do, kd),
            in_specs=[
                # one padded depth-slice per (n, do, depth-tap a); size-1
                # blocks on N and D so index_map can return do*sd + a directly
                pl.BlockSpec((None, None, Hp, Wp, cin),
                             lambda n, d, a: (n, d * sd + a, 0, 0, 0)),
                # weights for depth tap a
                pl.BlockSpec((None, kh * kw, cin, cout),
                             lambda n, d, a: (a, 0, 0, 0)),
                # folded BN shift (constant block)
                pl.BlockSpec((1, cout), lambda n, d, a: (0, 0)),
            ],
            out_specs=pl.BlockSpec((None, None, Ho * Wo, cout),
                                   lambda n, d, a: (n, d, 0, 0)),
            scratch_shapes=[pltpu.VMEM((Ho * Wo, cout), jnp.float32)],
        ),
        compiler_params=pltpu.CompilerParams(
            dimension_semantics=("parallel", "parallel", "arbitrary"),
            vmem_limit_bytes=vmem_limit),
    )(x_pad, w_f, shift2)

    return out.reshape(N, Do, Ho, Wo, cout)


# --------------------------- DoubleConv module ------------------------------

def make_double_conv(key, in_ch, out_ch, stride=1, kernel_size=3):
    """Deterministic synthetic params (arrays only) + jitted apply fn."""
    k1, k2, k3, k4 = jax.random.split(key, 4)
    ks = (kernel_size,) * 3

    def conv_w(k, cout, cin, kern):
        fan_in = cin * kern[0] * kern[1] * kern[2]
        return (jax.random.normal(k, (cout, cin) + kern, jnp.float32)
                / np.sqrt(fan_in))

    def bn(k, c):
        kg, kb, km, kv = jax.random.split(k, 4)
        gamma = 1.0 + 0.1 * jax.random.normal(kg, (c,), jnp.float32)
        beta = 0.1 * jax.random.normal(kb, (c,), jnp.float32)
        mean = 0.1 * jax.random.normal(km, (c,), jnp.float32)
        var = 1.0 + 0.1 * jax.random.uniform(kv, (c,), jnp.float32)
        scale = gamma / jnp.sqrt(var + 1e-5)
        shift = beta - mean * scale
        return scale, shift

    params = dict(w1=conv_w(k1, out_ch, in_ch, ks), bn1=bn(k2, out_ch),
                  w2=conv_w(k3, out_ch, out_ch, (3, 3, 3)), bn2=bn(k4, out_ch))

    stride3 = (stride,) * 3
    pad1 = (kernel_size // 2,) * 3

    @jax.jit
    def apply(params, x_ncdhw):
        x = jnp.transpose(x_ncdhw, (0, 2, 3, 4, 1))         # NCDHW -> NDHWC
        s1, sh1 = params["bn1"]
        s2, sh2 = params["bn2"]
        # conv1 emits bf16 (only re-read by conv2); conv2 emits the final f32.
        x = conv3d_bn_relu(x, params["w1"], s1, sh1, stride3, pad1,
                           relu=True, out_dtype=jnp.bfloat16)
        x = conv3d_bn_relu(x, params["w2"], s2, sh2, (1, 1, 1), (1, 1, 1),
                           relu=True, out_dtype=jnp.float32)
        return jnp.transpose(x, (0, 4, 1, 2, 3))             # NDHWC -> NCDHW

    return params, apply


# ------------------------- pure-XLA reference -------------------------------

def _conv_bn_relu_ref(x, w, scale, shift, stride, padding):
    # Match the kernel's bf16 operand rounding; accumulate in f32.
    w_f = (w * scale[:, None, None, None, None]).astype(jnp.bfloat16)
    w_f = w_f.astype(jnp.float32)
    xb = x.astype(jnp.bfloat16).astype(jnp.float32)
    y = lax.conv_general_dilated(
        xb, w_f, window_strides=stride,
        padding=[(p, p) for p in padding],
        dimension_numbers=("NDHWC", "OIDHW", "NDHWC"))
    y = y + shift.reshape(1, 1, 1, 1, -1)
    return jnp.maximum(y, 0.0)


def _reference_double_conv(params, x_ncdhw, stride, kernel_size):
    x = jnp.transpose(x_ncdhw, (0, 2, 3, 4, 1))
    s1, sh1 = params["bn1"]
    s2, sh2 = params["bn2"]
    pad1 = (kernel_size // 2,) * 3
    x = _conv_bn_relu_ref(x, params["w1"], s1, sh1, (stride,) * 3, pad1)
    x = _conv_bn_relu_ref(x, params["w2"], s2, sh2, (1, 1, 1), (1, 1, 1))
    return jnp.transpose(x, (0, 4, 1, 2, 3))


# ---------------------------------- main ------------------------------------

if __name__ == "__main__":
    key = jax.random.PRNGKey(0)
    kp, kx = jax.random.split(key)

    N, in_ch, out_ch = 2, 4, 32
    D, H, W = 8, 16, 16
    stride, kernel_size = 1, 3          # module defaults

    params, apply_fn = make_double_conv(kp, in_ch, out_ch, stride, kernel_size)
    x = jax.random.normal(kx, (N, in_ch, D, H, W), jnp.float32)

    out = jax.block_until_ready(apply_fn(params, x))
    assert out.shape == (N, out_ch, D, H, W), out.shape
    assert bool(jnp.isfinite(out).all())

    # Correctness vs a pure-XLA conv reference using the same bf16 rounding.
    ref = jax.block_until_ready(
        _reference_double_conv(params, x, stride, kernel_size))
    err = float(jnp.max(jnp.abs(out - ref)))
    ref_scale = float(jnp.max(jnp.abs(ref))) + 1e-6
    assert err <= 3e-2 * ref_scale + 1e-3, (err, ref_scale)

    print("KERNEL_OK")
</pallas_src>

<mosaic_0001>
module attributes {stable_mosaic.version = 11 : i64} {
  func.func @_conv_bn_relu_kernel(%arg0: i32, %arg1: i32, %arg2: i32, %arg3: memref<1x1x18x18x4xbf16, #tpu.memory_space<vmem>>, %arg4: memref<1x9x4x32xbf16, #tpu.memory_space<vmem>>, %arg5: memref<1x32xf32, #tpu.memory_space<vmem>>, %arg6: memref<1x1x256x32xbf16, #tpu.memory_space<vmem>>, %arg7: memref<256x32xf32, #tpu.memory_space<vmem>>) attributes {dimension_semantics = [#tpu.dimension_semantics<parallel>, #tpu.dimension_semantics<parallel>, #tpu.dimension_semantics<arbitrary>], iteration_bounds = array<i64: 2, 8, 3>, scalar_prefetch = 0 : i64, scratch_operands = 1 : i64, tpu.core_type = #tpu.core_type<tc>, window_params = [{transform_indices = @transform_0, window_bounds = array<i64: 1, 1, 18, 18, 4>}, {transform_indices = @transform_1, window_bounds = array<i64: 1, 9, 4, 32>}, {pipeline_mode = #tpu.pipeline_mode<synchronous>, transform_indices = @transform_2, window_bounds = array<i64: 1, 32>}, {transform_indices = @transform_3, window_bounds = array<i64: 1, 1, 256, 32>}]} {
    %c0_i32 = arith.constant 0 : i32
    %0 = arith.cmpi eq, %arg2, %c0_i32 : i32
    %1 = arith.extui %0 : i1 to i32
    %c0_i32_0 = arith.constant 0 : i32
    %2 = arith.cmpi ne, %1, %c0_i32_0 : i32
    scf.if %2 {
      %cst_86 = arith.constant 0.000000e+00 : f32
      %71 = vector.broadcast %cst_86 : f32 to vector<256x32xf32>
      %c0_87 = arith.constant 0 : index
      %c0_88 = arith.constant 0 : index
      %72 = vector.load %arg7[%c0_87, %c0_88] : memref<256x32xf32, #tpu.memory_space<vmem>>, vector<256x32xf32>
      tpu.vector_store %arg7[%c0_87, %c0_88], %71 {strides = array<i32>} : memref<256x32xf32, #tpu.memory_space<vmem>>, vector<256x32xf32>,
    } else {
    }
    %c0 = arith.constant 0 : index
    %c0_1 = arith.constant 0 : index
    %3 = vector.load %arg7[%c0, %c0_1] : memref<256x32xf32, #tpu.memory_space<vmem>>, vector<256x32xf32>
    %c0_2 = arith.constant 0 : index
    %c0_3 = arith.constant 0 : index
    %c0_4 = arith.constant 0 : index
    %c0_5 = arith.constant 0 : index
    %c0_6 = arith.constant 0 : index
    %4 = vector.load %arg3[%c0_2, %c0_3, %c0_4, %c0_5, %c0_6] : memref<1x1x18x18x4xbf16, #tpu.memory_space<vmem>>, vector<1x1x16x16x4xbf16>
    %5 = vector.shape_cast %4 : vector<1x1x16x16x4xbf16> to vector<16x16x4xbf16>
    %6 = vector.shape_cast %5 : vector<16x16x4xbf16> to vector<256x4xbf16>
    %c0_7 = arith.constant 0 : index
    %c0_8 = arith.constant 0 : index
    %c0_9 = arith.constant 0 : index
    %c0_10 = arith.constant 0 : index
    %7 = vector.load %arg4[%c0_7, %c0_8, %c0_9, %c0_10] : memref<1x9x4x32xbf16, #tpu.memory_space<vmem>>, vector<1x1x4x32xbf16>
    %8 = vector.shape_cast %7 : vector<1x1x4x32xbf16> to vector<4x32xbf16>
    %cst = arith.constant dense<0.000000e+00> : vector<256x32xf32>
    %9 = tpu.matmul %6, %8, %cst {dimension_numbers = #tpu.dot_dimension_numbers<[1], [0], [0], [1], [0, 0, 1, 1], [], []>} : vector<256x4xbf16>, vector<4x32xbf16>, vector<256x32xf32> -> vector<256x32xf32>
    %10 = arith.addf %3, %9 : vector<256x32xf32>
    %c0_11 = arith.constant 0 : index
    %c0_12 = arith.constant 0 : index
    %c0_13 = arith.constant 0 : index
    %c1 = arith.constant 1 : index
    %c0_14 = arith.constant 0 : index
    %11 = vector.load %arg3[%c0_11, %c0_12, %c0_13, %c1, %c0_14] : memref<1x1x18x18x4xbf16, #tpu.memory_space<vmem>>, vector<1x1x16x16x4xbf16>
    %12 = vector.shape_cast %11 : vector<1x1x16x16x4xbf16> to vector<16x16x4xbf16>
    %13 = vector.shape_cast %12 : vector<16x16x4xbf16> to vector<256x4xbf16>
    %c0_15 = arith.constant 0 : index
    %c1_16 = arith.constant 1 : index
    %c0_17 = arith.constant 0 : index
    %c0_18 = arith.constant 0 : index
    %14 = vector.load %arg4[%c0_15, %c1_16, %c0_17, %c0_18] : memref<1x9x4x32xbf16, #tpu.memory_space<vmem>>, vector<1x1x4x32xbf16>
    %15 = vector.shape_cast %14 : vector<1x1x4x32xbf16> to vector<4x32xbf16>
    %cst_19 = arith.constant dense<0.000000e+00> : vector<256x32xf32>
    %16 = tpu.matmul %13, %15, %cst_19 {dimension_numbers = #tpu.dot_dimension_numbers<[1], [0], [0], [1], [0, 0, 1, 1], [], []>} : vector<256x4xbf16>, vector<4x32xbf16>, vector<256x32xf32> -> vector<256x32xf32>
    %17 = arith.addf %10, %16 : vector<256x32xf32>
    %c0_20 = arith.constant 0 : index
    %c0_21 = arith.constant 0 : index
    %c0_22 = arith.constant 0 : index
    %c2 = arith.constant 2 : index
    %c0_23 = arith.constant 0 : index
    %18 = vector.load %arg3[%c0_20, %c0_21, %c0_22, %c2, %c0_23] : memref<1x1x18x18x4xbf16, #tpu.memory_space<vmem>>, vector<1x1x16x16x4xbf16>
    %19 = vector.shape_cast %18 : vector<1x1x16x16x4xbf16> to vector<16x16x4xbf16>
    %20 = vector.shape_cast %19 : vector<16x16x4xbf16> to vector<256x4xbf16>
    %c0_24 = arith.constant 0 : index
    %c2_25 = arith.constant 2 : index
    %c0_26 = arith.constant 0 : index
    %c0_27 = arith.constant 0 : index
    %21 = vector.load %arg4[%c0_24, %c2_25, %c0_26, %c0_27] : memref<1x9x4x32xbf16, #tpu.memory_space<vmem>>, vector<1x1x4x32xbf16>
    %22 = vector.shape_cast %21 : vector<1x1x4x32xbf16> to vector<4x32xbf16>
    %cst_28 = arith.constant dense<0.000000e+00> : vector<256x32xf32>
    %23 = tpu.matmul %20, %22, %cst_28 {dimension_numbers = #tpu.dot_dimension_numbers<[1], [0], [0], [1], [0, 0, 1, 1], [], []>} : vector<256x4xbf16>, vector<4x32xbf16>, vector<256x32xf32> -> vector<256x32xf32>
    %24 = arith.addf %17, %23 : vector<256x32xf32>
    %c0_29 = arith.constant 0 : index
    %c0_30 = arith.constant 0 : index
    %c1_31 = arith.constant 1 : index
    %c0_32 = arith.constant 0 : index
    %c0_33 = arith.constant 0 : index
    %25 = vector.load %arg3[%c0_29, %c0_30, %c1_31, %c0_32, %c0_33] : memref<1x1x18x18x4xbf16, #tpu.memory_space<vmem>>, vector<1x1x16x16x4xbf16>
    %26 = vector.shape_cast %25 : vector<1x1x16x16x4xbf16> to vector<16x16x4xbf16>
    %27 = vector.shape_cast %26 : vector<16x16x4xbf16> to vector<256x4xbf16>
    %c0_34 = arith.constant 0 : index
    %c3 = arith.constant 3 : index
    %c0_35 = arith.constant 0 : index
    %c0_36 = arith.constant 0 : index
    %28 = vector.load %arg4[%c0_34, %c3, %c0_35, %c0_36] : memref<1x9x4x32xbf16, #tpu.memory_space<vmem>>, vector<1x1x4x32xbf16>
    %29 = vector.shape_cast %28 : vector<1x1x4x32xbf16> to vector<4x32xbf16>
    %cst_37 = arith.constant dense<0.000000e+00> : vector<256x32xf32>
    %30 = tpu.matmul %27, %29, %cst_37 {dimension_numbers = #tpu.dot_dimension_numbers<[1], [0], [0], [1], [0, 0, 1, 1], [], []>} : vector<256x4xbf16>, vector<4x32xbf16>, vector<256x32xf32> -> vector<256x32xf32>
    %31 = arith.addf %24, %30 : vector<256x32xf32>
    %c0_38 = arith.constant 0 : index
    %c0_39 = arith.constant 0 : index
    %c1_40 = arith.constant 1 : index
    %c1_41 = arith.constant 1 : index
    %c0_42 = arith.constant 0 : index
    %32 = vector.load %arg3[%c0_38, %c0_39, %c1_40, %c1_41, %c0_42] : memref<1x1x18x18x4xbf16, #tpu.memory_space<vmem>>, vector<1x1x16x16x4xbf16>
    %33 = vector.shape_cast %32 : vector<1x1x16x16x4xbf16> to vector<16x16x4xbf16>
    %34 = vector.shape_cast %33 : vector<16x16x4xbf16> to vector<256x4xbf16>
    %c0_43 = arith.constant 0 : index
    %c4 = arith.constant 4 : index
    %c0_44 = arith.constant 0 : index
    %c0_45 = arith.constant 0 : index
    %35 = vector.load %arg4[%c0_43, %c4, %c0_44, %c0_45] : memref<1x9x4x32xbf16, #tpu.memory_space<vmem>>, vector<1x1x4x32xbf16>
    %36 = vector.shape_cast %35 : vector<1x1x4x32xbf16> to vector<4x32xbf16>
    %cst_46 = arith.constant dense<0.000000e+00> : vector<256x32xf32>
    %37 = tpu.matmul %34, %36, %cst_46 {dimension_numbers = #tpu.dot_dimension_numbers<[1], [0], [0], [1], [0, 0, 1, 1], [], []>} : vector<256x4xbf16>, vector<4x32xbf16>, vector<256x32xf32> -> vector<256x32xf32>
    %38 = arith.addf %31, %37 : vector<256x32xf32>
    %c0_47 = arith.constant 0 : index
    %c0_48 = arith.constant 0 : index
    %c1_49 = arith.constant 1 : index
    %c2_50 = arith.constant 2 : index
    %c0_51 = arith.constant 0 : index
    %39 = vector.load %arg3[%c0_47, %c0_48, %c1_49, %c2_50, %c0_51] : memref<1x1x18x18x4xbf16, #tpu.memory_space<vmem>>, vector<1x1x16x16x4xbf16>
    %40 = vector.shape_cast %39 : vector<1x1x16x16x4xbf16> to vector<16x16x4xbf16>
    %41 = vector.shape_cast %40 : vector<16x16x4xbf16> to vector<256x4xbf16>
    %c0_52 = arith.constant 0 : index
    %c5 = arith.constant 5 : index
    %c0_53 = arith.constant 0 : index
    %c0_54 = arith.constant 0 : index
    %42 = vector.load %arg4[%c0_52, %c5, %c0_53, %c0_54] : memref<1x9x4x32xbf16, #tpu.memory_space<vmem>>, vector<1x1x4x32xbf16>
    %43 = vector.shape_cast %42 : vector<1x1x4x32xbf16> to vector<4x32xbf16>
    %cst_55 = arith.constant dense<0.000000e+00> : vector<256x32xf32>
    %44 = tpu.matmul %41, %43, %cst_55 {dimension_numbers = #tpu.dot_dimension_numbers<[1], [0], [0], [1], [0, 0, 1, 1], [], []>} : vector<256x4xbf16>, vector<4x32xbf16>, vector<256x32xf32> -> vector<256x32xf32>
    %45 = arith.addf %38, %44 : vector<256x32xf32>
    %c0_56 = arith.constant 0 : index
    %c0_57 = arith.constant 0 : index
    %c2_58 = arith.constant 2 : index
    %c0_59 = arith.constant 0 : index
    %c0_60 = arith.constant 0 : index
    %46 = vector.load %arg3[%c0_56, %c0_57, %c2_58, %c0_59, %c0_60] : memref<1x1x18x18x4xbf16, #tpu.memory_space<vmem>>, vector<1x1x16x16x4xbf16>
    %47 = vector.shape_cast %46 : vector<1x1x16x16x4xbf16> to vector<16x16x4xbf16>
    %48 = vector.shape_cast %47 : vector<16x16x4xbf16> to vector<256x4xbf16>
    %c0_61 = arith.constant 0 : index
    %c6 = arith.constant 6 : index
    %c0_62 = arith.constant 0 : index
    %c0_63 = arith.constant 0 : index
    %49 = vector.load %arg4[%c0_61, %c6, %c0_62, %c0_63] : memref<1x9x4x32xbf16, #tpu.memory_space<vmem>>, vector<1x1x4x32xbf16>
    %50 = vector.shape_cast %49 : vector<1x1x4x32xbf16> to vector<4x32xbf16>
    %cst_64 = arith.constant dense<0.000000e+00> : vector<256x32xf32>
    %51 = tpu.matmul %48, %50, %cst_64 {dimension_numbers = #tpu.dot_dimension_numbers<[1], [0], [0], [1], [0, 0, 1, 1], [], []>} : vector<256x4xbf16>, vector<4x32xbf16>, vector<256x32xf32> -> vector<256x32xf32>
    %52 = arith.addf %45, %51 : vector<256x32xf32>
    %c0_65 = arith.constant 0 : index
    %c0_66 = arith.constant 0 : index
    %c2_67 = arith.constant 2 : index
    %c1_68 = arith.constant 1 : index
    %c0_69 = arith.constant 0 : index
    %53 = vector.load %arg3[%c0_65, %c0_66, %c2_67, %c1_68, %c0_69] : memref<1x1x18x18x4xbf16, #tpu.memory_space<vmem>>, vector<1x1x16x16x4xbf16>
    %54 = vector.shape_cast %53 : vector<1x1x16x16x4xbf16> to vector<16x16x4xbf16>
    %55 = vector.shape_cast %54 : vector<16x16x4xbf16> to vector<256x4xbf16>
    %c0_70 = arith.constant 0 : index
    %c7 = arith.constant 7 : index
    %c0_71 = arith.constant 0 : index
    %c0_72 = arith.constant 0 : index
    %56 = vector.load %arg4[%c0_70, %c7, %c0_71, %c0_72] : memref<1x9x4x32xbf16, #tpu.memory_space<vmem>>, vector<1x1x4x32xbf16>
    %57 = vector.shape_cast %56 : vector<1x1x4x32xbf16> to vector<4x32xbf16>
    %cst_73 = arith.constant dense<0.000000e+00> : vector<256x32xf32>
    %58 = tpu.matmul %55, %57, %cst_73 {dimension_numbers = #tpu.dot_dimension_numbers<[1], [0], [0], [1], [0, 0, 1, 1], [], []>} : vector<256x4xbf16>, vector<4x32xbf16>, vector<256x32xf32> -> vector<256x32xf32>
    %59 = arith.addf %52, %58 : vector<256x32xf32>
    %c0_74 = arith.constant 0 : index
    %c0_75 = arith.constant 0 : index
    %c2_76 = arith.constant 2 : index
    %c2_77 = arith.constant 2 : index
    %c0_78 = arith.constant 0 : index
    %60 = vector.load %arg3[%c0_74, %c0_75, %c2_76, %c2_77, %c0_78] : memref<1x1x18x18x4xbf16, #tpu.memory_space<vmem>>, vector<1x1x16x16x4xbf16>
    %61 = vector.shape_cast %60 : vector<1x1x16x16x4xbf16> to vector<16x16x4xbf16>
    %62 = vector.shape_cast %61 : vector<16x16x4xbf16> to vector<256x4xbf16>
    %c0_79 = arith.constant 0 : index
    %c8 = arith.constant 8 : index
    %c0_80 = arith.constant 0 : index
    %c0_81 = arith.constant 0 : index
    %63 = vector.load %arg4[%c0_79, %c8, %c0_80, %c0_81] : memref<1x9x4x32xbf16, #tpu.memory_space<vmem>>, vector<1x1x4x32xbf16>
    %64 = vector.shape_cast %63 : vector<1x1x4x32xbf16> to vector<4x32xbf16>
    %cst_82 = arith.constant dense<0.000000e+00> : vector<256x32xf32>
    %65 = tpu.matmul %62, %64, %cst_82 {dimension_numbers = #tpu.dot_dimension_numbers<[1], [0], [0], [1], [0, 0, 1, 1], [], []>} : vector<256x4xbf16>, vector<4x32xbf16>, vector<256x32xf32> -> vector<256x32xf32>
    %66 = arith.addf %59, %65 : vector<256x32xf32>
    %c0_83 = arith.constant 0 : index
    %c0_84 = arith.constant 0 : index
    %67 = vector.load %arg7[%c0_83, %c0_84] : memref<256x32xf32, #tpu.memory_space<vmem>>, vector<256x32xf32>
    tpu.vector_store %arg7[%c0_83, %c0_84], %66 {strides = array<i32>} : memref<256x32xf32, #tpu.memory_space<vmem>>, vector<256x32xf32>,
    %c2_i32 = arith.constant 2 : i32
    %68 = arith.cmpi eq, %arg2, %c2_i32 : i32
    %69 = arith.extui %68 : i1 to i32
    %c0_i32_85 = arith.constant 0 : i32
    %70 = arith.cmpi ne, %69, %c0_i32_85 : i32
    scf.if %70 {
      %c0_86 = arith.constant 0 : index
      %c0_87 = arith.constant 0 : index
      %71 = vector.load %arg7[%c0_86, %c0_87] : memref<256x32xf32, #tpu.memory_space<vmem>>, vector<256x32xf32>
      %c0_88 = arith.constant 0 : index
      %c0_89 = arith.constant 0 : index
      %72 = vector.load %arg5[%c0_88, %c0_89] : memref<1x32xf32, #tpu.memory_space<vmem>>, vector<1x32xf32>
      %73 = vector.broadcast %72 : vector<1x32xf32> to vector<256x32xf32>
      %74 = arith.addf %71, %73 : vector<256x32xf32>
      %cst_90 = arith.constant 0.000000e+00 : f32
      %75 = vector.broadcast %cst_90 : f32 to vector<256x32xf32>
      %76 = arith.maximumf %74, %75 : vector<256x32xf32>
      %77 = arith.truncf %76 : vector<256x32xf32> to vector<256x32xbf16>
      %c0_91 = arith.constant 0 : index
      %c0_92 = arith.constant 0 : index
      %c0_93 = arith.constant 0 : index
      %c0_94 = arith.constant 0 : index
      %78 = vector.load %arg6[%c0_91, %c0_92, %c0_93, %c0_94] : memref<1x1x256x32xbf16, #tpu.memory_space<vmem>>, vector<1x1x256x32xbf16>
      %79 = vector.shape_cast %78 : vector<1x1x256x32xbf16> to vector<256x32xbf16>
      %80 = vector.shape_cast %77 : vector<256x32xbf16> to vector<1x1x256x32xbf16>
      tpu.vector_store %arg6[%c0_91, %c0_92, %c0_93, %c0_94], %80 {strides = array<i32>} : memref<1x1x256x32xbf16, #tpu.memory_space<vmem>>, vector<1x1x256x32xbf16>,
    } else {
    }
    return
  }
  func.func @transform_0(%arg0: i32, %arg1: i32, %arg2: i32) -> (i32, i32, i32, i32, i32) {
    %c1_i32 = arith.constant 1 : i32
    %0 = arith.muli %arg1, %c1_i32 : i32
    %1 = arith.addi %0, %arg2 : i32
    %c0_i32 = arith.constant 0 : i32
    %c0_i32_0 = arith.constant 0 : i32
    %c0_i32_1 = arith.constant 0 : i32
    %c0_i32_2 = arith.constant 0 : i32
    return %arg0, %1, %c0_i32, %c0_i32_0, %c0_i32_1 : i32, i32, i32, i32, i32
  }
  func.func @transform_1(%arg0: i32, %arg1: i32, %arg2: i32) -> (i32, i32, i32, i32) {
    %c0_i32 = arith.constant 0 : i32
    %c0_i32_0 = arith.constant 0 : i32
    %c0_i32_1 = arith.constant 0 : i32
    %c0_i32_2 = arith.constant 0 : i32
    return %arg2, %c0_i32, %c0_i32_0, %c0_i32_1 : i32, i32, i32, i32
  }
  func.func @transform_2(%arg0: i32, %arg1: i32, %arg2: i32) -> (i32, i32) {
    %c0_i32 = arith.constant 0 : i32
    %c0_i32_0 = arith.constant 0 : i32
    %c0_i32_1 = arith.constant 0 : i32
    return %c0_i32, %c0_i32_0 : i32, i32
  }
  func.func @transform_3(%arg0: i32, %arg1: i32, %arg2: i32) -> (i32, i32, i32, i32) {
    %c0_i32 = arith.constant 0 : i32
    %c0_i32_0 = arith.constant 0 : i32
    %c0_i32_1 = arith.constant 0 : i32
    return %arg0, %arg1, %c0_i32, %c0_i32_0 : i32, i32, i32, i32
  }
}

module attributes {stable_mosaic.version = 11 : i64} {
  func.func @_conv_bn_relu_kernel(%arg0: i32, %arg1: i32, %arg2: i32, %arg3: memref<1x1x18x18x32xbf16, #tpu.memory_space<vmem>>, %arg4: memref<1x9x32x32xbf16, #tpu.memory_space<vmem>>, %arg5: memref<1x32xf32, #tpu.memory_space<vmem>>, %arg6: memref<1x1x256x32xf32, #tpu.memory_space<vmem>>, %arg7: memref<256x32xf32, #tpu.memory_space<vmem>>) attributes {dimension_semantics = [#tpu.dimension_semantics<parallel>, #tpu.dimension_semantics<parallel>, #tpu.dimension_semantics<arbitrary>], iteration_bounds = array<i64: 2, 8, 3>, scalar_prefetch = 0 : i64, scratch_operands = 1 : i64, tpu.core_type = #tpu.core_type<tc>, window_params = [{transform_indices = @transform_0, window_bounds = array<i64: 1, 1, 18, 18, 32>}, {transform_indices = @transform_1, window_bounds = array<i64: 1, 9, 32, 32>}, {pipeline_mode = #tpu.pipeline_mode<synchronous>, transform_indices = @transform_2, window_bounds = array<i64: 1, 32>}, {transform_indices = @transform_3, window_bounds = array<i64: 1, 1, 256, 32>}]} {
    %c0_i32 = arith.constant 0 : i32
    %0 = arith.cmpi eq, %arg2, %c0_i32 : i32
    %1 = arith.extui %0 : i1 to i32
    %c0_i32_0 = arith.constant 0 : i32
    %2 = arith.cmpi ne, %1, %c0_i32_0 : i32
    scf.if %2 {
      %cst_86 = arith.constant 0.000000e+00 : f32
      %71 = vector.broadcast %cst_86 : f32 to vector<256x32xf32>
      %c0_87 = arith.constant 0 : index
      %c0_88 = arith.constant 0 : index
      %72 = vector.load %arg7[%c0_87, %c0_88] : memref<256x32xf32, #tpu.memory_space<vmem>>, vector<256x32xf32>
      tpu.vector_store %arg7[%c0_87, %c0_88], %71 {strides = array<i32>} : memref<256x32xf32, #tpu.memory_space<vmem>>, vector<256x32xf32>,
    } else {
    }
    %c0 = arith.constant 0 : index
    %c0_1 = arith.constant 0 : index
    %3 = vector.load %arg7[%c0, %c0_1] : memref<256x32xf32, #tpu.memory_space<vmem>>, vector<256x32xf32>
    %c0_2 = arith.constant 0 : index
    %c0_3 = arith.constant 0 : index
    %c0_4 = arith.constant 0 : index
    %c0_5 = arith.constant 0 : index
    %c0_6 = arith.constant 0 : index
    %4 = vector.load %arg3[%c0_2, %c0_3, %c0_4, %c0_5, %c0_6] : memref<1x1x18x18x32xbf16, #tpu.memory_space<vmem>>, vector<1x1x16x16x32xbf16>
    %5 = vector.shape_cast %4 : vector<1x1x16x16x32xbf16> to vector<16x16x32xbf16>
    %6 = vector.shape_cast %5 : vector<16x16x32xbf16> to vector<256x32xbf16>
    %c0_7 = arith.constant 0 : index
    %c0_8 = arith.constant 0 : index
    %c0_9 = arith.constant 0 : index
    %c0_10 = arith.constant 0 : index
    %7 = vector.load %arg4[%c0_7, %c0_8, %c0_9, %c0_10] : memref<1x9x32x32xbf16, #tpu.memory_space<vmem>>, vector<1x1x32x32xbf16>
    %8 = vector.shape_cast %7 : vector<1x1x32x32xbf16> to vector<32x32xbf16>
    %cst = arith.constant dense<0.000000e+00> : vector<256x32xf32>
    %9 = tpu.matmul %6, %8, %cst {dimension_numbers = #tpu.dot_dimension_numbers<[1], [0], [0], [1], [0, 0, 1, 1], [], []>} : vector<256x32xbf16>, vector<32x32xbf16>, vector<256x32xf32> -> vector<256x32xf32>
    %10 = arith.addf %3, %9 : vector<256x32xf32>
    %c0_11 = arith.constant 0 : index
    %c0_12 = arith.constant 0 : index
    %c0_13 = arith.constant 0 : index
    %c1 = arith.constant 1 : index
    %c0_14 = arith.constant 0 : index
    %11 = vector.load %arg3[%c0_11, %c0_12, %c0_13, %c1, %c0_14] : memref<1x1x18x18x32xbf16, #tpu.memory_space<vmem>>, vector<1x1x16x16x32xbf16>
    %12 = vector.shape_cast %11 : vector<1x1x16x16x32xbf16> to vector<16x16x32xbf16>
    %13 = vector.shape_cast %12 : vector<16x16x32xbf16> to vector<256x32xbf16>
    %c0_15 = arith.constant 0 : index
    %c1_16 = arith.constant 1 : index
    %c0_17 = arith.constant 0 : index
    %c0_18 = arith.constant 0 : index
    %14 = vector.load %arg4[%c0_15, %c1_16, %c0_17, %c0_18] : memref<1x9x32x32xbf16, #tpu.memory_space<vmem>>, vector<1x1x32x32xbf16>
    %15 = vector.shape_cast %14 : vector<1x1x32x32xbf16> to vector<32x32xbf16>
    %cst_19 = arith.constant dense<0.000000e+00> : vector<256x32xf32>
    %16 = tpu.matmul %13, %15, %cst_19 {dimension_numbers = #tpu.dot_dimension_numbers<[1], [0], [0], [1], [0, 0, 1, 1], [], []>} : vector<256x32xbf16>, vector<32x32xbf16>, vector<256x32xf32> -> vector<256x32xf32>
    %17 = arith.addf %10, %16 : vector<256x32xf32>
    %c0_20 = arith.constant 0 : index
    %c0_21 = arith.constant 0 : index
    %c0_22 = arith.constant 0 : index
    %c2 = arith.constant 2 : index
    %c0_23 = arith.constant 0 : index
    %18 = vector.load %arg3[%c0_20, %c0_21, %c0_22, %c2, %c0_23] : memref<1x1x18x18x32xbf16, #tpu.memory_space<vmem>>, vector<1x1x16x16x32xbf16>
    %19 = vector.shape_cast %18 : vector<1x1x16x16x32xbf16> to vector<16x16x32xbf16>
    %20 = vector.shape_cast %19 : vector<16x16x32xbf16> to vector<256x32xbf16>
    %c0_24 = arith.constant 0 : index
    %c2_25 = arith.constant 2 : index
    %c0_26 = arith.constant 0 : index
    %c0_27 = arith.constant 0 : index
    %21 = vector.load %arg4[%c0_24, %c2_25, %c0_26, %c0_27] : memref<1x9x32x32xbf16, #tpu.memory_space<vmem>>, vector<1x1x32x32xbf16>
    %22 = vector.shape_cast %21 : vector<1x1x32x32xbf16> to vector<32x32xbf16>
    %cst_28 = arith.constant dense<0.000000e+00> : vector<256x32xf32>
    %23 = tpu.matmul %20, %22, %cst_28 {dimension_numbers = #tpu.dot_dimension_numbers<[1], [0], [0], [1], [0, 0, 1, 1], [], []>} : vector<256x32xbf16>, vector<32x32xbf16>, vector<256x32xf32> -> vector<256x32xf32>
    %24 = arith.addf %17, %23 : vector<256x32xf32>
    %c0_29 = arith.constant 0 : index
    %c0_30 = arith.constant 0 : index
    %c1_31 = arith.constant 1 : index
    %c0_32 = arith.constant 0 : index
    %c0_33 = arith.constant 0 : index
    %25 = vector.load %arg3[%c0_29, %c0_30, %c1_31, %c0_32, %c0_33] : memref<1x1x18x18x32xbf16, #tpu.memory_space<vmem>>, vector<1x1x16x16x32xbf16>
    %26 = vector.shape_cast %25 : vector<1x1x16x16x32xbf16> to vector<16x16x32xbf16>
    %27 = vector.shape_cast %26 : vector<16x16x32xbf16> to vector<256x32xbf16>
    %c0_34 = arith.constant 0 : index
    %c3 = arith.constant 3 : index
    %c0_35 = arith.constant 0 : index
    %c0_36 = arith.constant 0 : index
    %28 = vector.load %arg4[%c0_34, %c3, %c0_35, %c0_36] : memref<1x9x32x32xbf16, #tpu.memory_space<vmem>>, vector<1x1x32x32xbf16>
    %29 = vector.shape_cast %28 : vector<1x1x32x32xbf16> to vector<32x32xbf16>
    %cst_37 = arith.constant dense<0.000000e+00> : vector<256x32xf32>
    %30 = tpu.matmul %27, %29, %cst_37 {dimension_numbers = #tpu.dot_dimension_numbers<[1], [0], [0], [1], [0, 0, 1, 1], [], []>} : vector<256x32xbf16>, vector<32x32xbf16>, vector<256x32xf32> -> vector<256x32xf32>
    %31 = arith.addf %24, %30 : vector<256x32xf32>
    %c0_38 = arith.constant 0 : index
    %c0_39 = arith.constant 0 : index
    %c1_40 = arith.constant 1 : index
    %c1_41 = arith.constant 1 : index
    %c0_42 = arith.constant 0 : index
    %32 = vector.load %arg3[%c0_38, %c0_39, %c1_40, %c1_41, %c0_42] : memref<1x1x18x18x32xbf16, #tpu.memory_space<vmem>>, vector<1x1x16x16x32xbf16>
    %33 = vector.shape_cast %32 : vector<1x1x16x16x32xbf16> to vector<16x16x32xbf16>
    %34 = vector.shape_cast %33 : vector<16x16x32xbf16> to vector<256x32xbf16>
    %c0_43 = arith.constant 0 : index
    %c4 = arith.constant 4 : index
    %c0_44 = arith.constant 0 : index
    %c0_45 = arith.constant 0 : index
    %35 = vector.load %arg4[%c0_43, %c4, %c0_44, %c0_45] : memref<1x9x32x32xbf16, #tpu.memory_space<vmem>>, vector<1x1x32x32xbf16>
    %36 = vector.shape_cast %35 : vector<1x1x32x32xbf16> to vector<32x32xbf16>
    %cst_46 = arith.constant dense<0.000000e+00> : vector<256x32xf32>
    %37 = tpu.matmul %34, %36, %cst_46 {dimension_numbers = #tpu.dot_dimension_numbers<[1], [0], [0], [1], [0, 0, 1, 1], [], []>} : vector<256x32xbf16>, vector<32x32xbf16>, vector<256x32xf32> -> vector<256x32xf32>
    %38 = arith.addf %31, %37 : vector<256x32xf32>
    %c0_47 = arith.constant 0 : index
    %c0_48 = arith.constant 0 : index
    %c1_49 = arith.constant 1 : index
    %c2_50 = arith.constant 2 : index
    %c0_51 = arith.constant 0 : index
    %39 = vector.load %arg3[%c0_47, %c0_48, %c1_49, %c2_50, %c0_51] : memref<1x1x18x18x32xbf16, #tpu.memory_space<vmem>>, vector<1x1x16x16x32xbf16>
    %40 = vector.shape_cast %39 : vector<1x1x16x16x32xbf16> to vector<16x16x32xbf16>
    %41 = vector.shape_cast %40 : vector<16x16x32xbf16> to vector<256x32xbf16>
    %c0_52 = arith.constant 0 : index
    %c5 = arith.constant 5 : index
    %c0_53 = arith.constant 0 : index
    %c0_54 = arith.constant 0 : index
    %42 = vector.load %arg4[%c0_52, %c5, %c0_53, %c0_54] : memref<1x9x32x32xbf16, #tpu.memory_space<vmem>>, vector<1x1x32x32xbf16>
    %43 = vector.shape_cast %42 : vector<1x1x32x32xbf16> to vector<32x32xbf16>
    %cst_55 = arith.constant dense<0.000000e+00> : vector<256x32xf32>
    %44 = tpu.matmul %41, %43, %cst_55 {dimension_numbers = #tpu.dot_dimension_numbers<[1], [0], [0], [1], [0, 0, 1, 1], [], []>} : vector<256x32xbf16>, vector<32x32xbf16>, vector<256x32xf32> -> vector<256x32xf32>
    %45 = arith.addf %38, %44 : vector<256x32xf32>
    %c0_56 = arith.constant 0 : index
    %c0_57 = arith.constant 0 : index
    %c2_58 = arith.constant 2 : index
    %c0_59 = arith.constant 0 : index
    %c0_60 = arith.constant 0 : index
    %46 = vector.load %arg3[%c0_56, %c0_57, %c2_58, %c0_59, %c0_60] : memref<1x1x18x18x32xbf16, #tpu.memory_space<vmem>>, vector<1x1x16x16x32xbf16>
    %47 = vector.shape_cast %46 : vector<1x1x16x16x32xbf16> to vector<16x16x32xbf16>
    %48 = vector.shape_cast %47 : vector<16x16x32xbf16> to vector<256x32xbf16>
    %c0_61 = arith.constant 0 : index
    %c6 = arith.constant 6 : index
    %c0_62 = arith.constant 0 : index
    %c0_63 = arith.constant 0 : index
    %49 = vector.load %arg4[%c0_61, %c6, %c0_62, %c0_63] : memref<1x9x32x32xbf16, #tpu.memory_space<vmem>>, vector<1x1x32x32xbf16>
    %50 = vector.shape_cast %49 : vector<1x1x32x32xbf16> to vector<32x32xbf16>
    %cst_64 = arith.constant dense<0.000000e+00> : vector<256x32xf32>
    %51 = tpu.matmul %48, %50, %cst_64 {dimension_numbers = #tpu.dot_dimension_numbers<[1], [0], [0], [1], [0, 0, 1, 1], [], []>} : vector<256x32xbf16>, vector<32x32xbf16>, vector<256x32xf32> -> vector<256x32xf32>
    %52 = arith.addf %45, %51 : vector<256x32xf32>
    %c0_65 = arith.constant 0 : index
    %c0_66 = arith.constant 0 : index
    %c2_67 = arith.constant 2 : index
    %c1_68 = arith.constant 1 : index
    %c0_69 = arith.constant 0 : index
    %53 = vector.load %arg3[%c0_65, %c0_66, %c2_67, %c1_68, %c0_69] : memref<1x1x18x18x32xbf16, #tpu.memory_space<vmem>>, vector<1x1x16x16x32xbf16>
    %54 = vector.shape_cast %53 : vector<1x1x16x16x32xbf16> to vector<16x16x32xbf16>
    %55 = vector.shape_cast %54 : vector<16x16x32xbf16> to vector<256x32xbf16>
    %c0_70 = arith.constant 0 : index
    %c7 = arith.constant 7 : index
    %c0_71 = arith.constant 0 : index
    %c0_72 = arith.constant 0 : index
    %56 = vector.load %arg4[%c0_70, %c7, %c0_71, %c0_72] : memref<1x9x32x32xbf16, #tpu.memory_space<vmem>>, vector<1x1x32x32xbf16>
    %57 = vector.shape_cast %56 : vector<1x1x32x32xbf16> to vector<32x32xbf16>
    %cst_73 = arith.constant dense<0.000000e+00> : vector<256x32xf32>
    %58 = tpu.matmul %55, %57, %cst_73 {dimension_numbers = #tpu.dot_dimension_numbers<[1], [0], [0], [1], [0, 0, 1, 1], [], []>} : vector<256x32xbf16>, vector<32x32xbf16>, vector<256x32xf32> -> vector<256x32xf32>
    %59 = arith.addf %52, %58 : vector<256x32xf32>
    %c0_74 = arith.constant 0 : index
    %c0_75 = arith.constant 0 : index
    %c2_76 = arith.constant 2 : index
    %c2_77 = arith.constant 2 : index
    %c0_78 = arith.constant 0 : index
    %60 = vector.load %arg3[%c0_74, %c0_75, %c2_76, %c2_77, %c0_78] : memref<1x1x18x18x32xbf16, #tpu.memory_space<vmem>>, vector<1x1x16x16x32xbf16>
    %61 = vector.shape_cast %60 : vector<1x1x16x16x32xbf16> to vector<16x16x32xbf16>
    %62 = vector.shape_cast %61 : vector<16x16x32xbf16> to vector<256x32xbf16>
    %c0_79 = arith.constant 0 : index
    %c8 = arith.constant 8 : index
    %c0_80 = arith.constant 0 : index
    %c0_81 = arith.constant 0 : index
    %63 = vector.load %arg4[%c0_79, %c8, %c0_80, %c0_81] : memref<1x9x32x32xbf16, #tpu.memory_space<vmem>>, vector<1x1x32x32xbf16>
    %64 = vector.shape_cast %63 : vector<1x1x32x32xbf16> to vector<32x32xbf16>
    %cst_82 = arith.constant dense<0.000000e+00> : vector<256x32xf32>
    %65 = tpu.matmul %62, %64, %cst_82 {dimension_numbers = #tpu.dot_dimension_numbers<[1], [0], [0], [1], [0, 0, 1, 1], [], []>} : vector<256x32xbf16>, vector<32x32xbf16>, vector<256x32xf32> -> vector<256x32xf32>
    %66 = arith.addf %59, %65 : vector<256x32xf32>
    %c0_83 = arith.constant 0 : index
    %c0_84 = arith.constant 0 : index
    %67 = vector.load %arg7[%c0_83, %c0_84] : memref<256x32xf32, #tpu.memory_space<vmem>>, vector<256x32xf32>
    tpu.vector_store %arg7[%c0_83, %c0_84], %66 {strides = array<i32>} : memref<256x32xf32, #tpu.memory_space<vmem>>, vector<256x32xf32>,
    %c2_i32 = arith.constant 2 : i32
    %68 = arith.cmpi eq, %arg2, %c2_i32 : i32
    %69 = arith.extui %68 : i1 to i32
    %c0_i32_85 = arith.constant 0 : i32
    %70 = arith.cmpi ne, %69, %c0_i32_85 : i32
    scf.if %70 {
      %c0_86 = arith.constant 0 : index
      %c0_87 = arith.constant 0 : index
      %71 = vector.load %arg7[%c0_86, %c0_87] : memref<256x32xf32, #tpu.memory_space<vmem>>, vector<256x32xf32>
      %c0_88 = arith.constant 0 : index
      %c0_89 = arith.constant 0 : index
      %72 = vector.load %arg5[%c0_88, %c0_89] : memref<1x32xf32, #tpu.memory_space<vmem>>, vector<1x32xf32>
      %73 = vector.broadcast %72 : vector<1x32xf32> to vector<256x32xf32>
      %74 = arith.addf %71, %73 : vector<256x32xf32>
      %cst_90 = arith.constant 0.000000e+00 : f32
      %75 = vector.broadcast %cst_90 : f32 to vector<256x32xf32>
      %76 = arith.maximumf %74, %75 : vector<256x32xf32>
      %c0_91 = arith.constant 0 : index
      %c0_92 = arith.constant 0 : index
      %c0_93 = arith.constant 0 : index
      %c0_94 = arith.constant 0 : index
      %77 = vector.load %arg6[%c0_91, %c0_92, %c0_93, %c0_94] : memref<1x1x256x32xf32, #tpu.memory_space<vmem>>, vector<1x1x256x32xf32>
      %78 = vector.shape_cast %77 : vector<1x1x256x32xf32> to vector<256x32xf32>
      %79 = vector.shape_cast %76 : vector<256x32xf32> to vector<1x1x256x32xf32>
      tpu.vector_store %arg6[%c0_91, %c0_92, %c0_93, %c0_94], %79 {strides = array<i32>} : memref<1x1x256x32xf32, #tpu.memory_space<vmem>>, vector<1x1x256x32xf32>,
    } else {
    }
    return
  }
  func.func @transform_0(%arg0: i32, %arg1: i32, %arg2: i32) -> (i32, i32, i32, i32, i32) {
    %c1_i32 = arith.constant 1 : i32
    %0 = arith.muli %arg1, %c1_i32 : i32
    %1 = arith.addi %0, %arg2 : i32
    %c0_i32 = arith.constant 0 : i32
    %c0_i32_0 = arith.constant 0 : i32
    %c0_i32_1 = arith.constant 0 : i32
    %c0_i32_2 = arith.constant 0 : i32
    return %arg0, %1, %c0_i32, %c0_i32_0, %c0_i32_1 : i32, i32, i32, i32, i32
  }
  func.func @transform_1(%arg0: i32, %arg1: i32, %arg2: i32) -> (i32, i32, i32, i32) {
    %c0_i32 = arith.constant 0 : i32
    %c0_i32_0 = arith.constant 0 : i32
    %c0_i32_1 = arith.constant 0 : i32
    %c0_i32_2 = arith.constant 0 : i32
    return %arg2, %c0_i32, %c0_i32_0, %c0_i32_1 : i32, i32, i32, i32
  }
  func.func @transform_2(%arg0: i32, %arg1: i32, %arg2: i32) -> (i32, i32) {
    %c0_i32 = arith.constant 0 : i32
    %c0_i32_0 = arith.constant 0 : i32
    %c0_i32_1 = arith.constant 0 : i32
    return %c0_i32, %c0_i32_0 : i32, i32
  }
  func.func @transform_3(%arg0: i32, %arg1: i32, %arg2: i32) -> (i32, i32, i32, i32) {
    %c0_i32 = arith.constant 0 : i32
    %c0_i32_0 = arith.constant 0 : i32
    %c0_i32_1 = arith.constant 0 : i32
    return %arg0, %arg1, %c0_i32, %c0_i32_0 : i32, i32, i32, i32
  }
}

</mosaic_0001>

<llo_original>
// kernel: apply.2
$region0: #{apply.2}
  #allocation0 [shape = 'u32[]', space=smem, size = 0x4, offset = 0x4, fixed_abs, tag = 'smem constant byte address 0x4 - core index']
  #allocation1 [shape = 'u32[72,128]{1,0:T(1,128)}', space=vmem, size = 0x9000, scoped, tag = 'internal scratch']
  #allocation2 [shape = 'f32[256,32]{1,0:T(8,128)}', space=vmem, size = 0x20000, scoped, tag = 'scratch operand']
  %s0 = inlined_call_operand.vmem [shape: bf16[2,10,18,18,4], index: 0, kind: input, shape index: {}]
  %s1 = inlined_call_operand.vmem [shape: bf16[3,9,4,32], index: 1, kind: input, shape index: {}]
  %s2 = inlined_call_operand.vmem [shape: f32[1,32], index: 2, kind: input, shape index: {}]
  %s3 = inlined_call_operand.vmem [shape: bf16[2,8,256,32], index: 3, kind: output, shape index: {}]
  %s4 = sld [smem:[#allocation0]]
  $region53: #{apply.2} parent=0
    _
  %s6 = ssub.s32 1, %s4
  %s7 = scalar_select 0, %s6, %s4
  loop: start=0, step=1, limit=50
  $region2: #{apply.2} parent=0 // loop_pre_header
    _
  $region3: #{apply.2} parent=0 // loop_header
    %s9 = sphi 0, %s13
    %p10 = scmp.ge.s32.totalorder %s9, 50
    %s16 = sphi 0, %s35
    %s17 = sphi 0, %s31
    %s18 = sphi 0, %s27
    %s19 = sphi 0, %s16
    %s20 = sphi 0, %s17
    %s21 = sphi 0, %s18
    %s22 = sphi 0, %s19
    %s23 = sphi 0, %s20
    %s24 = sphi 0, %s21
    %s42 = sphi 0, %s44
    %s45 = sphi 0, %s42
    %s46 = sphi 0, %s45
    %s62 = sphi 0, %s46
    %s68 = sphi 0, %s70
    %s71 = sphi 0, %s68
    %s72 = sphi 0, %s71
    %s88 = sphi 0, %s72
    %s92 = sphi 0, %s92
    %s94 = sphi 0, %s92
    %s95 = sphi 0, %s94
    %s109 = sphi 0, %s95
    %s117 = sphi 0, %s119
    %s120 = sphi 0, %s117
    %s121 = sphi 0, %s120
    %s137 = sphi 0, %s121
  $region4: #{apply.2} parent=0 // loop_header_branch
    %12 = sbr.rel (%p10) target = $region8
  $region5: #{apply.2} parent=0 // loop_body
    %s14 = ssub.s32 %s9, 1
    %s15 = ssub.s32 %s9, 2
    %s25 = sadd.s32 1, %s18
    %p26 = scmp.ge.s32.totalorder %s25, 3
    %s27 = scalar_select %p26, 0, %s25
    %s28 = sadd.s32 1, %s17
    %s29 = scalar_select %p26, %s28, %s17
    %p30 = scmp.ge.s32.totalorder %s29, 8
    %s31 = scalar_select %p30, 0, %s29
    %s32 = sadd.s32 1, %s16
    %s33 = scalar_select %p30, %s32, %s16
    %p34 = scmp.ge.s32.totalorder %s33, 2
    %s35 = scalar_select %p34, 0, %s33
    %s36 = sadd.s32 %s17, %s18
    %s37 = sadd.s32 %s31, %s27
    %s38 = ssub.s32 %s16, %s35
    %s39 = ssub.s32 %s36, %s37
    %s40 = sor.u32 %s38, %s39
    %p41 = scmp.eq.s32.totalorder %s40, 0
    %s43 = sadd.s32 %s42, 1
    %s44 = scalar_select %p41, %s42, %s43
    %p47 = pneg %p41
    %p48 = scmp.eq.s32.totalorder %s9, 47
    %p49 = por %p47, %p48
    %p50 = scmp.ne.s32.totalorder %s42, %s45
    %p51 = scmp.eq.s32.totalorder %s9, 0
    %p52 = por %p50, %p51
    %p53 = scmp.ne.s32.totalorder %s42, %s45
    %p54 = scmp.eq.s32.totalorder %s14, 47
    %p55 = por %p53, %p54
    %p56 = scmp.ne.s32.totalorder %s45, %s46
    %p57 = scmp.eq.s32.totalorder %s14, 0
    %p58 = por %p56, %p57
    %p59 = scmp.ne.s32.totalorder %s45, %s46
    %p60 = scmp.eq.s32.totalorder %s15, 47
    %p61 = por %p59, %p60
    %p63 = scmp.ne.s32.totalorder %s46, %s62
    %p64 = scmp.eq.s32.totalorder %s15, 0
    %p65 = por %p63, %p64
    %s66 = ssub.s32 %s18, %s27
    %p67 = scmp.eq.s32.totalorder %s66, 0
    %s69 = sadd.s32 %s68, 1
    %s70 = scalar_select %p67, %s68, %s69
    %p73 = pneg %p67
    %p74 = scmp.eq.s32.totalorder %s9, 47
    %p75 = por %p73, %p74
    %p76 = scmp.ne.s32.totalorder %s68, %s71
    %p77 = scmp.eq.s32.totalorder %s9, 0
    %p78 = por %p76, %p77
    %p79 = scmp.ne.s32.totalorder %s68, %s71
    %p80 = scmp.eq.s32.totalorder %s14, 47
    %p81 = por %p79, %p80
    %p82 = scmp.ne.s32.totalorder %s71, %s72
    %p83 = scmp.eq.s32.totalorder %s14, 0
    %p84 = por %p82, %p83
    %p85 = scmp.ne.s32.totalorder %s71, %s72
    %p86 = scmp.eq.s32.totalorder %s15, 47
    %p87 = por %p85, %p86
    %p89 = scmp.ne.s32.totalorder %s72, %s88
    %p90 = scmp.eq.s32.totalorder %s15, 0
    %p91 = por %p89, %p90
    %s93 = sadd.s32 %s92, 1
    %p96 = scmp.eq.s32.totalorder %s9, 47
    %p97 = scmp.ne.s32.totalorder %s92, %s94
    %p98 = scmp.eq.s32.totalorder %s9, 0
    %p99 = por %p97, %p98
    %p100 = scmp.ne.s32.totalorder %s92, %s94
    %p101 = scmp.eq.s32.totalorder %s14, 47
    %p102 = por %p100, %p101
    %p103 = scmp.ne.s32.totalorder %s94, %s95
    %p104 = scmp.eq.s32.totalorder %s14, 0
    %p105 = por %p103, %p104
    %p106 = scmp.ne.s32.totalorder %s94, %s95
    %p107 = scmp.eq.s32.totalorder %s15, 47
    %p108 = por %p106, %p107
    %p110 = scmp.ne.s32.totalorder %s95, %s109
    %p111 = scmp.eq.s32.totalorder %s15, 0
    %p112 = por %p110, %p111
    %s113 = ssub.s32 %s16, %s35
    %s114 = ssub.s32 %s17, %s31
    %s115 = sor.u32 %s113, %s114
    %p116 = scmp.eq.s32.totalorder %s115, 0
    %s118 = sadd.s32 %s117, 1
    %s119 = scalar_select %p116, %s117, %s118
    %p122 = pneg %p116
    %p123 = scmp.eq.s32.totalorder %s9, 47
    %p124 = por %p122, %p123
    %p125 = scmp.ne.s32.totalorder %s117, %s120
    %p126 = scmp.eq.s32.totalorder %s9, 0
    %p127 = por %p125, %p126
    %p128 = scmp.ne.s32.totalorder %s117, %s120
    %p129 = scmp.eq.s32.totalorder %s14, 47
    %p130 = por %p128, %p129
    %p131 = scmp.ne.s32.totalorder %s120, %s121
    %p132 = scmp.eq.s32.totalorder %s14, 0
    %p133 = por %p131, %p132
    %p134 = scmp.ne.s32.totalorder %s120, %s121
    %p135 = scmp.eq.s32.totalorder %s15, 47
    %p136 = por %p134, %p135
    %p138 = scmp.ne.s32.totalorder %s121, %s137
    %p139 = scmp.eq.s32.totalorder %s15, 0
    %p140 = por %p138, %p139
    %p141 = scmp.le.s32.totalorder 1, %s9
    %p142 = scmp.lt.s32.totalorder %s9, 49
    %p143 = pnand %p141, %p142
    %p144 = pneg %p143
    // Predicated region
    $region9: #{apply.2} parent=5 // pred_check
      _
    $region10: #{apply.2} parent=5 // pred_check_branch
      %146 = sbr.rel (%p143) target = $region12
    $region11: #{apply.2} parent=5 // pred_region
      %s147 = ssub.s32 %s9, 1
      // Predicated region
      $region13: #{apply.2} parent=11 // pred_check
        %p148 = pneg %p105
      $region14: #{apply.2} parent=11 // pred_check_branch
        %150 = sbr.rel (%p148) target = $region16
      $region15: #{apply.2} parent=11 // pred_region
        _
      $region16: #{apply.2} parent=11 // pred_fallthru
        _
    $region12: #{apply.2} parent=5 // pred_fallthru
      _
    %p151 = scmp.lt.s32.totalorder %s9, 48
    // Predicated region
    $region17: #{apply.2} parent=5 // pred_check
      %p152 = pneg %p151
    $region18: #{apply.2} parent=5 // pred_check_branch
      %154 = sbr.rel (%p152) target = $region20
    $region19: #{apply.2} parent=5 // pred_region
      // Predicated region
      $region21: #{apply.2} parent=19 // pred_check
        %p155 = pneg %p52
      $region22: #{apply.2} parent=19 // pred_check_branch
        %157 = sbr.rel (%p155) target = $region24
      $region23: #{apply.2} parent=19 // pred_region
        %s158 = sadd.s32 %s17, %s18
        %p159 = scmp.lt.s32.totalorder %s16, 1
        %s160 = scalar_select %p159, %s16, 1
        %p161 = scmp.lt.s32.totalorder %s158, 9
        %s162 = scalar_select %p161, %s158, 9
        %s163 = smul.addr %s162, 54
        %s164 = smul.addr %s160, 540
        %s165 = sadd.s32 %s163, %s164
        %s166 = smul.addr %s165, 4
        %s167 = scalar_lea.vmem %s0, %s166
        %s168 = sadd.s32 %s17, %s18
      $region24: #{apply.2} parent=19 // pred_fallthru
        _
      // Predicated region
      $region25: #{apply.2} parent=19 // pred_check
        %p169 = pneg %p78
      $region26: #{apply.2} parent=19 // pred_check_branch
        %171 = sbr.rel (%p169) target = $region28
      $region27: #{apply.2} parent=19 // pred_region
        %p172 = scmp.lt.s32.totalorder %s18, 2
        %s173 = scalar_select %p172, %s18, 2
        %s174 = smul.addr %s173, 9
        %s175 = smul.addr %s174, 2
        %s176 = scalar_lea.vmem %s1, %s175
      $region28: #{apply.2} parent=19 // pred_fallthru
        _
    $region20: #{apply.2} parent=5 // pred_fallthru
      _
    %p177 = scmp.le.s32.totalorder 1, %s9
    %p178 = scmp.lt.s32.totalorder %s9, 49
    %p179 = pnand %p177, %p178
    %p180 = pneg %p179
    // Predicated region
    $region29: #{apply.2} parent=5 // pred_check
      _
    $region30: #{apply.2} parent=5 // pred_check_branch
      %182 = sbr.rel (%p179) target = $region32
    $region31: #{apply.2} parent=5 // pred_region
      %s183 = ssub.s32 %s9, 1
      %s184 = sadd.s32 %s20, %s21
      %p185 = scmp.lt.s32.totalorder %s19, 1
      %s186 = scalar_select %p185, %s19, 1
      %p187 = scmp.lt.s32.totalorder %s184, 9
      %s188 = scalar_select %p187, %s184, 9
      %s189 = smul.addr %s188, 54
      %s190 = smul.addr %s186, 540
      %s191 = sadd.s32 %s189, %s190
      %s192 = smul.addr %s191, 4
      %s193 = scalar_lea.vmem %s0, %s192
      %p194 = pneg %p58
      %p195 = pneg %p55
      %p196 = scmp.lt.s32.totalorder %s21, 2
      %s197 = scalar_select %p196, %s21, 2
      %s198 = smul.addr %s197, 9
      %s199 = smul.addr %s198, 2
      %s200 = scalar_lea.vmem %s1, %s199
      %p201 = pneg %p84
      %p202 = pneg %p81
      %p203 = pneg %p105
      %p204 = pneg %p102
      %p205 = pneg %p133
      %p206 = pneg %p130
      %p207 = scmp.lt.s32.totalorder %s19, 1
      %s208 = scalar_select %p207, %s19, 1
      %p209 = scmp.lt.s32.totalorder %s20, 7
      %s210 = scalar_select %p209, %s20, 7
      %s211 = smul.addr %s210, 32
      %s212 = smul.addr %s208, 256
      %s213 = sadd.s32 %s211, %s212
      %s214 = smul.addr %s213, 4
      %s215 = scalar_lea.vmem %s3, %s214
      %s216 = sadd.s32 %s20, %s21
      %p217 = scmp.lt.s32.totalorder %s19, 1
      %s218 = scalar_select %p217, %s19, 1
      %p219 = scmp.lt.s32.totalorder %s216, 9
      %s220 = scalar_select %p219, %s216, 9
      %s221 = smul.addr %s220, 54
      %s222 = smul.addr %s218, 540
      %s223 = sadd.s32 %s221, %s222
      %s224 = smul.addr %s223, 4
      %s225 = scalar_lea.vmem %s0, %s224
      %s226 = sadd.s32 %s20, %s21
      %p227 = scmp.lt.s32.totalorder %s21, 2
      %s228 = scalar_select %p227, %s21, 2
      %s229 = smul.addr %s228, 9
      %s230 = smul.addr %s229, 2
      %s231 = scalar_lea.vmem %s1, %s230
      %p232 = scmp.lt.s32.totalorder %s19, 1
      %s233 = scalar_select %p232, %s19, 1
      %p234 = scmp.lt.s32.totalorder %s20, 7
      %s235 = scalar_select %p234, %s20, 7
      %s236 = smul.addr %s235, 32
      %s237 = smul.addr %s233, 256
      %s238 = sadd.s32 %s236, %s237
      %s239 = smul.addr %s238, 4
      %s240 = scalar_lea.vmem %s3, %s239
      %p242 = scmp.eq.s32.totalorder %s21, 0
      // Predicated region
      $region33: #{apply.2} parent=31 // pred_check
        %p243 = pneg %p242
      $region34: #{apply.2} parent=31 // pred_check_branch
        %245 = sbr.rel (%p243) target = $region36
      $region35: #{apply.2} parent=31 // pred_region
        %vm246 = vcmask 261120
        %247 = vst.msk [vmem:[#allocation2] sm:$0xff] %vm246, 0.0
        %248 = vst.msk [vmem:[#allocation2 + $0x8] sm:$0xff] %vm246, 0.0
        %249 = vst.msk [vmem:[#allocation2 + $0x10] sm:$0xff] %vm246, 0.0
        %250 = vst.msk [vmem:[#allocation2 + $0x18] sm:$0xff] %vm246, 0.0
        %251 = vst.msk [vmem:[#allocation2 + $0x20] sm:$0xff] %vm246, 0.0
        %252 = vst.msk [vmem:[#allocation2 + $0x28] sm:$0xff] %vm246, 0.0
        %253 = vst.msk [vmem:[#allocation2 + $0x30] sm:$0xff] %vm246, 0.0
        %254 = vst.msk [vmem:[#allocation2 + $0x38] sm:$0xff] %vm246, 0.0
        %255 = vst.msk [vmem:[#allocation2 + $0x40] sm:$0xff] %vm246, 0.0
        %256 = vst.msk [vmem:[#allocation2 + $0x48] sm:$0xff] %vm246, 0.0
        %257 = vst.msk [vmem:[#allocation2 + $0x50] sm:$0xff] %vm246, 0.0
        %258 = vst.msk [vmem:[#allocation2 + $0x58] sm:$0xff] %vm246, 0.0
        %259 = vst.msk [vmem:[#allocation2 + $0x60] sm:$0xff] %vm246, 0.0
        %260 = vst.msk [vmem:[#allocation2 + $0x68] sm:$0xff] %vm246, 0.0
        %261 = vst.msk [vmem:[#allocation2 + $0x70] sm:$0xff] %vm246, 0.0
        %262 = vst.msk [vmem:[#allocation2 + $0x78] sm:$0xff] %vm246, 0.0
        %263 = vst.msk [vmem:[#allocation2 + $0x80] sm:$0xff] %vm246, 0.0
        %264 = vst.msk [vmem:[#allocation2 + $0x88] sm:$0xff] %vm246, 0.0
        %265 = vst.msk [vmem:[#allocation2 + $0x90] sm:$0xff] %vm246, 0.0
        %266 = vst.msk [vmem:[#allocation2 + $0x98] sm:$0xff] %vm246, 0.0
        %267 = vst.msk [vmem:[#allocation2 + $0xa0] sm:$0xff] %vm246, 0.0
        %268 = vst.msk [vmem:[#allocation2 + $0xa8] sm:$0xff] %vm246, 0.0
        %269 = vst.msk [vmem:[#allocation2 + $0xb0] sm:$0xff] %vm246, 0.0
        %270 = vst.msk [vmem:[#allocation2 + $0xb8] sm:$0xff] %vm246, 0.0
        %271 = vst.msk [vmem:[#allocation2 + $0xc0] sm:$0xff] %vm246, 0.0
        %272 = vst.msk [vmem:[#allocation2 + $0xc8] sm:$0xff] %vm246, 0.0
        %273 = vst.msk [vmem:[#allocation2 + $0xd0] sm:$0xff] %vm246, 0.0
        %274 = vst.msk [vmem:[#allocation2 + $0xd8] sm:$0xff] %vm246, 0.0
        %275 = vst.msk [vmem:[#allocation2 + $0xe0] sm:$0xff] %vm246, 0.0
        %276 = vst.msk [vmem:[#allocation2 + $0xe8] sm:$0xff] %vm246, 0.0
        %277 = vst.msk [vmem:[#allocation2 + $0xf0] sm:$0xff] %vm246, 0.0
        %278 = vst.msk [vmem:[#allocation2 + $0xf8] sm:$0xff] %vm246, 0.0
      $region36: #{apply.2} parent=31 // pred_fallthru
        _
      %v279 = vld [vmem:[#allocation2] sm:$0xff]
      %v280 = vld [vmem:[#allocation2 + $0x8] sm:$0xff]
      %v281 = vld [vmem:[#allocation2 + $0x10] sm:$0xff]
      %v282 = vld [vmem:[#allocation2 + $0x18] sm:$0xff]
      %v283 = vld [vmem:[#allocation2 + $0x20] sm:$0xff]
      %v284 = vld [vmem:[#allocation2 + $0x28] sm:$0xff]
      %v285 = vld [vmem:[#allocation2 + $0x30] sm:$0xff]
      %v286 = vld [vmem:[#allocation2 + $0x38] sm:$0xff]
      %v287 = vld [vmem:[#allocation2 + $0x40] sm:$0xff]
      %v288 = vld [vmem:[#allocation2 + $0x48] sm:$0xff]
      %v289 = vld [vmem:[#allocation2 + $0x50] sm:$0xff]
      %v290 = vld [vmem:[#allocation2 + $0x58] sm:$0xff]
      %v291 = vld [vmem:[#allocation2 + $0x60] sm:$0xff]
      %v292 = vld [vmem:[#allocation2 + $0x68] sm:$0xff]
      %v293 = vld [vmem:[#allocation2 + $0x70] sm:$0xff]
      %v294 = vld [vmem:[#allocation2 + $0x78] sm:$0xff]
      %v295 = vld [vmem:[#allocation2 + $0x80] sm:$0xff]
      %v296 = vld [vmem:[#allocation2 + $0x88] sm:$0xff]
      %v297 = vld [vmem:[#allocation2 + $0x90] sm:$0xff]
      %v298 = vld [vmem:[#allocation2 + $0x98] sm:$0xff]
      %v299 = vld [vmem:[#allocation2 + $0xa0] sm:$0xff]
      %v300 = vld [vmem:[#allocation2 + $0xa8] sm:$0xff]
      %v301 = vld [vmem:[#allocation2 + $0xb0] sm:$0xff]
      %v302 = vld [vmem:[#allocation2 + $0xb8] sm:$0xff]
      %v303 = vld [vmem:[#allocation2 + $0xc0] sm:$0xff]
      %v304 = vld [vmem:[#allocation2 + $0xc8] sm:$0xff]
      %v305 = vld [vmem:[#allocation2 + $0xd0] sm:$0xff]
      %v306 = vld [vmem:[#allocation2 + $0xd8] sm:$0xff]
      %v307 = vld [vmem:[#allocation2 + $0xe0] sm:$0xff]
      %v308 = vld [vmem:[#allocation2 + $0xe8] sm:$0xff]
      %v309 = vld [vmem:[#allocation2 + $0xf0] sm:$0xff]
      %v310 = vld [vmem:[#allocation2 + $0xf8] sm:$0xff]
      %v311 = vld [vmem:[%s225] sm:$0xf]
      %v312 = vld [vmem:[%s225 + $0x4] sm:$0xf]
      %v313 = vld [vmem:[%s225 + $0xc] sm:$0xf]
      %v314 = vld [vmem:[%s225 + $0x10] sm:$0xf]
      %v315 = vld [vmem:[%s225 + $0x18] sm:$0xf]
      %v316 = vld [vmem:[%s225 + $0x1c] sm:$0xf]
      %v317 = vld [vmem:[%s225 + $0x24] sm:$0xf]
      %v318 = vld [vmem:[%s225 + $0x28] sm:$0xf]
      %v319 = vld [vmem:[%s225 + $0x30] sm:$0xf]
      %v320 = vld [vmem:[%s225 + $0x34] sm:$0xf]
      %v321 = vld [vmem:[%s225 + $0x3c] sm:$0xf]
      %v322 = vld [vmem:[%s225 + $0x40] sm:$0xf]
      %v323 = vld [vmem:[%s225 + $0x48] sm:$0xf]
      %v324 = vld [vmem:[%s225 + $0x4c] sm:$0xf]
      %v325 = vld [vmem:[%s225 + $0x54] sm:$0xf]
      %v326 = vld [vmem:[%s225 + $0x58] sm:$0xf]
      %v327 = vld [vmem:[%s225 + $0x60] sm:$0xf]
      %v328 = vld [vmem:[%s225 + $0x64] sm:$0xf]
      %v329 = vld [vmem:[%s225 + $0x6c] sm:$0xf]
      %v330 = vld [vmem:[%s225 + $0x70] sm:$0xf]
      %v331 = vld [vmem:[%s225 + $0x78] sm:$0xf]
      %v332 = vld [vmem:[%s225 + $0x7c] sm:$0xf]
      %v333 = vld [vmem:[%s225 + $0x84] sm:$0xf]
      %v334 = vld [vmem:[%s225 + $0x88] sm:$0xf]
      %v335 = vld [vmem:[%s225 + $0x90] sm:$0xf]
      %v336 = vld [vmem:[%s225 + $0x94] sm:$0xf]
      %v337 = vld [vmem:[%s225 + $0x9c] sm:$0xf]
      %v338 = vld [vmem:[%s225 + $0xa0] sm:$0xf]
      %v339 = vld [vmem:[%s225 + $0xa8] sm:$0xf]
      %v340 = vld [vmem:[%s225 + $0xac] sm:$0xf]
      %v341 = vld [vmem:[%s225 + $0xb4] sm:$0xf]
      %v342 = vld [vmem:[%s225 + $0xb8] sm:$0xf]
      %v343 = vld [vmem:[%s231] sm:$0x3]
      %v376 = vunpack.c.l.b16 %v311
      %v377 = vunpack.c.l.b16 %v312
      %v378 = vunpack.c.l.b16 %v313
      %v379 = vunpack.c.l.b16 %v314
      %v380 = vunpack.c.l.b16 %v315
      %v381 = vunpack.c.l.b16 %v316
      %v382 = vunpack.c.l.b16 %v317
      %v383 = vunpack.c.l.b16 %v318
      %v384 = vunpack.c.l.b16 %v319
      %v385 = vunpack.c.l.b16 %v320
      %v386 = vunpack.c.l.b16 %v321
      %v387 = vunpack.c.l.b16 %v322
      %v388 = vunpack.c.l.b16 %v323
      %v389 = vunpack.c.l.b16 %v324
      %v390 = vunpack.c.l.b16 %v325
      %v391 = vunpack.c.l.b16 %v326
      %v392 = vunpack.c.l.b16 %v327
      %v393 = vunpack.c.l.b16 %v328
      %v394 = vunpack.c.l.b16 %v329
      %v395 = vunpack.c.l.b16 %v330
      %v396 = vunpack.c.l.b16 %v331
      %v397 = vunpack.c.l.b16 %v332
      %v398 = vunpack.c.l.b16 %v333
      %v399 = vunpack.c.l.b16 %v334
      %v400 = vunpack.c.l.b16 %v335
      %v401 = vunpack.c.l.b16 %v336
      %v402 = vunpack.c.l.b16 %v337
      %v403 = vunpack.c.l.b16 %v338
      %v404 = vunpack.c.l.b16 %v339
      %v405 = vunpack.c.l.b16 %v340
      %v406 = vunpack.c.l.b16 %v341
      %v407 = vunpack.c.l.b16 %v342
      %v408 = vpack.c.b16 %v377, %v376
      %v409 = vpack.c.b16 %v379, %v378
      %v410 = vpack.c.b16 %v381, %v380
      %v411 = vpack.c.b16 %v383, %v382
      %v412 = vpack.c.b16 %v385, %v384
      %v413 = vpack.c.b16 %v387, %v386
      %v414 = vpack.c.b16 %v389, %v388
      %v415 = vpack.c.b16 %v391, %v390
      %v416 = vpack.c.b16 %v393, %v392
      %v417 = vpack.c.b16 %v395, %v394
      %v418 = vpack.c.b16 %v397, %v396
      %v419 = vpack.c.b16 %v399, %v398
      %v420 = vpack.c.b16 %v401, %v400
      %v421 = vpack.c.b16 %v403, %v402
      %v422 = vpack.c.b16 %v405, %v404
      %v423 = vpack.c.b16 %v407, %v406
      %vm424 = vcmask 31744
      %v426 = vsel %vm424, %v408, 0
      %v429 = vsel %vm424, %v409, 0
      %v432 = vsel %vm424, %v410, 0
      %v435 = vsel %vm424, %v411, 0
      %v438 = vsel %vm424, %v412, 0
      %v441 = vsel %vm424, %v413, 0
      %v444 = vsel %vm424, %v414, 0
      %v447 = vsel %vm424, %v415, 0
      %v450 = vsel %vm424, %v416, 0
      %v453 = vsel %vm424, %v417, 0
      %v456 = vsel %vm424, %v418, 0
      %v459 = vsel %vm424, %v419, 0
      %v462 = vsel %vm424, %v420, 0
      %v465 = vsel %vm424, %v421, 0
      %v468 = vsel %vm424, %v422, 0
      %v471 = vsel %vm424, %v423, 0
      %vm473 = vcmask 1041408
      %v475 = vsel %vm473, %v343, 0
      %477 = vmatpush.bf16.msra.mxu0 0
      %478 = vmatpush.bf16.msra.mxu0 0
      %479 = vmatpush.bf16.msra.mxu0 0
      %480 = vmatpush.bf16.msra.mxu0 0
      %481 = vmatpush.bf16.msra.mxu0 0
      %482 = vmatpush.bf16.msra.mxu0 0
      %483 = vmatpush.bf16.msra.mxu0 0
      %484 = vmatpush.bf16.msra.mxu0 %v475
      %485 = vmatmul.bf16.gmra.mxu0 %v426
      %v486 = vpop.f32.mrf.mxu0
      %v487 = vadd.f32 0.0, %v486
      %v488 = vpop.f32.mrf.mxu0
      %v489 = vadd.f32 0.0, %v488
      %490 = vmatmul.bf16.gmra.mxu0 %v429
      %v491 = vpop.f32.mrf.mxu0
      %v492 = vadd.f32 0.0, %v491
      %v493 = vpop.f32.mrf.mxu0
      %v494 = vadd.f32 0.0, %v493
      %495 = vmatmul.bf16.gmra.mxu0 %v432
      %v496 = vpop.f32.mrf.mxu0
      %v497 = vadd.f32 0.0, %v496
      %v498 = vpop.f32.mrf.mxu0
      %v499 = vadd.f32 0.0, %v498
      %500 = vmatmul.bf16.gmra.mxu0 %v435
      %v501 = vpop.f32.mrf.mxu0
      %v502 = vadd.f32 0.0, %v501
      %v503 = vpop.f32.mrf.mxu0
      %v504 = vadd.f32 0.0, %v503
      %505 = vmatmul.bf16.gmra.mxu0 %v438
      %v506 = vpop.f32.mrf.mxu0
      %v507 = vadd.f32 0.0, %v506
      %v508 = vpop.f32.mrf.mxu0
      %v509 = vadd.f32 0.0, %v508
      %510 = vmatmul.bf16.gmra.mxu0 %v441
      %v511 = vpop.f32.mrf.mxu0
      %v512 = vadd.f32 0.0, %v511
      %v513 = vpop.f32.mrf.mxu0
      %v514 = vadd.f32 0.0, %v513
      %515 = vmatmul.bf16.gmra.mxu0 %v444
      %v516 = vpop.f32.mrf.mxu0
      %v517 = vadd.f32 0.0, %v516
      %v518 = vpop.f32.mrf.mxu0
      %v519 = vadd.f32 0.0, %v518
      %520 = vmatmul.bf16.gmra.mxu0 %v447
      %v521 = vpop.f32.mrf.mxu0
      %v522 = vadd.f32 0.0, %v521
      %v523 = vpop.f32.mrf.mxu0
      %v524 = vadd.f32 0.0, %v523
      %525 = vmatmul.bf16.gmra.mxu0 %v450
      %v526 = vpop.f32.mrf.mxu0
      %v527 = vadd.f32 0.0, %v526
      %v528 = vpop.f32.mrf.mxu0
      %v529 = vadd.f32 0.0, %v528
      %530 = vmatmul.bf16.gmra.mxu0 %v453
      %v531 = vpop.f32.mrf.mxu0
      %v532 = vadd.f32 0.0, %v531
      %v533 = vpop.f32.mrf.mxu0
      %v534 = vadd.f32 0.0, %v533
      %535 = vmatmul.bf16.gmra.mxu0 %v456
      %v536 = vpop.f32.mrf.mxu0
      %v537 = vadd.f32 0.0, %v536
      %v538 = vpop.f32.mrf.mxu0
      %v539 = vadd.f32 0.0, %v538
      %540 = vmatmul.bf16.gmra.mxu0 %v459
      %v541 = vpop.f32.mrf.mxu0
      %v542 = vadd.f32 0.0, %v541
      %v543 = vpop.f32.mrf.mxu0
      %v544 = vadd.f32 0.0, %v543
      %545 = vmatmul.bf16.gmra.mxu0 %v462
      %v546 = vpop.f32.mrf.mxu0
      %v547 = vadd.f32 0.0, %v546
      %v548 = vpop.f32.mrf.mxu0
      %v549 = vadd.f32 0.0, %v548
      %550 = vmatmul.bf16.gmra.mxu0 %v465
      %v551 = vpop.f32.mrf.mxu0
      %v552 = vadd.f32 0.0, %v551
      %v553 = vpop.f32.mrf.mxu0
      %v554 = vadd.f32 0.0, %v553
      %555 = vmatmul.bf16.gmra.mxu0 %v468
      %v556 = vpop.f32.mrf.mxu0
      %v557 = vadd.f32 0.0, %v556
      %v558 = vpop.f32.mrf.mxu0
      %v559 = vadd.f32 0.0, %v558
      %560 = vmatmul.bf16.gmra.mxu0 %v471
      %v561 = vpop.f32.mrf.mxu0
      %v562 = vadd.f32 0.0, %v561
      %v563 = vpop.f32.mrf.mxu0
      %v564 = vadd.f32 0.0, %v563
      %565 = vdwg.mxu0
      %v566 = vadd.f32 %v279, %v487
      %v567 = vadd.f32 %v280, %v489
      %v568 = vadd.f32 %v281, %v492
      %v569 = vadd.f32 %v282, %v494
      %v570 = vadd.f32 %v283, %v497
      %v571 = vadd.f32 %v284, %v499
      %v572 = vadd.f32 %v285, %v502
      %v573 = vadd.f32 %v286, %v504
      %v574 = vadd.f32 %v287, %v507
      %v575 = vadd.f32 %v288, %v509
      %v576 = vadd.f32 %v289, %v512
      %v577 = vadd.f32 %v290, %v514
      %v578 = vadd.f32 %v291, %v517
      %v579 = vadd.f32 %v292, %v519
      %v580 = vadd.f32 %v293, %v522
      %v581 = vadd.f32 %v294, %v524
      %v582 = vadd.f32 %v295, %v527
      %v583 = vadd.f32 %v296, %v529
      %v584 = vadd.f32 %v297, %v532
      %v585 = vadd.f32 %v298, %v534
      %v586 = vadd.f32 %v299, %v537
      %v587 = vadd.f32 %v300, %v539
      %v588 = vadd.f32 %v301, %v542
      %v589 = vadd.f32 %v302, %v544
      %v590 = vadd.f32 %v303, %v547
      %v591 = vadd.f32 %v304, %v549
      %v592 = vadd.f32 %v305, %v552
      %v593 = vadd.f32 %v306, %v554
      %v594 = vadd.f32 %v307, %v557
      %v595 = vadd.f32 %v308, %v559
      %v596 = vadd.f32 %v309, %v562
      %v597 = vadd.f32 %v310, %v564
      %v598 = vld [vmem:[%s225] sm:$0xf]
      %v599 = vld [vmem:[%s225 + $0x4] sm:$0xf]
      %v600 = vld [vmem:[%s225 + $0x8] sm:$0x1]
      %v601 = vld [vmem:[%s225 + $0xc] sm:$0xf]
      %v602 = vld [vmem:[%s225 + $0x10] sm:$0xf]
      %v603 = vld [vmem:[%s225 + $0x14] sm:$0x1]
      %v604 = vld [vmem:[%s225 + $0x18] sm:$0xf]
      %v605 = vld [vmem:[%s225 + $0x1c] sm:$0xf]
      %v606 = vld [vmem:[%s225 + $0x20] sm:$0x1]
      %v607 = vld [vmem:[%s225 + $0x24] sm:$0xf]
      %v608 = vld [vmem:[%s225 + $0x28] sm:$0xf]
      %v609 = vld [vmem:[%s225 + $0x2c] sm:$0x1]
      %v610 = vld [vmem:[%s225 + $0x30] sm:$0xf]
      %v611 = vld [vmem:[%s225 + $0x34] sm:$0xf]
      %v612 = vld [vmem:[%s225 + $0x38] sm:$0x1]
      %v613 = vld [vmem:[%s225 + $0x3c] sm:$0xf]
      %v614 = vld [vmem:[%s225 + $0x40] sm:$0xf]
      %v615 = vld [vmem:[%s225 + $0x44] sm:$0x1]
      %v616 = vld [vmem:[%s225 + $0x48] sm:$0xf]
      %v617 = vld [vmem:[%s225 + $0x4c] sm:$0xf]
      %v618 = vld [vmem:[%s225 + $0x50] sm:$0x1]
      %v619 = vld [vmem:[%s225 + $0x54] sm:$0xf]
      %v620 = vld [vmem:[%s225 + $0x58] sm:$0xf]
      %v621 = vld [vmem:[%s225 + $0x5c] sm:$0x1]
      %v622 = vld [vmem:[%s225 + $0x60] sm:$0xf]
      %v623 = vld [vmem:[%s225 + $0x64] sm:$0xf]
      %v624 = vld [vmem:[%s225 + $0x68] sm:$0x1]
      %v625 = vld [vmem:[%s225 + $0x6c] sm:$0xf]
      %v626 = vld [vmem:[%s225 + $0x70] sm:$0xf]
      %v627 = vld [vmem:[%s225 + $0x74] sm:$0x1]
      %v628 = vld [vmem:[%s225 + $0x78] sm:$0xf]
      %v629 = vld [vmem:[%s225 + $0x7c] sm:$0xf]
      %v630 = vld [vmem:[%s225 + $0x80] sm:$0x1]
      %v631 = vld [vmem:[%s225 + $0x84] sm:$0xf]
      %v632 = vld [vmem:[%s225 + $0x88] sm:$0xf]
      %v633 = vld [vmem:[%s225 + $0x8c] sm:$0x1]
      %v634 = vld [vmem:[%s225 + $0x90] sm:$0xf]
      %v635 = vld [vmem:[%s225 + $0x94] sm:$0xf]
      %v636 = vld [vmem:[%s225 + $0x98] sm:$0x1]
      %v637 = vld [vmem:[%s225 + $0x9c] sm:$0xf]
      %v638 = vld [vmem:[%s225 + $0xa0] sm:$0xf]
      %v639 = vld [vmem:[%s225 + $0xa4] sm:$0x1]
      %v640 = vld [vmem:[%s225 + $0xa8] sm:$0xf]
      %v641 = vld [vmem:[%s225 + $0xac] sm:$0xf]
      %v642 = vld [vmem:[%s225 + $0xb0] sm:$0x1]
      %v643 = vld [vmem:[%s225 + $0xb4] sm:$0xf]
      %v644 = vld [vmem:[%s225 + $0xb8] sm:$0xf]
      %v645 = vld [vmem:[%s225 + $0xbc] sm:$0x1]
      %vm646 = vsmask.f32 3328
      %vm647 = vsmask.f32 7440
      %vm648 = vmor %vm646, %vm647
      %v650 = vshrl.u32 %v598, 16
      %v652 = vrot.slane %v650, 4
      %v653 = vshll.u32 %v598, 16
      %v655 = vrot.slane %v653, 5
      %v656 = vor.u32 %v652, %v655
      %v657 = vrot.slane %v656, 4
      %v659 = vshll.u32 %v599, 16
      %v661 = vrot.slane %v659, 5
      %v662 = vsel %vm648, %v657, %v661
      %v663 = vshrl.u32 %v599, 16
      %v665 = vrot.slane %v663, 4
      %v666 = vor.u32 %v665, %v661
      %v667 = vrot.slane %v666, 4
      %v669 = vshll.u32 %v600, 16
      %v671 = vrot.slane %v669, 5
      %v672 = vsel %vm648, %v667, %v671
      %v674 = vshrl.u32 %v601, 16
      %v676 = vrot.slane %v674, 4
      %v677 = vshll.u32 %v601, 16
      %v679 = vrot.slane %v677, 5
      %v680 = vor.u32 %v676, %v679
      %v681 = vrot.slane %v680, 4
      %v683 = vshll.u32 %v602, 16
      %v685 = vrot.slane %v683, 5
      %v686 = vsel %vm648, %v681, %v685
      %v687 = vshrl.u32 %v602, 16
      %v689 = vrot.slane %v687, 4
      %v690 = vor.u32 %v689, %v685
      %v691 = vrot.slane %v690, 4
      %v693 = vshll.u32 %v603, 16
      %v695 = vrot.slane %v693, 5
      %v696 = vsel %vm648, %v691, %v695
      %v698 = vshrl.u32 %v604, 16
      %v700 = vrot.slane %v698, 4
      %v701 = vshll.u32 %v604, 16
      %v703 = vrot.slane %v701, 5
      %v704 = vor.u32 %v700, %v703
      %v705 = vrot.slane %v704, 4
      %v707 = vshll.u32 %v605, 16
      %v709 = vrot.slane %v707, 5
      %v710 = vsel %vm648, %v705, %v709
      %v711 = vshrl.u32 %v605, 16
      %v713 = vrot.slane %v711, 4
      %v714 = vor.u32 %v713, %v709
      %v715 = vrot.slane %v714, 4
      %v717 = vshll.u32 %v606, 16
      %v719 = vrot.slane %v717, 5
      %v720 = vsel %vm648, %v715, %v719
      %v722 = vshrl.u32 %v607, 16
      %v724 = vrot.slane %v722, 4
      %v725 = vshll.u32 %v607, 16
      %v727 = vrot.slane %v725, 5
      %v728 = vor.u32 %v724, %v727
      %v729 = vrot.slane %v728, 4
      %v731 = vshll.u32 %v608, 16
      %v733 = vrot.slane %v731, 5
      %v734 = vsel %vm648, %v729, %v733
      %v735 = vshrl.u32 %v608, 16
      %v737 = vrot.slane %v735, 4
      %v738 = vor.u32 %v737, %v733
      %v739 = vrot.slane %v738, 4
      %v741 = vshll.u32 %v609, 16
      %v743 = vrot.slane %v741, 5
      %v744 = vsel %vm648, %v739, %v743
      %v746 = vshrl.u32 %v610, 16
      %v748 = vrot.slane %v746, 4
      %v749 = vshll.u32 %v610, 16
      %v751 = vrot.slane %v749, 5
      %v752 = vor.u32 %v748, %v751
      %v753 = vrot.slane %v752, 4
      %v755 = vshll.u32 %v611, 16
      %v757 = vrot.slane %v755, 5
      %v758 = vsel %vm648, %v753, %v757
      %v759 = vshrl.u32 %v611, 16
      %v761 = vrot.slane %v759, 4
      %v762 = vor.u32 %v761, %v757
      %v763 = vrot.slane %v762, 4
      %v765 = vshll.u32 %v612, 16
      %v767 = vrot.slane %v765, 5
      %v768 = vsel %vm648, %v763, %v767
      %v770 = vshrl.u32 %v613, 16
      %v772 = vrot.slane %v770, 4
      %v773 = vshll.u32 %v613, 16
      %v775 = vrot.slane %v773, 5
      %v776 = vor.u32 %v772, %v775
      %v777 = vrot.slane %v776, 4
      %v779 = vshll.u32 %v614, 16
      %v781 = vrot.slane %v779, 5
      %v782 = vsel %vm648, %v777, %v781
      %v783 = vshrl.u32 %v614, 16
      %v785 = vrot.slane %v783, 4
      %v786 = vor.u32 %v785, %v781
      %v787 = vrot.slane %v786, 4
      %v789 = vshll.u32 %v615, 16
      %v791 = vrot.slane %v789, 5
      %v792 = vsel %vm648, %v787, %v791
      %v794 = vshrl.u32 %v616, 16
      %v796 = vrot.slane %v794, 4
      %v797 = vshll.u32 %v616, 16
      %v799 = vrot.slane %v797, 5
      %v800 = vor.u32 %v796, %v799
      %v801 = vrot.slane %v800, 4
      %v803 = vshll.u32 %v617, 16
      %v805 = vrot.slane %v803, 5
      %v806 = vsel %vm648, %v801, %v805
      %v807 = vshrl.u32 %v617, 16
      %v809 = vrot.slane %v807, 4
      %v810 = vor.u32 %v809, %v805
      %v811 = vrot.slane %v810, 4
      %v813 = vshll.u32 %v618, 16
      %v815 = vrot.slane %v813, 5
      %v816 = vsel %vm648, %v811, %v815
      %v818 = vshrl.u32 %v619, 16
      %v820 = vrot.slane %v818, 4
      %v821 = vshll.u32 %v619, 16
      %v823 = vrot.slane %v821, 5
      %v824 = vor.u32 %v820, %v823
      %v825 = vrot.slane %v824, 4
      %v827 = vshll.u32 %v620, 16
      %v829 = vrot.slane %v827, 5
      %v830 = vsel %vm648, %v825, %v829
      %v831 = vshrl.u32 %v620, 16
      %v833 = vrot.slane %v831, 4
      %v834 = vor.u32 %v833, %v829
      %v835 = vrot.slane %v834, 4
      %v837 = vshll.u32 %v621, 16
      %v839 = vrot.slane %v837, 5
      %v840 = vsel %vm648, %v835, %v839
      %v842 = vshrl.u32 %v622, 16
      %v844 = vrot.slane %v842, 4
      %v845 = vshll.u32 %v622, 16
      %v847 = vrot.slane %v845, 5
      %v848 = vor.u32 %v844, %v847
      %v849 = vrot.slane %v848, 4
      %v851 = vshll.u32 %v623, 16
      %v853 = vrot.slane %v851, 5
      %v854 = vsel %vm648, %v849, %v853
      %v855 = vshrl.u32 %v623, 16
      %v857 = vrot.slane %v855, 4
      %v858 = vor.u32 %v857, %v853
      %v859 = vrot.slane %v858, 4
      %v861 = vshll.u32 %v624, 16
      %v863 = vrot.slane %v861, 5
      %v864 = vsel %vm648, %v859, %v863
      %v866 = vshrl.u32 %v625, 16
      %v868 = vrot.slane %v866, 4
      %v869 = vshll.u32 %v625, 16
      %v871 = vrot.slane %v869, 5
      %v872 = vor.u32 %v868, %v871
      %v873 = vrot.slane %v872, 4
      %v875 = vshll.u32 %v626, 16
      %v877 = vrot.slane %v875, 5
      %v878 = vsel %vm648, %v873, %v877
      %v879 = vshrl.u32 %v626, 16
      %v881 = vrot.slane %v879, 4
      %v882 = vor.u32 %v881, %v877
      %v883 = vrot.slane %v882, 4
      %v885 = vshll.u32 %v627, 16
      %v887 = vrot.slane %v885, 5
      %v888 = vsel %vm648, %v883, %v887
      %v890 = vshrl.u32 %v628, 16
      %v892 = vrot.slane %v890, 4
      %v893 = vshll.u32 %v628, 16
      %v895 = vrot.slane %v893, 5
      %v896 = vor.u32 %v892, %v895
      %v897 = vrot.slane %v896, 4
      %v899 = vshll.u32 %v629, 16
      %v901 = vrot.slane %v899, 5
      %v902 = vsel %vm648, %v897, %v901
      %v903 = vshrl.u32 %v629, 16
      %v905 = vrot.slane %v903, 4
      %v906 = vor.u32 %v905, %v901
      %v907 = vrot.slane %v906, 4
      %v909 = vshll.u32 %v630, 16
      %v911 = vrot.slane %v909, 5
      %v912 = vsel %vm648, %v907, %v911
      %v914 = vshrl.u32 %v631, 16
      %v916 = vrot.slane %v914, 4
      %v917 = vshll.u32 %v631, 16
      %v919 = vrot.slane %v917, 5
      %v920 = vor.u32 %v916, %v919
      %v921 = vrot.slane %v920, 4
      %v923 = vshll.u32 %v632, 16
      %v925 = vrot.slane %v923, 5
      %v926 = vsel %vm648, %v921, %v925
      %v927 = vshrl.u32 %v632, 16
      %v929 = vrot.slane %v927, 4
      %v930 = vor.u32 %v929, %v925
      %v931 = vrot.slane %v930, 4
      %v933 = vshll.u32 %v633, 16
      %v935 = vrot.slane %v933, 5
      %v936 = vsel %vm648, %v931, %v935
      %v938 = vshrl.u32 %v634, 16
      %v940 = vrot.slane %v938, 4
      %v941 = vshll.u32 %v634, 16
      %v943 = vrot.slane %v941, 5
      %v944 = vor.u32 %v940, %v943
      %v945 = vrot.slane %v944, 4
      %v947 = vshll.u32 %v635, 16
      %v949 = vrot.slane %v947, 5
      %v950 = vsel %vm648, %v945, %v949
      %v951 = vshrl.u32 %v635, 16
      %v953 = vrot.slane %v951, 4
      %v954 = vor.u32 %v953, %v949
      %v955 = vrot.slane %v954, 4
      %v957 = vshll.u32 %v636, 16
      %v959 = vrot.slane %v957, 5
      %v960 = vsel %vm648, %v955, %v959
      %v962 = vshrl.u32 %v637, 16
      %v964 = vrot.slane %v962, 4
      %v965 = vshll.u32 %v637, 16
      %v967 = vrot.slane %v965, 5
      %v968 = vor.u32 %v964, %v967
      %v969 = vrot.slane %v968, 4
      %v971 = vshll.u32 %v638, 16
      %v973 = vrot.slane %v971, 5
      %v974 = vsel %vm648, %v969, %v973
      %v975 = vshrl.u32 %v638, 16
      %v977 = vrot.slane %v975, 4
      %v978 = vor.u32 %v977, %v973
      %v979 = vrot.slane %v978, 4
      %v981 = vshll.u32 %v639, 16
      %v983 = vrot.slane %v981, 5
      %v984 = vsel %vm648, %v979, %v983
      %v986 = vshrl.u32 %v640, 16
      %v988 = vrot.slane %v986, 4
      %v989 = vshll.u32 %v640, 16
      %v991 = vrot.slane %v989, 5
      %v992 = vor.u32 %v988, %v991
      %v993 = vrot.slane %v992, 4
      %v995 = vshll.u32 %v641, 16
      %v997 = vrot.slane %v995, 5
      %v998 = vsel %vm648, %v993, %v997
      %v999 = vshrl.u32 %v641, 16
      %v1001 = vrot.slane %v999, 4
      %v1002 = vor.u32 %v1001, %v997
      %v1003 = vrot.slane %v1002, 4
      %v1005 = vshll.u32 %v642, 16
      %v1007 = vrot.slane %v1005, 5
      %v1008 = vsel %vm648, %v1003, %v1007
      %v1010 = vshrl.u32 %v643, 16
      %v1012 = vrot.slane %v1010, 4
      %v1013 = vshll.u32 %v643, 16
      %v1015 = vrot.slane %v1013, 5
      %v1016 = vor.u32 %v1012, %v1015
      %v1017 = vrot.slane %v1016, 4
      %v1019 = vshll.u32 %v644, 16
      %v1021 = vrot.slane %v1019, 5
      %v1022 = vsel %vm648, %v1017, %v1021
      %v1023 = vshrl.u32 %v644, 16
      %v1025 = vrot.slane %v1023, 4
      %v1026 = vor.u32 %v1025, %v1021
      %v1027 = vrot.slane %v1026, 4
      %v1029 = vshll.u32 %v645, 16
      %v1031 = vrot.slane %v1029, 5
      %v1032 = vsel %vm648, %v1027, %v1031
      %s1033 = scalar_lea.vmem %s231, 2
      %v1034 = vld [vmem:[%s1033] sm:$0x3]
      %v1035 = vunpack.c.l.b16 %v662
      %v1036 = vunpack.c.l.b16 %v672
      %v1037 = vunpack.c.l.b16 %v686
      %v1038 = vunpack.c.l.b16 %v696
      %v1039 = vunpack.c.l.b16 %v710
      %v1040 = vunpack.c.l.b16 %v720
      %v1041 = vunpack.c.l.b16 %v734
      %v1042 = vunpack.c.l.b16 %v744
      %v1043 = vunpack.c.l.b16 %v758
      %v1044 = vunpack.c.l.b16 %v768
      %v1045 = vunpack.c.l.b16 %v782
      %v1046 = vunpack.c.l.b16 %v792
      %v1047 = vunpack.c.l.b16 %v806
      %v1048 = vunpack.c.l.b16 %v816
      %v1049 = vunpack.c.l.b16 %v830
      %v1050 = vunpack.c.l.b16 %v840
      %v1051 = vunpack.c.l.b16 %v854
      %v1052 = vunpack.c.l.b16 %v864
      %v1053 = vunpack.c.l.b16 %v878
      %v1054 = vunpack.c.l.b16 %v888
      %v1055 = vunpack.c.l.b16 %v902
      %v1056 = vunpack.c.l.b16 %v912
      %v1057 = vunpack.c.l.b16 %v926
      %v1058 = vunpack.c.l.b16 %v936
      %v1059 = vunpack.c.l.b16 %v950
      %v1060 = vunpack.c.l.b16 %v960
      %v1061 = vunpack.c.l.b16 %v974
      %v1062 = vunpack.c.l.b16 %v984
      %v1063 = vunpack.c.l.b16 %v998
      %v1064 = vunpack.c.l.b16 %v1008
      %v1065 = vunpack.c.l.b16 %v1022
      %v1066 = vunpack.c.l.b16 %v1032
      %v1067 = vpack.c.b16 %v1036, %v1035
      %v1068 = vpack.c.b16 %v1038, %v1037
      %v1069 = vpack.c.b16 %v1040, %v1039
      %v1070 = vpack.c.b16 %v1042, %v1041
      %v1071 = vpack.c.b16 %v1044, %v1043
      %v1072 = vpack.c.b16 %v1046, %v1045
      %v1073 = vpack.c.b16 %v1048, %v1047
      %v1074 = vpack.c.b16 %v1050, %v1049
      %v1075 = vpack.c.b16 %v1052, %v1051
      %v1076 = vpack.c.b16 %v1054, %v1053
      %v1077 = vpack.c.b16 %v1056, %v1055
      %v1078 = vpack.c.b16 %v1058, %v1057
      %v1079 = vpack.c.b16 %v1060, %v1059
      %v1080 = vpack.c.b16 %v1062, %v1061
      %v1081 = vpack.c.b16 %v1064, %v1063
      %v1082 = vpack.c.b16 %v1066, %v1065
      %v1084 = vsel %vm424, %v1067, 0
      %v1087 = vsel %vm424, %v1068, 0
      %v1090 = vsel %vm424, %v1069, 0
      %v1093 = vsel %vm424, %v1070, 0
      %v1096 = vsel %vm424, %v1071, 0
      %v1099 = vsel %vm424, %v1072, 0
      %v1102 = vsel %vm424, %v1073, 0
      %v1105 = vsel %vm424, %v1074, 0
      %v1108 = vsel %vm424, %v1075, 0
      %v1111 = vsel %vm424, %v1076, 0
      %v1114 = vsel %vm424, %v1077, 0
      %v1117 = vsel %vm424, %v1078, 0
      %v1120 = vsel %vm424, %v1079, 0
      %v1123 = vsel %vm424, %v1080, 0
      %v1126 = vsel %vm424, %v1081, 0
      %v1129 = vsel %vm424, %v1082, 0
      %v1132 = vsel %vm473, %v1034, 0
      %1134 = vmatpush.bf16.msra.mxu0 0
      %1135 = vmatpush.bf16.msra.mxu0 0
      %1136 = vmatpush.bf16.msra.mxu0 0
      %1137 = vmatpush.bf16.msra.mxu0 0
      %1138 = vmatpush.bf16.msra.mxu0 0
      %1139 = vmatpush.bf16.msra.mxu0 0
      %1140 = vmatpush.bf16.msra.mxu0 0
      %1141 = vmatpush.bf16.msra.mxu0 %v1132
      %1142 = vmatmul.bf16.gmra.mxu0 %v1084
      %v1143 = vpop.f32.mrf.mxu0
      %v1144 = vadd.f32 0.0, %v1143
      %v1145 = vpop.f32.mrf.mxu0
      %v1146 = vadd.f32 0.0, %v1145
      %1147 = vmatmul.bf16.gmra.mxu0 %v1087
      %v1148 = vpop.f32.mrf.mxu0
      %v1149 = vadd.f32 0.0, %v1148
      %v1150 = vpop.f32.mrf.mxu0
      %v1151 = vadd.f32 0.0, %v1150
      %1152 = vmatmul.bf16.gmra.mxu0 %v1090
      %v1153 = vpop.f32.mrf.mxu0
      %v1154 = vadd.f32 0.0, %v1153
      %v1155 = vpop.f32.mrf.mxu0
      %v1156 = vadd.f32 0.0, %v1155
      %1157 = vmatmul.bf16.gmra.mxu0 %v1093
      %v1158 = vpop.f32.mrf.mxu0
      %v1159 = vadd.f32 0.0, %v1158
      %v1160 = vpop.f32.mrf.mxu0
      %v1161 = vadd.f32 0.0, %v1160
      %1162 = vmatmul.bf16.gmra.mxu0 %v1096
      %v1163 = vpop.f32.mrf.mxu0
      %v1164 = vadd.f32 0.0, %v1163
      %v1165 = vpop.f32.mrf.mxu0
      %v1166 = vadd.f32 0.0, %v1165
      %1167 = vmatmul.bf16.gmra.mxu0 %v1099
      %v1168 = vpop.f32.mrf.mxu0
      %v1169 = vadd.f32 0.0, %v1168
      %v1170 = vpop.f32.mrf.mxu0
      %v1171 = vadd.f32 0.0, %v1170
      %1172 = vmatmul.bf16.gmra.mxu0 %v1102
      %v1173 = vpop.f32.mrf.mxu0
      %v1174 = vadd.f32 0.0, %v1173
      %v1175 = vpop.f32.mrf.mxu0
      %v1176 = vadd.f32 0.0, %v1175
      %1177 = vmatmul.bf16.gmra.mxu0 %v1105
      %v1178 = vpop.f32.mrf.mxu0
      %v1179 = vadd.f32 0.0, %v1178
      %v1180 = vpop.f32.mrf.mxu0
      %v1181 = vadd.f32 0.0, %v1180
      %1182 = vmatmul.bf16.gmra.mxu0 %v1108
      %v1183 = vpop.f32.mrf.mxu0
      %v1184 = vadd.f32 0.0, %v1183
      %v1185 = vpop.f32.mrf.mxu0
      %v1186 = vadd.f32 0.0, %v1185
      %1187 = vmatmul.bf16.gmra.mxu0 %v1111
      %v1188 = vpop.f32.mrf.mxu0
      %v1189 = vadd.f32 0.0, %v1188
      %v1190 = vpop.f32.mrf.mxu0
      %v1191 = vadd.f32 0.0, %v1190
      %1192 = vmatmul.bf16.gmra.mxu0 %v1114
      %v1193 = vpop.f32.mrf.mxu0
      %v1194 = vadd.f32 0.0, %v1193
      %v1195 = vpop.f32.mrf.mxu0
      %v1196 = vadd.f32 0.0, %v1195
      %1197 = vmatmul.bf16.gmra.mxu0 %v1117
      %v1198 = vpop.f32.mrf.mxu0
      %v1199 = vadd.f32 0.0, %v1198
      %v1200 = vpop.f32.mrf.mxu0
      %v1201 = vadd.f32 0.0, %v1200
      %1202 = vmatmul.bf16.gmra.mxu0 %v1120
      %v1203 = vpop.f32.mrf.mxu0
      %v1204 = vadd.f32 0.0, %v1203
      %v1205 = vpop.f32.mrf.mxu0
      %v1206 = vadd.f32 0.0, %v1205
      %1207 = vmatmul.bf16.gmra.mxu0 %v1123
      %v1208 = vpop.f32.mrf.mxu0
      %v1209 = vadd.f32 0.0, %v1208
      %v1210 = vpop.f32.mrf.mxu0
      %v1211 = vadd.f32 0.0, %v1210
      %1212 = vmatmul.bf16.gmra.mxu0 %v1126
      %v1213 = vpop.f32.mrf.mxu0
      %v1214 = vadd.f32 0.0, %v1213
      %v1215 = vpop.f32.mrf.mxu0
      %v1216 = vadd.f32 0.0, %v1215
      %1217 = vmatmul.bf16.gmra.mxu0 %v1129
      %v1218 = vpop.f32.mrf.mxu0
      %v1219 = vadd.f32 0.0, %v1218
      %v1220 = vpop.f32.mrf.mxu0
      %v1221 = vadd.f32 0.0, %v1220
      %1222 = vdwg.mxu0
      %v1223 = vadd.f32 %v566, %v1144
      %v1224 = vadd.f32 %v567, %v1146
      %v1225 = vadd.f32 %v568, %v1149
      %v1226 = vadd.f32 %v569, %v1151
      %v1227 = vadd.f32 %v570, %v1154
      %v1228 = vadd.f32 %v571, %v1156
      %v1229 = vadd.f32 %v572, %v1159
      %v1230 = vadd.f32 %v573, %v1161
      %v1231 = vadd.f32 %v574, %v1164
      %v1232 = vadd.f32 %v575, %v1166
      %v1233 = vadd.f32 %v576, %v1169
      %v1234 = vadd.f32 %v577, %v1171
      %v1235 = vadd.f32 %v578, %v1174
      %v1236 = vadd.f32 %v579, %v1176
      %v1237 = vadd.f32 %v580, %v1179
      %v1238 = vadd.f32 %v581, %v1181
      %v1239 = vadd.f32 %v582, %v1184
      %v1240 = vadd.f32 %v583, %v1186
      %v1241 = vadd.f32 %v584, %v1189
      %v1242 = vadd.f32 %v585, %v1191
      %v1243 = vadd.f32 %v586, %v1194
      %v1244 = vadd.f32 %v587, %v1196
      %v1245 = vadd.f32 %v588, %v1199
      %v1246 = vadd.f32 %v589, %v1201
      %v1247 = vadd.f32 %v590, %v1204
      %v1248 = vadd.f32 %v591, %v1206
      %v1249 = vadd.f32 %v592, %v1209
      %v1250 = vadd.f32 %v593, %v1211
      %v1251 = vadd.f32 %v594, %v1214
      %v1252 = vadd.f32 %v595, %v1216
      %v1253 = vadd.f32 %v596, %v1219
      %v1254 = vadd.f32 %v597, %v1221
      %v1255 = vld [vmem:[%s225] sm:$0xe]
      %v1256 = vld [vmem:[%s225 + $0xc] sm:$0xe]
      %v1257 = vld [vmem:[%s225 + $0x18] sm:$0xe]
      %v1258 = vld [vmem:[%s225 + $0x24] sm:$0xe]
      %v1259 = vld [vmem:[%s225 + $0x30] sm:$0xe]
      %v1260 = vld [vmem:[%s225 + $0x3c] sm:$0xe]
      %v1261 = vld [vmem:[%s225 + $0x48] sm:$0xe]
      %v1262 = vld [vmem:[%s225 + $0x54] sm:$0xe]
      %v1263 = vld [vmem:[%s225 + $0x60] sm:$0xe]
      %v1264 = vld [vmem:[%s225 + $0x6c] sm:$0xe]
      %v1265 = vld [vmem:[%s225 + $0x78] sm:$0xe]
      %v1266 = vld [vmem:[%s225 + $0x84] sm:$0xe]
      %v1267 = vld [vmem:[%s225 + $0x90] sm:$0xe]
      %v1268 = vld [vmem:[%s225 + $0x9c] sm:$0xe]
      %v1269 = vld [vmem:[%s225 + $0xa8] sm:$0xe]
      %v1270 = vld [vmem:[%s225 + $0xb4] sm:$0xe]
      %vm1319 = vcmask 1042432
      %vm1320 = vcmask 1046532
      %vm1321 = vmor %vm1319, %vm1320
      %v1322 = vrot.slane %v1255, 5
      %v1323 = vrot.slane %v1322, 4
      %v1324 = vrot.slane %v599, 5
      %v1325 = vsel %vm1321, %v1323, %v1324
      %v1326 = vrot.slane %v1324, 4
      %v1327 = vrot.slane %v600, 5
      %v1328 = vsel %vm1321, %v1326, %v1327
      %v1329 = vrot.slane %v1256, 5
      %v1330 = vrot.slane %v1329, 4
      %v1331 = vrot.slane %v602, 5
      %v1332 = vsel %vm1321, %v1330, %v1331
      %v1333 = vrot.slane %v1331, 4
      %v1334 = vrot.slane %v603, 5
      %v1335 = vsel %vm1321, %v1333, %v1334
      %v1336 = vrot.slane %v1257, 5
      %v1337 = vrot.slane %v1336, 4
      %v1338 = vrot.slane %v605, 5
      %v1339 = vsel %vm1321, %v1337, %v1338
      %v1340 = vrot.slane %v1338, 4
      %v1341 = vrot.slane %v606, 5
      %v1342 = vsel %vm1321, %v1340, %v1341
      %v1343 = vrot.slane %v1258, 5
      %v1344 = vrot.slane %v1343, 4
      %v1345 = vrot.slane %v608, 5
      %v1346 = vsel %vm1321, %v1344, %v1345
      %v1347 = vrot.slane %v1345, 4
      %v1348 = vrot.slane %v609, 5
      %v1349 = vsel %vm1321, %v1347, %v1348
      %v1350 = vrot.slane %v1259, 5
      %v1351 = vrot.slane %v1350, 4
      %v1352 = vrot.slane %v611, 5
      %v1353 = vsel %vm1321, %v1351, %v1352
      %v1354 = vrot.slane %v1352, 4
      %v1355 = vrot.slane %v612, 5
      %v1356 = vsel %vm1321, %v1354, %v1355
      %v1357 = vrot.slane %v1260, 5
      %v1358 = vrot.slane %v1357, 4
      %v1359 = vrot.slane %v614, 5
      %v1360 = vsel %vm1321, %v1358, %v1359
      %v1361 = vrot.slane %v1359, 4
      %v1362 = vrot.slane %v615, 5
      %v1363 = vsel %vm1321, %v1361, %v1362
      %v1364 = vrot.slane %v1261, 5
      %v1365 = vrot.slane %v1364, 4
      %v1366 = vrot.slane %v617, 5
      %v1367 = vsel %vm1321, %v1365, %v1366
      %v1368 = vrot.slane %v1366, 4
      %v1369 = vrot.slane %v618, 5
      %v1370 = vsel %vm1321, %v1368, %v1369
      %v1371 = vrot.slane %v1262, 5
      %v1372 = vrot.slane %v1371, 4
      %v1373 = vrot.slane %v620, 5
      %v1374 = vsel %vm1321, %v1372, %v1373
      %v1375 = vrot.slane %v1373, 4
      %v1376 = vrot.slane %v621, 5
      %v1377 = vsel %vm1321, %v1375, %v1376
      %v1378 = vrot.slane %v1263, 5
      %v1379 = vrot.slane %v1378, 4
      %v1380 = vrot.slane %v623, 5
      %v1381 = vsel %vm1321, %v1379, %v1380
      %v1382 = vrot.slane %v1380, 4
      %v1383 = vrot.slane %v624, 5
      %v1384 = vsel %vm1321, %v1382, %v1383
      %v1385 = vrot.slane %v1264, 5
      %v1386 = vrot.slane %v1385, 4
      %v1387 = vrot.slane %v626, 5
      %v1388 = vsel %vm1321, %v1386, %v1387
      %v1389 = vrot.slane %v1387, 4
      %v1390 = vrot.slane %v627, 5
      %v1391 = vsel %vm1321, %v1389, %v1390
      %v1392 = vrot.slane %v1265, 5
      %v1393 = vrot.slane %v1392, 4
      %v1394 = vrot.slane %v629, 5
      %v1395 = vsel %vm1321, %v1393, %v1394
      %v1396 = vrot.slane %v1394, 4
      %v1397 = vrot.slane %v630, 5
      %v1398 = vsel %vm1321, %v1396, %v1397
      %v1399 = vrot.slane %v1266, 5
      %v1400 = vrot.slane %v1399, 4
      %v1401 = vrot.slane %v632, 5
      %v1402 = vsel %vm1321, %v1400, %v1401
      %v1403 = vrot.slane %v1401, 4
      %v1404 = vrot.slane %v633, 5
      %v1405 = vsel %vm1321, %v1403, %v1404
      %v1406 = vrot.slane %v1267, 5
      %v1407 = vrot.slane %v1406, 4
      %v1408 = vrot.slane %v635, 5
      %v1409 = vsel %vm1321, %v1407, %v1408
      %v1410 = vrot.slane %v1408, 4
      %v1411 = vrot.slane %v636, 5
      %v1412 = vsel %vm1321, %v1410, %v1411
      %v1413 = vrot.slane %v1268, 5
      %v1414 = vrot.slane %v1413, 4
      %v1415 = vrot.slane %v638, 5
      %v1416 = vsel %vm1321, %v1414, %v1415
      %v1417 = vrot.slane %v1415, 4
      %v1418 = vrot.slane %v639, 5
      %v1419 = vsel %vm1321, %v1417, %v1418
      %v1420 = vrot.slane %v1269, 5
      %v1421 = vrot.slane %v1420, 4
      %v1422 = vrot.slane %v641, 5
      %v1423 = vsel %vm1321, %v1421, %v1422
      %v1424 = vrot.slane %v1422, 4
      %v1425 = vrot.slane %v642, 5
      %v1426 = vsel %vm1321, %v1424, %v1425
      %v1427 = vrot.slane %v1270, 5
      %v1428 = vrot.slane %v1427, 4
      %v1429 = vrot.slane %v644, 5
      %v1430 = vsel %vm1321, %v1428, %v1429
      %v1431 = vrot.slane %v1429, 4
      %v1432 = vrot.slane %v645, 5
      %v1433 = vsel %vm1321, %v1431, %v1432
      %s1434 = scalar_lea.vmem %s231, 4
      %v1435 = vld [vmem:[%s1434] sm:$0x3]
      %v1436 = vunpack.c.l.b16 %v1325
      %v1437 = vunpack.c.l.b16 %v1328
      %v1438 = vunpack.c.l.b16 %v1332
      %v1439 = vunpack.c.l.b16 %v1335
      %v1440 = vunpack.c.l.b16 %v1339
      %v1441 = vunpack.c.l.b16 %v1342
      %v1442 = vunpack.c.l.b16 %v1346
      %v1443 = vunpack.c.l.b16 %v1349
      %v1444 = vunpack.c.l.b16 %v1353
      %v1445 = vunpack.c.l.b16 %v1356
      %v1446 = vunpack.c.l.b16 %v1360
      %v1447 = vunpack.c.l.b16 %v1363
      %v1448 = vunpack.c.l.b16 %v1367
      %v1449 = vunpack.c.l.b16 %v1370
      %v1450 = vunpack.c.l.b16 %v1374
      %v1451 = vunpack.c.l.b16 %v1377
      %v1452 = vunpack.c.l.b16 %v1381
      %v1453 = vunpack.c.l.b16 %v1384
      %v1454 = vunpack.c.l.b16 %v1388
      %v1455 = vunpack.c.l.b16 %v1391
      %v1456 = vunpack.c.l.b16 %v1395
      %v1457 = vunpack.c.l.b16 %v1398
      %v1458 = vunpack.c.l.b16 %v1402
      %v1459 = vunpack.c.l.b16 %v1405
      %v1460 = vunpack.c.l.b16 %v1409
      %v1461 = vunpack.c.l.b16 %v1412
      %v1462 = vunpack.c.l.b16 %v1416
      %v1463 = vunpack.c.l.b16 %v1419
      %v1464 = vunpack.c.l.b16 %v1423
      %v1465 = vunpack.c.l.b16 %v1426
      %v1466 = vunpack.c.l.b16 %v1430
      %v1467 = vunpack.c.l.b16 %v1433
      %v1468 = vpack.c.b16 %v1437, %v1436
      %v1469 = vpack.c.b16 %v1439, %v1438
      %v1470 = vpack.c.b16 %v1441, %v1440
      %v1471 = vpack.c.b16 %v1443, %v1442
      %v1472 = vpack.c.b16 %v1445, %v1444
      %v1473 = vpack.c.b16 %v1447, %v1446
      %v1474 = vpack.c.b16 %v1449, %v1448
      %v1475 = vpack.c.b16 %v1451, %v1450
      %v1476 = vpack.c.b16 %v1453, %v1452
      %v1477 = vpack.c.b16 %v1455, %v1454
      %v1478 = vpack.c.b16 %v1457, %v1456
      %v1479 = vpack.c.b16 %v1459, %v1458
      %v1480 = vpack.c.b16 %v1461, %v1460
      %v1481 = vpack.c.b16 %v1463, %v1462
      %v1482 = vpack.c.b16 %v1465, %v1464
      %v1483 = vpack.c.b16 %v1467, %v1466
      %v1485 = vsel %vm424, %v1468, 0
      %v1488 = vsel %vm424, %v1469, 0
      %v1491 = vsel %vm424, %v1470, 0
      %v1494 = vsel %vm424, %v1471, 0
      %v1497 = vsel %vm424, %v1472, 0
      %v1500 = vsel %vm424, %v1473, 0
      %v1503 = vsel %vm424, %v1474, 0
      %v1506 = vsel %vm424, %v1475, 0
      %v1509 = vsel %vm424, %v1476, 0
      %v1512 = vsel %vm424, %v1477, 0
      %v1515 = vsel %vm424, %v1478, 0
      %v1518 = vsel %vm424, %v1479, 0
      %v1521 = vsel %vm424, %v1480, 0
      %v1524 = vsel %vm424, %v1481, 0
      %v1527 = vsel %vm424, %v1482, 0
      %v1530 = vsel %vm424, %v1483, 0
      %v1533 = vsel %vm473, %v1435, 0
      %1535 = vmatpush.bf16.msra.mxu0 0
      %1536 = vmatpush.bf16.msra.mxu0 0
      %1537 = vmatpush.bf16.msra.mxu0 0
      %1538 = vmatpush.bf16.msra.mxu0 0
      %1539 = vmatpush.bf16.msra.mxu0 0
      %1540 = vmatpush.bf16.msra.mxu0 0
      %1541 = vmatpush.bf16.msra.mxu0 0
      %1542 = vmatpush.bf16.msra.mxu0 %v1533
      %1543 = vmatmul.bf16.gmra.mxu0 %v1485
      %v1544 = vpop.f32.mrf.mxu0
      %v1545 = vadd.f32 0.0, %v1544
      %v1546 = vpop.f32.mrf.mxu0
      %v1547 = vadd.f32 0.0, %v1546
      %1548 = vmatmul.bf16.gmra.mxu0 %v1488
      %v1549 = vpop.f32.mrf.mxu0
      %v1550 = vadd.f32 0.0, %v1549
      %v1551 = vpop.f32.mrf.mxu0
      %v1552 = vadd.f32 0.0, %v1551
      %1553 = vmatmul.bf16.gmra.mxu0 %v1491
      %v1554 = vpop.f32.mrf.mxu0
      %v1555 = vadd.f32 0.0, %v1554
      %v1556 = vpop.f32.mrf.mxu0
      %v1557 = vadd.f32 0.0, %v1556
      %1558 = vmatmul.bf16.gmra.mxu0 %v1494
      %v1559 = vpop.f32.mrf.mxu0
      %v1560 = vadd.f32 0.0, %v1559
      %v1561 = vpop.f32.mrf.mxu0
      %v1562 = vadd.f32 0.0, %v1561
      %1563 = vmatmul.bf16.gmra.mxu0 %v1497
      %v1564 = vpop.f32.mrf.mxu0
      %v1565 = vadd.f32 0.0, %v1564
      %v1566 = vpop.f32.mrf.mxu0
      %v1567 = vadd.f32 0.0, %v1566
      %1568 = vmatmul.bf16.gmra.mxu0 %v1500
      %v1569 = vpop.f32.mrf.mxu0
      %v1570 = vadd.f32 0.0, %v1569
      %v1571 = vpop.f32.mrf.mxu0
      %v1572 = vadd.f32 0.0, %v1571
      %1573 = vmatmul.bf16.gmra.mxu0 %v1503
      %v1574 = vpop.f32.mrf.mxu0
      %v1575 = vadd.f32 0.0, %v1574
      %v1576 = vpop.f32.mrf.mxu0
      %v1577 = vadd.f32 0.0, %v1576
      %1578 = vmatmul.bf16.gmra.mxu0 %v1506
      %v1579 = vpop.f32.mrf.mxu0
      %v1580 = vadd.f32 0.0, %v1579
      %v1581 = vpop.f32.mrf.mxu0
      %v1582 = vadd.f32 0.0, %v1581
      %1583 = vmatmul.bf16.gmra.mxu0 %v1509
      %v1584 = vpop.f32.mrf.mxu0
      %v1585 = vadd.f32 0.0, %v1584
      %v1586 = vpop.f32.mrf.mxu0
      %v1587 = vadd.f32 0.0, %v1586
      %1588 = vmatmul.bf16.gmra.mxu0 %v1512
      %v1589 = vpop.f32.mrf.mxu0
      %v1590 = vadd.f32 0.0, %v1589
      %v1591 = vpop.f32.mrf.mxu0
      %v1592 = vadd.f32 0.0, %v1591
      %1593 = vmatmul.bf16.gmra.mxu0 %v1515
      %v1594 = vpop.f32.mrf.mxu0
      %v1595 = vadd.f32 0.0, %v1594
      %v1596 = vpop.f32.mrf.mxu0
      %v1597 = vadd.f32 0.0, %v1596
      %1598 = vmatmul.bf16.gmra.mxu0 %v1518
      %v1599 = vpop.f32.mrf.mxu0
      %v1600 = vadd.f32 0.0, %v1599
      %v1601 = vpop.f32.mrf.mxu0
      %v1602 = vadd.f32 0.0, %v1601
      %1603 = vmatmul.bf16.gmra.mxu0 %v1521
      %v1604 = vpop.f32.mrf.mxu0
      %v1605 = vadd.f32 0.0, %v1604
      %v1606 = vpop.f32.mrf.mxu0
      %v1607 = vadd.f32 0.0, %v1606
      %1608 = vmatmul.bf16.gmra.mxu0 %v1524
      %v1609 = vpop.f32.mrf.mxu0
      %v1610 = vadd.f32 0.0, %v1609
      %v1611 = vpop.f32.mrf.mxu0
      %v1612 = vadd.f32 0.0, %v1611
      %1613 = vmatmul.bf16.gmra.mxu0 %v1527
      %v1614 = vpop.f32.mrf.mxu0
      %v1615 = vadd.f32 0.0, %v1614
      %v1616 = vpop.f32.mrf.mxu0
      %v1617 = vadd.f32 0.0, %v1616
      %1618 = vmatmul.bf16.gmra.mxu0 %v1530
      %v1619 = vpop.f32.mrf.mxu0
      %v1620 = vadd.f32 0.0, %v1619
      %v1621 = vpop.f32.mrf.mxu0
      %v1622 = vadd.f32 0.0, %v1621
      %1623 = vdwg.mxu0
      %v1624 = vadd.f32 %v1223, %v1545
      %v1625 = vadd.f32 %v1224, %v1547
      %v1626 = vadd.f32 %v1225, %v1550
      %v1627 = vadd.f32 %v1226, %v1552
      %v1628 = vadd.f32 %v1227, %v1555
      %v1629 = vadd.f32 %v1228, %v1557
      %v1630 = vadd.f32 %v1229, %v1560
      %v1631 = vadd.f32 %v1230, %v1562
      %v1632 = vadd.f32 %v1231, %v1565
      %v1633 = vadd.f32 %v1232, %v1567
      %v1634 = vadd.f32 %v1233, %v1570
      %v1635 = vadd.f32 %v1234, %v1572
      %v1636 = vadd.f32 %v1235, %v1575
      %v1637 = vadd.f32 %v1236, %v1577
      %v1638 = vadd.f32 %v1237, %v1580
      %v1639 = vadd.f32 %v1238, %v1582
      %v1640 = vadd.f32 %v1239, %v1585
      %v1641 = vadd.f32 %v1240, %v1587
      %v1642 = vadd.f32 %v1241, %v1590
      %v1643 = vadd.f32 %v1242, %v1592
      %v1644 = vadd.f32 %v1243, %v1595
      %v1645 = vadd.f32 %v1244, %v1597
      %v1646 = vadd.f32 %v1245, %v1600
      %v1647 = vadd.f32 %v1246, %v1602
      %v1648 = vadd.f32 %v1247, %v1605
      %v1649 = vadd.f32 %v1248, %v1607
      %v1650 = vadd.f32 %v1249, %v1610
      %v1651 = vadd.f32 %v1250, %v1612
      %v1652 = vadd.f32 %v1251, %v1615
      %v1653 = vadd.f32 %v1252, %v1617
      %v1654 = vadd.f32 %v1253, %v1620
      %v1655 = vadd.f32 %v1254, %v1622
      %s1656 = scalar_lea.vmem %s225, 12
      %v1657 = vld [vmem:[%s1656] sm:$0xf]
      %v1658 = vld [vmem:[%s1656 + $0x4] sm:$0xf]
      %v1659 = vld [vmem:[%s1656 + $0xc] sm:$0xf]
      %v1660 = vld [vmem:[%s1656 + $0x10] sm:$0xf]
      %v1661 = vld [vmem:[%s1656 + $0x18] sm:$0xf]
      %v1662 = vld [vmem:[%s1656 + $0x1c] sm:$0xf]
      %v1663 = vld [vmem:[%s1656 + $0x24] sm:$0xf]
      %v1664 = vld [vmem:[%s1656 + $0x28] sm:$0xf]
      %v1665 = vld [vmem:[%s1656 + $0x30] sm:$0xf]
      %v1666 = vld [vmem:[%s1656 + $0x34] sm:$0xf]
      %v1667 = vld [vmem:[%s1656 + $0x3c] sm:$0xf]
      %v1668 = vld [vmem:[%s1656 + $0x40] sm:$0xf]
      %v1669 = vld [vmem:[%s1656 + $0x48] sm:$0xf]
      %v1670 = vld [vmem:[%s1656 + $0x4c] sm:$0xf]
      %v1671 = vld [vmem:[%s1656 + $0x54] sm:$0xf]
      %v1672 = vld [vmem:[%s1656 + $0x58] sm:$0xf]
      %v1673 = vld [vmem:[%s1656 + $0x60] sm:$0xf]
      %v1674 = vld [vmem:[%s1656 + $0x64] sm:$0xf]
      %v1675 = vld [vmem:[%s1656 + $0x6c] sm:$0xf]
      %v1676 = vld [vmem:[%s1656 + $0x70] sm:$0xf]
      %v1677 = vld [vmem:[%s1656 + $0x78] sm:$0xf]
      %v1678 = vld [vmem:[%s1656 + $0x7c] sm:$0xf]
      %v1679 = vld [vmem:[%s1656 + $0x84] sm:$0xf]
      %v1680 = vld [vmem:[%s1656 + $0x88] sm:$0xf]
      %v1681 = vld [vmem:[%s1656 + $0x90] sm:$0xf]
      %v1682 = vld [vmem:[%s1656 + $0x94] sm:$0xf]
      %v1683 = vld [vmem:[%s1656 + $0x9c] sm:$0xf]
      %v1684 = vld [vmem:[%s1656 + $0xa0] sm:$0xf]
      %v1685 = vld [vmem:[%s1656 + $0xa8] sm:$0xf]
      %v1686 = vld [vmem:[%s1656 + $0xac] sm:$0xf]
      %v1687 = vld [vmem:[%s1656 + $0xb4] sm:$0xf]
      %v1688 = vld [vmem:[%s1656 + $0xb8] sm:$0xf]
      %s1689 = scalar_lea.vmem %s231, 6
      %v1690 = vld [vmem:[%s1689] sm:$0x3]
      %v1723 = vunpack.c.l.b16 %v1657
      %v1724 = vunpack.c.l.b16 %v1658
      %v1725 = vunpack.c.l.b16 %v1659
      %v1726 = vunpack.c.l.b16 %v1660
      %v1727 = vunpack.c.l.b16 %v1661
      %v1728 = vunpack.c.l.b16 %v1662
      %v1729 = vunpack.c.l.b16 %v1663
      %v1730 = vunpack.c.l.b16 %v1664
      %v1731 = vunpack.c.l.b16 %v1665
      %v1732 = vunpack.c.l.b16 %v1666
      %v1733 = vunpack.c.l.b16 %v1667
      %v1734 = vunpack.c.l.b16 %v1668
      %v1735 = vunpack.c.l.b16 %v1669
      %v1736 = vunpack.c.l.b16 %v1670
      %v1737 = vunpack.c.l.b16 %v1671
      %v1738 = vunpack.c.l.b16 %v1672
      %v1739 = vunpack.c.l.b16 %v1673
      %v1740 = vunpack.c.l.b16 %v1674
      %v1741 = vunpack.c.l.b16 %v1675
      %v1742 = vunpack.c.l.b16 %v1676
      %v1743 = vunpack.c.l.b16 %v1677
      %v1744 = vunpack.c.l.b16 %v1678
      %v1745 = vunpack.c.l.b16 %v1679
      %v1746 = vunpack.c.l.b16 %v1680
      %v1747 = vunpack.c.l.b16 %v1681
      %v1748 = vunpack.c.l.b16 %v1682
      %v1749 = vunpack.c.l.b16 %v1683
      %v1750 = vunpack.c.l.b16 %v1684
      %v1751 = vunpack.c.l.b16 %v1685
      %v1752 = vunpack.c.l.b16 %v1686
      %v1753 = vunpack.c.l.b16 %v1687
      %v1754 = vunpack.c.l.b16 %v1688
      %v1755 = vpack.c.b16 %v1724, %v1723
      %v1756 = vpack.c.b16 %v1726, %v1725
      %v1757 = vpack.c.b16 %v1728, %v1727
      %v1758 = vpack.c.b16 %v1730, %v1729
      %v1759 = vpack.c.b16 %v1732, %v1731
      %v1760 = vpack.c.b16 %v1734, %v1733
      %v1761 = vpack.c.b16 %v1736, %v1735
      %v1762 = vpack.c.b16 %v1738, %v1737
      %v1763 = vpack.c.b16 %v1740, %v1739
      %v1764 = vpack.c.b16 %v1742, %v1741
      %v1765 = vpack.c.b16 %v1744, %v1743
      %v1766 = vpack.c.b16 %v1746, %v1745
      %v1767 = vpack.c.b16 %v1748, %v1747
      %v1768 = vpack.c.b16 %v1750, %v1749
      %v1769 = vpack.c.b16 %v1752, %v1751
      %v1770 = vpack.c.b16 %v1754, %v1753
      %v1772 = vsel %vm424, %v1755, 0
      %v1775 = vsel %vm424, %v1756, 0
      %v1778 = vsel %vm424, %v1757, 0
      %v1781 = vsel %vm424, %v1758, 0
      %v1784 = vsel %vm424, %v1759, 0
      %v1787 = vsel %vm424, %v1760, 0
      %v1790 = vsel %vm424, %v1761, 0
      %v1793 = vsel %vm424, %v1762, 0
      %v1796 = vsel %vm424, %v1763, 0
      %v1799 = vsel %vm424, %v1764, 0
      %v1802 = vsel %vm424, %v1765, 0
      %v1805 = vsel %vm424, %v1766, 0
      %v1808 = vsel %vm424, %v1767, 0
      %v1811 = vsel %vm424, %v1768, 0
      %v1814 = vsel %vm424, %v1769, 0
      %v1817 = vsel %vm424, %v1770, 0
      %v1820 = vsel %vm473, %v1690, 0
      %1822 = vmatpush.bf16.msra.mxu0 0
      %1823 = vmatpush.bf16.msra.mxu0 0
      %1824 = vmatpush.bf16.msra.mxu0 0
      %1825 = vmatpush.bf16.msra.mxu0 0
      %1826 = vmatpush.bf16.msra.mxu0 0
      %1827 = vmatpush.bf16.msra.mxu0 0
      %1828 = vmatpush.bf16.msra.mxu0 0
      %1829 = vmatpush.bf16.msra.mxu0 %v1820
      %1830 = vmatmul.bf16.gmra.mxu0 %v1772
      %v1831 = vpop.f32.mrf.mxu0
      %v1832 = vadd.f32 0.0, %v1831
      %v1833 = vpop.f32.mrf.mxu0
      %v1834 = vadd.f32 0.0, %v1833
      %1835 = vmatmul.bf16.gmra.mxu0 %v1775
      %v1836 = vpop.f32.mrf.mxu0
      %v1837 = vadd.f32 0.0, %v1836
      %v1838 = vpop.f32.mrf.mxu0
      %v1839 = vadd.f32 0.0, %v1838
      %1840 = vmatmul.bf16.gmra.mxu0 %v1778
      %v1841 = vpop.f32.mrf.mxu0
      %v1842 = vadd.f32 0.0, %v1841
      %v1843 = vpop.f32.mrf.mxu0
      %v1844 = vadd.f32 0.0, %v1843
      %1845 = vmatmul.bf16.gmra.mxu0 %v1781
      %v1846 = vpop.f32.mrf.mxu0
      %v1847 = vadd.f32 0.0, %v1846
      %v1848 = vpop.f32.mrf.mxu0
      %v1849 = vadd.f32 0.0, %v1848
      %1850 = vmatmul.bf16.gmra.mxu0 %v1784
      %v1851 = vpop.f32.mrf.mxu0
      %v1852 = vadd.f32 0.0, %v1851
      %v1853 = vpop.f32.mrf.mxu0
      %v1854 = vadd.f32 0.0, %v1853
      %1855 = vmatmul.bf16.gmra.mxu0 %v1787
      %v1856 = vpop.f32.mrf.mxu0
      %v1857 = vadd.f32 0.0, %v1856
      %v1858 = vpop.f32.mrf.mxu0
      %v1859 = vadd.f32 0.0, %v1858
      %1860 = vmatmul.bf16.gmra.mxu0 %v1790
      %v1861 = vpop.f32.mrf.mxu0
      %v1862 = vadd.f32 0.0, %v1861
      %v1863 = vpop.f32.mrf.mxu0
      %v1864 = vadd.f32 0.0, %v1863
      %1865 = vmatmul.bf16.gmra.mxu0 %v1793
      %v1866 = vpop.f32.mrf.mxu0
      %v1867 = vadd.f32 0.0, %v1866
      %v1868 = vpop.f32.mrf.mxu0
      %v1869 = vadd.f32 0.0, %v1868
      %1870 = vmatmul.bf16.gmra.mxu0 %v1796
      %v1871 = vpop.f32.mrf.mxu0
      %v1872 = vadd.f32 0.0, %v1871
      %v1873 = vpop.f32.mrf.mxu0
      %v1874 = vadd.f32 0.0, %v1873
      %1875 = vmatmul.bf16.gmra.mxu0 %v1799
      %v1876 = vpop.f32.mrf.mxu0
      %v1877 = vadd.f32 0.0, %v1876
      %v1878 = vpop.f32.mrf.mxu0
      %v1879 = vadd.f32 0.0, %v1878
      %1880 = vmatmul.bf16.gmra.mxu0 %v1802
      %v1881 = vpop.f32.mrf.mxu0
      %v1882 = vadd.f32 0.0, %v1881
      %v1883 = vpop.f32.mrf.mxu0
      %v1884 = vadd.f32 0.0, %v1883
      %1885 = vmatmul.bf16.gmra.mxu0 %v1805
      %v1886 = vpop.f32.mrf.mxu0
      %v1887 = vadd.f32 0.0, %v1886
      %v1888 = vpop.f32.mrf.mxu0
      %v1889 = vadd.f32 0.0, %v1888
      %1890 = vmatmul.bf16.gmra.mxu0 %v1808
      %v1891 = vpop.f32.mrf.mxu0
      %v1892 = vadd.f32 0.0, %v1891
      %v1893 = vpop.f32.mrf.mxu0
      %v1894 = vadd.f32 0.0, %v1893
      %1895 = vmatmul.bf16.gmra.mxu0 %v1811
      %v1896 = vpop.f32.mrf.mxu0
      %v1897 = vadd.f32 0.0, %v1896
      %v1898 = vpop.f32.mrf.mxu0
      %v1899 = vadd.f32 0.0, %v1898
      %1900 = vmatmul.bf16.gmra.mxu0 %v1814
      %v1901 = vpop.f32.mrf.mxu0
      %v1902 = vadd.f32 0.0, %v1901
      %v1903 = vpop.f32.mrf.mxu0
      %v1904 = vadd.f32 0.0, %v1903
      %1905 = vmatmul.bf16.gmra.mxu0 %v1817
      %v1906 = vpop.f32.mrf.mxu0
      %v1907 = vadd.f32 0.0, %v1906
      %v1908 = vpop.f32.mrf.mxu0
      %v1909 = vadd.f32 0.0, %v1908
      %1910 = vdwg.mxu0
      %v1911 = vadd.f32 %v1624, %v1832
      %v1912 = vadd.f32 %v1625, %v1834
      %v1913 = vadd.f32 %v1626, %v1837
      %v1914 = vadd.f32 %v1627, %v1839
      %v1915 = vadd.f32 %v1628, %v1842
      %v1916 = vadd.f32 %v1629, %v1844
      %v1917 = vadd.f32 %v1630, %v1847
      %v1918 = vadd.f32 %v1631, %v1849
      %v1919 = vadd.f32 %v1632, %v1852
      %v1920 = vadd.f32 %v1633, %v1854
      %v1921 = vadd.f32 %v1634, %v1857
      %v1922 = vadd.f32 %v1635, %v1859
      %v1923 = vadd.f32 %v1636, %v1862
      %v1924 = vadd.f32 %v1637, %v1864
      %v1925 = vadd.f32 %v1638, %v1867
      %v1926 = vadd.f32 %v1639, %v1869
      %v1927 = vadd.f32 %v1640, %v1872
      %v1928 = vadd.f32 %v1641, %v1874
      %v1929 = vadd.f32 %v1642, %v1877
      %v1930 = vadd.f32 %v1643, %v1879
      %v1931 = vadd.f32 %v1644, %v1882
      %v1932 = vadd.f32 %v1645, %v1884
      %v1933 = vadd.f32 %v1646, %v1887
      %v1934 = vadd.f32 %v1647, %v1889
      %v1935 = vadd.f32 %v1648, %v1892
      %v1936 = vadd.f32 %v1649, %v1894
      %v1937 = vadd.f32 %v1650, %v1897
      %v1938 = vadd.f32 %v1651, %v1899
      %v1939 = vadd.f32 %v1652, %v1902
      %v1940 = vadd.f32 %v1653, %v1904
      %v1941 = vadd.f32 %v1654, %v1907
      %v1942 = vadd.f32 %v1655, %v1909
      %v1943 = vld [vmem:[%s1656] sm:$0xf]
      %v1944 = vld [vmem:[%s1656 + $0x4] sm:$0xf]
      %v1945 = vld [vmem:[%s1656 + $0x8] sm:$0x1]
      %v1946 = vld [vmem:[%s1656 + $0xc] sm:$0xf]
      %v1947 = vld [vmem:[%s1656 + $0x10] sm:$0xf]
      %v1948 = vld [vmem:[%s1656 + $0x14] sm:$0x1]
      %v1949 = vld [vmem:[%s1656 + $0x18] sm:$0xf]
      %v1950 = vld [vmem:[%s1656 + $0x1c] sm:$0xf]
      %v1951 = vld [vmem:[%s1656 + $0x20] sm:$0x1]
      %v1952 = vld [vmem:[%s1656 + $0x24] sm:$0xf]
      %v1953 = vld [vmem:[%s1656 + $0x28] sm:$0xf]
      %v1954 = vld [vmem:[%s1656 + $0x2c] sm:$0x1]
      %v1955 = vld [vmem:[%s1656 + $0x30] sm:$0xf]
      %v1956 = vld [vmem:[%s1656 + $0x34] sm:$0xf]
      %v1957 = vld [vmem:[%s1656 + $0x38] sm:$0x1]
      %v1958 = vld [vmem:[%s1656 + $0x3c] sm:$0xf]
      %v1959 = vld [vmem:[%s1656 + $0x40] sm:$0xf]
      %v1960 = vld [vmem:[%s1656 + $0x44] sm:$0x1]
      %v1961 = vld [vmem:[%s1656 + $0x48] sm:$0xf]
      %v1962 = vld [vmem:[%s1656 + $0x4c] sm:$0xf]
      %v1963 = vld [vmem:[%s1656 + $0x50] sm:$0x1]
      %v1964 = vld [vmem:[%s1656 + $0x54] sm:$0xf]
      %v1965 = vld [vmem:[%s1656 + $0x58] sm:$0xf]
      %v1966 = vld [vmem:[%s1656 + $0x5c] sm:$0x1]
      %v1967 = vld [vmem:[%s1656 + $0x60] sm:$0xf]
      %v1968 = vld [vmem:[%s1656 + $0x64] sm:$0xf]
      %v1969 = vld [vmem:[%s1656 + $0x68] sm:$0x1]
      %v1970 = vld [vmem:[%s1656 + $0x6c] sm:$0xf]
      %v1971 = vld [vmem:[%s1656 + $0x70] sm:$0xf]
      %v1972 = vld [vmem:[%s1656 + $0x74] sm:$0x1]
      %v1973 = vld [vmem:[%s1656 + $0x78] sm:$0xf]
      %v1974 = vld [vmem:[%s1656 + $0x7c] sm:$0xf]
      %v1975 = vld [vmem:[%s1656 + $0x80] sm:$0x1]
      %v1976 = vld [vmem:[%s1656 + $0x84] sm:$0xf]
      %v1977 = vld [vmem:[%s1656 + $0x88] sm:$0xf]
      %v1978 = vld [vmem:[%s1656 + $0x8c] sm:$0x1]
      %v1979 = vld [vmem:[%s1656 + $0x90] sm:$0xf]
      %v1980 = vld [vmem:[%s1656 + $0x94] sm:$0xf]
      %v1981 = vld [vmem:[%s1656 + $0x98] sm:$0x1]
      %v1982 = vld [vmem:[%s1656 + $0x9c] sm:$0xf]
      %v1983 = vld [vmem:[%s1656 + $0xa0] sm:$0xf]
      %v1984 = vld [vmem:[%s1656 + $0xa4] sm:$0x1]
      %v1985 = vld [vmem:[%s1656 + $0xa8] sm:$0xf]
      %v1986 = vld [vmem:[%s1656 + $0xac] sm:$0xf]
      %v1987 = vld [vmem:[%s1656 + $0xb0] sm:$0x1]
      %v1988 = vld [vmem:[%s1656 + $0xb4] sm:$0xf]
      %v1989 = vld [vmem:[%s1656 + $0xb8] sm:$0xf]
      %v1990 = vld [vmem:[%s1656 + $0xbc] sm:$0x1]
      %v1992 = vshrl.u32 %v1943, 16
      %v1994 = vrot.slane %v1992, 4
      %v1995 = vshll.u32 %v1943, 16
      %v1997 = vrot.slane %v1995, 5
      %v1998 = vor.u32 %v1994, %v1997
      %v1999 = vrot.slane %v1998, 4
      %v2001 = vshll.u32 %v1944, 16
      %v2003 = vrot.slane %v2001, 5
      %v2004 = vsel %vm648, %v1999, %v2003
      %v2005 = vshrl.u32 %v1944, 16
      %v2007 = vrot.slane %v2005, 4
      %v2008 = vor.u32 %v2007, %v2003
      %v2009 = vrot.slane %v2008, 4
      %v2011 = vshll.u32 %v1945, 16
      %v2013 = vrot.slane %v2011, 5
      %v2014 = vsel %vm648, %v2009, %v2013
      %v2016 = vshrl.u32 %v1946, 16
      %v2018 = vrot.slane %v2016, 4
      %v2019 = vshll.u32 %v1946, 16
      %v2021 = vrot.slane %v2019, 5
      %v2022 = vor.u32 %v2018, %v2021
      %v2023 = vrot.slane %v2022, 4
      %v2025 = vshll.u32 %v1947, 16
      %v2027 = vrot.slane %v2025, 5
      %v2028 = vsel %vm648, %v2023, %v2027
      %v2029 = vshrl.u32 %v1947, 16
      %v2031 = vrot.slane %v2029, 4
      %v2032 = vor.u32 %v2031, %v2027
      %v2033 = vrot.slane %v2032, 4
      %v2035 = vshll.u32 %v1948, 16
      %v2037 = vrot.slane %v2035, 5
      %v2038 = vsel %vm648, %v2033, %v2037
      %v2040 = vshrl.u32 %v1949, 16
      %v2042 = vrot.slane %v2040, 4
      %v2043 = vshll.u32 %v1949, 16
      %v2045 = vrot.slane %v2043, 5
      %v2046 = vor.u32 %v2042, %v2045
      %v2047 = vrot.slane %v2046, 4
      %v2049 = vshll.u32 %v1950, 16
      %v2051 = vrot.slane %v2049, 5
      %v2052 = vsel %vm648, %v2047, %v2051
      %v2053 = vshrl.u32 %v1950, 16
      %v2055 = vrot.slane %v2053, 4
      %v2056 = vor.u32 %v2055, %v2051
      %v2057 = vrot.slane %v2056, 4
      %v2059 = vshll.u32 %v1951, 16
      %v2061 = vrot.slane %v2059, 5
      %v2062 = vsel %vm648, %v2057, %v2061
      %v2064 = vshrl.u32 %v1952, 16
      %v2066 = vrot.slane %v2064, 4
      %v2067 = vshll.u32 %v1952, 16
      %v2069 = vrot.slane %v2067, 5
      %v2070 = vor.u32 %v2066, %v2069
      %v2071 = vrot.slane %v2070, 4
      %v2073 = vshll.u32 %v1953, 16
      %v2075 = vrot.slane %v2073, 5
      %v2076 = vsel %vm648, %v2071, %v2075
      %v2077 = vshrl.u32 %v1953, 16
      %v2079 = vrot.slane %v2077, 4
      %v2080 = vor.u32 %v2079, %v2075
      %v2081 = vrot.slane %v2080, 4
      %v2083 = vshll.u32 %v1954, 16
      %v2085 = vrot.slane %v2083, 5
      %v2086 = vsel %vm648, %v2081, %v2085
      %v2088 = vshrl.u32 %v1955, 16
      %v2090 = vrot.slane %v2088, 4
      %v2091 = vshll.u32 %v1955, 16
      %v2093 = vrot.slane %v2091, 5
      %v2094 = vor.u32 %v2090, %v2093
      %v2095 = vrot.slane %v2094, 4
      %v2097 = vshll.u32 %v1956, 16
      %v2099 = vrot.slane %v2097, 5
      %v2100 = vsel %vm648, %v2095, %v2099
      %v2101 = vshrl.u32 %v1956, 16
      %v2103 = vrot.slane %v2101, 4
      %v2104 = vor.u32 %v2103, %v2099
      %v2105 = vrot.slane %v2104, 4
      %v2107 = vshll.u32 %v1957, 16
      %v2109 = vrot.slane %v2107, 5
      %v2110 = vsel %vm648, %v2105, %v2109
      %v2112 = vshrl.u32 %v1958, 16
      %v2114 = vrot.slane %v2112, 4
      %v2115 = vshll.u32 %v1958, 16
      %v2117 = vrot.slane %v2115, 5
      %v2118 = vor.u32 %v2114, %v2117
      %v2119 = vrot.slane %v2118, 4
      %v2121 = vshll.u32 %v1959, 16
      %v2123 = vrot.slane %v2121, 5
      %v2124 = vsel %vm648, %v2119, %v2123
      %v2125 = vshrl.u32 %v1959, 16
      %v2127 = vrot.slane %v2125, 4
      %v2128 = vor.u32 %v2127, %v2123
      %v2129 = vrot.slane %v2128, 4
      %v2131 = vshll.u32 %v1960, 16
      %v2133 = vrot.slane %v2131, 5
      %v2134 = vsel %vm648, %v2129, %v2133
      %v2136 = vshrl.u32 %v1961, 16
      %v2138 = vrot.slane %v2136, 4
      %v2139 = vshll.u32 %v1961, 16
      %v2141 = vrot.slane %v2139, 5
      %v2142 = vor.u32 %v2138, %v2141
      %v2143 = vrot.slane %v2142, 4
      %v2145 = vshll.u32 %v1962, 16
      %v2147 = vrot.slane %v2145, 5
      %v2148 = vsel %vm648, %v2143, %v2147
      %v2149 = vshrl.u32 %v1962, 16
      %v2151 = vrot.slane %v2149, 4
      %v2152 = vor.u32 %v2151, %v2147
      %v2153 = vrot.slane %v2152, 4
      %v2155 = vshll.u32 %v1963, 16
      %v2157 = vrot.slane %v2155, 5
      %v2158 = vsel %vm648, %v2153, %v2157
      %v2160 = vshrl.u32 %v1964, 16
      %v2162 = vrot.slane %v2160, 4
      %v2163 = vshll.u32 %v1964, 16
      %v2165 = vrot.slane %v2163, 5
      %v2166 = vor.u32 %v2162, %v2165
      %v2167 = vrot.slane %v2166, 4
      %v2169 = vshll.u32 %v1965, 16
      %v2171 = vrot.slane %v2169, 5
      %v2172 = vsel %vm648, %v2167, %v2171
      %v2173 = vshrl.u32 %v1965, 16
      %v2175 = vrot.slane %v2173, 4
      %v2176 = vor.u32 %v2175, %v2171
      %v2177 = vrot.slane %v2176, 4
      %v2179 = vshll.u32 %v1966, 16
      %v2181 = vrot.slane %v2179, 5
      %v2182 = vsel %vm648, %v2177, %v2181
      %v2184 = vshrl.u32 %v1967, 16
      %v2186 = vrot.slane %v2184, 4
      %v2187 = vshll.u32 %v1967, 16
      %v2189 = vrot.slane %v2187, 5
      %v2190 = vor.u32 %v2186, %v2189
      %v2191 = vrot.slane %v2190, 4
      %v2193 = vshll.u32 %v1968, 16
      %v2195 = vrot.slane %v2193, 5
      %v2196 = vsel %vm648, %v2191, %v2195
      %v2197 = vshrl.u32 %v1968, 16
      %v2199 = vrot.slane %v2197, 4
      %v2200 = vor.u32 %v2199, %v2195
      %v2201 = vrot.slane %v2200, 4
      %v2203 = vshll.u32 %v1969, 16
      %v2205 = vrot.slane %v2203, 5
      %v2206 = vsel %vm648, %v2201, %v2205
      %v2208 = vshrl.u32 %v1970, 16
      %v2210 = vrot.slane %v2208, 4
      %v2211 = vshll.u32 %v1970, 16
      %v2213 = vrot.slane %v2211, 5
      %v2214 = vor.u32 %v2210, %v2213
      %v2215 = vrot.slane %v2214, 4
      %v2217 = vshll.u32 %v1971, 16
      %v2219 = vrot.slane %v2217, 5
      %v2220 = vsel %vm648, %v2215, %v2219
      %v2221 = vshrl.u32 %v1971, 16
      %v2223 = vrot.slane %v2221, 4
      %v2224 = vor.u32 %v2223, %v2219
      %v2225 = vrot.slane %v2224, 4
      %v2227 = vshll.u32 %v1972, 16
      %v2229 = vrot.slane %v2227, 5
      %v2230 = vsel %vm648, %v2225, %v2229
      %v2232 = vshrl.u32 %v1973, 16
      %v2234 = vrot.slane %v2232, 4
      %v2235 = vshll.u32 %v1973, 16
      %v2237 = vrot.slane %v2235, 5
      %v2238 = vor.u32 %v2234, %v2237
      %v2239 = vrot.slane %v2238, 4
      %v2241 = vshll.u32 %v1974, 16
      %v2243 = vrot.slane %v2241, 5
      %v2244 = vsel %vm648, %v2239, %v2243
      %v2245 = vshrl.u32 %v1974, 16
      %v2247 = vrot.slane %v2245, 4
      %v2248 = vor.u32 %v2247, %v2243
      %v2249 = vrot.slane %v2248, 4
      %v2251 = vshll.u32 %v1975, 16
      %v2253 = vrot.slane %v2251, 5
      %v2254 = vsel %vm648, %v2249, %v2253
      %v2256 = vshrl.u32 %v1976, 16
      %v2258 = vrot.slane %v2256, 4
      %v2259 = vshll.u32 %v1976, 16
      %v2261 = vrot.slane %v2259, 5
      %v2262 = vor.u32 %v2258, %v2261
      %v2263 = vrot.slane %v2262, 4
      %v2265 = vshll.u32 %v1977, 16
      %v2267 = vrot.slane %v2265, 5
      %v2268 = vsel %vm648, %v2263, %v2267
      %v2269 = vshrl.u32 %v1977, 16
      %v2271 = vrot.slane %v2269, 4
      %v2272 = vor.u32 %v2271, %v2267
      %v2273 = vrot.slane %v2272, 4
      %v2275 = vshll.u32 %v1978, 16
      %v2277 = vrot.slane %v2275, 5
      %v2278 = vsel %vm648, %v2273, %v2277
      %v2280 = vshrl.u32 %v1979, 16
      %v2282 = vrot.slane %v2280, 4
      %v2283 = vshll.u32 %v1979, 16
      %v2285 = vrot.slane %v2283, 5
      %v2286 = vor.u32 %v2282, %v2285
      %v2287 = vrot.slane %v2286, 4
      %v2289 = vshll.u32 %v1980, 16
      %v2291 = vrot.slane %v2289, 5
      %v2292 = vsel %vm648, %v2287, %v2291
      %v2293 = vshrl.u32 %v1980, 16
      %v2295 = vrot.slane %v2293, 4
      %v2296 = vor.u32 %v2295, %v2291
      %v2297 = vrot.slane %v2296, 4
      %v2299 = vshll.u32 %v1981, 16
      %v2301 = vrot.slane %v2299, 5
      %v2302 = vsel %vm648, %v2297, %v2301
      %v2304 = vshrl.u32 %v1982, 16
      %v2306 = vrot.slane %v2304, 4
      %v2307 = vshll.u32 %v1982, 16
      %v2309 = vrot.slane %v2307, 5
      %v2310 = vor.u32 %v2306, %v2309
      %v2311 = vrot.slane %v2310, 4
      %v2313 = vshll.u32 %v1983, 16
      %v2315 = vrot.slane %v2313, 5
      %v2316 = vsel %vm648, %v2311, %v2315
      %v2317 = vshrl.u32 %v1983, 16
      %v2319 = vrot.slane %v2317, 4
      %v2320 = vor.u32 %v2319, %v2315
      %v2321 = vrot.slane %v2320, 4
      %v2323 = vshll.u32 %v1984, 16
      %v2325 = vrot.slane %v2323, 5
      %v2326 = vsel %vm648, %v2321, %v2325
      %v2328 = vshrl.u32 %v1985, 16
      %v2330 = vrot.slane %v2328, 4
      %v2331 = vshll.u32 %v1985, 16
      %v2333 = vrot.slane %v2331, 5
      %v2334 = vor.u32 %v2330, %v2333
      %v2335 = vrot.slane %v2334, 4
      %v2337 = vshll.u32 %v1986, 16
      %v2339 = vrot.slane %v2337, 5
      %v2340 = vsel %vm648, %v2335, %v2339
      %v2341 = vshrl.u32 %v1986, 16
      %v2343 = vrot.slane %v2341, 4
      %v2344 = vor.u32 %v2343, %v2339
      %v2345 = vrot.slane %v2344, 4
      %v2347 = vshll.u32 %v1987, 16
      %v2349 = vrot.slane %v2347, 5
      %v2350 = vsel %vm648, %v2345, %v2349
      %v2352 = vshrl.u32 %v1988, 16
      %v2354 = vrot.slane %v2352, 4
      %v2355 = vshll.u32 %v1988, 16
      %v2357 = vrot.slane %v2355, 5
      %v2358 = vor.u32 %v2354, %v2357
      %v2359 = vrot.slane %v2358, 4
      %v2361 = vshll.u32 %v1989, 16
      %v2363 = vrot.slane %v2361, 5
      %v2364 = vsel %vm648, %v2359, %v2363
      %v2365 = vshrl.u32 %v1989, 16
      %v2367 = vrot.slane %v2365, 4
      %v2368 = vor.u32 %v2367, %v2363
      %v2369 = vrot.slane %v2368, 4
      %v2371 = vshll.u32 %v1990, 16
      %v2373 = vrot.slane %v2371, 5
      %v2374 = vsel %vm648, %v2369, %v2373
      %s2375 = scalar_lea.vmem %s231, 8
      %v2376 = vld [vmem:[%s2375] sm:$0x3]
      %v2377 = vunpack.c.l.b16 %v2004
      %v2378 = vunpack.c.l.b16 %v2014
      %v2379 = vunpack.c.l.b16 %v2028
      %v2380 = vunpack.c.l.b16 %v2038
      %v2381 = vunpack.c.l.b16 %v2052
      %v2382 = vunpack.c.l.b16 %v2062
      %v2383 = vunpack.c.l.b16 %v2076
      %v2384 = vunpack.c.l.b16 %v2086
      %v2385 = vunpack.c.l.b16 %v2100
      %v2386 = vunpack.c.l.b16 %v2110
      %v2387 = vunpack.c.l.b16 %v2124
      %v2388 = vunpack.c.l.b16 %v2134
      %v2389 = vunpack.c.l.b16 %v2148
      %v2390 = vunpack.c.l.b16 %v2158
      %v2391 = vunpack.c.l.b16 %v2172
      %v2392 = vunpack.c.l.b16 %v2182
      %v2393 = vunpack.c.l.b16 %v2196
      %v2394 = vunpack.c.l.b16 %v2206
      %v2395 = vunpack.c.l.b16 %v2220
      %v2396 = vunpack.c.l.b16 %v2230
      %v2397 = vunpack.c.l.b16 %v2244
      %v2398 = vunpack.c.l.b16 %v2254
      %v2399 = vunpack.c.l.b16 %v2268
      %v2400 = vunpack.c.l.b16 %v2278
      %v2401 = vunpack.c.l.b16 %v2292
      %v2402 = vunpack.c.l.b16 %v2302
      %v2403 = vunpack.c.l.b16 %v2316
      %v2404 = vunpack.c.l.b16 %v2326
      %v2405 = vunpack.c.l.b16 %v2340
      %v2406 = vunpack.c.l.b16 %v2350
      %v2407 = vunpack.c.l.b16 %v2364
      %v2408 = vunpack.c.l.b16 %v2374
      %v2409 = vpack.c.b16 %v2378, %v2377
      %v2410 = vpack.c.b16 %v2380, %v2379
      %v2411 = vpack.c.b16 %v2382, %v2381
      %v2412 = vpack.c.b16 %v2384, %v2383
      %v2413 = vpack.c.b16 %v2386, %v2385
      %v2414 = vpack.c.b16 %v2388, %v2387
      %v2415 = vpack.c.b16 %v2390, %v2389
      %v2416 = vpack.c.b16 %v2392, %v2391
      %v2417 = vpack.c.b16 %v2394, %v2393
      %v2418 = vpack.c.b16 %v2396, %v2395
      %v2419 = vpack.c.b16 %v2398, %v2397
      %v2420 = vpack.c.b16 %v2400, %v2399
      %v2421 = vpack.c.b16 %v2402, %v2401
      %v2422 = vpack.c.b16 %v2404, %v2403
      %v2423 = vpack.c.b16 %v2406, %v2405
      %v2424 = vpack.c.b16 %v2408, %v2407
      %v2426 = vsel %vm424, %v2409, 0
      %v2429 = vsel %vm424, %v2410, 0
      %v2432 = vsel %vm424, %v2411, 0
      %v2435 = vsel %vm424, %v2412, 0
      %v2438 = vsel %vm424, %v2413, 0
      %v2441 = vsel %vm424, %v2414, 0
      %v2444 = vsel %vm424, %v2415, 0
      %v2447 = vsel %vm424, %v2416, 0
      %v2450 = vsel %vm424, %v2417, 0
      %v2453 = vsel %vm424, %v2418, 0
      %v2456 = vsel %vm424, %v2419, 0
      %v2459 = vsel %vm424, %v2420, 0
      %v2462 = vsel %vm424, %v2421, 0
      %v2465 = vsel %vm424, %v2422, 0
      %v2468 = vsel %vm424, %v2423, 0
      %v2471 = vsel %vm424, %v2424, 0
      %v2474 = vsel %vm473, %v2376, 0
      %2476 = vmatpush.bf16.msra.mxu0 0
      %2477 = vmatpush.bf16.msra.mxu0 0
      %2478 = vmatpush.bf16.msra.mxu0 0
      %2479 = vmatpush.bf16.msra.mxu0 0
      %2480 = vmatpush.bf16.msra.mxu0 0
      %2481 = vmatpush.bf16.msra.mxu0 0
      %2482 = vmatpush.bf16.msra.mxu0 0
      %2483 = vmatpush.bf16.msra.mxu0 %v2474
      %2484 = vmatmul.bf16.gmra.mxu0 %v2426
      %v2485 = vpop.f32.mrf.mxu0
      %v2486 = vadd.f32 0.0, %v2485
      %v2487 = vpop.f32.mrf.mxu0
      %v2488 = vadd.f32 0.0, %v2487
      %2489 = vmatmul.bf16.gmra.mxu0 %v2429
      %v2490 = vpop.f32.mrf.mxu0
      %v2491 = vadd.f32 0.0, %v2490
      %v2492 = vpop.f32.mrf.mxu0
      %v2493 = vadd.f32 0.0, %v2492
      %2494 = vmatmul.bf16.gmra.mxu0 %v2432
      %v2495 = vpop.f32.mrf.mxu0
      %v2496 = vadd.f32 0.0, %v2495
      %v2497 = vpop.f32.mrf.mxu0
      %v2498 = vadd.f32 0.0, %v2497
      %2499 = vmatmul.bf16.gmra.mxu0 %v2435
      %v2500 = vpop.f32.mrf.mxu0
      %v2501 = vadd.f32 0.0, %v2500
      %v2502 = vpop.f32.mrf.mxu0
      %v2503 = vadd.f32 0.0, %v2502
      %2504 = vmatmul.bf16.gmra.mxu0 %v2438
      %v2505 = vpop.f32.mrf.mxu0
      %v2506 = vadd.f32 0.0, %v2505
      %v2507 = vpop.f32.mrf.mxu0
      %v2508 = vadd.f32 0.0, %v2507
      %2509 = vmatmul.bf16.gmra.mxu0 %v2441
      %v2510 = vpop.f32.mrf.mxu0
      %v2511 = vadd.f32 0.0, %v2510
      %v2512 = vpop.f32.mrf.mxu0
      %v2513 = vadd.f32 0.0, %v2512
      %2514 = vmatmul.bf16.gmra.mxu0 %v2444
      %v2515 = vpop.f32.mrf.mxu0
      %v2516 = vadd.f32 0.0, %v2515
      %v2517 = vpop.f32.mrf.mxu0
      %v2518 = vadd.f32 0.0, %v2517
      %2519 = vmatmul.bf16.gmra.mxu0 %v2447
      %v2520 = vpop.f32.mrf.mxu0
      %v2521 = vadd.f32 0.0, %v2520
      %v2522 = vpop.f32.mrf.mxu0
      %v2523 = vadd.f32 0.0, %v2522
      %2524 = vmatmul.bf16.gmra.mxu0 %v2450
      %v2525 = vpop.f32.mrf.mxu0
      %v2526 = vadd.f32 0.0, %v2525
      %v2527 = vpop.f32.mrf.mxu0
      %v2528 = vadd.f32 0.0, %v2527
      %2529 = vmatmul.bf16.gmra.mxu0 %v2453
      %v2530 = vpop.f32.mrf.mxu0
      %v2531 = vadd.f32 0.0, %v2530
      %v2532 = vpop.f32.mrf.mxu0
      %v2533 = vadd.f32 0.0, %v2532
      %2534 = vmatmul.bf16.gmra.mxu0 %v2456
      %v2535 = vpop.f32.mrf.mxu0
      %v2536 = vadd.f32 0.0, %v2535
      %v2537 = vpop.f32.mrf.mxu0
      %v2538 = vadd.f32 0.0, %v2537
      %2539 = vmatmul.bf16.gmra.mxu0 %v2459
      %v2540 = vpop.f32.mrf.mxu0
      %v2541 = vadd.f32 0.0, %v2540
      %v2542 = vpop.f32.mrf.mxu0
      %v2543 = vadd.f32 0.0, %v2542
      %2544 = vmatmul.bf16.gmra.mxu0 %v2462
      %v2545 = vpop.f32.mrf.mxu0
      %v2546 = vadd.f32 0.0, %v2545
      %v2547 = vpop.f32.mrf.mxu0
      %v2548 = vadd.f32 0.0, %v2547
      %2549 = vmatmul.bf16.gmra.mxu0 %v2465
      %v2550 = vpop.f32.mrf.mxu0
      %v2551 = vadd.f32 0.0, %v2550
      %v2552 = vpop.f32.mrf.mxu0
      %v2553 = vadd.f32 0.0, %v2552
      %2554 = vmatmul.bf16.gmra.mxu0 %v2468
      %v2555 = vpop.f32.mrf.mxu0
      %v2556 = vadd.f32 0.0, %v2555
      %v2557 = vpop.f32.mrf.mxu0
      %v2558 = vadd.f32 0.0, %v2557
      %2559 = vmatmul.bf16.gmra.mxu0 %v2471
      %v2560 = vpop.f32.mrf.mxu0
      %v2561 = vadd.f32 0.0, %v2560
      %v2562 = vpop.f32.mrf.mxu0
      %v2563 = vadd.f32 0.0, %v2562
      %2564 = vdwg.mxu0
      %v2565 = vadd.f32 %v1911, %v2486
      %v2566 = vadd.f32 %v1912, %v2488
      %v2567 = vadd.f32 %v1913, %v2491
      %v2568 = vadd.f32 %v1914, %v2493
      %v2569 = vadd.f32 %v1915, %v2496
      %v2570 = vadd.f32 %v1916, %v2498
      %v2571 = vadd.f32 %v1917, %v2501
      %v2572 = vadd.f32 %v1918, %v2503
      %v2573 = vadd.f32 %v1919, %v2506
      %v2574 = vadd.f32 %v1920, %v2508
      %v2575 = vadd.f32 %v1921, %v2511
      %v2576 = vadd.f32 %v1922, %v2513
      %v2577 = vadd.f32 %v1923, %v2516
      %v2578 = vadd.f32 %v1924, %v2518
      %v2579 = vadd.f32 %v1925, %v2521
      %v2580 = vadd.f32 %v1926, %v2523
      %v2581 = vadd.f32 %v1927, %v2526
      %v2582 = vadd.f32 %v1928, %v2528
      %v2583 = vadd.f32 %v1929, %v2531
      %v2584 = vadd.f32 %v1930, %v2533
      %v2585 = vadd.f32 %v1931, %v2536
      %v2586 = vadd.f32 %v1932, %v2538
      %v2587 = vadd.f32 %v1933, %v2541
      %v2588 = vadd.f32 %v1934, %v2543
      %v2589 = vadd.f32 %v1935, %v2546
      %v2590 = vadd.f32 %v1936, %v2548
      %v2591 = vadd.f32 %v1937, %v2551
      %v2592 = vadd.f32 %v1938, %v2553
      %v2593 = vadd.f32 %v1939, %v2556
      %v2594 = vadd.f32 %v1940, %v2558
      %v2595 = vadd.f32 %v1941, %v2561
      %v2596 = vadd.f32 %v1942, %v2563
      %v2597 = vld [vmem:[%s1656] sm:$0xe]
      %v2598 = vld [vmem:[%s1656 + $0xc] sm:$0xe]
      %v2599 = vld [vmem:[%s1656 + $0x18] sm:$0xe]
      %v2600 = vld [vmem:[%s1656 + $0x24] sm:$0xe]
      %v2601 = vld [vmem:[%s1656 + $0x30] sm:$0xe]
      %v2602 = vld [vmem:[%s1656 + $0x3c] sm:$0xe]
      %v2603 = vld [vmem:[%s1656 + $0x48] sm:$0xe]
      %v2604 = vld [vmem:[%s1656 + $0x54] sm:$0xe]
      %v2605 = vld [vmem:[%s1656 + $0x60] sm:$0xe]
      %v2606 = vld [vmem:[%s1656 + $0x6c] sm:$0xe]
      %v2607 = vld [vmem:[%s1656 + $0x78] sm:$0xe]
      %v2608 = vld [vmem:[%s1656 + $0x84] sm:$0xe]
      %v2609 = vld [vmem:[%s1656 + $0x90] sm:$0xe]
      %v2610 = vld [vmem:[%s1656 + $0x9c] sm:$0xe]
      %v2611 = vld [vmem:[%s1656 + $0xa8] sm:$0xe]
      %v2612 = vld [vmem:[%s1656 + $0xb4] sm:$0xe]
      %v2661 = vrot.slane %v2597, 5
      %v2662 = vrot.slane %v2661, 4
      %v2663 = vrot.slane %v1944, 5
      %v2664 = vsel %vm1321, %v2662, %v2663
      %v2665 = vrot.slane %v2663, 4
      %v2666 = vrot.slane %v1945, 5
      %v2667 = vsel %vm1321, %v2665, %v2666
      %v2668 = vrot.slane %v2598, 5
      %v2669 = vrot.slane %v2668, 4
      %v2670 = vrot.slane %v1947, 5
      %v2671 = vsel %vm1321, %v2669, %v2670
      %v2672 = vrot.slane %v2670, 4
      %v2673 = vrot.slane %v1948, 5
      %v2674 = vsel %vm1321, %v2672, %v2673
      %v2675 = vrot.slane %v2599, 5
      %v2676 = vrot.slane %v2675, 4
      %v2677 = vrot.slane %v1950, 5
      %v2678 = vsel %vm1321, %v2676, %v2677
      %v2679 = vrot.slane %v2677, 4
      %v2680 = vrot.slane %v1951, 5
      %v2681 = vsel %vm1321, %v2679, %v2680
      %v2682 = vrot.slane %v2600, 5
      %v2683 = vrot.slane %v2682, 4
      %v2684 = vrot.slane %v1953, 5
      %v2685 = vsel %vm1321, %v2683, %v2684
      %v2686 = vrot.slane %v2684, 4
      %v2687 = vrot.slane %v1954, 5
      %v2688 = vsel %vm1321, %v2686, %v2687
      %v2689 = vrot.slane %v2601, 5
      %v2690 = vrot.slane %v2689, 4
      %v2691 = vrot.slane %v1956, 5
      %v2692 = vsel %vm1321, %v2690, %v2691
      %v2693 = vrot.slane %v2691, 4
      %v2694 = vrot.slane %v1957, 5
      %v2695 = vsel %vm1321, %v2693, %v2694
      %v2696 = vrot.slane %v2602, 5
      %v2697 = vrot.slane %v2696, 4
      %v2698 = vrot.slane %v1959, 5
      %v2699 = vsel %vm1321, %v2697, %v2698
      %v2700 = vrot.slane %v2698, 4
      %v2701 = vrot.slane %v1960, 5
      %v2702 = vsel %vm1321, %v2700, %v2701
      %v2703 = vrot.slane %v2603, 5
      %v2704 = vrot.slane %v2703, 4
      %v2705 = vrot.slane %v1962, 5
      %v2706 = vsel %vm1321, %v2704, %v2705
      %v2707 = vrot.slane %v2705, 4
      %v2708 = vrot.slane %v1963, 5
      %v2709 = vsel %vm1321, %v2707, %v2708
      %v2710 = vrot.slane %v2604, 5
      %v2711 = vrot.slane %v2710, 4
      %v2712 = vrot.slane %v1965, 5
      %v2713 = vsel %vm1321, %v2711, %v2712
      %v2714 = vrot.slane %v2712, 4
      %v2715 = vrot.slane %v1966, 5
      %v2716 = vsel %vm1321, %v2714, %v2715
      %v2717 = vrot.slane %v2605, 5
      %v2718 = vrot.slane %v2717, 4
      %v2719 = vrot.slane %v1968, 5
      %v2720 = vsel %vm1321, %v2718, %v2719
      %v2721 = vrot.slane %v2719, 4
      %v2722 = vrot.slane %v1969, 5
      %v2723 = vsel %vm1321, %v2721, %v2722
      %v2724 = vrot.slane %v2606, 5
      %v2725 = vrot.slane %v2724, 4
      %v2726 = vrot.slane %v1971, 5
      %v2727 = vsel %vm1321, %v2725, %v2726
      %v2728 = vrot.slane %v2726, 4
      %v2729 = vrot.slane %v1972, 5
      %v2730 = vsel %vm1321, %v2728, %v2729
      %v2731 = vrot.slane %v2607, 5
      %v2732 = vrot.slane %v2731, 4
      %v2733 = vrot.slane %v1974, 5
      %v2734 = vsel %vm1321, %v2732, %v2733
      %v2735 = vrot.slane %v2733, 4
      %v2736 = vrot.slane %v1975, 5
      %v2737 = vsel %vm1321, %v2735, %v2736
      %v2738 = vrot.slane %v2608, 5
      %v2739 = vrot.slane %v2738, 4
      %v2740 = vrot.slane %v1977, 5
      %v2741 = vsel %vm1321, %v2739, %v2740
      %v2742 = vrot.slane %v2740, 4
      %v2743 = vrot.slane %v1978, 5
      %v2744 = vsel %vm1321, %v2742, %v2743
      %v2745 = vrot.slane %v2609, 5
      %v2746 = vrot.slane %v2745, 4
      %v2747 = vrot.slane %v1980, 5
      %v2748 = vsel %vm1321, %v2746, %v2747
      %v2749 = vrot.slane %v2747, 4
      %v2750 = vrot.slane %v1981, 5
      %v2751 = vsel %vm1321, %v2749, %v2750
      %v2752 = vrot.slane %v2610, 5
      %v2753 = vrot.slane %v2752, 4
      %v2754 = vrot.slane %v1983, 5
      %v2755 = vsel %vm1321, %v2753, %v2754
      %v2756 = vrot.slane %v2754, 4
      %v2757 = vrot.slane %v1984, 5
      %v2758 = vsel %vm1321, %v2756, %v2757
      %v2759 = vrot.slane %v2611, 5
      %v2760 = vrot.slane %v2759, 4
      %v2761 = vrot.slane %v1986, 5
      %v2762 = vsel %vm1321, %v2760, %v2761
      %v2763 = vrot.slane %v2761, 4
      %v2764 = vrot.slane %v1987, 5
      %v2765 = vsel %vm1321, %v2763, %v2764
      %v2766 = vrot.slane %v2612, 5
      %v2767 = vrot.slane %v2766, 4
      %v2768 = vrot.slane %v1989, 5
      %v2769 = vsel %vm1321, %v2767, %v2768
      %v2770 = vrot.slane %v2768, 4
      %v2771 = vrot.slane %v1990, 5
      %v2772 = vsel %vm1321, %v2770, %v2771
      %s2773 = scalar_lea.vmem %s231, 10
      %v2774 = vld [vmem:[%s2773] sm:$0x3]
      %v2775 = vunpack.c.l.b16 %v2664
      %v2776 = vunpack.c.l.b16 %v2667
      %v2777 = vunpack.c.l.b16 %v2671
      %v2778 = vunpack.c.l.b16 %v2674
      %v2779 = vunpack.c.l.b16 %v2678
      %v2780 = vunpack.c.l.b16 %v2681
      %v2781 = vunpack.c.l.b16 %v2685
      %v2782 = vunpack.c.l.b16 %v2688
      %v2783 = vunpack.c.l.b16 %v2692
      %v2784 = vunpack.c.l.b16 %v2695
      %v2785 = vunpack.c.l.b16 %v2699
      %v2786 = vunpack.c.l.b16 %v2702
      %v2787 = vunpack.c.l.b16 %v2706
      %v2788 = vunpack.c.l.b16 %v2709
      %v2789 = vunpack.c.l.b16 %v2713
      %v2790 = vunpack.c.l.b16 %v2716
      %v2791 = vunpack.c.l.b16 %v2720
      %v2792 = vunpack.c.l.b16 %v2723
      %v2793 = vunpack.c.l.b16 %v2727
      %v2794 = vunpack.c.l.b16 %v2730
      %v2795 = vunpack.c.l.b16 %v2734
      %v2796 = vunpack.c.l.b16 %v2737
      %v2797 = vunpack.c.l.b16 %v2741
      %v2798 = vunpack.c.l.b16 %v2744
      %v2799 = vunpack.c.l.b16 %v2748
      %v2800 = vunpack.c.l.b16 %v2751
      %v2801 = vunpack.c.l.b16 %v2755
      %v2802 = vunpack.c.l.b16 %v2758
      %v2803 = vunpack.c.l.b16 %v2762
      %v2804 = vunpack.c.l.b16 %v2765
      %v2805 = vunpack.c.l.b16 %v2769
      %v2806 = vunpack.c.l.b16 %v2772
      %v2807 = vpack.c.b16 %v2776, %v2775
      %v2808 = vpack.c.b16 %v2778, %v2777
      %v2809 = vpack.c.b16 %v2780, %v2779
      %v2810 = vpack.c.b16 %v2782, %v2781
      %v2811 = vpack.c.b16 %v2784, %v2783
      %v2812 = vpack.c.b16 %v2786, %v2785
      %v2813 = vpack.c.b16 %v2788, %v2787
      %v2814 = vpack.c.b16 %v2790, %v2789
      %v2815 = vpack.c.b16 %v2792, %v2791
      %v2816 = vpack.c.b16 %v2794, %v2793
      %v2817 = vpack.c.b16 %v2796, %v2795
      %v2818 = vpack.c.b16 %v2798, %v2797
      %v2819 = vpack.c.b16 %v2800, %v2799
      %v2820 = vpack.c.b16 %v2802, %v2801
      %v2821 = vpack.c.b16 %v2804, %v2803
      %v2822 = vpack.c.b16 %v2806, %v2805
      %v2824 = vsel %vm424, %v2807, 0
      %v2827 = vsel %vm424, %v2808, 0
      %v2830 = vsel %vm424, %v2809, 0
      %v2833 = vsel %vm424, %v2810, 0
      %v2836 = vsel %vm424, %v2811, 0
      %v2839 = vsel %vm424, %v2812, 0
      %v2842 = vsel %vm424, %v2813, 0
      %v2845 = vsel %vm424, %v2814, 0
      %v2848 = vsel %vm424, %v2815, 0
      %v2851 = vsel %vm424, %v2816, 0
      %v2854 = vsel %vm424, %v2817, 0
      %v2857 = vsel %vm424, %v2818, 0
      %v2860 = vsel %vm424, %v2819, 0
      %v2863 = vsel %vm424, %v2820, 0
      %v2866 = vsel %vm424, %v2821, 0
      %v2869 = vsel %vm424, %v2822, 0
      %v2872 = vsel %vm473, %v2774, 0
      %2874 = vmatpush.bf16.msra.mxu0 0
      %2875 = vmatpush.bf16.msra.mxu0 0
      %2876 = vmatpush.bf16.msra.mxu0 0
      %2877 = vmatpush.bf16.msra.mxu0 0
      %2878 = vmatpush.bf16.msra.mxu0 0
      %2879 = vmatpush.bf16.msra.mxu0 0
      %2880 = vmatpush.bf16.msra.mxu0 0
      %2881 = vmatpush.bf16.msra.mxu0 %v2872
      %2882 = vmatmul.bf16.gmra.mxu0 %v2824
      %v2883 = vpop.f32.mrf.mxu0
      %v2884 = vadd.f32 0.0, %v2883
      %v2885 = vpop.f32.mrf.mxu0
      %v2886 = vadd.f32 0.0, %v2885
      %2887 = vmatmul.bf16.gmra.mxu0 %v2827
      %v2888 = vpop.f32.mrf.mxu0
      %v2889 = vadd.f32 0.0, %v2888
      %v2890 = vpop.f32.mrf.mxu0
      %v2891 = vadd.f32 0.0, %v2890
      %2892 = vmatmul.bf16.gmra.mxu0 %v2830
      %v2893 = vpop.f32.mrf.mxu0
      %v2894 = vadd.f32 0.0, %v2893
      %v2895 = vpop.f32.mrf.mxu0
      %v2896 = vadd.f32 0.0, %v2895
      %2897 = vmatmul.bf16.gmra.mxu0 %v2833
      %v2898 = vpop.f32.mrf.mxu0
      %v2899 = vadd.f32 0.0, %v2898
      %v2900 = vpop.f32.mrf.mxu0
      %v2901 = vadd.f32 0.0, %v2900
      %2902 = vmatmul.bf16.gmra.mxu0 %v2836
      %v2903 = vpop.f32.mrf.mxu0
      %v2904 = vadd.f32 0.0, %v2903
      %v2905 = vpop.f32.mrf.mxu0
      %v2906 = vadd.f32 0.0, %v2905
      %2907 = vmatmul.bf16.gmra.mxu0 %v2839
      %v2908 = vpop.f32.mrf.mxu0
      %v2909 = vadd.f32 0.0, %v2908
      %v2910 = vpop.f32.mrf.mxu0
      %v2911 = vadd.f32 0.0, %v2910
      %2912 = vmatmul.bf16.gmra.mxu0 %v2842
      %v2913 = vpop.f32.mrf.mxu0
      %v2914 = vadd.f32 0.0, %v2913
      %v2915 = vpop.f32.mrf.mxu0
      %v2916 = vadd.f32 0.0, %v2915
      %2917 = vmatmul.bf16.gmra.mxu0 %v2845
      %v2918 = vpop.f32.mrf.mxu0
      %v2919 = vadd.f32 0.0, %v2918
      %v2920 = vpop.f32.mrf.mxu0
      %v2921 = vadd.f32 0.0, %v2920
      %2922 = vmatmul.bf16.gmra.mxu0 %v2848
      %v2923 = vpop.f32.mrf.mxu0
      %v2924 = vadd.f32 0.0, %v2923
      %v2925 = vpop.f32.mrf.mxu0
      %v2926 = vadd.f32 0.0, %v2925
      %2927 = vmatmul.bf16.gmra.mxu0 %v2851
      %v2928 = vpop.f32.mrf.mxu0
      %v2929 = vadd.f32 0.0, %v2928
      %v2930 = vpop.f32.mrf.mxu0
      %v2931 = vadd.f32 0.0, %v2930
      %2932 = vmatmul.bf16.gmra.mxu0 %v2854
      %v2933 = vpop.f32.mrf.mxu0
      %v2934 = vadd.f32 0.0, %v2933
      %v2935 = vpop.f32.mrf.mxu0
      %v2936 = vadd.f32 0.0, %v2935
      %2937 = vmatmul.bf16.gmra.mxu0 %v2857
      %v2938 = vpop.f32.mrf.mxu0
      %v2939 = vadd.f32 0.0, %v2938
      %v2940 = vpop.f32.mrf.mxu0
      %v2941 = vadd.f32 0.0, %v2940
      %2942 = vmatmul.bf16.gmra.mxu0 %v2860
      %v2943 = vpop.f32.mrf.mxu0
      %v2944 = vadd.f32 0.0, %v2943
      %v2945 = vpop.f32.mrf.mxu0
      %v2946 = vadd.f32 0.0, %v2945
      %2947 = vmatmul.bf16.gmra.mxu0 %v2863
      %v2948 = vpop.f32.mrf.mxu0
      %v2949 = vadd.f32 0.0, %v2948
      %v2950 = vpop.f32.mrf.mxu0
      %v2951 = vadd.f32 0.0, %v2950
      %2952 = vmatmul.bf16.gmra.mxu0 %v2866
      %v2953 = vpop.f32.mrf.mxu0
      %v2954 = vadd.f32 0.0, %v2953
      %v2955 = vpop.f32.mrf.mxu0
      %v2956 = vadd.f32 0.0, %v2955
      %2957 = vmatmul.bf16.gmra.mxu0 %v2869
      %v2958 = vpop.f32.mrf.mxu0
      %v2959 = vadd.f32 0.0, %v2958
      %v2960 = vpop.f32.mrf.mxu0
      %v2961 = vadd.f32 0.0, %v2960
      %2962 = vdwg.mxu0
      %v2963 = vadd.f32 %v2565, %v2884
      %v2964 = vadd.f32 %v2566, %v2886
      %v2965 = vadd.f32 %v2567, %v2889
      %v2966 = vadd.f32 %v2568, %v2891
      %v2967 = vadd.f32 %v2569, %v2894
      %v2968 = vadd.f32 %v2570, %v2896
      %v2969 = vadd.f32 %v2571, %v2899
      %v2970 = vadd.f32 %v2572, %v2901
      %v2971 = vadd.f32 %v2573, %v2904
      %v2972 = vadd.f32 %v2574, %v2906
      %v2973 = vadd.f32 %v2575, %v2909
      %v2974 = vadd.f32 %v2576, %v2911
      %v2975 = vadd.f32 %v2577, %v2914
      %v2976 = vadd.f32 %v2578, %v2916
      %v2977 = vadd.f32 %v2579, %v2919
      %v2978 = vadd.f32 %v2580, %v2921
      %v2979 = vadd.f32 %v2581, %v2924
      %v2980 = vadd.f32 %v2582, %v2926
      %v2981 = vadd.f32 %v2583, %v2929
      %v2982 = vadd.f32 %v2584, %v2931
      %v2983 = vadd.f32 %v2585, %v2934
      %v2984 = vadd.f32 %v2586, %v2936
      %v2985 = vadd.f32 %v2587, %v2939
      %v2986 = vadd.f32 %v2588, %v2941
      %v2987 = vadd.f32 %v2589, %v2944
      %v2988 = vadd.f32 %v2590, %v2946
      %v2989 = vadd.f32 %v2591, %v2949
      %v2990 = vadd.f32 %v2592, %v2951
      %v2991 = vadd.f32 %v2593, %v2954
      %v2992 = vadd.f32 %v2594, %v2956
      %v2993 = vadd.f32 %v2595, %v2959
      %v2994 = vadd.f32 %v2596, %v2961
      %s2995 = scalar_lea.vmem %s225, 24
      %v2996 = vld [vmem:[%s2995] sm:$0xf]
      %v2997 = vld [vmem:[%s2995 + $0x4] sm:$0xf]
      %v2998 = vld [vmem:[%s2995 + $0xc] sm:$0xf]
      %v2999 = vld [vmem:[%s2995 + $0x10] sm:$0xf]
      %v3000 = vld [vmem:[%s2995 + $0x18] sm:$0xf]
      %v3001 = vld [vmem:[%s2995 + $0x1c] sm:$0xf]
      %v3002 = vld [vmem:[%s2995 + $0x24] sm:$0xf]
      %v3003 = vld [vmem:[%s2995 + $0x28] sm:$0xf]
      %v3004 = vld [vmem:[%s2995 + $0x30] sm:$0xf]
      %v3005 = vld [vmem:[%s2995 + $0x34] sm:$0xf]
      %v3006 = vld [vmem:[%s2995 + $0x3c] sm:$0xf]
      %v3007 = vld [vmem:[%s2995 + $0x40] sm:$0xf]
      %v3008 = vld [vmem:[%s2995 + $0x48] sm:$0xf]
      %v3009 = vld [vmem:[%s2995 + $0x4c] sm:$0xf]
      %v3010 = vld [vmem:[%s2995 + $0x54] sm:$0xf]
      %v3011 = vld [vmem:[%s2995 + $0x58] sm:$0xf]
      %v3012 = vld [vmem:[%s2995 + $0x60] sm:$0xf]
      %v3013 = vld [vmem:[%s2995 + $0x64] sm:$0xf]
      %v3014 = vld [vmem:[%s2995 + $0x6c] sm:$0xf]
      %v3015 = vld [vmem:[%s2995 + $0x70] sm:$0xf]
      %v3016 = vld [vmem:[%s2995 + $0x78] sm:$0xf]
      %v3017 = vld [vmem:[%s2995 + $0x7c] sm:$0xf]
      %v3018 = vld [vmem:[%s2995 + $0x84] sm:$0xf]
      %v3019 = vld [vmem:[%s2995 + $0x88] sm:$0xf]
      %v3020 = vld [vmem:[%s2995 + $0x90] sm:$0xf]
      %v3021 = vld [vmem:[%s2995 + $0x94] sm:$0xf]
      %v3022 = vld [vmem:[%s2995 + $0x9c] sm:$0xf]
      %v3023 = vld [vmem:[%s2995 + $0xa0] sm:$0xf]
      %v3024 = vld [vmem:[%s2995 + $0xa8] sm:$0xf]
      %v3025 = vld [vmem:[%s2995 + $0xac] sm:$0xf]
      %v3026 = vld [vmem:[%s2995 + $0xb4] sm:$0xf]
      %v3027 = vld [vmem:[%s2995 + $0xb8] sm:$0xf]
      %s3028 = scalar_lea.vmem %s231, 12
      %v3029 = vld [vmem:[%s3028] sm:$0x3]
      %v3062 = vunpack.c.l.b16 %v2996
      %v3063 = vunpack.c.l.b16 %v2997
      %v3064 = vunpack.c.l.b16 %v2998
      %v3065 = vunpack.c.l.b16 %v2999
      %v3066 = vunpack.c.l.b16 %v3000
      %v3067 = vunpack.c.l.b16 %v3001
      %v3068 = vunpack.c.l.b16 %v3002
      %v3069 = vunpack.c.l.b16 %v3003
      %v3070 = vunpack.c.l.b16 %v3004
      %v3071 = vunpack.c.l.b16 %v3005
      %v3072 = vunpack.c.l.b16 %v3006
      %v3073 = vunpack.c.l.b16 %v3007
      %v3074 = vunpack.c.l.b16 %v3008
      %v3075 = vunpack.c.l.b16 %v3009
      %v3076 = vunpack.c.l.b16 %v3010
      %v3077 = vunpack.c.l.b16 %v3011
      %v3078 = vunpack.c.l.b16 %v3012
      %v3079 = vunpack.c.l.b16 %v3013
      %v3080 = vunpack.c.l.b16 %v3014
      %v3081 = vunpack.c.l.b16 %v3015
      %v3082 = vunpack.c.l.b16 %v3016
      %v3083 = vunpack.c.l.b16 %v3017
      %v3084 = vunpack.c.l.b16 %v3018
      %v3085 = vunpack.c.l.b16 %v3019
      %v3086 = vunpack.c.l.b16 %v3020
      %v3087 = vunpack.c.l.b16 %v3021
      %v3088 = vunpack.c.l.b16 %v3022
      %v3089 = vunpack.c.l.b16 %v3023
      %v3090 = vunpack.c.l.b16 %v3024
      %v3091 = vunpack.c.l.b16 %v3025
      %v3092 = vunpack.c.l.b16 %v3026
      %v3093 = vunpack.c.l.b16 %v3027
      %v3094 = vpack.c.b16 %v3063, %v3062
      %v3095 = vpack.c.b16 %v3065, %v3064
      %v3096 = vpack.c.b16 %v3067, %v3066
      %v3097 = vpack.c.b16 %v3069, %v3068
      %v3098 = vpack.c.b16 %v3071, %v3070
      %v3099 = vpack.c.b16 %v3073, %v3072
      %v3100 = vpack.c.b16 %v3075, %v3074
      %v3101 = vpack.c.b16 %v3077, %v3076
      %v3102 = vpack.c.b16 %v3079, %v3078
      %v3103 = vpack.c.b16 %v3081, %v3080
      %v3104 = vpack.c.b16 %v3083, %v3082
      %v3105 = vpack.c.b16 %v3085, %v3084
      %v3106 = vpack.c.b16 %v3087, %v3086
      %v3107 = vpack.c.b16 %v3089, %v3088
      %v3108 = vpack.c.b16 %v3091, %v3090
      %v3109 = vpack.c.b16 %v3093, %v3092
      %v3111 = vsel %vm424, %v3094, 0
      %v3114 = vsel %vm424, %v3095, 0
      %v3117 = vsel %vm424, %v3096, 0
      %v3120 = vsel %vm424, %v3097, 0
      %v3123 = vsel %vm424, %v3098, 0
      %v3126 = vsel %vm424, %v3099, 0
      %v3129 = vsel %vm424, %v3100, 0
      %v3132 = vsel %vm424, %v3101, 0
      %v3135 = vsel %vm424, %v3102, 0
      %v3138 = vsel %vm424, %v3103, 0
      %v3141 = vsel %vm424, %v3104, 0
      %v3144 = vsel %vm424, %v3105, 0
      %v3147 = vsel %vm424, %v3106, 0
      %v3150 = vsel %vm424, %v3107, 0
      %v3153 = vsel %vm424, %v3108, 0
      %v3156 = vsel %vm424, %v3109, 0
      %v3159 = vsel %vm473, %v3029, 0
      %3161 = vmatpush.bf16.msra.mxu0 0
      %3162 = vmatpush.bf16.msra.mxu0 0
      %3163 = vmatpush.bf16.msra.mxu0 0
      %3164 = vmatpush.bf16.msra.mxu0 0
      %3165 = vmatpush.bf16.msra.mxu0 0
      %3166 = vmatpush.bf16.msra.mxu0 0
      %3167 = vmatpush.bf16.msra.mxu0 0
      %3168 = vmatpush.bf16.msra.mxu0 %v3159
      %3169 = vmatmul.bf16.gmra.mxu0 %v3111
      %v3170 = vpop.f32.mrf.mxu0
      %v3171 = vadd.f32 0.0, %v3170
      %v3172 = vpop.f32.mrf.mxu0
      %v3173 = vadd.f32 0.0, %v3172
      %3174 = vmatmul.bf16.gmra.mxu0 %v3114
      %v3175 = vpop.f32.mrf.mxu0
      %v3176 = vadd.f32 0.0, %v3175
      %v3177 = vpop.f32.mrf.mxu0
      %v3178 = vadd.f32 0.0, %v3177
      %3179 = vmatmul.bf16.gmra.mxu0 %v3117
      %v3180 = vpop.f32.mrf.mxu0
      %v3181 = vadd.f32 0.0, %v3180
      %v3182 = vpop.f32.mrf.mxu0
      %v3183 = vadd.f32 0.0, %v3182
      %3184 = vmatmul.bf16.gmra.mxu0 %v3120
      %v3185 = vpop.f32.mrf.mxu0
      %v3186 = vadd.f32 0.0, %v3185
      %v3187 = vpop.f32.mrf.mxu0
      %v3188 = vadd.f32 0.0, %v3187
      %3189 = vmatmul.bf16.gmra.mxu0 %v3123
      %v3190 = vpop.f32.mrf.mxu0
      %v3191 = vadd.f32 0.0, %v3190
      %v3192 = vpop.f32.mrf.mxu0
      %v3193 = vadd.f32 0.0, %v3192
      %3194 = vmatmul.bf16.gmra.mxu0 %v3126
      %v3195 = vpop.f32.mrf.mxu0
      %v3196 = vadd.f32 0.0, %v3195
      %v3197 = vpop.f32.mrf.mxu0
      %v3198 = vadd.f32 0.0, %v3197
      %3199 = vmatmul.bf16.gmra.mxu0 %v3129
      %v3200 = vpop.f32.mrf.mxu0
      %v3201 = vadd.f32 0.0, %v3200
      %v3202 = vpop.f32.mrf.mxu0
      %v3203 = vadd.f32 0.0, %v3202
      %3204 = vmatmul.bf16.gmra.mxu0 %v3132
      %v3205 = vpop.f32.mrf.mxu0
      %v3206 = vadd.f32 0.0, %v3205
      %v3207 = vpop.f32.mrf.mxu0
      %v3208 = vadd.f32 0.0, %v3207
      %3209 = vmatmul.bf16.gmra.mxu0 %v3135
      %v3210 = vpop.f32.mrf.mxu0
      %v3211 = vadd.f32 0.0, %v3210
      %v3212 = vpop.f32.mrf.mxu0
      %v3213 = vadd.f32 0.0, %v3212
      %3214 = vmatmul.bf16.gmra.mxu0 %v3138
      %v3215 = vpop.f32.mrf.mxu0
      %v3216 = vadd.f32 0.0, %v3215
      %v3217 = vpop.f32.mrf.mxu0
      %v3218 = vadd.f32 0.0, %v3217
      %3219 = vmatmul.bf16.gmra.mxu0 %v3141
      %v3220 = vpop.f32.mrf.mxu0
      %v3221 = vadd.f32 0.0, %v3220
      %v3222 = vpop.f32.mrf.mxu0
      %v3223 = vadd.f32 0.0, %v3222
      %3224 = vmatmul.bf16.gmra.mxu0 %v3144
      %v3225 = vpop.f32.mrf.mxu0
      %v3226 = vadd.f32 0.0, %v3225
      %v3227 = vpop.f32.mrf.mxu0
      %v3228 = vadd.f32 0.0, %v3227
      %3229 = vmatmul.bf16.gmra.mxu0 %v3147
      %v3230 = vpop.f32.mrf.mxu0
      %v3231 = vadd.f32 0.0, %v3230
      %v3232 = vpop.f32.mrf.mxu0
      %v3233 = vadd.f32 0.0, %v3232
      %3234 = vmatmul.bf16.gmra.mxu0 %v3150
      %v3235 = vpop.f32.mrf.mxu0
      %v3236 = vadd.f32 0.0, %v3235
      %v3237 = vpop.f32.mrf.mxu0
      %v3238 = vadd.f32 0.0, %v3237
      %3239 = vmatmul.bf16.gmra.mxu0 %v3153
      %v3240 = vpop.f32.mrf.mxu0
      %v3241 = vadd.f32 0.0, %v3240
      %v3242 = vpop.f32.mrf.mxu0
      %v3243 = vadd.f32 0.0, %v3242
      %3244 = vmatmul.bf16.gmra.mxu0 %v3156
      %v3245 = vpop.f32.mrf.mxu0
      %v3246 = vadd.f32 0.0, %v3245
      %v3247 = vpop.f32.mrf.mxu0
      %v3248 = vadd.f32 0.0, %v3247
      %3249 = vdwg.mxu0
      %v3250 = vadd.f32 %v2963, %v3171
      %v3251 = vadd.f32 %v2964, %v3173
      %v3252 = vadd.f32 %v2965, %v3176
      %v3253 = vadd.f32 %v2966, %v3178
      %v3254 = vadd.f32 %v2967, %v3181
      %v3255 = vadd.f32 %v2968, %v3183
      %v3256 = vadd.f32 %v2969, %v3186
      %v3257 = vadd.f32 %v2970, %v3188
      %v3258 = vadd.f32 %v2971, %v3191
      %v3259 = vadd.f32 %v2972, %v3193
      %v3260 = vadd.f32 %v2973, %v3196
      %v3261 = vadd.f32 %v2974, %v3198
      %v3262 = vadd.f32 %v2975, %v3201
      %v3263 = vadd.f32 %v2976, %v3203
      %v3264 = vadd.f32 %v2977, %v3206
      %v3265 = vadd.f32 %v2978, %v3208
      %v3266 = vadd.f32 %v2979, %v3211
      %v3267 = vadd.f32 %v2980, %v3213
      %v3268 = vadd.f32 %v2981, %v3216
      %v3269 = vadd.f32 %v2982, %v3218
      %v3270 = vadd.f32 %v2983, %v3221
      %v3271 = vadd.f32 %v2984, %v3223
      %v3272 = vadd.f32 %v2985, %v3226
      %v3273 = vadd.f32 %v2986, %v3228
      %v3274 = vadd.f32 %v2987, %v3231
      %v3275 = vadd.f32 %v2988, %v3233
      %v3276 = vadd.f32 %v2989, %v3236
      %v3277 = vadd.f32 %v2990, %v3238
      %v3278 = vadd.f32 %v2991, %v3241
      %v3279 = vadd.f32 %v2992, %v3243
      %v3280 = vadd.f32 %v2993, %v3246
      %v3281 = vadd.f32 %v2994, %v3248
      %v3282 = vld [vmem:[%s2995] sm:$0xf]
      %v3283 = vld [vmem:[%s2995 + $0x4] sm:$0xf]
      %v3284 = vld [vmem:[%s2995 + $0x8] sm:$0x1]
      %v3285 = vld [vmem:[%s2995 + $0xc] sm:$0xf]
      %v3286 = vld [vmem:[%s2995 + $0x10] sm:$0xf]
      %v3287 = vld [vmem:[%s2995 + $0x14] sm:$0x1]
      %v3288 = vld [vmem:[%s2995 + $0x18] sm:$0xf]
      %v3289 = vld [vmem:[%s2995 + $0x1c] sm:$0xf]
      %v3290 = vld [vmem:[%s2995 + $0x20] sm:$0x1]
      %v3291 = vld [vmem:[%s2995 + $0x24] sm:$0xf]
      %v3292 = vld [vmem:[%s2995 + $0x28] sm:$0xf]
      %v3293 = vld [vmem:[%s2995 + $0x2c] sm:$0x1]
      %v3294 = vld [vmem:[%s2995 + $0x30] sm:$0xf]
      %v3295 = vld [vmem:[%s2995 + $0x34] sm:$0xf]
      %v3296 = vld [vmem:[%s2995 + $0x38] sm:$0x1]
      %v3297 = vld [vmem:[%s2995 + $0x3c] sm:$0xf]
      %v3298 = vld [vmem:[%s2995 + $0x40] sm:$0xf]
      %v3299 = vld [vmem:[%s2995 + $0x44] sm:$0x1]
      %v3300 = vld [vmem:[%s2995 + $0x48] sm:$0xf]
      %v3301 = vld [vmem:[%s2995 + $0x4c] sm:$0xf]
      %v3302 = vld [vmem:[%s2995 + $0x50] sm:$0x1]
      %v3303 = vld [vmem:[%s2995 + $0x54] sm:$0xf]
      %v3304 = vld [vmem:[%s2995 + $0x58] sm:$0xf]
      %v3305 = vld [vmem:[%s2995 + $0x5c] sm:$0x1]
      %v3306 = vld [vmem:[%s2995 + $0x60] sm:$0xf]
      %v3307 = vld [vmem:[%s2995 + $0x64] sm:$0xf]
      %v3308 = vld [vmem:[%s2995 + $0x68] sm:$0x1]
      %v3309 = vld [vmem:[%s2995 + $0x6c] sm:$0xf]
      %v3310 = vld [vmem:[%s2995 + $0x70] sm:$0xf]
      %v3311 = vld [vmem:[%s2995 + $0x74] sm:$0x1]
      %v3312 = vld [vmem:[%s2995 + $0x78] sm:$0xf]
      %v3313 = vld [vmem:[%s2995 + $0x7c] sm:$0xf]
      %v3314 = vld [vmem:[%s2995 + $0x80] sm:$0x1]
      %v3315 = vld [vmem:[%s2995 + $0x84] sm:$0xf]
      %v3316 = vld [vmem:[%s2995 + $0x88] sm:$0xf]
      %v3317 = vld [vmem:[%s2995 + $0x8c] sm:$0x1]
      %v3318 = vld [vmem:[%s2995 + $0x90] sm:$0xf]
      %v3319 = vld [vmem:[%s2995 + $0x94] sm:$0xf]
      %v3320 = vld [vmem:[%s2995 + $0x98] sm:$0x1]
      %v3321 = vld [vmem:[%s2995 + $0x9c] sm:$0xf]
      %v3322 = vld [vmem:[%s2995 + $0xa0] sm:$0xf]
      %v3323 = vld [vmem:[%s2995 + $0xa4] sm:$0x1]
      %v3324 = vld [vmem:[%s2995 + $0xa8] sm:$0xf]
      %v3325 = vld [vmem:[%s2995 + $0xac] sm:$0xf]
      %v3326 = vld [vmem:[%s2995 + $0xb0] sm:$0x1]
      %v3327 = vld [vmem:[%s2995 + $0xb4] sm:$0xf]
      %v3328 = vld [vmem:[%s2995 + $0xb8] sm:$0xf]
      %v3329 = vld [vmem:[%s2995 + $0xbc] sm:$0x1]
      %v3331 = vshrl.u32 %v3282, 16
      %v3333 = vrot.slane %v3331, 4
      %v3334 = vshll.u32 %v3282, 16
      %v3336 = vrot.slane %v3334, 5
      %v3337 = vor.u32 %v3333, %v3336
      %v3338 = vrot.slane %v3337, 4
      %v3340 = vshll.u32 %v3283, 16
      %v3342 = vrot.slane %v3340, 5
      %v3343 = vsel %vm648, %v3338, %v3342
      %v3344 = vshrl.u32 %v3283, 16
      %v3346 = vrot.slane %v3344, 4
      %v3347 = vor.u32 %v3346, %v3342
      %v3348 = vrot.slane %v3347, 4
      %v3350 = vshll.u32 %v3284, 16
      %v3352 = vrot.slane %v3350, 5
      %v3353 = vsel %vm648, %v3348, %v3352
      %v3355 = vshrl.u32 %v3285, 16
      %v3357 = vrot.slane %v3355, 4
      %v3358 = vshll.u32 %v3285, 16
      %v3360 = vrot.slane %v3358, 5
      %v3361 = vor.u32 %v3357, %v3360
      %v3362 = vrot.slane %v3361, 4
      %v3364 = vshll.u32 %v3286, 16
      %v3366 = vrot.slane %v3364, 5
      %v3367 = vsel %vm648, %v3362, %v3366
      %v3368 = vshrl.u32 %v3286, 16
      %v3370 = vrot.slane %v3368, 4
      %v3371 = vor.u32 %v3370, %v3366
      %v3372 = vrot.slane %v3371, 4
      %v3374 = vshll.u32 %v3287, 16
      %v3376 = vrot.slane %v3374, 5
      %v3377 = vsel %vm648, %v3372, %v3376
      %v3379 = vshrl.u32 %v3288, 16
      %v3381 = vrot.slane %v3379, 4
      %v3382 = vshll.u32 %v3288, 16
      %v3384 = vrot.slane %v3382, 5
      %v3385 = vor.u32 %v3381, %v3384
      %v3386 = vrot.slane %v3385, 4
      %v3388 = vshll.u32 %v3289, 16
      %v3390 = vrot.slane %v3388, 5
      %v3391 = vsel %vm648, %v3386, %v3390
      %v3392 = vshrl.u32 %v3289, 16
      %v3394 = vrot.slane %v3392, 4
      %v3395 = vor.u32 %v3394, %v3390
      %v3396 = vrot.slane %v3395, 4
      %v3398 = vshll.u32 %v3290, 16
      %v3400 = vrot.slane %v3398, 5
      %v3401 = vsel %vm648, %v3396, %v3400
      %v3403 = vshrl.u32 %v3291, 16
      %v3405 = vrot.slane %v3403, 4
      %v3406 = vshll.u32 %v3291, 16
      %v3408 = vrot.slane %v3406, 5
      %v3409 = vor.u32 %v3405, %v3408
      %v3410 = vrot.slane %v3409, 4
      %v3412 = vshll.u32 %v3292, 16
      %v3414 = vrot.slane %v3412, 5
      %v3415 = vsel %vm648, %v3410, %v3414
      %v3416 = vshrl.u32 %v3292, 16
      %v3418 = vrot.slane %v3416, 4
      %v3419 = vor.u32 %v3418, %v3414
      %v3420 = vrot.slane %v3419, 4
      %v3422 = vshll.u32 %v3293, 16
      %v3424 = vrot.slane %v3422, 5
      %v3425 = vsel %vm648, %v3420, %v3424
      %v3427 = vshrl.u32 %v3294, 16
      %v3429 = vrot.slane %v3427, 4
      %v3430 = vshll.u32 %v3294, 16
      %v3432 = vrot.slane %v3430, 5
      %v3433 = vor.u32 %v3429, %v3432
      %v3434 = vrot.slane %v3433, 4
      %v3436 = vshll.u32 %v3295, 16
      %v3438 = vrot.slane %v3436, 5
      %v3439 = vsel %vm648, %v3434, %v3438
      %v3440 = vshrl.u32 %v3295, 16
      %v3442 = vrot.slane %v3440, 4
      %v3443 = vor.u32 %v3442, %v3438
      %v3444 = vrot.slane %v3443, 4
      %v3446 = vshll.u32 %v3296, 16
      %v3448 = vrot.slane %v3446, 5
      %v3449 = vsel %vm648, %v3444, %v3448
      %v3451 = vshrl.u32 %v3297, 16
      %v3453 = vrot.slane %v3451, 4
      %v3454 = vshll.u32 %v3297, 16
      %v3456 = vrot.slane %v3454, 5
      %v3457 = vor.u32 %v3453, %v3456
      %v3458 = vrot.slane %v3457, 4
      %v3460 = vshll.u32 %v3298, 16
      %v3462 = vrot.slane %v3460, 5
      %v3463 = vsel %vm648, %v3458, %v3462
      %v3464 = vshrl.u32 %v3298, 16
      %v3466 = vrot.slane %v3464, 4
      %v3467 = vor.u32 %v3466, %v3462
      %v3468 = vrot.slane %v3467, 4
      %v3470 = vshll.u32 %v3299, 16
      %v3472 = vrot.slane %v3470, 5
      %v3473 = vsel %vm648, %v3468, %v3472
      %v3475 = vshrl.u32 %v3300, 16
      %v3477 = vrot.slane %v3475, 4
      %v3478 = vshll.u32 %v3300, 16
      %v3480 = vrot.slane %v3478, 5
      %v3481 = vor.u32 %v3477, %v3480
      %v3482 = vrot.slane %v3481, 4
      %v3484 = vshll.u32 %v3301, 16
      %v3486 = vrot.slane %v3484, 5
      %v3487 = vsel %vm648, %v3482, %v3486
      %v3488 = vshrl.u32 %v3301, 16
      %v3490 = vrot.slane %v3488, 4
      %v3491 = vor.u32 %v3490, %v3486
      %v3492 = vrot.slane %v3491, 4
      %v3494 = vshll.u32 %v3302, 16
      %v3496 = vrot.slane %v3494, 5
      %v3497 = vsel %vm648, %v3492, %v3496
      %v3499 = vshrl.u32 %v3303, 16
      %v3501 = vrot.slane %v3499, 4
      %v3502 = vshll.u32 %v3303, 16
      %v3504 = vrot.slane %v3502, 5
      %v3505 = vor.u32 %v3501, %v3504
      %v3506 = vrot.slane %v3505, 4
      %v3508 = vshll.u32 %v3304, 16
      %v3510 = vrot.slane %v3508, 5
      %v3511 = vsel %vm648, %v3506, %v3510
      %v3512 = vshrl.u32 %v3304, 16
      %v3514 = vrot.slane %v3512, 4
      %v3515 = vor.u32 %v3514, %v3510
      %v3516 = vrot.slane %v3515, 4
      %v3518 = vshll.u32 %v3305, 16
      %v3520 = vrot.slane %v3518, 5
      %v3521 = vsel %vm648, %v3516, %v3520
      %v3523 = vshrl.u32 %v3306, 16
      %v3525 = vrot.slane %v3523, 4
      %v3526 = vshll.u32 %v3306, 16
      %v3528 = vrot.slane %v3526, 5
      %v3529 = vor.u32 %v3525, %v3528
      %v3530 = vrot.slane %v3529, 4
      %v3532 = vshll.u32 %v3307, 16
      %v3534 = vrot.slane %v3532, 5
      %v3535 = vsel %vm648, %v3530, %v3534
      %v3536 = vshrl.u32 %v3307, 16
      %v3538 = vrot.slane %v3536, 4
      %v3539 = vor.u32 %v3538, %v3534
      %v3540 = vrot.slane %v3539, 4
      %v3542 = vshll.u32 %v3308, 16
      %v3544 = vrot.slane %v3542, 5
      %v3545 = vsel %vm648, %v3540, %v3544
      %v3547 = vshrl.u32 %v3309, 16
      %v3549 = vrot.slane %v3547, 4
      %v3550 = vshll.u32 %v3309, 16
      %v3552 = vrot.slane %v3550, 5
      %v3553 = vor.u32 %v3549, %v3552
      %v3554 = vrot.slane %v3553, 4
      %v3556 = vshll.u32 %v3310, 16
      %v3558 = vrot.slane %v3556, 5
      %v3559 = vsel %vm648, %v3554, %v3558
      %v3560 = vshrl.u32 %v3310, 16
      %v3562 = vrot.slane %v3560, 4
      %v3563 = vor.u32 %v3562, %v3558
      %v3564 = vrot.slane %v3563, 4
      %v3566 = vshll.u32 %v3311, 16
      %v3568 = vrot.slane %v3566, 5
      %v3569 = vsel %vm648, %v3564, %v3568
      %v3571 = vshrl.u32 %v3312, 16
      %v3573 = vrot.slane %v3571, 4
      %v3574 = vshll.u32 %v3312, 16
      %v3576 = vrot.slane %v3574, 5
      %v3577 = vor.u32 %v3573, %v3576
      %v3578 = vrot.slane %v3577, 4
      %v3580 = vshll.u32 %v3313, 16
      %v3582 = vrot.slane %v3580, 5
      %v3583 = vsel %vm648, %v3578, %v3582
      %v3584 = vshrl.u32 %v3313, 16
      %v3586 = vrot.slane %v3584, 4
      %v3587 = vor.u32 %v3586, %v3582
      %v3588 = vrot.slane %v3587, 4
      %v3590 = vshll.u32 %v3314, 16
      %v3592 = vrot.slane %v3590, 5
      %v3593 = vsel %vm648, %v3588, %v3592
      %v3595 = vshrl.u32 %v3315, 16
      %v3597 = vrot.slane %v3595, 4
      %v3598 = vshll.u32 %v3315, 16
      %v3600 = vrot.slane %v3598, 5
      %v3601 = vor.u32 %v3597, %v3600
      %v3602 = vrot.slane %v3601, 4
      %v3604 = vshll.u32 %v3316, 16
      %v3606 = vrot.slane %v3604, 5
      %v3607 = vsel %vm648, %v3602, %v3606
      %v3608 = vshrl.u32 %v3316, 16
      %v3610 = vrot.slane %v3608, 4
      %v3611 = vor.u32 %v3610, %v3606
      %v3612 = vrot.slane %v3611, 4
      %v3614 = vshll.u32 %v3317, 16
      %v3616 = vrot.slane %v3614, 5
      %v3617 = vsel %vm648, %v3612, %v3616
      %v3619 = vshrl.u32 %v3318, 16
      %v3621 = vrot.slane %v3619, 4
      %v3622 = vshll.u32 %v3318, 16
      %v3624 = vrot.slane %v3622, 5
      %v3625 = vor.u32 %v3621, %v3624
      %v3626 = vrot.slane %v3625, 4
      %v3628 = vshll.u32 %v3319, 16
      %v3630 = vrot.slane %v3628, 5
      %v3631 = vsel %vm648, %v3626, %v3630
      %v3632 = vshrl.u32 %v3319, 16
      %v3634 = vrot.slane %v3632, 4
      %v3635 = vor.u32 %v3634, %v3630
      %v3636 = vrot.slane %v3635, 4
      %v3638 = vshll.u32 %v3320, 16
      %v3640 = vrot.slane %v3638, 5
      %v3641 = vsel %vm648, %v3636, %v3640
      %v3643 = vshrl.u32 %v3321, 16
      %v3645 = vrot.slane %v3643, 4
      %v3646 = vshll.u32 %v3321, 16
      %v3648 = vrot.slane %v3646, 5
      %v3649 = vor.u32 %v3645, %v3648
      %v3650 = vrot.slane %v3649, 4
      %v3652 = vshll.u32 %v3322, 16
      %v3654 = vrot.slane %v3652, 5
      %v3655 = vsel %vm648, %v3650, %v3654
      %v3656 = vshrl.u32 %v3322, 16
      %v3658 = vrot.slane %v3656, 4
      %v3659 = vor.u32 %v3658, %v3654
      %v3660 = vrot.slane %v3659, 4
      %v3662 = vshll.u32 %v3323, 16
      %v3664 = vrot.slane %v3662, 5
      %v3665 = vsel %vm648, %v3660, %v3664
      %v3667 = vshrl.u32 %v3324, 16
      %v3669 = vrot.slane %v3667, 4
      %v3670 = vshll.u32 %v3324, 16
      %v3672 = vrot.slane %v3670, 5
      %v3673 = vor.u32 %v3669, %v3672
      %v3674 = vrot.slane %v3673, 4
      %v3676 = vshll.u32 %v3325, 16
      %v3678 = vrot.slane %v3676, 5
      %v3679 = vsel %vm648, %v3674, %v3678
      %v3680 = vshrl.u32 %v3325, 16
      %v3682 = vrot.slane %v3680, 4
      %v3683 = vor.u32 %v3682, %v3678
      %v3684 = vrot.slane %v3683, 4
      %v3686 = vshll.u32 %v3326, 16
      %v3688 = vrot.slane %v3686, 5
      %v3689 = vsel %vm648, %v3684, %v3688
      %v3691 = vshrl.u32 %v3327, 16
      %v3693 = vrot.slane %v3691, 4
      %v3694 = vshll.u32 %v3327, 16
      %v3696 = vrot.slane %v3694, 5
      %v3697 = vor.u32 %v3693, %v3696
      %v3698 = vrot.slane %v3697, 4
      %v3700 = vshll.u32 %v3328, 16
      %v3702 = vrot.slane %v3700, 5
      %v3703 = vsel %vm648, %v3698, %v3702
      %v3704 = vshrl.u32 %v3328, 16
      %v3706 = vrot.slane %v3704, 4
      %v3707 = vor.u32 %v3706, %v3702
      %v3708 = vrot.slane %v3707, 4
      %v3710 = vshll.u32 %v3329, 16
      %v3712 = vrot.slane %v3710, 5
      %v3713 = vsel %vm648, %v3708, %v3712
      %s3714 = scalar_lea.vmem %s231, 14
      %v3715 = vld [vmem:[%s3714] sm:$0x3]
      %v3716 = vunpack.c.l.b16 %v3343
      %v3717 = vunpack.c.l.b16 %v3353
      %v3718 = vunpack.c.l.b16 %v3367
      %v3719 = vunpack.c.l.b16 %v3377
      %v3720 = vunpack.c.l.b16 %v3391
      %v3721 = vunpack.c.l.b16 %v3401
      %v3722 = vunpack.c.l.b16 %v3415
      %v3723 = vunpack.c.l.b16 %v3425
      %v3724 = vunpack.c.l.b16 %v3439
      %v3725 = vunpack.c.l.b16 %v3449
      %v3726 = vunpack.c.l.b16 %v3463
      %v3727 = vunpack.c.l.b16 %v3473
      %v3728 = vunpack.c.l.b16 %v3487
      %v3729 = vunpack.c.l.b16 %v3497
      %v3730 = vunpack.c.l.b16 %v3511
      %v3731 = vunpack.c.l.b16 %v3521
      %v3732 = vunpack.c.l.b16 %v3535
      %v3733 = vunpack.c.l.b16 %v3545
      %v3734 = vunpack.c.l.b16 %v3559
      %v3735 = vunpack.c.l.b16 %v3569
      %v3736 = vunpack.c.l.b16 %v3583
      %v3737 = vunpack.c.l.b16 %v3593
      %v3738 = vunpack.c.l.b16 %v3607
      %v3739 = vunpack.c.l.b16 %v3617
      %v3740 = vunpack.c.l.b16 %v3631
      %v3741 = vunpack.c.l.b16 %v3641
      %v3742 = vunpack.c.l.b16 %v3655
      %v3743 = vunpack.c.l.b16 %v3665
      %v3744 = vunpack.c.l.b16 %v3679
      %v3745 = vunpack.c.l.b16 %v3689
      %v3746 = vunpack.c.l.b16 %v3703
      %v3747 = vunpack.c.l.b16 %v3713
      %v3748 = vpack.c.b16 %v3717, %v3716
      %v3749 = vpack.c.b16 %v3719, %v3718
      %v3750 = vpack.c.b16 %v3721, %v3720
      %v3751 = vpack.c.b16 %v3723, %v3722
      %v3752 = vpack.c.b16 %v3725, %v3724
      %v3753 = vpack.c.b16 %v3727, %v3726
      %v3754 = vpack.c.b16 %v3729, %v3728
      %v3755 = vpack.c.b16 %v3731, %v3730
      %v3756 = vpack.c.b16 %v3733, %v3732
      %v3757 = vpack.c.b16 %v3735, %v3734
      %v3758 = vpack.c.b16 %v3737, %v3736
      %v3759 = vpack.c.b16 %v3739, %v3738
      %v3760 = vpack.c.b16 %v3741, %v3740
      %v3761 = vpack.c.b16 %v3743, %v3742
      %v3762 = vpack.c.b16 %v3745, %v3744
      %v3763 = vpack.c.b16 %v3747, %v3746
      %v3765 = vsel %vm424, %v3748, 0
      %v3768 = vsel %vm424, %v3749, 0
      %v3771 = vsel %vm424, %v3750, 0
      %v3774 = vsel %vm424, %v3751, 0
      %v3777 = vsel %vm424, %v3752, 0
      %v3780 = vsel %vm424, %v3753, 0
      %v3783 = vsel %vm424, %v3754, 0
      %v3786 = vsel %vm424, %v3755, 0
      %v3789 = vsel %vm424, %v3756, 0
      %v3792 = vsel %vm424, %v3757, 0
      %v3795 = vsel %vm424, %v3758, 0
      %v3798 = vsel %vm424, %v3759, 0
      %v3801 = vsel %vm424, %v3760, 0
      %v3804 = vsel %vm424, %v3761, 0
      %v3807 = vsel %vm424, %v3762, 0
      %v3810 = vsel %vm424, %v3763, 0
      %v3813 = vsel %vm473, %v3715, 0
      %3815 = vmatpush.bf16.msra.mxu0 0
      %3816 = vmatpush.bf16.msra.mxu0 0
      %3817 = vmatpush.bf16.msra.mxu0 0
      %3818 = vmatpush.bf16.msra.mxu0 0
      %3819 = vmatpush.bf16.msra.mxu0 0
      %3820 = vmatpush.bf16.msra.mxu0 0
      %3821 = vmatpush.bf16.msra.mxu0 0
      %3822 = vmatpush.bf16.msra.mxu0 %v3813
      %3823 = vmatmul.bf16.gmra.mxu0 %v3765
      %v3824 = vpop.f32.mrf.mxu0
      %v3825 = vadd.f32 0.0, %v3824
      %v3826 = vpop.f32.mrf.mxu0
      %v3827 = vadd.f32 0.0, %v3826
      %3828 = vmatmul.bf16.gmra.mxu0 %v3768
      %v3829 = vpop.f32.mrf.mxu0
      %v3830 = vadd.f32 0.0, %v3829
      %v3831 = vpop.f32.mrf.mxu0
      %v3832 = vadd.f32 0.0, %v3831
      %3833 = vmatmul.bf16.gmra.mxu0 %v3771
      %v3834 = vpop.f32.mrf.mxu0
      %v3835 = vadd.f32 0.0, %v3834
      %v3836 = vpop.f32.mrf.mxu0
      %v3837 = vadd.f32 0.0, %v3836
      %3838 = vmatmul.bf16.gmra.mxu0 %v3774
      %v3839 = vpop.f32.mrf.mxu0
      %v3840 = vadd.f32 0.0, %v3839
      %v3841 = vpop.f32.mrf.mxu0
      %v3842 = vadd.f32 0.0, %v3841
      %3843 = vmatmul.bf16.gmra.mxu0 %v3777
      %v3844 = vpop.f32.mrf.mxu0
      %v3845 = vadd.f32 0.0, %v3844
      %v3846 = vpop.f32.mrf.mxu0
      %v3847 = vadd.f32 0.0, %v3846
      %3848 = vmatmul.bf16.gmra.mxu0 %v3780
      %v3849 = vpop.f32.mrf.mxu0
      %v3850 = vadd.f32 0.0, %v3849
      %v3851 = vpop.f32.mrf.mxu0
      %v3852 = vadd.f32 0.0, %v3851
      %3853 = vmatmul.bf16.gmra.mxu0 %v3783
      %v3854 = vpop.f32.mrf.mxu0
      %v3855 = vadd.f32 0.0, %v3854
      %v3856 = vpop.f32.mrf.mxu0
      %v3857 = vadd.f32 0.0, %v3856
      %3858 = vmatmul.bf16.gmra.mxu0 %v3786
      %v3859 = vpop.f32.mrf.mxu0
      %v3860 = vadd.f32 0.0, %v3859
      %v3861 = vpop.f32.mrf.mxu0
      %v3862 = vadd.f32 0.0, %v3861
      %3863 = vmatmul.bf16.gmra.mxu0 %v3789
      %v3864 = vpop.f32.mrf.mxu0
      %v3865 = vadd.f32 0.0, %v3864
      %v3866 = vpop.f32.mrf.mxu0
      %v3867 = vadd.f32 0.0, %v3866
      %3868 = vmatmul.bf16.gmra.mxu0 %v3792
      %v3869 = vpop.f32.mrf.mxu0
      %v3870 = vadd.f32 0.0, %v3869
      %v3871 = vpop.f32.mrf.mxu0
      %v3872 = vadd.f32 0.0, %v3871
      %3873 = vmatmul.bf16.gmra.mxu0 %v3795
      %v3874 = vpop.f32.mrf.mxu0
      %v3875 = vadd.f32 0.0, %v3874
      %v3876 = vpop.f32.mrf.mxu0
      %v3877 = vadd.f32 0.0, %v3876
      %3878 = vmatmul.bf16.gmra.mxu0 %v3798
      %v3879 = vpop.f32.mrf.mxu0
      %v3880 = vadd.f32 0.0, %v3879
      %v3881 = vpop.f32.mrf.mxu0
      %v3882 = vadd.f32 0.0, %v3881
      %3883 = vmatmul.bf16.gmra.mxu0 %v3801
      %v3884 = vpop.f32.mrf.mxu0
      %v3885 = vadd.f32 0.0, %v3884
      %v3886 = vpop.f32.mrf.mxu0
      %v3887 = vadd.f32 0.0, %v3886
      %3888 = vmatmul.bf16.gmra.mxu0 %v3804
      %v3889 = vpop.f32.mrf.mxu0
      %v3890 = vadd.f32 0.0, %v3889
      %v3891 = vpop.f32.mrf.mxu0
      %v3892 = vadd.f32 0.0, %v3891
      %3893 = vmatmul.bf16.gmra.mxu0 %v3807
      %v3894 = vpop.f32.mrf.mxu0
      %v3895 = vadd.f32 0.0, %v3894
      %v3896 = vpop.f32.mrf.mxu0
      %v3897 = vadd.f32 0.0, %v3896
      %3898 = vmatmul.bf16.gmra.mxu0 %v3810
      %v3899 = vpop.f32.mrf.mxu0
      %v3900 = vadd.f32 0.0, %v3899
      %v3901 = vpop.f32.mrf.mxu0
      %v3902 = vadd.f32 0.0, %v3901
      %3903 = vdwg.mxu0
      %v3904 = vadd.f32 %v3250, %v3825
      %v3905 = vadd.f32 %v3251, %v3827
      %v3906 = vadd.f32 %v3252, %v3830
      %v3907 = vadd.f32 %v3253, %v3832
      %v3908 = vadd.f32 %v3254, %v3835
      %v3909 = vadd.f32 %v3255, %v3837
      %v3910 = vadd.f32 %v3256, %v3840
      %v3911 = vadd.f32 %v3257, %v3842
      %v3912 = vadd.f32 %v3258, %v3845
      %v3913 = vadd.f32 %v3259, %v3847
      %v3914 = vadd.f32 %v3260, %v3850
      %v3915 = vadd.f32 %v3261, %v3852
      %v3916 = vadd.f32 %v3262, %v3855
      %v3917 = vadd.f32 %v3263, %v3857
      %v3918 = vadd.f32 %v3264, %v3860
      %v3919 = vadd.f32 %v3265, %v3862
      %v3920 = vadd.f32 %v3266, %v3865
      %v3921 = vadd.f32 %v3267, %v3867
      %v3922 = vadd.f32 %v3268, %v3870
      %v3923 = vadd.f32 %v3269, %v3872
      %v3924 = vadd.f32 %v3270, %v3875
      %v3925 = vadd.f32 %v3271, %v3877
      %v3926 = vadd.f32 %v3272, %v3880
      %v3927 = vadd.f32 %v3273, %v3882
      %v3928 = vadd.f32 %v3274, %v3885
      %v3929 = vadd.f32 %v3275, %v3887
      %v3930 = vadd.f32 %v3276, %v3890
      %v3931 = vadd.f32 %v3277, %v3892
      %v3932 = vadd.f32 %v3278, %v3895
      %v3933 = vadd.f32 %v3279, %v3897
      %v3934 = vadd.f32 %v3280, %v3900
      %v3935 = vadd.f32 %v3281, %v3902
      %v3936 = vld [vmem:[%s2995] sm:$0xe]
      %v3937 = vld [vmem:[%s2995 + $0xc] sm:$0xe]
      %v3938 = vld [vmem:[%s2995 + $0x18] sm:$0xe]
      %v3939 = vld [vmem:[%s2995 + $0x24] sm:$0xe]
      %v3940 = vld [vmem:[%s2995 + $0x30] sm:$0xe]
      %v3941 = vld [vmem:[%s2995 + $0x3c] sm:$0xe]
      %v3942 = vld [vmem:[%s2995 + $0x48] sm:$0xe]
      %v3943 = vld [vmem:[%s2995 + $0x54] sm:$0xe]
      %v3944 = vld [vmem:[%s2995 + $0x60] sm:$0xe]
      %v3945 = vld [vmem:[%s2995 + $0x6c] sm:$0xe]
      %v3946 = vld [vmem:[%s2995 + $0x78] sm:$0xe]
      %v3947 = vld [vmem:[%s2995 + $0x84] sm:$0xe]
      %v3948 = vld [vmem:[%s2995 + $0x90] sm:$0xe]
      %v3949 = vld [vmem:[%s2995 + $0x9c] sm:$0xe]
      %v3950 = vld [vmem:[%s2995 + $0xa8] sm:$0xe]
      %v3951 = vld [vmem:[%s2995 + $0xb4] sm:$0xe]
      %v4000 = vrot.slane %v3936, 5
      %v4001 = vrot.slane %v4000, 4
      %v4002 = vrot.slane %v3283, 5
      %v4003 = vsel %vm1321, %v4001, %v4002
      %v4004 = vrot.slane %v4002, 4
      %v4005 = vrot.slane %v3284, 5
      %v4006 = vsel %vm1321, %v4004, %v4005
      %v4007 = vrot.slane %v3937, 5
      %v4008 = vrot.slane %v4007, 4
      %v4009 = vrot.slane %v3286, 5
      %v4010 = vsel %vm1321, %v4008, %v4009
      %v4011 = vrot.slane %v4009, 4
      %v4012 = vrot.slane %v3287, 5
      %v4013 = vsel %vm1321, %v4011, %v4012
      %v4014 = vrot.slane %v3938, 5
      %v4015 = vrot.slane %v4014, 4
      %v4016 = vrot.slane %v3289, 5
      %v4017 = vsel %vm1321, %v4015, %v4016
      %v4018 = vrot.slane %v4016, 4
      %v4019 = vrot.slane %v3290, 5
      %v4020 = vsel %vm1321, %v4018, %v4019
      %v4021 = vrot.slane %v3939, 5
      %v4022 = vrot.slane %v4021, 4
      %v4023 = vrot.slane %v3292, 5
      %v4024 = vsel %vm1321, %v4022, %v4023
      %v4025 = vrot.slane %v4023, 4
      %v4026 = vrot.slane %v3293, 5
      %v4027 = vsel %vm1321, %v4025, %v4026
      %v4028 = vrot.slane %v3940, 5
      %v4029 = vrot.slane %v4028, 4
      %v4030 = vrot.slane %v3295, 5
      %v4031 = vsel %vm1321, %v4029, %v4030
      %v4032 = vrot.slane %v4030, 4
      %v4033 = vrot.slane %v3296, 5
      %v4034 = vsel %vm1321, %v4032, %v4033
      %v4035 = vrot.slane %v3941, 5
      %v4036 = vrot.slane %v4035, 4
      %v4037 = vrot.slane %v3298, 5
      %v4038 = vsel %vm1321, %v4036, %v4037
      %v4039 = vrot.slane %v4037, 4
      %v4040 = vrot.slane %v3299, 5
      %v4041 = vsel %vm1321, %v4039, %v4040
      %v4042 = vrot.slane %v3942, 5
      %v4043 = vrot.slane %v4042, 4
      %v4044 = vrot.slane %v3301, 5
      %v4045 = vsel %vm1321, %v4043, %v4044
      %v4046 = vrot.slane %v4044, 4
      %v4047 = vrot.slane %v3302, 5
      %v4048 = vsel %vm1321, %v4046, %v4047
      %v4049 = vrot.slane %v3943, 5
      %v4050 = vrot.slane %v4049, 4
      %v4051 = vrot.slane %v3304, 5
      %v4052 = vsel %vm1321, %v4050, %v4051
      %v4053 = vrot.slane %v4051, 4
      %v4054 = vrot.slane %v3305, 5
      %v4055 = vsel %vm1321, %v4053, %v4054
      %v4056 = vrot.slane %v3944, 5
      %v4057 = vrot.slane %v4056, 4
      %v4058 = vrot.slane %v3307, 5
      %v4059 = vsel %vm1321, %v4057, %v4058
      %v4060 = vrot.slane %v4058, 4
      %v4061 = vrot.slane %v3308, 5
      %v4062 = vsel %vm1321, %v4060, %v4061
      %v4063 = vrot.slane %v3945, 5
      %v4064 = vrot.slane %v4063, 4
      %v4065 = vrot.slane %v3310, 5
      %v4066 = vsel %vm1321, %v4064, %v4065
      %v4067 = vrot.slane %v4065, 4
      %v4068 = vrot.slane %v3311, 5
      %v4069 = vsel %vm1321, %v4067, %v4068
      %v4070 = vrot.slane %v3946, 5
      %v4071 = vrot.slane %v4070, 4
      %v4072 = vrot.slane %v3313, 5
      %v4073 = vsel %vm1321, %v4071, %v4072
      %v4074 = vrot.slane %v4072, 4
      %v4075 = vrot.slane %v3314, 5
      %v4076 = vsel %vm1321, %v4074, %v4075
      %v4077 = vrot.slane %v3947, 5
      %v4078 = vrot.slane %v4077, 4
      %v4079 = vrot.slane %v3316, 5
      %v4080 = vsel %vm1321, %v4078, %v4079
      %v4081 = vrot.slane %v4079, 4
      %v4082 = vrot.slane %v3317, 5
      %v4083 = vsel %vm1321, %v4081, %v4082
      %v4084 = vrot.slane %v3948, 5
      %v4085 = vrot.slane %v4084, 4
      %v4086 = vrot.slane %v3319, 5
      %v4087 = vsel %vm1321, %v4085, %v4086
      %v4088 = vrot.slane %v4086, 4
      %v4089 = vrot.slane %v3320, 5
      %v4090 = vsel %vm1321, %v4088, %v4089
      %v4091 = vrot.slane %v3949, 5
      %v4092 = vrot.slane %v4091, 4
      %v4093 = vrot.slane %v3322, 5
      %v4094 = vsel %vm1321, %v4092, %v4093
      %v4095 = vrot.slane %v4093, 4
      %v4096 = vrot.slane %v3323, 5
      %v4097 = vsel %vm1321, %v4095, %v4096
      %v4098 = vrot.slane %v3950, 5
      %v4099 = vrot.slane %v4098, 4
      %v4100 = vrot.slane %v3325, 5
      %v4101 = vsel %vm1321, %v4099, %v4100
      %v4102 = vrot.slane %v4100, 4
      %v4103 = vrot.slane %v3326, 5
      %v4104 = vsel %vm1321, %v4102, %v4103
      %v4105 = vrot.slane %v3951, 5
      %v4106 = vrot.slane %v4105, 4
      %v4107 = vrot.slane %v3328, 5
      %v4108 = vsel %vm1321, %v4106, %v4107
      %v4109 = vrot.slane %v4107, 4
      %v4110 = vrot.slane %v3329, 5
      %v4111 = vsel %vm1321, %v4109, %v4110
      %s4112 = scalar_lea.vmem %s231, 16
      %v4113 = vld [vmem:[%s4112] sm:$0x3]
      %v4114 = vunpack.c.l.b16 %v4003
      %v4115 = vunpack.c.l.b16 %v4006
      %v4116 = vunpack.c.l.b16 %v4010
      %v4117 = vunpack.c.l.b16 %v4013
      %v4118 = vunpack.c.l.b16 %v4017
      %v4119 = vunpack.c.l.b16 %v4020
      %v4120 = vunpack.c.l.b16 %v4024
      %v4121 = vunpack.c.l.b16 %v4027
      %v4122 = vunpack.c.l.b16 %v4031
      %v4123 = vunpack.c.l.b16 %v4034
      %v4124 = vunpack.c.l.b16 %v4038
      %v4125 = vunpack.c.l.b16 %v4041
      %v4126 = vunpack.c.l.b16 %v4045
      %v4127 = vunpack.c.l.b16 %v4048
      %v4128 = vunpack.c.l.b16 %v4052
      %v4129 = vunpack.c.l.b16 %v4055
      %v4130 = vunpack.c.l.b16 %v4059
      %v4131 = vunpack.c.l.b16 %v4062
      %v4132 = vunpack.c.l.b16 %v4066
      %v4133 = vunpack.c.l.b16 %v4069
      %v4134 = vunpack.c.l.b16 %v4073
      %v4135 = vunpack.c.l.b16 %v4076
      %v4136 = vunpack.c.l.b16 %v4080
      %v4137 = vunpack.c.l.b16 %v4083
      %v4138 = vunpack.c.l.b16 %v4087
      %v4139 = vunpack.c.l.b16 %v4090
      %v4140 = vunpack.c.l.b16 %v4094
      %v4141 = vunpack.c.l.b16 %v4097
      %v4142 = vunpack.c.l.b16 %v4101
      %v4143 = vunpack.c.l.b16 %v4104
      %v4144 = vunpack.c.l.b16 %v4108
      %v4145 = vunpack.c.l.b16 %v4111
      %v4146 = vpack.c.b16 %v4115, %v4114
      %v4147 = vpack.c.b16 %v4117, %v4116
      %v4148 = vpack.c.b16 %v4119, %v4118
      %v4149 = vpack.c.b16 %v4121, %v4120
      %v4150 = vpack.c.b16 %v4123, %v4122
      %v4151 = vpack.c.b16 %v4125, %v4124
      %v4152 = vpack.c.b16 %v4127, %v4126
      %v4153 = vpack.c.b16 %v4129, %v4128
      %v4154 = vpack.c.b16 %v4131, %v4130
      %v4155 = vpack.c.b16 %v4133, %v4132
      %v4156 = vpack.c.b16 %v4135, %v4134
      %v4157 = vpack.c.b16 %v4137, %v4136
      %v4158 = vpack.c.b16 %v4139, %v4138
      %v4159 = vpack.c.b16 %v4141, %v4140
      %v4160 = vpack.c.b16 %v4143, %v4142
      %v4161 = vpack.c.b16 %v4145, %v4144
      %v4163 = vsel %vm424, %v4146, 0
      %v4166 = vsel %vm424, %v4147, 0
      %v4169 = vsel %vm424, %v4148, 0
      %v4172 = vsel %vm424, %v4149, 0
      %v4175 = vsel %vm424, %v4150, 0
      %v4178 = vsel %vm424, %v4151, 0
      %v4181 = vsel %vm424, %v4152, 0
      %v4184 = vsel %vm424, %v4153, 0
      %v4187 = vsel %vm424, %v4154, 0
      %v4190 = vsel %vm424, %v4155, 0
      %v4193 = vsel %vm424, %v4156, 0
      %v4196 = vsel %vm424, %v4157, 0
      %v4199 = vsel %vm424, %v4158, 0
      %v4202 = vsel %vm424, %v4159, 0
      %v4205 = vsel %vm424, %v4160, 0
      %v4208 = vsel %vm424, %v4161, 0
      %v4211 = vsel %vm473, %v4113, 0
      %4213 = vmatpush.bf16.msra.mxu0 0
      %4214 = vmatpush.bf16.msra.mxu0 0
      %4215 = vmatpush.bf16.msra.mxu0 0
      %4216 = vmatpush.bf16.msra.mxu0 0
      %4217 = vmatpush.bf16.msra.mxu0 0
      %4218 = vmatpush.bf16.msra.mxu0 0
      %4219 = vmatpush.bf16.msra.mxu0 0
      %4220 = vmatpush.bf16.msra.mxu0 %v4211
      %4221 = vmatmul.bf16.gmra.mxu0 %v4163
      %v4222 = vpop.f32.mrf.mxu0
      %v4223 = vadd.f32 0.0, %v4222
      %v4224 = vpop.f32.mrf.mxu0
      %v4225 = vadd.f32 0.0, %v4224
      %4226 = vmatmul.bf16.gmra.mxu0 %v4166
      %v4227 = vpop.f32.mrf.mxu0
      %v4228 = vadd.f32 0.0, %v4227
      %v4229 = vpop.f32.mrf.mxu0
      %v4230 = vadd.f32 0.0, %v4229
      %4231 = vmatmul.bf16.gmra.mxu0 %v4169
      %v4232 = vpop.f32.mrf.mxu0
      %v4233 = vadd.f32 0.0, %v4232
      %v4234 = vpop.f32.mrf.mxu0
      %v4235 = vadd.f32 0.0, %v4234
      %4236 = vmatmul.bf16.gmra.mxu0 %v4172
      %v4237 = vpop.f32.mrf.mxu0
      %v4238 = vadd.f32 0.0, %v4237
      %v4239 = vpop.f32.mrf.mxu0
      %v4240 = vadd.f32 0.0, %v4239
      %4241 = vmatmul.bf16.gmra.mxu0 %v4175
      %v4242 = vpop.f32.mrf.mxu0
      %v4243 = vadd.f32 0.0, %v4242
      %v4244 = vpop.f32.mrf.mxu0
      %v4245 = vadd.f32 0.0, %v4244
      %4246 = vmatmul.bf16.gmra.mxu0 %v4178
      %v4247 = vpop.f32.mrf.mxu0
      %v4248 = vadd.f32 0.0, %v4247
      %v4249 = vpop.f32.mrf.mxu0
      %v4250 = vadd.f32 0.0, %v4249
      %4251 = vmatmul.bf16.gmra.mxu0 %v4181
      %v4252 = vpop.f32.mrf.mxu0
      %v4253 = vadd.f32 0.0, %v4252
      %v4254 = vpop.f32.mrf.mxu0
      %v4255 = vadd.f32 0.0, %v4254
      %4256 = vmatmul.bf16.gmra.mxu0 %v4184
      %v4257 = vpop.f32.mrf.mxu0
      %v4258 = vadd.f32 0.0, %v4257
      %v4259 = vpop.f32.mrf.mxu0
      %v4260 = vadd.f32 0.0, %v4259
      %4261 = vmatmul.bf16.gmra.mxu0 %v4187
      %v4262 = vpop.f32.mrf.mxu0
      %v4263 = vadd.f32 0.0, %v4262
      %v4264 = vpop.f32.mrf.mxu0
      %v4265 = vadd.f32 0.0, %v4264
      %4266 = vmatmul.bf16.gmra.mxu0 %v4190
      %v4267 = vpop.f32.mrf.mxu0
      %v4268 = vadd.f32 0.0, %v4267
      %v4269 = vpop.f32.mrf.mxu0
      %v4270 = vadd.f32 0.0, %v4269
      %4271 = vmatmul.bf16.gmra.mxu0 %v4193
      %v4272 = vpop.f32.mrf.mxu0
      %v4273 = vadd.f32 0.0, %v4272
      %v4274 = vpop.f32.mrf.mxu0
      %v4275 = vadd.f32 0.0, %v4274
      %4276 = vmatmul.bf16.gmra.mxu0 %v4196
      %v4277 = vpop.f32.mrf.mxu0
      %v4278 = vadd.f32 0.0, %v4277
      %v4279 = vpop.f32.mrf.mxu0
      %v4280 = vadd.f32 0.0, %v4279
      %4281 = vmatmul.bf16.gmra.mxu0 %v4199
      %v4282 = vpop.f32.mrf.mxu0
      %v4283 = vadd.f32 0.0, %v4282
      %v4284 = vpop.f32.mrf.mxu0
      %v4285 = vadd.f32 0.0, %v4284
      %4286 = vmatmul.bf16.gmra.mxu0 %v4202
      %v4287 = vpop.f32.mrf.mxu0
      %v4288 = vadd.f32 0.0, %v4287
      %v4289 = vpop.f32.mrf.mxu0
      %v4290 = vadd.f32 0.0, %v4289
      %4291 = vmatmul.bf16.gmra.mxu0 %v4205
      %v4292 = vpop.f32.mrf.mxu0
      %v4293 = vadd.f32 0.0, %v4292
      %v4294 = vpop.f32.mrf.mxu0
      %v4295 = vadd.f32 0.0, %v4294
      %4296 = vmatmul.bf16.gmra.mxu0 %v4208
      %v4297 = vpop.f32.mrf.mxu0
      %v4298 = vadd.f32 0.0, %v4297
      %v4299 = vpop.f32.mrf.mxu0
      %v4300 = vadd.f32 0.0, %v4299
      %4301 = vdwg.mxu0
      %v4302 = vadd.f32 %v3904, %v4223
      %v4303 = vadd.f32 %v3905, %v4225
      %v4304 = vadd.f32 %v3906, %v4228
      %v4305 = vadd.f32 %v3907, %v4230
      %v4306 = vadd.f32 %v3908, %v4233
      %v4307 = vadd.f32 %v3909, %v4235
      %v4308 = vadd.f32 %v3910, %v4238
      %v4309 = vadd.f32 %v3911, %v4240
      %v4310 = vadd.f32 %v3912, %v4243
      %v4311 = vadd.f32 %v3913, %v4245
      %v4312 = vadd.f32 %v3914, %v4248
      %v4313 = vadd.f32 %v3915, %v4250
      %v4314 = vadd.f32 %v3916, %v4253
      %v4315 = vadd.f32 %v3917, %v4255
      %v4316 = vadd.f32 %v3918, %v4258
      %v4317 = vadd.f32 %v3919, %v4260
      %v4318 = vadd.f32 %v3920, %v4263
      %v4319 = vadd.f32 %v3921, %v4265
      %v4320 = vadd.f32 %v3922, %v4268
      %v4321 = vadd.f32 %v3923, %v4270
      %v4322 = vadd.f32 %v3924, %v4273
      %v4323 = vadd.f32 %v3925, %v4275
      %v4324 = vadd.f32 %v3926, %v4278
      %v4325 = vadd.f32 %v3927, %v4280
      %v4326 = vadd.f32 %v3928, %v4283
      %v4327 = vadd.f32 %v3929, %v4285
      %v4328 = vadd.f32 %v3930, %v4288
      %v4329 = vadd.f32 %v3931, %v4290
      %v4330 = vadd.f32 %v3932, %v4293
      %v4331 = vadd.f32 %v3933, %v4295
      %v4332 = vadd.f32 %v3934, %v4298
      %v4333 = vadd.f32 %v3935, %v4300
      %vm4334 = vcmask 261120
      %4335 = vst.msk [vmem:[#allocation2] sm:$0xff] %vm4334, %v4302
      %4336 = vst.msk [vmem:[#allocation2 + $0x8] sm:$0xff] %vm4334, %v4303
      %4337 = vst.msk [vmem:[#allocation2 + $0x10] sm:$0xff] %vm4334, %v4304
      %4338 = vst.msk [vmem:[#allocation2 + $0x18] sm:$0xff] %vm4334, %v4305
      %4339 = vst.msk [vmem:[#allocation2 + $0x20] sm:$0xff] %vm4334, %v4306
      %4340 = vst.msk [vmem:[#allocation2 + $0x28] sm:$0xff] %vm4334, %v4307
      %4341 = vst.msk [vmem:[#allocation2 + $0x30] sm:$0xff] %vm4334, %v4308
      %4342 = vst.msk [vmem:[#allocation2 + $0x38] sm:$0xff] %vm4334, %v4309
      %4343 = vst.msk [vmem:[#allocation2 + $0x40] sm:$0xff] %vm4334, %v4310
      %4344 = vst.msk [vmem:[#allocation2 + $0x48] sm:$0xff] %vm4334, %v4311
      %4345 = vst.msk [vmem:[#allocation2 + $0x50] sm:$0xff] %vm4334, %v4312
      %4346 = vst.msk [vmem:[#allocation2 + $0x58] sm:$0xff] %vm4334, %v4313
      %4347 = vst.msk [vmem:[#allocation2 + $0x60] sm:$0xff] %vm4334, %v4314
      %4348 = vst.msk [vmem:[#allocation2 + $0x68] sm:$0xff] %vm4334, %v4315
      %4349 = vst.msk [vmem:[#allocation2 + $0x70] sm:$0xff] %vm4334, %v4316
      %4350 = vst.msk [vmem:[#allocation2 + $0x78] sm:$0xff] %vm4334, %v4317
      %4351 = vst.msk [vmem:[#allocation2 + $0x80] sm:$0xff] %vm4334, %v4318
      %4352 = vst.msk [vmem:[#allocation2 + $0x88] sm:$0xff] %vm4334, %v4319
      %4353 = vst.msk [vmem:[#allocation2 + $0x90] sm:$0xff] %vm4334, %v4320
      %4354 = vst.msk [vmem:[#allocation2 + $0x98] sm:$0xff] %vm4334, %v4321
      %4355 = vst.msk [vmem:[#allocation2 + $0xa0] sm:$0xff] %vm4334, %v4322
      %4356 = vst.msk [vmem:[#allocation2 + $0xa8] sm:$0xff] %vm4334, %v4323
      %4357 = vst.msk [vmem:[#allocation2 + $0xb0] sm:$0xff] %vm4334, %v4324
      %4358 = vst.msk [vmem:[#allocation2 + $0xb8] sm:$0xff] %vm4334, %v4325
      %4359 = vst.msk [vmem:[#allocation2 + $0xc0] sm:$0xff] %vm4334, %v4326
      %4360 = vst.msk [vmem:[#allocation2 + $0xc8] sm:$0xff] %vm4334, %v4327
      %4361 = vst.msk [vmem:[#allocation2 + $0xd0] sm:$0xff] %vm4334, %v4328
      %4362 = vst.msk [vmem:[#allocation2 + $0xd8] sm:$0xff] %vm4334, %v4329
      %4363 = vst.msk [vmem:[#allocation2 + $0xe0] sm:$0xff] %vm4334, %v4330
      %4364 = vst.msk [vmem:[#allocation2 + $0xe8] sm:$0xff] %vm4334, %v4331
      %4365 = vst.msk [vmem:[#allocation2 + $0xf0] sm:$0xff] %vm4334, %v4332
      %4366 = vst.msk [vmem:[#allocation2 + $0xf8] sm:$0xff] %vm4334, %v4333
      %p4367 = scmp.eq.s32.totalorder %s21, 2
      // Predicated region
      $region37: #{apply.2} parent=31 // pred_check
        %p4368 = pneg %p4367
      $region38: #{apply.2} parent=31 // pred_check_branch
        %4370 = sbr.rel (%p4368) target = $region40
      $region39: #{apply.2} parent=31 // pred_region
        %v4371 = vld [vmem:[#allocation2] sm:$0xff]
        %v4372 = vld [vmem:[#allocation2 + $0x8] sm:$0xff]
        %v4373 = vld [vmem:[#allocation2 + $0x10] sm:$0xff]
        %v4374 = vld [vmem:[#allocation2 + $0x18] sm:$0xff]
        %v4375 = vld [vmem:[#allocation2 + $0x20] sm:$0xff]
        %v4376 = vld [vmem:[#allocation2 + $0x28] sm:$0xff]
        %v4377 = vld [vmem:[#allocation2 + $0x30] sm:$0xff]
        %v4378 = vld [vmem:[#allocation2 + $0x38] sm:$0xff]
        %v4379 = vld [vmem:[#allocation2 + $0x40] sm:$0xff]
        %v4380 = vld [vmem:[#allocation2 + $0x48] sm:$0xff]
        %v4381 = vld [vmem:[#allocation2 + $0x50] sm:$0xff]
        %v4382 = vld [vmem:[#allocation2 + $0x58] sm:$0xff]
        %v4383 = vld [vmem:[#allocation2 + $0x60] sm:$0xff]
        %v4384 = vld [vmem:[#allocation2 + $0x68] sm:$0xff]
        %v4385 = vld [vmem:[#allocation2 + $0x70] sm:$0xff]
        %v4386 = vld [vmem:[#allocation2 + $0x78] sm:$0xff]
        %v4387 = vld [vmem:[#allocation2 + $0x80] sm:$0xff]
        %v4388 = vld [vmem:[#allocation2 + $0x88] sm:$0xff]
        %v4389 = vld [vmem:[#allocation2 + $0x90] sm:$0xff]
        %v4390 = vld [vmem:[#allocation2 + $0x98] sm:$0xff]
        %v4391 = vld [vmem:[#allocation2 + $0xa0] sm:$0xff]
        %v4392 = vld [vmem:[#allocation2 + $0xa8] sm:$0xff]
        %v4393 = vld [vmem:[#allocation2 + $0xb0] sm:$0xff]
        %v4394 = vld [vmem:[#allocation2 + $0xb8] sm:$0xff]
        %v4395 = vld [vmem:[#allocation2 + $0xc0] sm:$0xff]
        %v4396 = vld [vmem:[#allocation2 + $0xc8] sm:$0xff]
        %v4397 = vld [vmem:[#allocation2 + $0xd0] sm:$0xff]
        %v4398 = vld [vmem:[#allocation2 + $0xd8] sm:$0xff]
        %v4399 = vld [vmem:[#allocation2 + $0xe0] sm:$0xff]
        %v4400 = vld [vmem:[#allocation2 + $0xe8] sm:$0xff]
        %v4401 = vld [vmem:[#allocation2 + $0xf0] sm:$0xff]
        %v4402 = vld [vmem:[#allocation2 + $0xf8] sm:$0xff]
        %v4403 = vld [vmem:[%s2] sm:$0x1]
        %v4405 = vperm.slane %v4403, 0
        %v4407 = vadd.f32 %v4371, %v4405
        %v4408 = vadd.f32 %v4372, %v4405
        %v4409 = vadd.f32 %v4373, %v4405
        %v4410 = vadd.f32 %v4374, %v4405
        %v4411 = vadd.f32 %v4375, %v4405
        %v4412 = vadd.f32 %v4376, %v4405
        %v4413 = vadd.f32 %v4377, %v4405
        %v4414 = vadd.f32 %v4378, %v4405
        %v4415 = vadd.f32 %v4379, %v4405
        %v4416 = vadd.f32 %v4380, %v4405
        %v4417 = vadd.f32 %v4381, %v4405
        %v4418 = vadd.f32 %v4382, %v4405
        %v4419 = vadd.f32 %v4383, %v4405
        %v4420 = vadd.f32 %v4384, %v4405
        %v4421 = vadd.f32 %v4385, %v4405
        %v4422 = vadd.f32 %v4386, %v4405
        %v4423 = vadd.f32 %v4387, %v4405
        %v4424 = vadd.f32 %v4388, %v4405
        %v4425 = vadd.f32 %v4389, %v4405
        %v4426 = vadd.f32 %v4390, %v4405
        %v4427 = vadd.f32 %v4391, %v4405
        %v4428 = vadd.f32 %v4392, %v4405
        %v4429 = vadd.f32 %v4393, %v4405
        %v4430 = vadd.f32 %v4394, %v4405
        %v4431 = vadd.f32 %v4395, %v4405
        %v4432 = vadd.f32 %v4396, %v4405
        %v4433 = vadd.f32 %v4397, %v4405
        %v4434 = vadd.f32 %v4398, %v4405
        %v4435 = vadd.f32 %v4399, %v4405
        %v4436 = vadd.f32 %v4400, %v4405
        %v4437 = vadd.f32 %v4401, %v4405
        %v4438 = vadd.f32 %v4402, %v4405
        %v4439 = vmax.f32 %v4407, 0.0
        %v4440 = vmax.f32 %v4408, 0.0
        %v4441 = vmax.f32 %v4409, 0.0
        %v4442 = vmax.f32 %v4410, 0.0
        %v4443 = vmax.f32 %v4411, 0.0
        %v4444 = vmax.f32 %v4412, 0.0
        %v4445 = vmax.f32 %v4413, 0.0
        %v4446 = vmax.f32 %v4414, 0.0
        %v4447 = vmax.f32 %v4415, 0.0
        %v4448 = vmax.f32 %v4416, 0.0
        %v4449 = vmax.f32 %v4417, 0.0
        %v4450 = vmax.f32 %v4418, 0.0
        %v4451 = vmax.f32 %v4419, 0.0
        %v4452 = vmax.f32 %v4420, 0.0
        %v4453 = vmax.f32 %v4421, 0.0
        %v4454 = vmax.f32 %v4422, 0.0
        %v4455 = vmax.f32 %v4423, 0.0
        %v4456 = vmax.f32 %v4424, 0.0
        %v4457 = vmax.f32 %v4425, 0.0
        %v4458 = vmax.f32 %v4426, 0.0
        %v4459 = vmax.f32 %v4427, 0.0
        %v4460 = vmax.f32 %v4428, 0.0
        %v4461 = vmax.f32 %v4429, 0.0
        %v4462 = vmax.f32 %v4430, 0.0
        %v4463 = vmax.f32 %v4431, 0.0
        %v4464 = vmax.f32 %v4432, 0.0
        %v4465 = vmax.f32 %v4433, 0.0
        %v4466 = vmax.f32 %v4434, 0.0
        %v4467 = vmax.f32 %v4435, 0.0
        %v4468 = vmax.f32 %v4436, 0.0
        %v4469 = vmax.f32 %v4437, 0.0
        %v4470 = vmax.f32 %v4438, 0.0
        %v4471 = vpack.c.bf16 %v4439, %v4439
        %v4472 = vpack.c.bf16 %v4440, %v4440
        %v4473 = vpack.c.bf16 %v4441, %v4441
        %v4474 = vpack.c.bf16 %v4442, %v4442
        %v4475 = vpack.c.bf16 %v4443, %v4443
        %v4476 = vpack.c.bf16 %v4444, %v4444
        %v4477 = vpack.c.bf16 %v4445, %v4445
        %v4478 = vpack.c.bf16 %v4446, %v4446
        %v4479 = vpack.c.bf16 %v4447, %v4447
        %v4480 = vpack.c.bf16 %v4448, %v4448
        %v4481 = vpack.c.bf16 %v4449, %v4449
        %v4482 = vpack.c.bf16 %v4450, %v4450
        %v4483 = vpack.c.bf16 %v4451, %v4451
        %v4484 = vpack.c.bf16 %v4452, %v4452
        %v4485 = vpack.c.bf16 %v4453, %v4453
        %v4486 = vpack.c.bf16 %v4454, %v4454
        %v4487 = vpack.c.bf16 %v4455, %v4455
        %v4488 = vpack.c.bf16 %v4456, %v4456
        %v4489 = vpack.c.bf16 %v4457, %v4457
        %v4490 = vpack.c.bf16 %v4458, %v4458
        %v4491 = vpack.c.bf16 %v4459, %v4459
        %v4492 = vpack.c.bf16 %v4460, %v4460
        %v4493 = vpack.c.bf16 %v4461, %v4461
        %v4494 = vpack.c.bf16 %v4462, %v4462
        %v4495 = vpack.c.bf16 %v4463, %v4463
        %v4496 = vpack.c.bf16 %v4464, %v4464
        %v4497 = vpack.c.bf16 %v4465, %v4465
        %v4498 = vpack.c.bf16 %v4466, %v4466
        %v4499 = vpack.c.bf16 %v4467, %v4467
        %v4500 = vpack.c.bf16 %v4468, %v4468
        %v4501 = vpack.c.bf16 %v4469, %v4469
        %v4502 = vpack.c.bf16 %v4470, %v4470
        %vm4503 = vcmask 257024
        %4504 = vst.msk [vmem:[%s240] sm:$0xf] %vm4503, %v4471
        %4505 = vst.msk [vmem:[%s240 + $0x4] sm:$0xf] %vm4503, %v4472
        %4506 = vst.msk [vmem:[%s240 + $0x8] sm:$0xf] %vm4503, %v4473
        %4507 = vst.msk [vmem:[%s240 + $0xc] sm:$0xf] %vm4503, %v4474
        %4508 = vst.msk [vmem:[%s240 + $0x10] sm:$0xf] %vm4503, %v4475
        %4509 = vst.msk [vmem:[%s240 + $0x14] sm:$0xf] %vm4503, %v4476
        %4510 = vst.msk [vmem:[%s240 + $0x18] sm:$0xf] %vm4503, %v4477
        %4511 = vst.msk [vmem:[%s240 + $0x1c] sm:$0xf] %vm4503, %v4478
        %4512 = vst.msk [vmem:[%s240 + $0x20] sm:$0xf] %vm4503, %v4479
        %4513 = vst.msk [vmem:[%s240 + $0x24] sm:$0xf] %vm4503, %v4480
        %4514 = vst.msk [vmem:[%s240 + $0x28] sm:$0xf] %vm4503, %v4481
        %4515 = vst.msk [vmem:[%s240 + $0x2c] sm:$0xf] %vm4503, %v4482
        %4516 = vst.msk [vmem:[%s240 + $0x30] sm:$0xf] %vm4503, %v4483
        %4517 = vst.msk [vmem:[%s240 + $0x34] sm:$0xf] %vm4503, %v4484
        %4518 = vst.msk [vmem:[%s240 + $0x38] sm:$0xf] %vm4503, %v4485
        %4519 = vst.msk [vmem:[%s240 + $0x3c] sm:$0xf] %vm4503, %v4486
        %4520 = vst.msk [vmem:[%s240 + $0x40] sm:$0xf] %vm4503, %v4487
        %4521 = vst.msk [vmem:[%s240 + $0x44] sm:$0xf] %vm4503, %v4488
        %4522 = vst.msk [vmem:[%s240 + $0x48] sm:$0xf] %vm4503, %v4489
        %4523 = vst.msk [vmem:[%s240 + $0x4c] sm:$0xf] %vm4503, %v4490
        %4524 = vst.msk [vmem:[%s240 + $0x50] sm:$0xf] %vm4503, %v4491
        %4525 = vst.msk [vmem:[%s240 + $0x54] sm:$0xf] %vm4503, %v4492
        %4526 = vst.msk [vmem:[%s240 + $0x58] sm:$0xf] %vm4503, %v4493
        %4527 = vst.msk [vmem:[%s240 + $0x5c] sm:$0xf] %vm4503, %v4494
        %4528 = vst.msk [vmem:[%s240 + $0x60] sm:$0xf] %vm4503, %v4495
        %4529 = vst.msk [vmem:[%s240 + $0x64] sm:$0xf] %vm4503, %v4496
        %4530 = vst.msk [vmem:[%s240 + $0x68] sm:$0xf] %vm4503, %v4497
        %4531 = vst.msk [vmem:[%s240 + $0x6c] sm:$0xf] %vm4503, %v4498
        %4532 = vst.msk [vmem:[%s240 + $0x70] sm:$0xf] %vm4503, %v4499
        %4533 = vst.msk [vmem:[%s240 + $0x74] sm:$0xf] %vm4503, %v4500
        %4534 = vst.msk [vmem:[%s240 + $0x78] sm:$0xf] %vm4503, %v4501
        %4535 = vst.msk [vmem:[%s240 + $0x7c] sm:$0xf] %vm4503, %v4502
      $region40: #{apply.2} parent=31 // pred_fallthru
        _
      %p4536 = scmp.lt.s32.totalorder %s19, 1
      %s4537 = scalar_select %p4536, %s19, 1
      %p4538 = scmp.lt.s32.totalorder %s20, 7
      %s4539 = scalar_select %p4538, %s20, 7
      %s4540 = smul.addr %s4539, 32
      %s4541 = smul.addr %s4537, 256
      %s4542 = sadd.s32 %s4540, %s4541
      %s4543 = smul.addr %s4542, 4
      %s4544 = scalar_lea.vmem %s3, %s4543
      // Predicated region
      $region41: #{apply.2} parent=31 // pred_check
        %p4545 = pneg %p130
      $region42: #{apply.2} parent=31 // pred_check_branch
        %4547 = sbr.rel (%p4545) target = $region44
      $region43: #{apply.2} parent=31 // pred_region
        _
      $region44: #{apply.2} parent=31 // pred_fallthru
        _
    $region32: #{apply.2} parent=5 // pred_fallthru
      _
    %p4548 = scmp.le.s32.totalorder 2, %s9
    // Predicated region
    $region45: #{apply.2} parent=5 // pred_check
      %p4549 = pneg %p4548
    $region46: #{apply.2} parent=5 // pred_check_branch
      %4551 = sbr.rel (%p4549) target = $region48
    $region47: #{apply.2} parent=5 // pred_region
      %s4552 = ssub.s32 %s9, 2
      // Predicated region
      $region49: #{apply.2} parent=47 // pred_check
        %p4553 = pneg %p136
      $region50: #{apply.2} parent=47 // pred_check_branch
        %4555 = sbr.rel (%p4553) target = $region52
      $region51: #{apply.2} parent=47 // pred_region
        %p4556 = scmp.lt.s32.totalorder %s22, 1
        %s4557 = scalar_select %p4556, %s22, 1
        %p4558 = scmp.lt.s32.totalorder %s23, 7
        %s4559 = scalar_select %p4558, %s23, 7
        %s4560 = smul.addr %s4559, 32
        %s4561 = smul.addr %s4557, 256
        %s4562 = sadd.s32 %s4560, %s4561
        %s4563 = smul.addr %s4562, 4
        %s4564 = scalar_lea.vmem %s3, %s4563
      $region52: #{apply.2} parent=47 // pred_fallthru
        _
    $region48: #{apply.2} parent=5 // pred_fallthru
      _
  $region6: #{apply.2} parent=0 // loop_footer
    %s13 = sadd.s32 1, %s9
  $region7: #{apply.2} parent=0 // loop_footer_branch
    %8 = sbr.rel target = $region3
  $region8: #{apply.2} parent=0 // loop_exit
    _

// kernel: apply.3
$region0: #{apply.3}
  #allocation0 [shape = 'u32[]', space=smem, size = 0x4, offset = 0x4, fixed_abs, tag = 'smem constant byte address 0x4 - core index']
  #allocation1 [shape = 'u32[72,128]{1,0:T(1,128)}', space=vmem, size = 0x9000, scoped, tag = 'internal scratch']
  #allocation2 [shape = 'f32[256,32]{1,0:T(8,128)}', space=vmem, size = 0x20000, scoped, tag = 'scratch operand']
  %s0 = inlined_call_operand.vmem [shape: bf16[2,10,18,18,32], index: 0, kind: input, shape index: {}]
  %s1 = inlined_call_operand.vmem [shape: bf16[3,9,32,32], index: 1, kind: input, shape index: {}]
  %s2 = inlined_call_operand.vmem [shape: f32[1,32], index: 2, kind: input, shape index: {}]
  %s3 = inlined_call_operand.hbm [shape: f32[2,8,256,32], index: 3, kind: output, shape index: {}]
  %s4 = sld [smem:[#allocation0]]
  $region53: #{apply.3} parent=0
    _
  %s6 = ssub.s32 1, %s4
  %s7 = scalar_select 0, %s6, %s4
  $region1: #{apply.3} parent=0
    #allocation3 [shape = 'u8[262144]{0}', space=vmem, size = 0x40000, scoped, tag = 'output window, operand 0']
    #allocation4 [shape = 's32[2]{0}', space=sflag, size = 0x8, scoped, tag = 'scoped memory for apply.3']
    %8 = vsyncpa [#allocation4], 0
    %s9 = scalar_lea.sflag [#allocation4], 1
    %10 = vsyncpa %s9, 0
    loop: start=0, step=1, limit=50
    $region2: #{apply.3} parent=1 // loop_pre_header
      _
    $region3: #{apply.3} parent=1 // loop_header
      %s12 = sphi 0, %s16
      %p13 = scmp.ge.s32.totalorder %s12, 50
      %s19 = sphi 0, %s38
      %s20 = sphi 0, %s34
      %s21 = sphi 0, %s30
      %s22 = sphi 0, %s19
      %s23 = sphi 0, %s20
      %s24 = sphi 0, %s21
      %s25 = sphi 0, %s22
      %s26 = sphi 0, %s23
      %s27 = sphi 0, %s24
      %s45 = sphi 0, %s47
      %s48 = sphi 0, %s45
      %s49 = sphi 0, %s48
      %s65 = sphi 0, %s49
      %s71 = sphi 0, %s73
      %s74 = sphi 0, %s71
      %s75 = sphi 0, %s74
      %s91 = sphi 0, %s75
      %s95 = sphi 0, %s95
      %s97 = sphi 0, %s95
      %s98 = sphi 0, %s97
      %s112 = sphi 0, %s98
      %s120 = sphi 0, %s122
      %s123 = sphi 0, %s120
      %s124 = sphi 0, %s123
      %s140 = sphi 0, %s124
    $region4: #{apply.3} parent=1 // loop_header_branch
      %15 = sbr.rel (%p13) target = $region8
    $region5: #{apply.3} parent=1 // loop_body
      %s17 = ssub.s32 %s12, 1
      %s18 = ssub.s32 %s12, 2
      %s28 = sadd.s32 1, %s21
      %p29 = scmp.ge.s32.totalorder %s28, 3
      %s30 = scalar_select %p29, 0, %s28
      %s31 = sadd.s32 1, %s20
      %s32 = scalar_select %p29, %s31, %s20
      %p33 = scmp.ge.s32.totalorder %s32, 8
      %s34 = scalar_select %p33, 0, %s32
      %s35 = sadd.s32 1, %s19
      %s36 = scalar_select %p33, %s35, %s19
      %p37 = scmp.ge.s32.totalorder %s36, 2
      %s38 = scalar_select %p37, 0, %s36
      %s39 = sadd.s32 %s20, %s21
      %s40 = sadd.s32 %s34, %s30
      %s41 = ssub.s32 %s19, %s38
      %s42 = ssub.s32 %s39, %s40
      %s43 = sor.u32 %s41, %s42
      %p44 = scmp.eq.s32.totalorder %s43, 0
      %s46 = sadd.s32 %s45, 1
      %s47 = scalar_select %p44, %s45, %s46
      %p50 = pneg %p44
      %p51 = scmp.eq.s32.totalorder %s12, 47
      %p52 = por %p50, %p51
      %p53 = scmp.ne.s32.totalorder %s45, %s48
      %p54 = scmp.eq.s32.totalorder %s12, 0
      %p55 = por %p53, %p54
      %p56 = scmp.ne.s32.totalorder %s45, %s48
      %p57 = scmp.eq.s32.totalorder %s17, 47
      %p58 = por %p56, %p57
      %p59 = scmp.ne.s32.totalorder %s48, %s49
      %p60 = scmp.eq.s32.totalorder %s17, 0
      %p61 = por %p59, %p60
      %p62 = scmp.ne.s32.totalorder %s48, %s49
      %p63 = scmp.eq.s32.totalorder %s18, 47
      %p64 = por %p62, %p63
      %p66 = scmp.ne.s32.totalorder %s49, %s65
      %p67 = scmp.eq.s32.totalorder %s18, 0
      %p68 = por %p66, %p67
      %s69 = ssub.s32 %s21, %s30
      %p70 = scmp.eq.s32.totalorder %s69, 0
      %s72 = sadd.s32 %s71, 1
      %s73 = scalar_select %p70, %s71, %s72
      %p76 = pneg %p70
      %p77 = scmp.eq.s32.totalorder %s12, 47
      %p78 = por %p76, %p77
      %p79 = scmp.ne.s32.totalorder %s71, %s74
      %p80 = scmp.eq.s32.totalorder %s12, 0
      %p81 = por %p79, %p80
      %p82 = scmp.ne.s32.totalorder %s71, %s74
      %p83 = scmp.eq.s32.totalorder %s17, 47
      %p84 = por %p82, %p83
      %p85 = scmp.ne.s32.totalorder %s74, %s75
      %p86 = scmp.eq.s32.totalorder %s17, 0
      %p87 = por %p85, %p86
      %p88 = scmp.ne.s32.totalorder %s74, %s75
      %p89 = scmp.eq.s32.totalorder %s18, 47
      %p90 = por %p88, %p89
      %p92 = scmp.ne.s32.totalorder %s75, %s91
      %p93 = scmp.eq.s32.totalorder %s18, 0
      %p94 = por %p92, %p93
      %s96 = sadd.s32 %s95, 1
      %p99 = scmp.eq.s32.totalorder %s12, 47
      %p100 = scmp.ne.s32.totalorder %s95, %s97
      %p101 = scmp.eq.s32.totalorder %s12, 0
      %p102 = por %p100, %p101
      %p103 = scmp.ne.s32.totalorder %s95, %s97
      %p104 = scmp.eq.s32.totalorder %s17, 47
      %p105 = por %p103, %p104
      %p106 = scmp.ne.s32.totalorder %s97, %s98
      %p107 = scmp.eq.s32.totalorder %s17, 0
      %p108 = por %p106, %p107
      %p109 = scmp.ne.s32.totalorder %s97, %s98
      %p110 = scmp.eq.s32.totalorder %s18, 47
      %p111 = por %p109, %p110
      %p113 = scmp.ne.s32.totalorder %s98, %s112
      %p114 = scmp.eq.s32.totalorder %s18, 0
      %p115 = por %p113, %p114
      %s116 = ssub.s32 %s19, %s38
      %s117 = ssub.s32 %s20, %s34
      %s118 = sor.u32 %s116, %s117
      %p119 = scmp.eq.s32.totalorder %s118, 0
      %s121 = sadd.s32 %s120, 1
      %s122 = scalar_select %p119, %s120, %s121
      %p125 = pneg %p119
      %p126 = scmp.eq.s32.totalorder %s12, 47
      %p127 = por %p125, %p126
      %p128 = scmp.ne.s32.totalorder %s120, %s123
      %p129 = scmp.eq.s32.totalorder %s12, 0
      %p130 = por %p128, %p129
      %p131 = scmp.ne.s32.totalorder %s120, %s123
      %p132 = scmp.eq.s32.totalorder %s17, 47
      %p133 = por %p131, %p132
      %p134 = scmp.ne.s32.totalorder %s123, %s124
      %p135 = scmp.eq.s32.totalorder %s17, 0
      %p136 = por %p134, %p135
      %p137 = scmp.ne.s32.totalorder %s123, %s124
      %p138 = scmp.eq.s32.totalorder %s18, 47
      %p139 = por %p137, %p138
      %p141 = scmp.ne.s32.totalorder %s124, %s140
      %p142 = scmp.eq.s32.totalorder %s18, 0
      %p143 = por %p141, %p142
      %p144 = scmp.le.s32.totalorder 1, %s12
      %p145 = scmp.lt.s32.totalorder %s12, 49
      %p146 = pnand %p144, %p145
      %p147 = pneg %p146
      // Predicated region
      $region9: #{apply.3} parent=5 // pred_check
        _
      $region10: #{apply.3} parent=5 // pred_check_branch
        %149 = sbr.rel (%p146) target = $region12
      $region11: #{apply.3} parent=5 // pred_region
        %s150 = ssub.s32 %s12, 1
        // Predicated region
        $region13: #{apply.3} parent=11 // pred_check
          %p151 = pneg %p108
        $region14: #{apply.3} parent=11 // pred_check_branch
          %153 = sbr.rel (%p151) target = $region16
        $region15: #{apply.3} parent=11 // pred_region
          _
        $region16: #{apply.3} parent=11 // pred_fallthru
          _
      $region12: #{apply.3} parent=5 // pred_fallthru
        _
      %p154 = scmp.lt.s32.totalorder %s12, 48
      // Predicated region
      $region17: #{apply.3} parent=5 // pred_check
        %p155 = pneg %p154
      $region18: #{apply.3} parent=5 // pred_check_branch
        %157 = sbr.rel (%p155) target = $region20
      $region19: #{apply.3} parent=5 // pred_region
        // Predicated region
        $region21: #{apply.3} parent=19 // pred_check
          %p158 = pneg %p55
        $region22: #{apply.3} parent=19 // pred_check_branch
          %160 = sbr.rel (%p158) target = $region24
        $region23: #{apply.3} parent=19 // pred_region
          %s161 = sadd.s32 %s20, %s21
          %p162 = scmp.lt.s32.totalorder %s19, 1
          %s163 = scalar_select %p162, %s19, 1
          %p164 = scmp.lt.s32.totalorder %s161, 9
          %s165 = scalar_select %p164, %s161, 9
          %s166 = smul.addr %s165, 54
          %s167 = smul.addr %s163, 540
          %s168 = sadd.s32 %s166, %s167
          %s169 = smul.addr %s168, 4
          %s170 = scalar_lea.vmem %s0, %s169
          %s171 = sadd.s32 %s20, %s21
        $region24: #{apply.3} parent=19 // pred_fallthru
          _
        // Predicated region
        $region25: #{apply.3} parent=19 // pred_check
          %p172 = pneg %p81
        $region26: #{apply.3} parent=19 // pred_check_branch
          %174 = sbr.rel (%p172) target = $region28
        $region27: #{apply.3} parent=19 // pred_region
          %p175 = scmp.lt.s32.totalorder %s21, 2
          %s176 = scalar_select %p175, %s21, 2
          %s177 = smul.addr %s176, 36
          %s178 = smul.addr %s177, 4
          %s179 = scalar_lea.vmem %s1, %s178
        $region28: #{apply.3} parent=19 // pred_fallthru
          _
      $region20: #{apply.3} parent=5 // pred_fallthru
        _
      %p180 = scmp.le.s32.totalorder 1, %s12
      %p181 = scmp.lt.s32.totalorder %s12, 49
      %p182 = pnand %p180, %p181
      %p183 = pneg %p182
      // Predicated region
      $region29: #{apply.3} parent=5 // pred_check
        _
      $region30: #{apply.3} parent=5 // pred_check_branch
        %185 = sbr.rel (%p182) target = $region32
      $region31: #{apply.3} parent=5 // pred_region
        %s186 = ssub.s32 %s12, 1
        %s187 = sadd.s32 %s23, %s24
        %p188 = scmp.lt.s32.totalorder %s22, 1
        %s189 = scalar_select %p188, %s22, 1
        %p190 = scmp.lt.s32.totalorder %s187, 9
        %s191 = scalar_select %p190, %s187, 9
        %s192 = smul.addr %s191, 54
        %s193 = smul.addr %s189, 540
        %s194 = sadd.s32 %s192, %s193
        %s195 = smul.addr %s194, 4
        %s196 = scalar_lea.vmem %s0, %s195
        %p197 = pneg %p61
        %p198 = pneg %p58
        %p199 = scmp.lt.s32.totalorder %s24, 2
        %s200 = scalar_select %p199, %s24, 2
        %s201 = smul.addr %s200, 36
        %s202 = smul.addr %s201, 4
        %s203 = scalar_lea.vmem %s1, %s202
        %p204 = pneg %p87
        %p205 = pneg %p84
        %p206 = pneg %p108
        %p207 = pneg %p105
        %p208 = pneg %p136
        %p209 = pneg %p133
        %s210 = sand.u32 %s123, 1
        %s211 = scalar_lea.sflag [#allocation4], %s210
        %s212 = sand.u32 %s123, 1
        %s213 = smul.addr %s212, 256
        %s214 = scalar_lea.vmem [#allocation3], %s213
        %s215 = sadd.s32 %s23, %s24
        %p216 = scmp.lt.s32.totalorder %s22, 1
        %s217 = scalar_select %p216, %s22, 1
        %p218 = scmp.lt.s32.totalorder %s215, 9
        %s219 = scalar_select %p218, %s215, 9
        %s220 = smul.addr %s219, 54
        %s221 = smul.addr %s217, 540
        %s222 = sadd.s32 %s220, %s221
        %s223 = smul.addr %s222, 4
        %s224 = scalar_lea.vmem %s0, %s223
        %s225 = sadd.s32 %s23, %s24
        %p226 = scmp.lt.s32.totalorder %s24, 2
        %s227 = scalar_select %p226, %s24, 2
        %s228 = smul.addr %s227, 36
        %s229 = smul.addr %s228, 4
        %s230 = scalar_lea.vmem %s1, %s229
        %p232 = scmp.eq.s32.totalorder %s24, 0
        // Predicated region
        $region33: #{apply.3} parent=31 // pred_check
          %p233 = pneg %p232
        $region34: #{apply.3} parent=31 // pred_check_branch
          %235 = sbr.rel (%p233) target = $region36
        $region35: #{apply.3} parent=31 // pred_region
          %vm236 = vcmask 261120
          %237 = vst.msk [vmem:[#allocation2] sm:$0xff] %vm236, 0.0
          %238 = vst.msk [vmem:[#allocation2 + $0x8] sm:$0xff] %vm236, 0.0
          %239 = vst.msk [vmem:[#allocation2 + $0x10] sm:$0xff] %vm236, 0.0
          %240 = vst.msk [vmem:[#allocation2 + $0x18] sm:$0xff] %vm236, 0.0
          %241 = vst.msk [vmem:[#allocation2 + $0x20] sm:$0xff] %vm236, 0.0
          %242 = vst.msk [vmem:[#allocation2 + $0x28] sm:$0xff] %vm236, 0.0
          %243 = vst.msk [vmem:[#allocation2 + $0x30] sm:$0xff] %vm236, 0.0
          %244 = vst.msk [vmem:[#allocation2 + $0x38] sm:$0xff] %vm236, 0.0
          %245 = vst.msk [vmem:[#allocation2 + $0x40] sm:$0xff] %vm236, 0.0
          %246 = vst.msk [vmem:[#allocation2 + $0x48] sm:$0xff] %vm236, 0.0
          %247 = vst.msk [vmem:[#allocation2 + $0x50] sm:$0xff] %vm236, 0.0
          %248 = vst.msk [vmem:[#allocation2 + $0x58] sm:$0xff] %vm236, 0.0
          %249 = vst.msk [vmem:[#allocation2 + $0x60] sm:$0xff] %vm236, 0.0
          %250 = vst.msk [vmem:[#allocation2 + $0x68] sm:$0xff] %vm236, 0.0
          %251 = vst.msk [vmem:[#allocation2 + $0x70] sm:$0xff] %vm236, 0.0
          %252 = vst.msk [vmem:[#allocation2 + $0x78] sm:$0xff] %vm236, 0.0
          %253 = vst.msk [vmem:[#allocation2 + $0x80] sm:$0xff] %vm236, 0.0
          %254 = vst.msk [vmem:[#allocation2 + $0x88] sm:$0xff] %vm236, 0.0
          %255 = vst.msk [vmem:[#allocation2 + $0x90] sm:$0xff] %vm236, 0.0
          %256 = vst.msk [vmem:[#allocation2 + $0x98] sm:$0xff] %vm236, 0.0
          %257 = vst.msk [vmem:[#allocation2 + $0xa0] sm:$0xff] %vm236, 0.0
          %258 = vst.msk [vmem:[#allocation2 + $0xa8] sm:$0xff] %vm236, 0.0
          %259 = vst.msk [vmem:[#allocation2 + $0xb0] sm:$0xff] %vm236, 0.0
          %260 = vst.msk [vmem:[#allocation2 + $0xb8] sm:$0xff] %vm236, 0.0
          %261 = vst.msk [vmem:[#allocation2 + $0xc0] sm:$0xff] %vm236, 0.0
          %262 = vst.msk [vmem:[#allocation2 + $0xc8] sm:$0xff] %vm236, 0.0
          %263 = vst.msk [vmem:[#allocation2 + $0xd0] sm:$0xff] %vm236, 0.0
          %264 = vst.msk [vmem:[#allocation2 + $0xd8] sm:$0xff] %vm236, 0.0
          %265 = vst.msk [vmem:[#allocation2 + $0xe0] sm:$0xff] %vm236, 0.0
          %266 = vst.msk [vmem:[#allocation2 + $0xe8] sm:$0xff] %vm236, 0.0
          %267 = vst.msk [vmem:[#allocation2 + $0xf0] sm:$0xff] %vm236, 0.0
          %268 = vst.msk [vmem:[#allocation2 + $0xf8] sm:$0xff] %vm236, 0.0
        $region36: #{apply.3} parent=31 // pred_fallthru
          _
        %v269 = vld [vmem:[#allocation2] sm:$0xff]
        %v270 = vld [vmem:[#allocation2 + $0x8] sm:$0xff]
        %v271 = vld [vmem:[#allocation2 + $0x10] sm:$0xff]
        %v272 = vld [vmem:[#allocation2 + $0x18] sm:$0xff]
        %v273 = vld [vmem:[#allocation2 + $0x20] sm:$0xff]
        %v274 = vld [vmem:[#allocation2 + $0x28] sm:$0xff]
        %v275 = vld [vmem:[#allocation2 + $0x30] sm:$0xff]
        %v276 = vld [vmem:[#allocation2 + $0x38] sm:$0xff]
        %v277 = vld [vmem:[#allocation2 + $0x40] sm:$0xff]
        %v278 = vld [vmem:[#allocation2 + $0x48] sm:$0xff]
        %v279 = vld [vmem:[#allocation2 + $0x50] sm:$0xff]
        %v280 = vld [vmem:[#allocation2 + $0x58] sm:$0xff]
        %v281 = vld [vmem:[#allocation2 + $0x60] sm:$0xff]
        %v282 = vld [vmem:[#allocation2 + $0x68] sm:$0xff]
        %v283 = vld [vmem:[#allocation2 + $0x70] sm:$0xff]
        %v284 = vld [vmem:[#allocation2 + $0x78] sm:$0xff]
        %v285 = vld [vmem:[#allocation2 + $0x80] sm:$0xff]
        %v286 = vld [vmem:[#allocation2 + $0x88] sm:$0xff]
        %v287 = vld [vmem:[#allocation2 + $0x90] sm:$0xff]
        %v288 = vld [vmem:[#allocation2 + $0x98] sm:$0xff]
        %v289 = vld [vmem:[#allocation2 + $0xa0] sm:$0xff]
        %v290 = vld [vmem:[#allocation2 + $0xa8] sm:$0xff]
        %v291 = vld [vmem:[#allocation2 + $0xb0] sm:$0xff]
        %v292 = vld [vmem:[#allocation2 + $0xb8] sm:$0xff]
        %v293 = vld [vmem:[#allocation2 + $0xc0] sm:$0xff]
        %v294 = vld [vmem:[#allocation2 + $0xc8] sm:$0xff]
        %v295 = vld [vmem:[#allocation2 + $0xd0] sm:$0xff]
        %v296 = vld [vmem:[#allocation2 + $0xd8] sm:$0xff]
        %v297 = vld [vmem:[#allocation2 + $0xe0] sm:$0xff]
        %v298 = vld [vmem:[#allocation2 + $0xe8] sm:$0xff]
        %v299 = vld [vmem:[#allocation2 + $0xf0] sm:$0xff]
        %v300 = vld [vmem:[#allocation2 + $0xf8] sm:$0xff]
        %v301 = vld [vmem:[%s224] sm:$0xf]
        %v302 = vld [vmem:[%s224 + $0x4] sm:$0xf]
        %v303 = vld [vmem:[%s224 + $0xc] sm:$0xf]
        %v304 = vld [vmem:[%s224 + $0x10] sm:$0xf]
        %v305 = vld [vmem:[%s224 + $0x18] sm:$0xf]
        %v306 = vld [vmem:[%s224 + $0x1c] sm:$0xf]
        %v307 = vld [vmem:[%s224 + $0x24] sm:$0xf]
        %v308 = vld [vmem:[%s224 + $0x28] sm:$0xf]
        %v309 = vld [vmem:[%s224 + $0x30] sm:$0xf]
        %v310 = vld [vmem:[%s224 + $0x34] sm:$0xf]
        %v311 = vld [vmem:[%s224 + $0x3c] sm:$0xf]
        %v312 = vld [vmem:[%s224 + $0x40] sm:$0xf]
        %v313 = vld [vmem:[%s224 + $0x48] sm:$0xf]
        %v314 = vld [vmem:[%s224 + $0x4c] sm:$0xf]
        %v315 = vld [vmem:[%s224 + $0x54] sm:$0xf]
        %v316 = vld [vmem:[%s224 + $0x58] sm:$0xf]
        %v317 = vld [vmem:[%s224 + $0x60] sm:$0xf]
        %v318 = vld [vmem:[%s224 + $0x64] sm:$0xf]
        %v319 = vld [vmem:[%s224 + $0x6c] sm:$0xf]
        %v320 = vld [vmem:[%s224 + $0x70] sm:$0xf]
        %v321 = vld [vmem:[%s224 + $0x78] sm:$0xf]
        %v322 = vld [vmem:[%s224 + $0x7c] sm:$0xf]
        %v323 = vld [vmem:[%s224 + $0x84] sm:$0xf]
        %v324 = vld [vmem:[%s224 + $0x88] sm:$0xf]
        %v325 = vld [vmem:[%s224 + $0x90] sm:$0xf]
        %v326 = vld [vmem:[%s224 + $0x94] sm:$0xf]
        %v327 = vld [vmem:[%s224 + $0x9c] sm:$0xf]
        %v328 = vld [vmem:[%s224 + $0xa0] sm:$0xf]
        %v329 = vld [vmem:[%s224 + $0xa8] sm:$0xf]
        %v330 = vld [vmem:[%s224 + $0xac] sm:$0xf]
        %v331 = vld [vmem:[%s224 + $0xb4] sm:$0xf]
        %v332 = vld [vmem:[%s224 + $0xb8] sm:$0xf]
        %v333 = vld [vmem:[%s230] sm:$0xf]
        %v334 = vld [vmem:[%s230 + $0x4] sm:$0xf]
        %v335 = vld [vmem:[%s230 + $0x8] sm:$0xf]
        %v336 = vld [vmem:[%s230 + $0xc] sm:$0xf]
        %v369 = vunpack.c.l.b16 %v301
        %v370 = vunpack.c.l.b16 %v302
        %v371 = vunpack.c.l.b16 %v303
        %v372 = vunpack.c.l.b16 %v304
        %v373 = vunpack.c.l.b16 %v305
        %v374 = vunpack.c.l.b16 %v306
        %v375 = vunpack.c.l.b16 %v307
        %v376 = vunpack.c.l.b16 %v308
        %v377 = vunpack.c.l.b16 %v309
        %v378 = vunpack.c.l.b16 %v310
        %v379 = vunpack.c.l.b16 %v311
        %v380 = vunpack.c.l.b16 %v312
        %v381 = vunpack.c.l.b16 %v313
        %v382 = vunpack.c.l.b16 %v314
        %v383 = vunpack.c.l.b16 %v315
        %v384 = vunpack.c.l.b16 %v316
        %v385 = vunpack.c.l.b16 %v317
        %v386 = vunpack.c.l.b16 %v318
        %v387 = vunpack.c.l.b16 %v319
        %v388 = vunpack.c.l.b16 %v320
        %v389 = vunpack.c.l.b16 %v321
        %v390 = vunpack.c.l.b16 %v322
        %v391 = vunpack.c.l.b16 %v323
        %v392 = vunpack.c.l.b16 %v324
        %v393 = vunpack.c.l.b16 %v325
        %v394 = vunpack.c.l.b16 %v326
        %v395 = vunpack.c.l.b16 %v327
        %v396 = vunpack.c.l.b16 %v328
        %v397 = vunpack.c.l.b16 %v329
        %v398 = vunpack.c.l.b16 %v330
        %v399 = vunpack.c.l.b16 %v331
        %v400 = vunpack.c.l.b16 %v332
        %v401 = vpack.c.b16 %v370, %v369
        %v402 = vpack.c.b16 %v372, %v371
        %v403 = vpack.c.b16 %v374, %v373
        %v404 = vpack.c.b16 %v376, %v375
        %v405 = vpack.c.b16 %v378, %v377
        %v406 = vpack.c.b16 %v380, %v379
        %v407 = vpack.c.b16 %v382, %v381
        %v408 = vpack.c.b16 %v384, %v383
        %v409 = vpack.c.b16 %v386, %v385
        %v410 = vpack.c.b16 %v388, %v387
        %v411 = vpack.c.b16 %v390, %v389
        %v412 = vpack.c.b16 %v392, %v391
        %v413 = vpack.c.b16 %v394, %v393
        %v414 = vpack.c.b16 %v396, %v395
        %v415 = vpack.c.b16 %v398, %v397
        %v416 = vpack.c.b16 %v400, %v399
        %v421 = vunpack.c.l.b16 %v333
        %v422 = vunpack.c.l.b16 %v334
        %v423 = vunpack.c.l.b16 %v335
        %v424 = vunpack.c.l.b16 %v336
        %v425 = vpack.c.b16 %v422, %v421
        %v426 = vpack.c.b16 %v424, %v423
        %vm429 = vcmask 261120
        %v431 = vsel %vm429, %v401, 0
        %v434 = vsel %vm429, %v402, 0
        %v437 = vsel %vm429, %v403, 0
        %v440 = vsel %vm429, %v404, 0
        %v443 = vsel %vm429, %v405, 0
        %v446 = vsel %vm429, %v406, 0
        %v449 = vsel %vm429, %v407, 0
        %v452 = vsel %vm429, %v408, 0
        %v455 = vsel %vm429, %v409, 0
        %v458 = vsel %vm429, %v410, 0
        %v461 = vsel %vm429, %v411, 0
        %v464 = vsel %vm429, %v412, 0
        %v467 = vsel %vm429, %v413, 0
        %v470 = vsel %vm429, %v414, 0
        %v473 = vsel %vm429, %v415, 0
        %v476 = vsel %vm429, %v416, 0
        %478 = vmatpush.bf16.msra.mxu0 0
        %479 = vmatpush.bf16.msra.mxu0 0
        %480 = vmatpush.bf16.msra.mxu0 0
        %481 = vmatpush.bf16.msra.mxu0 0
        %482 = vmatpush.bf16.msra.mxu0 0
        %483 = vmatpush.bf16.msra.mxu0 0
        %484 = vmatpush.bf16.msra.mxu0 %v426
        %485 = vmatpush.bf16.msra.mxu0 %v425
        %486 = vmatmul.bf16.gmra.mxu0 %v431
        %v487 = vpop.f32.mrf.mxu0
        %v488 = vadd.f32 0.0, %v487
        %v489 = vpop.f32.mrf.mxu0
        %v490 = vadd.f32 0.0, %v489
        %491 = vmatmul.bf16.gmra.mxu0 %v434
        %v492 = vpop.f32.mrf.mxu0
        %v493 = vadd.f32 0.0, %v492
        %v494 = vpop.f32.mrf.mxu0
        %v495 = vadd.f32 0.0, %v494
        %496 = vmatmul.bf16.gmra.mxu0 %v437
        %v497 = vpop.f32.mrf.mxu0
        %v498 = vadd.f32 0.0, %v497
        %v499 = vpop.f32.mrf.mxu0
        %v500 = vadd.f32 0.0, %v499
        %501 = vmatmul.bf16.gmra.mxu0 %v440
        %v502 = vpop.f32.mrf.mxu0
        %v503 = vadd.f32 0.0, %v502
        %v504 = vpop.f32.mrf.mxu0
        %v505 = vadd.f32 0.0, %v504
        %506 = vmatmul.bf16.gmra.mxu0 %v443
        %v507 = vpop.f32.mrf.mxu0
        %v508 = vadd.f32 0.0, %v507
        %v509 = vpop.f32.mrf.mxu0
        %v510 = vadd.f32 0.0, %v509
        %511 = vmatmul.bf16.gmra.mxu0 %v446
        %v512 = vpop.f32.mrf.mxu0
        %v513 = vadd.f32 0.0, %v512
        %v514 = vpop.f32.mrf.mxu0
        %v515 = vadd.f32 0.0, %v514
        %516 = vmatmul.bf16.gmra.mxu0 %v449
        %v517 = vpop.f32.mrf.mxu0
        %v518 = vadd.f32 0.0, %v517
        %v519 = vpop.f32.mrf.mxu0
        %v520 = vadd.f32 0.0, %v519
        %521 = vmatmul.bf16.gmra.mxu0 %v452
        %v522 = vpop.f32.mrf.mxu0
        %v523 = vadd.f32 0.0, %v522
        %v524 = vpop.f32.mrf.mxu0
        %v525 = vadd.f32 0.0, %v524
        %526 = vmatmul.bf16.gmra.mxu0 %v455
        %v527 = vpop.f32.mrf.mxu0
        %v528 = vadd.f32 0.0, %v527
        %v529 = vpop.f32.mrf.mxu0
        %v530 = vadd.f32 0.0, %v529
        %531 = vmatmul.bf16.gmra.mxu0 %v458
        %v532 = vpop.f32.mrf.mxu0
        %v533 = vadd.f32 0.0, %v532
        %v534 = vpop.f32.mrf.mxu0
        %v535 = vadd.f32 0.0, %v534
        %536 = vmatmul.bf16.gmra.mxu0 %v461
        %v537 = vpop.f32.mrf.mxu0
        %v538 = vadd.f32 0.0, %v537
        %v539 = vpop.f32.mrf.mxu0
        %v540 = vadd.f32 0.0, %v539
        %541 = vmatmul.bf16.gmra.mxu0 %v464
        %v542 = vpop.f32.mrf.mxu0
        %v543 = vadd.f32 0.0, %v542
        %v544 = vpop.f32.mrf.mxu0
        %v545 = vadd.f32 0.0, %v544
        %546 = vmatmul.bf16.gmra.mxu0 %v467
        %v547 = vpop.f32.mrf.mxu0
        %v548 = vadd.f32 0.0, %v547
        %v549 = vpop.f32.mrf.mxu0
        %v550 = vadd.f32 0.0, %v549
        %551 = vmatmul.bf16.gmra.mxu0 %v470
        %v552 = vpop.f32.mrf.mxu0
        %v553 = vadd.f32 0.0, %v552
        %v554 = vpop.f32.mrf.mxu0
        %v555 = vadd.f32 0.0, %v554
        %556 = vmatmul.bf16.gmra.mxu0 %v473
        %v557 = vpop.f32.mrf.mxu0
        %v558 = vadd.f32 0.0, %v557
        %v559 = vpop.f32.mrf.mxu0
        %v560 = vadd.f32 0.0, %v559
        %561 = vmatmul.bf16.gmra.mxu0 %v476
        %v562 = vpop.f32.mrf.mxu0
        %v563 = vadd.f32 0.0, %v562
        %v564 = vpop.f32.mrf.mxu0
        %v565 = vadd.f32 0.0, %v564
        %566 = vdwg.mxu0
        %v567 = vadd.f32 %v269, %v488
        %v568 = vadd.f32 %v270, %v490
        %v569 = vadd.f32 %v271, %v493
        %v570 = vadd.f32 %v272, %v495
        %v571 = vadd.f32 %v273, %v498
        %v572 = vadd.f32 %v274, %v500
        %v573 = vadd.f32 %v275, %v503
        %v574 = vadd.f32 %v276, %v505
        %v575 = vadd.f32 %v277, %v508
        %v576 = vadd.f32 %v278, %v510
        %v577 = vadd.f32 %v279, %v513
        %v578 = vadd.f32 %v280, %v515
        %v579 = vadd.f32 %v281, %v518
        %v580 = vadd.f32 %v282, %v520
        %v581 = vadd.f32 %v283, %v523
        %v582 = vadd.f32 %v284, %v525
        %v583 = vadd.f32 %v285, %v528
        %v584 = vadd.f32 %v286, %v530
        %v585 = vadd.f32 %v287, %v533
        %v586 = vadd.f32 %v288, %v535
        %v587 = vadd.f32 %v289, %v538
        %v588 = vadd.f32 %v290, %v540
        %v589 = vadd.f32 %v291, %v543
        %v590 = vadd.f32 %v292, %v545
        %v591 = vadd.f32 %v293, %v548
        %v592 = vadd.f32 %v294, %v550
        %v593 = vadd.f32 %v295, %v553
        %v594 = vadd.f32 %v296, %v555
        %v595 = vadd.f32 %v297, %v558
        %v596 = vadd.f32 %v298, %v560
        %v597 = vadd.f32 %v299, %v563
        %v598 = vadd.f32 %v300, %v565
        %v599 = vld [vmem:[%s224] sm:$0xf]
        %v600 = vld [vmem:[%s224 + $0x4] sm:$0xf]
        %v601 = vld [vmem:[%s224 + $0x8] sm:$0x1]
        %v602 = vld [vmem:[%s224 + $0xc] sm:$0xf]
        %v603 = vld [vmem:[%s224 + $0x10] sm:$0xf]
        %v604 = vld [vmem:[%s224 + $0x14] sm:$0x1]
        %v605 = vld [vmem:[%s224 + $0x18] sm:$0xf]
        %v606 = vld [vmem:[%s224 + $0x1c] sm:$0xf]
        %v607 = vld [vmem:[%s224 + $0x20] sm:$0x1]
        %v608 = vld [vmem:[%s224 + $0x24] sm:$0xf]
        %v609 = vld [vmem:[%s224 + $0x28] sm:$0xf]
        %v610 = vld [vmem:[%s224 + $0x2c] sm:$0x1]
        %v611 = vld [vmem:[%s224 + $0x30] sm:$0xf]
        %v612 = vld [vmem:[%s224 + $0x34] sm:$0xf]
        %v613 = vld [vmem:[%s224 + $0x38] sm:$0x1]
        %v614 = vld [vmem:[%s224 + $0x3c] sm:$0xf]
        %v615 = vld [vmem:[%s224 + $0x40] sm:$0xf]
        %v616 = vld [vmem:[%s224 + $0x44] sm:$0x1]
        %v617 = vld [vmem:[%s224 + $0x48] sm:$0xf]
        %v618 = vld [vmem:[%s224 + $0x4c] sm:$0xf]
        %v619 = vld [vmem:[%s224 + $0x50] sm:$0x1]
        %v620 = vld [vmem:[%s224 + $0x54] sm:$0xf]
        %v621 = vld [vmem:[%s224 + $0x58] sm:$0xf]
        %v622 = vld [vmem:[%s224 + $0x5c] sm:$0x1]
        %v623 = vld [vmem:[%s224 + $0x60] sm:$0xf]
        %v624 = vld [vmem:[%s224 + $0x64] sm:$0xf]
        %v625 = vld [vmem:[%s224 + $0x68] sm:$0x1]
        %v626 = vld [vmem:[%s224 + $0x6c] sm:$0xf]
        %v627 = vld [vmem:[%s224 + $0x70] sm:$0xf]
        %v628 = vld [vmem:[%s224 + $0x74] sm:$0x1]
        %v629 = vld [vmem:[%s224 + $0x78] sm:$0xf]
        %v630 = vld [vmem:[%s224 + $0x7c] sm:$0xf]
        %v631 = vld [vmem:[%s224 + $0x80] sm:$0x1]
        %v632 = vld [vmem:[%s224 + $0x84] sm:$0xf]
        %v633 = vld [vmem:[%s224 + $0x88] sm:$0xf]
        %v634 = vld [vmem:[%s224 + $0x8c] sm:$0x1]
        %v635 = vld [vmem:[%s224 + $0x90] sm:$0xf]
        %v636 = vld [vmem:[%s224 + $0x94] sm:$0xf]
        %v637 = vld [vmem:[%s224 + $0x98] sm:$0x1]
        %v638 = vld [vmem:[%s224 + $0x9c] sm:$0xf]
        %v639 = vld [vmem:[%s224 + $0xa0] sm:$0xf]
        %v640 = vld [vmem:[%s224 + $0xa4] sm:$0x1]
        %v641 = vld [vmem:[%s224 + $0xa8] sm:$0xf]
        %v642 = vld [vmem:[%s224 + $0xac] sm:$0xf]
        %v643 = vld [vmem:[%s224 + $0xb0] sm:$0x1]
        %v644 = vld [vmem:[%s224 + $0xb4] sm:$0xf]
        %v645 = vld [vmem:[%s224 + $0xb8] sm:$0xf]
        %v646 = vld [vmem:[%s224 + $0xbc] sm:$0x1]
        %vm647 = vsmask.f32 3328
        %vm648 = vsmask.f32 7440
        %vm649 = vmor %vm647, %vm648
        %v651 = vshrl.u32 %v599, 16
        %v653 = vrot.slane %v651, 4
        %v654 = vshll.u32 %v599, 16
        %v656 = vrot.slane %v654, 5
        %v657 = vor.u32 %v653, %v656
        %v658 = vrot.slane %v657, 4
        %v660 = vshll.u32 %v600, 16
        %v662 = vrot.slane %v660, 5
        %v663 = vsel %vm649, %v658, %v662
        %v664 = vshrl.u32 %v600, 16
        %v666 = vrot.slane %v664, 4
        %v667 = vor.u32 %v666, %v662
        %v668 = vrot.slane %v667, 4
        %v670 = vshll.u32 %v601, 16
        %v672 = vrot.slane %v670, 5
        %v673 = vsel %vm649, %v668, %v672
        %v675 = vshrl.u32 %v602, 16
        %v677 = vrot.slane %v675, 4
        %v678 = vshll.u32 %v602, 16
        %v680 = vrot.slane %v678, 5
        %v681 = vor.u32 %v677, %v680
        %v682 = vrot.slane %v681, 4
        %v684 = vshll.u32 %v603, 16
        %v686 = vrot.slane %v684, 5
        %v687 = vsel %vm649, %v682, %v686
        %v688 = vshrl.u32 %v603, 16
        %v690 = vrot.slane %v688, 4
        %v691 = vor.u32 %v690, %v686
        %v692 = vrot.slane %v691, 4
        %v694 = vshll.u32 %v604, 16
        %v696 = vrot.slane %v694, 5
        %v697 = vsel %vm649, %v692, %v696
        %v699 = vshrl.u32 %v605, 16
        %v701 = vrot.slane %v699, 4
        %v702 = vshll.u32 %v605, 16
        %v704 = vrot.slane %v702, 5
        %v705 = vor.u32 %v701, %v704
        %v706 = vrot.slane %v705, 4
        %v708 = vshll.u32 %v606, 16
        %v710 = vrot.slane %v708, 5
        %v711 = vsel %vm649, %v706, %v710
        %v712 = vshrl.u32 %v606, 16
        %v714 = vrot.slane %v712, 4
        %v715 = vor.u32 %v714, %v710
        %v716 = vrot.slane %v715, 4
        %v718 = vshll.u32 %v607, 16
        %v720 = vrot.slane %v718, 5
        %v721 = vsel %vm649, %v716, %v720
        %v723 = vshrl.u32 %v608, 16
        %v725 = vrot.slane %v723, 4
        %v726 = vshll.u32 %v608, 16
        %v728 = vrot.slane %v726, 5
        %v729 = vor.u32 %v725, %v728
        %v730 = vrot.slane %v729, 4
        %v732 = vshll.u32 %v609, 16
        %v734 = vrot.slane %v732, 5
        %v735 = vsel %vm649, %v730, %v734
        %v736 = vshrl.u32 %v609, 16
        %v738 = vrot.slane %v736, 4
        %v739 = vor.u32 %v738, %v734
        %v740 = vrot.slane %v739, 4
        %v742 = vshll.u32 %v610, 16
        %v744 = vrot.slane %v742, 5
        %v745 = vsel %vm649, %v740, %v744
        %v747 = vshrl.u32 %v611, 16
        %v749 = vrot.slane %v747, 4
        %v750 = vshll.u32 %v611, 16
        %v752 = vrot.slane %v750, 5
        %v753 = vor.u32 %v749, %v752
        %v754 = vrot.slane %v753, 4
        %v756 = vshll.u32 %v612, 16
        %v758 = vrot.slane %v756, 5
        %v759 = vsel %vm649, %v754, %v758
        %v760 = vshrl.u32 %v612, 16
        %v762 = vrot.slane %v760, 4
        %v763 = vor.u32 %v762, %v758
        %v764 = vrot.slane %v763, 4
        %v766 = vshll.u32 %v613, 16
        %v768 = vrot.slane %v766, 5
        %v769 = vsel %vm649, %v764, %v768
        %v771 = vshrl.u32 %v614, 16
        %v773 = vrot.slane %v771, 4
        %v774 = vshll.u32 %v614, 16
        %v776 = vrot.slane %v774, 5
        %v777 = vor.u32 %v773, %v776
        %v778 = vrot.slane %v777, 4
        %v780 = vshll.u32 %v615, 16
        %v782 = vrot.slane %v780, 5
        %v783 = vsel %vm649, %v778, %v782
        %v784 = vshrl.u32 %v615, 16
        %v786 = vrot.slane %v784, 4
        %v787 = vor.u32 %v786, %v782
        %v788 = vrot.slane %v787, 4
        %v790 = vshll.u32 %v616, 16
        %v792 = vrot.slane %v790, 5
        %v793 = vsel %vm649, %v788, %v792
        %v795 = vshrl.u32 %v617, 16
        %v797 = vrot.slane %v795, 4
        %v798 = vshll.u32 %v617, 16
        %v800 = vrot.slane %v798, 5
        %v801 = vor.u32 %v797, %v800
        %v802 = vrot.slane %v801, 4
        %v804 = vshll.u32 %v618, 16
        %v806 = vrot.slane %v804, 5
        %v807 = vsel %vm649, %v802, %v806
        %v808 = vshrl.u32 %v618, 16
        %v810 = vrot.slane %v808, 4
        %v811 = vor.u32 %v810, %v806
        %v812 = vrot.slane %v811, 4
        %v814 = vshll.u32 %v619, 16
        %v816 = vrot.slane %v814, 5
        %v817 = vsel %vm649, %v812, %v816
        %v819 = vshrl.u32 %v620, 16
        %v821 = vrot.slane %v819, 4
        %v822 = vshll.u32 %v620, 16
        %v824 = vrot.slane %v822, 5
        %v825 = vor.u32 %v821, %v824
        %v826 = vrot.slane %v825, 4
        %v828 = vshll.u32 %v621, 16
        %v830 = vrot.slane %v828, 5
        %v831 = vsel %vm649, %v826, %v830
        %v832 = vshrl.u32 %v621, 16
        %v834 = vrot.slane %v832, 4
        %v835 = vor.u32 %v834, %v830
        %v836 = vrot.slane %v835, 4
        %v838 = vshll.u32 %v622, 16
        %v840 = vrot.slane %v838, 5
        %v841 = vsel %vm649, %v836, %v840
        %v843 = vshrl.u32 %v623, 16
        %v845 = vrot.slane %v843, 4
        %v846 = vshll.u32 %v623, 16
        %v848 = vrot.slane %v846, 5
        %v849 = vor.u32 %v845, %v848
        %v850 = vrot.slane %v849, 4
        %v852 = vshll.u32 %v624, 16
        %v854 = vrot.slane %v852, 5
        %v855 = vsel %vm649, %v850, %v854
        %v856 = vshrl.u32 %v624, 16
        %v858 = vrot.slane %v856, 4
        %v859 = vor.u32 %v858, %v854
        %v860 = vrot.slane %v859, 4
        %v862 = vshll.u32 %v625, 16
        %v864 = vrot.slane %v862, 5
        %v865 = vsel %vm649, %v860, %v864
        %v867 = vshrl.u32 %v626, 16
        %v869 = vrot.slane %v867, 4
        %v870 = vshll.u32 %v626, 16
        %v872 = vrot.slane %v870, 5
        %v873 = vor.u32 %v869, %v872
        %v874 = vrot.slane %v873, 4
        %v876 = vshll.u32 %v627, 16
        %v878 = vrot.slane %v876, 5
        %v879 = vsel %vm649, %v874, %v878
        %v880 = vshrl.u32 %v627, 16
        %v882 = vrot.slane %v880, 4
        %v883 = vor.u32 %v882, %v878
        %v884 = vrot.slane %v883, 4
        %v886 = vshll.u32 %v628, 16
        %v888 = vrot.slane %v886, 5
        %v889 = vsel %vm649, %v884, %v888
        %v891 = vshrl.u32 %v629, 16
        %v893 = vrot.slane %v891, 4
        %v894 = vshll.u32 %v629, 16
        %v896 = vrot.slane %v894, 5
        %v897 = vor.u32 %v893, %v896
        %v898 = vrot.slane %v897, 4
        %v900 = vshll.u32 %v630, 16
        %v902 = vrot.slane %v900, 5
        %v903 = vsel %vm649, %v898, %v902
        %v904 = vshrl.u32 %v630, 16
        %v906 = vrot.slane %v904, 4
        %v907 = vor.u32 %v906, %v902
        %v908 = vrot.slane %v907, 4
        %v910 = vshll.u32 %v631, 16
        %v912 = vrot.slane %v910, 5
        %v913 = vsel %vm649, %v908, %v912
        %v915 = vshrl.u32 %v632, 16
        %v917 = vrot.slane %v915, 4
        %v918 = vshll.u32 %v632, 16
        %v920 = vrot.slane %v918, 5
        %v921 = vor.u32 %v917, %v920
        %v922 = vrot.slane %v921, 4
        %v924 = vshll.u32 %v633, 16
        %v926 = vrot.slane %v924, 5
        %v927 = vsel %vm649, %v922, %v926
        %v928 = vshrl.u32 %v633, 16
        %v930 = vrot.slane %v928, 4
        %v931 = vor.u32 %v930, %v926
        %v932 = vrot.slane %v931, 4
        %v934 = vshll.u32 %v634, 16
        %v936 = vrot.slane %v934, 5
        %v937 = vsel %vm649, %v932, %v936
        %v939 = vshrl.u32 %v635, 16
        %v941 = vrot.slane %v939, 4
        %v942 = vshll.u32 %v635, 16
        %v944 = vrot.slane %v942, 5
        %v945 = vor.u32 %v941, %v944
        %v946 = vrot.slane %v945, 4
        %v948 = vshll.u32 %v636, 16
        %v950 = vrot.slane %v948, 5
        %v951 = vsel %vm649, %v946, %v950
        %v952 = vshrl.u32 %v636, 16
        %v954 = vrot.slane %v952, 4
        %v955 = vor.u32 %v954, %v950
        %v956 = vrot.slane %v955, 4
        %v958 = vshll.u32 %v637, 16
        %v960 = vrot.slane %v958, 5
        %v961 = vsel %vm649, %v956, %v960
        %v963 = vshrl.u32 %v638, 16
        %v965 = vrot.slane %v963, 4
        %v966 = vshll.u32 %v638, 16
        %v968 = vrot.slane %v966, 5
        %v969 = vor.u32 %v965, %v968
        %v970 = vrot.slane %v969, 4
        %v972 = vshll.u32 %v639, 16
        %v974 = vrot.slane %v972, 5
        %v975 = vsel %vm649, %v970, %v974
        %v976 = vshrl.u32 %v639, 16
        %v978 = vrot.slane %v976, 4
        %v979 = vor.u32 %v978, %v974
        %v980 = vrot.slane %v979, 4
        %v982 = vshll.u32 %v640, 16
        %v984 = vrot.slane %v982, 5
        %v985 = vsel %vm649, %v980, %v984
        %v987 = vshrl.u32 %v641, 16
        %v989 = vrot.slane %v987, 4
        %v990 = vshll.u32 %v641, 16
        %v992 = vrot.slane %v990, 5
        %v993 = vor.u32 %v989, %v992
        %v994 = vrot.slane %v993, 4
        %v996 = vshll.u32 %v642, 16
        %v998 = vrot.slane %v996, 5
        %v999 = vsel %vm649, %v994, %v998
        %v1000 = vshrl.u32 %v642, 16
        %v1002 = vrot.slane %v1000, 4
        %v1003 = vor.u32 %v1002, %v998
        %v1004 = vrot.slane %v1003, 4
        %v1006 = vshll.u32 %v643, 16
        %v1008 = vrot.slane %v1006, 5
        %v1009 = vsel %vm649, %v1004, %v1008
        %v1011 = vshrl.u32 %v644, 16
        %v1013 = vrot.slane %v1011, 4
        %v1014 = vshll.u32 %v644, 16
        %v1016 = vrot.slane %v1014, 5
        %v1017 = vor.u32 %v1013, %v1016
        %v1018 = vrot.slane %v1017, 4
        %v1020 = vshll.u32 %v645, 16
        %v1022 = vrot.slane %v1020, 5
        %v1023 = vsel %vm649, %v1018, %v1022
        %v1024 = vshrl.u32 %v645, 16
        %v1026 = vrot.slane %v1024, 4
        %v1027 = vor.u32 %v1026, %v1022
        %v1028 = vrot.slane %v1027, 4
        %v1030 = vshll.u32 %v646, 16
        %v1032 = vrot.slane %v1030, 5
        %v1033 = vsel %vm649, %v1028, %v1032
        %s1034 = scalar_lea.vmem %s230, 16
        %v1035 = vld [vmem:[%s1034] sm:$0xf]
        %v1036 = vld [vmem:[%s1034 + $0x4] sm:$0xf]
        %v1037 = vld [vmem:[%s1034 + $0x8] sm:$0xf]
        %v1038 = vld [vmem:[%s1034 + $0xc] sm:$0xf]
        %v1039 = vunpack.c.l.b16 %v663
        %v1040 = vunpack.c.l.b16 %v673
        %v1041 = vunpack.c.l.b16 %v687
        %v1042 = vunpack.c.l.b16 %v697
        %v1043 = vunpack.c.l.b16 %v711
        %v1044 = vunpack.c.l.b16 %v721
        %v1045 = vunpack.c.l.b16 %v735
        %v1046 = vunpack.c.l.b16 %v745
        %v1047 = vunpack.c.l.b16 %v759
        %v1048 = vunpack.c.l.b16 %v769
        %v1049 = vunpack.c.l.b16 %v783
        %v1050 = vunpack.c.l.b16 %v793
        %v1051 = vunpack.c.l.b16 %v807
        %v1052 = vunpack.c.l.b16 %v817
        %v1053 = vunpack.c.l.b16 %v831
        %v1054 = vunpack.c.l.b16 %v841
        %v1055 = vunpack.c.l.b16 %v855
        %v1056 = vunpack.c.l.b16 %v865
        %v1057 = vunpack.c.l.b16 %v879
        %v1058 = vunpack.c.l.b16 %v889
        %v1059 = vunpack.c.l.b16 %v903
        %v1060 = vunpack.c.l.b16 %v913
        %v1061 = vunpack.c.l.b16 %v927
        %v1062 = vunpack.c.l.b16 %v937
        %v1063 = vunpack.c.l.b16 %v951
        %v1064 = vunpack.c.l.b16 %v961
        %v1065 = vunpack.c.l.b16 %v975
        %v1066 = vunpack.c.l.b16 %v985
        %v1067 = vunpack.c.l.b16 %v999
        %v1068 = vunpack.c.l.b16 %v1009
        %v1069 = vunpack.c.l.b16 %v1023
        %v1070 = vunpack.c.l.b16 %v1033
        %v1071 = vpack.c.b16 %v1040, %v1039
        %v1072 = vpack.c.b16 %v1042, %v1041
        %v1073 = vpack.c.b16 %v1044, %v1043
        %v1074 = vpack.c.b16 %v1046, %v1045
        %v1075 = vpack.c.b16 %v1048, %v1047
        %v1076 = vpack.c.b16 %v1050, %v1049
        %v1077 = vpack.c.b16 %v1052, %v1051
        %v1078 = vpack.c.b16 %v1054, %v1053
        %v1079 = vpack.c.b16 %v1056, %v1055
        %v1080 = vpack.c.b16 %v1058, %v1057
        %v1081 = vpack.c.b16 %v1060, %v1059
        %v1082 = vpack.c.b16 %v1062, %v1061
        %v1083 = vpack.c.b16 %v1064, %v1063
        %v1084 = vpack.c.b16 %v1066, %v1065
        %v1085 = vpack.c.b16 %v1068, %v1067
        %v1086 = vpack.c.b16 %v1070, %v1069
        %v1091 = vunpack.c.l.b16 %v1035
        %v1092 = vunpack.c.l.b16 %v1036
        %v1093 = vunpack.c.l.b16 %v1037
        %v1094 = vunpack.c.l.b16 %v1038
        %v1095 = vpack.c.b16 %v1092, %v1091
        %v1096 = vpack.c.b16 %v1094, %v1093
        %v1100 = vsel %vm429, %v1071, 0
        %v1103 = vsel %vm429, %v1072, 0
        %v1106 = vsel %vm429, %v1073, 0
        %v1109 = vsel %vm429, %v1074, 0
        %v1112 = vsel %vm429, %v1075, 0
        %v1115 = vsel %vm429, %v1076, 0
        %v1118 = vsel %vm429, %v1077, 0
        %v1121 = vsel %vm429, %v1078, 0
        %v1124 = vsel %vm429, %v1079, 0
        %v1127 = vsel %vm429, %v1080, 0
        %v1130 = vsel %vm429, %v1081, 0
        %v1133 = vsel %vm429, %v1082, 0
        %v1136 = vsel %vm429, %v1083, 0
        %v1139 = vsel %vm429, %v1084, 0
        %v1142 = vsel %vm429, %v1085, 0
        %v1145 = vsel %vm429, %v1086, 0
        %1147 = vmatpush.bf16.msra.mxu0 0
        %1148 = vmatpush.bf16.msra.mxu0 0
        %1149 = vmatpush.bf16.msra.mxu0 0
        %1150 = vmatpush.bf16.msra.mxu0 0
        %1151 = vmatpush.bf16.msra.mxu0 0
        %1152 = vmatpush.bf16.msra.mxu0 0
        %1153 = vmatpush.bf16.msra.mxu0 %v1096
        %1154 = vmatpush.bf16.msra.mxu0 %v1095
        %1155 = vmatmul.bf16.gmra.mxu0 %v1100
        %v1156 = vpop.f32.mrf.mxu0
        %v1157 = vadd.f32 0.0, %v1156
        %v1158 = vpop.f32.mrf.mxu0
        %v1159 = vadd.f32 0.0, %v1158
        %1160 = vmatmul.bf16.gmra.mxu0 %v1103
        %v1161 = vpop.f32.mrf.mxu0
        %v1162 = vadd.f32 0.0, %v1161
        %v1163 = vpop.f32.mrf.mxu0
        %v1164 = vadd.f32 0.0, %v1163
        %1165 = vmatmul.bf16.gmra.mxu0 %v1106
        %v1166 = vpop.f32.mrf.mxu0
        %v1167 = vadd.f32 0.0, %v1166
        %v1168 = vpop.f32.mrf.mxu0
        %v1169 = vadd.f32 0.0, %v1168
        %1170 = vmatmul.bf16.gmra.mxu0 %v1109
        %v1171 = vpop.f32.mrf.mxu0
        %v1172 = vadd.f32 0.0, %v1171
        %v1173 = vpop.f32.mrf.mxu0
        %v1174 = vadd.f32 0.0, %v1173
        %1175 = vmatmul.bf16.gmra.mxu0 %v1112
        %v1176 = vpop.f32.mrf.mxu0
        %v1177 = vadd.f32 0.0, %v1176
        %v1178 = vpop.f32.mrf.mxu0
        %v1179 = vadd.f32 0.0, %v1178
        %1180 = vmatmul.bf16.gmra.mxu0 %v1115
        %v1181 = vpop.f32.mrf.mxu0
        %v1182 = vadd.f32 0.0, %v1181
        %v1183 = vpop.f32.mrf.mxu0
        %v1184 = vadd.f32 0.0, %v1183
        %1185 = vmatmul.bf16.gmra.mxu0 %v1118
        %v1186 = vpop.f32.mrf.mxu0
        %v1187 = vadd.f32 0.0, %v1186
        %v1188 = vpop.f32.mrf.mxu0
        %v1189 = vadd.f32 0.0, %v1188
        %1190 = vmatmul.bf16.gmra.mxu0 %v1121
        %v1191 = vpop.f32.mrf.mxu0
        %v1192 = vadd.f32 0.0, %v1191
        %v1193 = vpop.f32.mrf.mxu0
        %v1194 = vadd.f32 0.0, %v1193
        %1195 = vmatmul.bf16.gmra.mxu0 %v1124
        %v1196 = vpop.f32.mrf.mxu0
        %v1197 = vadd.f32 0.0, %v1196
        %v1198 = vpop.f32.mrf.mxu0
        %v1199 = vadd.f32 0.0, %v1198
        %1200 = vmatmul.bf16.gmra.mxu0 %v1127
        %v1201 = vpop.f32.mrf.mxu0
        %v1202 = vadd.f32 0.0, %v1201
        %v1203 = vpop.f32.mrf.mxu0
        %v1204 = vadd.f32 0.0, %v1203
        %1205 = vmatmul.bf16.gmra.mxu0 %v1130
        %v1206 = vpop.f32.mrf.mxu0
        %v1207 = vadd.f32 0.0, %v1206
        %v1208 = vpop.f32.mrf.mxu0
        %v1209 = vadd.f32 0.0, %v1208
        %1210 = vmatmul.bf16.gmra.mxu0 %v1133
        %v1211 = vpop.f32.mrf.mxu0
        %v1212 = vadd.f32 0.0, %v1211
        %v1213 = vpop.f32.mrf.mxu0
        %v1214 = vadd.f32 0.0, %v1213
        %1215 = vmatmul.bf16.gmra.mxu0 %v1136
        %v1216 = vpop.f32.mrf.mxu0
        %v1217 = vadd.f32 0.0, %v1216
        %v1218 = vpop.f32.mrf.mxu0
        %v1219 = vadd.f32 0.0, %v1218
        %1220 = vmatmul.bf16.gmra.mxu0 %v1139
        %v1221 = vpop.f32.mrf.mxu0
        %v1222 = vadd.f32 0.0, %v1221
        %v1223 = vpop.f32.mrf.mxu0
        %v1224 = vadd.f32 0.0, %v1223
        %1225 = vmatmul.bf16.gmra.mxu0 %v1142
        %v1226 = vpop.f32.mrf.mxu0
        %v1227 = vadd.f32 0.0, %v1226
        %v1228 = vpop.f32.mrf.mxu0
        %v1229 = vadd.f32 0.0, %v1228
        %1230 = vmatmul.bf16.gmra.mxu0 %v1145
        %v1231 = vpop.f32.mrf.mxu0
        %v1232 = vadd.f32 0.0, %v1231
        %v1233 = vpop.f32.mrf.mxu0
        %v1234 = vadd.f32 0.0, %v1233
        %1235 = vdwg.mxu0
        %v1236 = vadd.f32 %v567, %v1157
        %v1237 = vadd.f32 %v568, %v1159
        %v1238 = vadd.f32 %v569, %v1162
        %v1239 = vadd.f32 %v570, %v1164
        %v1240 = vadd.f32 %v571, %v1167
        %v1241 = vadd.f32 %v572, %v1169
        %v1242 = vadd.f32 %v573, %v1172
        %v1243 = vadd.f32 %v574, %v1174
        %v1244 = vadd.f32 %v575, %v1177
        %v1245 = vadd.f32 %v576, %v1179
        %v1246 = vadd.f32 %v577, %v1182
        %v1247 = vadd.f32 %v578, %v1184
        %v1248 = vadd.f32 %v579, %v1187
        %v1249 = vadd.f32 %v580, %v1189
        %v1250 = vadd.f32 %v581, %v1192
        %v1251 = vadd.f32 %v582, %v1194
        %v1252 = vadd.f32 %v583, %v1197
        %v1253 = vadd.f32 %v584, %v1199
        %v1254 = vadd.f32 %v585, %v1202
        %v1255 = vadd.f32 %v586, %v1204
        %v1256 = vadd.f32 %v587, %v1207
        %v1257 = vadd.f32 %v588, %v1209
        %v1258 = vadd.f32 %v589, %v1212
        %v1259 = vadd.f32 %v590, %v1214
        %v1260 = vadd.f32 %v591, %v1217
        %v1261 = vadd.f32 %v592, %v1219
        %v1262 = vadd.f32 %v593, %v1222
        %v1263 = vadd.f32 %v594, %v1224
        %v1264 = vadd.f32 %v595, %v1227
        %v1265 = vadd.f32 %v596, %v1229
        %v1266 = vadd.f32 %v597, %v1232
        %v1267 = vadd.f32 %v598, %v1234
        %v1268 = vld [vmem:[%s224] sm:$0xe]
        %v1269 = vld [vmem:[%s224 + $0xc] sm:$0xe]
        %v1270 = vld [vmem:[%s224 + $0x18] sm:$0xe]
        %v1271 = vld [vmem:[%s224 + $0x24] sm:$0xe]
        %v1272 = vld [vmem:[%s224 + $0x30] sm:$0xe]
        %v1273 = vld [vmem:[%s224 + $0x3c] sm:$0xe]
        %v1274 = vld [vmem:[%s224 + $0x48] sm:$0xe]
        %v1275 = vld [vmem:[%s224 + $0x54] sm:$0xe]
        %v1276 = vld [vmem:[%s224 + $0x60] sm:$0xe]
        %v1277 = vld [vmem:[%s224 + $0x6c] sm:$0xe]
        %v1278 = vld [vmem:[%s224 + $0x78] sm:$0xe]
        %v1279 = vld [vmem:[%s224 + $0x84] sm:$0xe]
        %v1280 = vld [vmem:[%s224 + $0x90] sm:$0xe]
        %v1281 = vld [vmem:[%s224 + $0x9c] sm:$0xe]
        %v1282 = vld [vmem:[%s224 + $0xa8] sm:$0xe]
        %v1283 = vld [vmem:[%s224 + $0xb4] sm:$0xe]
        %vm1332 = vcmask 1042432
        %vm1333 = vcmask 1046532
        %vm1334 = vmor %vm1332, %vm1333
        %v1335 = vrot.slane %v1268, 5
        %v1336 = vrot.slane %v1335, 4
        %v1337 = vrot.slane %v600, 5
        %v1338 = vsel %vm1334, %v1336, %v1337
        %v1339 = vrot.slane %v1337, 4
        %v1340 = vrot.slane %v601, 5
        %v1341 = vsel %vm1334, %v1339, %v1340
        %v1342 = vrot.slane %v1269, 5
        %v1343 = vrot.slane %v1342, 4
        %v1344 = vrot.slane %v603, 5
        %v1345 = vsel %vm1334, %v1343, %v1344
        %v1346 = vrot.slane %v1344, 4
        %v1347 = vrot.slane %v604, 5
        %v1348 = vsel %vm1334, %v1346, %v1347
        %v1349 = vrot.slane %v1270, 5
        %v1350 = vrot.slane %v1349, 4
        %v1351 = vrot.slane %v606, 5
        %v1352 = vsel %vm1334, %v1350, %v1351
        %v1353 = vrot.slane %v1351, 4
        %v1354 = vrot.slane %v607, 5
        %v1355 = vsel %vm1334, %v1353, %v1354
        %v1356 = vrot.slane %v1271, 5
        %v1357 = vrot.slane %v1356, 4
        %v1358 = vrot.slane %v609, 5
        %v1359 = vsel %vm1334, %v1357, %v1358
        %v1360 = vrot.slane %v1358, 4
        %v1361 = vrot.slane %v610, 5
        %v1362 = vsel %vm1334, %v1360, %v1361
        %v1363 = vrot.slane %v1272, 5
        %v1364 = vrot.slane %v1363, 4
        %v1365 = vrot.slane %v612, 5
        %v1366 = vsel %vm1334, %v1364, %v1365
        %v1367 = vrot.slane %v1365, 4
        %v1368 = vrot.slane %v613, 5
        %v1369 = vsel %vm1334, %v1367, %v1368
        %v1370 = vrot.slane %v1273, 5
        %v1371 = vrot.slane %v1370, 4
        %v1372 = vrot.slane %v615, 5
        %v1373 = vsel %vm1334, %v1371, %v1372
        %v1374 = vrot.slane %v1372, 4
        %v1375 = vrot.slane %v616, 5
        %v1376 = vsel %vm1334, %v1374, %v1375
        %v1377 = vrot.slane %v1274, 5
        %v1378 = vrot.slane %v1377, 4
        %v1379 = vrot.slane %v618, 5
        %v1380 = vsel %vm1334, %v1378, %v1379
        %v1381 = vrot.slane %v1379, 4
        %v1382 = vrot.slane %v619, 5
        %v1383 = vsel %vm1334, %v1381, %v1382
        %v1384 = vrot.slane %v1275, 5
        %v1385 = vrot.slane %v1384, 4
        %v1386 = vrot.slane %v621, 5
        %v1387 = vsel %vm1334, %v1385, %v1386
        %v1388 = vrot.slane %v1386, 4
        %v1389 = vrot.slane %v622, 5
        %v1390 = vsel %vm1334, %v1388, %v1389
        %v1391 = vrot.slane %v1276, 5
        %v1392 = vrot.slane %v1391, 4
        %v1393 = vrot.slane %v624, 5
        %v1394 = vsel %vm1334, %v1392, %v1393
        %v1395 = vrot.slane %v1393, 4
        %v1396 = vrot.slane %v625, 5
        %v1397 = vsel %vm1334, %v1395, %v1396
        %v1398 = vrot.slane %v1277, 5
        %v1399 = vrot.slane %v1398, 4
        %v1400 = vrot.slane %v627, 5
        %v1401 = vsel %vm1334, %v1399, %v1400
        %v1402 = vrot.slane %v1400, 4
        %v1403 = vrot.slane %v628, 5
        %v1404 = vsel %vm1334, %v1402, %v1403
        %v1405 = vrot.slane %v1278, 5
        %v1406 = vrot.slane %v1405, 4
        %v1407 = vrot.slane %v630, 5
        %v1408 = vsel %vm1334, %v1406, %v1407
        %v1409 = vrot.slane %v1407, 4
        %v1410 = vrot.slane %v631, 5
        %v1411 = vsel %vm1334, %v1409, %v1410
        %v1412 = vrot.slane %v1279, 5
        %v1413 = vrot.slane %v1412, 4
        %v1414 = vrot.slane %v633, 5
        %v1415 = vsel %vm1334, %v1413, %v1414
        %v1416 = vrot.slane %v1414, 4
        %v1417 = vrot.slane %v634, 5
        %v1418 = vsel %vm1334, %v1416, %v1417
        %v1419 = vrot.slane %v1280, 5
        %v1420 = vrot.slane %v1419, 4
        %v1421 = vrot.slane %v636, 5
        %v1422 = vsel %vm1334, %v1420, %v1421
        %v1423 = vrot.slane %v1421, 4
        %v1424 = vrot.slane %v637, 5
        %v1425 = vsel %vm1334, %v1423, %v1424
        %v1426 = vrot.slane %v1281, 5
        %v1427 = vrot.slane %v1426, 4
        %v1428 = vrot.slane %v639, 5
        %v1429 = vsel %vm1334, %v1427, %v1428
        %v1430 = vrot.slane %v1428, 4
        %v1431 = vrot.slane %v640, 5
        %v1432 = vsel %vm1334, %v1430, %v1431
        %v1433 = vrot.slane %v1282, 5
        %v1434 = vrot.slane %v1433, 4
        %v1435 = vrot.slane %v642, 5
        %v1436 = vsel %vm1334, %v1434, %v1435
        %v1437 = vrot.slane %v1435, 4
        %v1438 = vrot.slane %v643, 5
        %v1439 = vsel %vm1334, %v1437, %v1438
        %v1440 = vrot.slane %v1283, 5
        %v1441 = vrot.slane %v1440, 4
        %v1442 = vrot.slane %v645, 5
        %v1443 = vsel %vm1334, %v1441, %v1442
        %v1444 = vrot.slane %v1442, 4
        %v1445 = vrot.slane %v646, 5
        %v1446 = vsel %vm1334, %v1444, %v1445
        %s1447 = scalar_lea.vmem %s230, 32
        %v1448 = vld [vmem:[%s1447] sm:$0xf]
        %v1449 = vld [vmem:[%s1447 + $0x4] sm:$0xf]
        %v1450 = vld [vmem:[%s1447 + $0x8] sm:$0xf]
        %v1451 = vld [vmem:[%s1447 + $0xc] sm:$0xf]
        %v1452 = vunpack.c.l.b16 %v1338
        %v1453 = vunpack.c.l.b16 %v1341
        %v1454 = vunpack.c.l.b16 %v1345
        %v1455 = vunpack.c.l.b16 %v1348
        %v1456 = vunpack.c.l.b16 %v1352
        %v1457 = vunpack.c.l.b16 %v1355
        %v1458 = vunpack.c.l.b16 %v1359
        %v1459 = vunpack.c.l.b16 %v1362
        %v1460 = vunpack.c.l.b16 %v1366
        %v1461 = vunpack.c.l.b16 %v1369
        %v1462 = vunpack.c.l.b16 %v1373
        %v1463 = vunpack.c.l.b16 %v1376
        %v1464 = vunpack.c.l.b16 %v1380
        %v1465 = vunpack.c.l.b16 %v1383
        %v1466 = vunpack.c.l.b16 %v1387
        %v1467 = vunpack.c.l.b16 %v1390
        %v1468 = vunpack.c.l.b16 %v1394
        %v1469 = vunpack.c.l.b16 %v1397
        %v1470 = vunpack.c.l.b16 %v1401
        %v1471 = vunpack.c.l.b16 %v1404
        %v1472 = vunpack.c.l.b16 %v1408
        %v1473 = vunpack.c.l.b16 %v1411
        %v1474 = vunpack.c.l.b16 %v1415
        %v1475 = vunpack.c.l.b16 %v1418
        %v1476 = vunpack.c.l.b16 %v1422
        %v1477 = vunpack.c.l.b16 %v1425
        %v1478 = vunpack.c.l.b16 %v1429
        %v1479 = vunpack.c.l.b16 %v1432
        %v1480 = vunpack.c.l.b16 %v1436
        %v1481 = vunpack.c.l.b16 %v1439
        %v1482 = vunpack.c.l.b16 %v1443
        %v1483 = vunpack.c.l.b16 %v1446
        %v1484 = vpack.c.b16 %v1453, %v1452
        %v1485 = vpack.c.b16 %v1455, %v1454
        %v1486 = vpack.c.b16 %v1457, %v1456
        %v1487 = vpack.c.b16 %v1459, %v1458
        %v1488 = vpack.c.b16 %v1461, %v1460
        %v1489 = vpack.c.b16 %v1463, %v1462
        %v1490 = vpack.c.b16 %v1465, %v1464
        %v1491 = vpack.c.b16 %v1467, %v1466
        %v1492 = vpack.c.b16 %v1469, %v1468
        %v1493 = vpack.c.b16 %v1471, %v1470
        %v1494 = vpack.c.b16 %v1473, %v1472
        %v1495 = vpack.c.b16 %v1475, %v1474
        %v1496 = vpack.c.b16 %v1477, %v1476
        %v1497 = vpack.c.b16 %v1479, %v1478
        %v1498 = vpack.c.b16 %v1481, %v1480
        %v1499 = vpack.c.b16 %v1483, %v1482
        %v1504 = vunpack.c.l.b16 %v1448
        %v1505 = vunpack.c.l.b16 %v1449
        %v1506 = vunpack.c.l.b16 %v1450
        %v1507 = vunpack.c.l.b16 %v1451
        %v1508 = vpack.c.b16 %v1505, %v1504
        %v1509 = vpack.c.b16 %v1507, %v1506
        %v1513 = vsel %vm429, %v1484, 0
        %v1516 = vsel %vm429, %v1485, 0
        %v1519 = vsel %vm429, %v1486, 0
        %v1522 = vsel %vm429, %v1487, 0
        %v1525 = vsel %vm429, %v1488, 0
        %v1528 = vsel %vm429, %v1489, 0
        %v1531 = vsel %vm429, %v1490, 0
        %v1534 = vsel %vm429, %v1491, 0
        %v1537 = vsel %vm429, %v1492, 0
        %v1540 = vsel %vm429, %v1493, 0
        %v1543 = vsel %vm429, %v1494, 0
        %v1546 = vsel %vm429, %v1495, 0
        %v1549 = vsel %vm429, %v1496, 0
        %v1552 = vsel %vm429, %v1497, 0
        %v1555 = vsel %vm429, %v1498, 0
        %v1558 = vsel %vm429, %v1499, 0
        %1560 = vmatpush.bf16.msra.mxu0 0
        %1561 = vmatpush.bf16.msra.mxu0 0
        %1562 = vmatpush.bf16.msra.mxu0 0
        %1563 = vmatpush.bf16.msra.mxu0 0
        %1564 = vmatpush.bf16.msra.mxu0 0
        %1565 = vmatpush.bf16.msra.mxu0 0
        %1566 = vmatpush.bf16.msra.mxu0 %v1509
        %1567 = vmatpush.bf16.msra.mxu0 %v1508
        %1568 = vmatmul.bf16.gmra.mxu0 %v1513
        %v1569 = vpop.f32.mrf.mxu0
        %v1570 = vadd.f32 0.0, %v1569
        %v1571 = vpop.f32.mrf.mxu0
        %v1572 = vadd.f32 0.0, %v1571
        %1573 = vmatmul.bf16.gmra.mxu0 %v1516
        %v1574 = vpop.f32.mrf.mxu0
        %v1575 = vadd.f32 0.0, %v1574
        %v1576 = vpop.f32.mrf.mxu0
        %v1577 = vadd.f32 0.0, %v1576
        %1578 = vmatmul.bf16.gmra.mxu0 %v1519
        %v1579 = vpop.f32.mrf.mxu0
        %v1580 = vadd.f32 0.0, %v1579
        %v1581 = vpop.f32.mrf.mxu0
        %v1582 = vadd.f32 0.0, %v1581
        %1583 = vmatmul.bf16.gmra.mxu0 %v1522
        %v1584 = vpop.f32.mrf.mxu0
        %v1585 = vadd.f32 0.0, %v1584
        %v1586 = vpop.f32.mrf.mxu0
        %v1587 = vadd.f32 0.0, %v1586
        %1588 = vmatmul.bf16.gmra.mxu0 %v1525
        %v1589 = vpop.f32.mrf.mxu0
        %v1590 = vadd.f32 0.0, %v1589
        %v1591 = vpop.f32.mrf.mxu0
        %v1592 = vadd.f32 0.0, %v1591
        %1593 = vmatmul.bf16.gmra.mxu0 %v1528
        %v1594 = vpop.f32.mrf.mxu0
        %v1595 = vadd.f32 0.0, %v1594
        %v1596 = vpop.f32.mrf.mxu0
        %v1597 = vadd.f32 0.0, %v1596
        %1598 = vmatmul.bf16.gmra.mxu0 %v1531
        %v1599 = vpop.f32.mrf.mxu0
        %v1600 = vadd.f32 0.0, %v1599
        %v1601 = vpop.f32.mrf.mxu0
        %v1602 = vadd.f32 0.0, %v1601
        %1603 = vmatmul.bf16.gmra.mxu0 %v1534
        %v1604 = vpop.f32.mrf.mxu0
        %v1605 = vadd.f32 0.0, %v1604
        %v1606 = vpop.f32.mrf.mxu0
        %v1607 = vadd.f32 0.0, %v1606
        %1608 = vmatmul.bf16.gmra.mxu0 %v1537
        %v1609 = vpop.f32.mrf.mxu0
        %v1610 = vadd.f32 0.0, %v1609
        %v1611 = vpop.f32.mrf.mxu0
        %v1612 = vadd.f32 0.0, %v1611
        %1613 = vmatmul.bf16.gmra.mxu0 %v1540
        %v1614 = vpop.f32.mrf.mxu0
        %v1615 = vadd.f32 0.0, %v1614
        %v1616 = vpop.f32.mrf.mxu0
        %v1617 = vadd.f32 0.0, %v1616
        %1618 = vmatmul.bf16.gmra.mxu0 %v1543
        %v1619 = vpop.f32.mrf.mxu0
        %v1620 = vadd.f32 0.0, %v1619
        %v1621 = vpop.f32.mrf.mxu0
        %v1622 = vadd.f32 0.0, %v1621
        %1623 = vmatmul.bf16.gmra.mxu0 %v1546
        %v1624 = vpop.f32.mrf.mxu0
        %v1625 = vadd.f32 0.0, %v1624
        %v1626 = vpop.f32.mrf.mxu0
        %v1627 = vadd.f32 0.0, %v1626
        %1628 = vmatmul.bf16.gmra.mxu0 %v1549
        %v1629 = vpop.f32.mrf.mxu0
        %v1630 = vadd.f32 0.0, %v1629
        %v1631 = vpop.f32.mrf.mxu0
        %v1632 = vadd.f32 0.0, %v1631
        %1633 = vmatmul.bf16.gmra.mxu0 %v1552
        %v1634 = vpop.f32.mrf.mxu0
        %v1635 = vadd.f32 0.0, %v1634
        %v1636 = vpop.f32.mrf.mxu0
        %v1637 = vadd.f32 0.0, %v1636
        %1638 = vmatmul.bf16.gmra.mxu0 %v1555
        %v1639 = vpop.f32.mrf.mxu0
        %v1640 = vadd.f32 0.0, %v1639
        %v1641 = vpop.f32.mrf.mxu0
        %v1642 = vadd.f32 0.0, %v1641
        %1643 = vmatmul.bf16.gmra.mxu0 %v1558
        %v1644 = vpop.f32.mrf.mxu0
        %v1645 = vadd.f32 0.0, %v1644
        %v1646 = vpop.f32.mrf.mxu0
        %v1647 = vadd.f32 0.0, %v1646
        %1648 = vdwg.mxu0
        %v1649 = vadd.f32 %v1236, %v1570
        %v1650 = vadd.f32 %v1237, %v1572
        %v1651 = vadd.f32 %v1238, %v1575
        %v1652 = vadd.f32 %v1239, %v1577
        %v1653 = vadd.f32 %v1240, %v1580
        %v1654 = vadd.f32 %v1241, %v1582
        %v1655 = vadd.f32 %v1242, %v1585
        %v1656 = vadd.f32 %v1243, %v1587
        %v1657 = vadd.f32 %v1244, %v1590
        %v1658 = vadd.f32 %v1245, %v1592
        %v1659 = vadd.f32 %v1246, %v1595
        %v1660 = vadd.f32 %v1247, %v1597
        %v1661 = vadd.f32 %v1248, %v1600
        %v1662 = vadd.f32 %v1249, %v1602
        %v1663 = vadd.f32 %v1250, %v1605
        %v1664 = vadd.f32 %v1251, %v1607
        %v1665 = vadd.f32 %v1252, %v1610
        %v1666 = vadd.f32 %v1253, %v1612
        %v1667 = vadd.f32 %v1254, %v1615
        %v1668 = vadd.f32 %v1255, %v1617
        %v1669 = vadd.f32 %v1256, %v1620
        %v1670 = vadd.f32 %v1257, %v1622
        %v1671 = vadd.f32 %v1258, %v1625
        %v1672 = vadd.f32 %v1259, %v1627
        %v1673 = vadd.f32 %v1260, %v1630
        %v1674 = vadd.f32 %v1261, %v1632
        %v1675 = vadd.f32 %v1262, %v1635
        %v1676 = vadd.f32 %v1263, %v1637
        %v1677 = vadd.f32 %v1264, %v1640
        %v1678 = vadd.f32 %v1265, %v1642
        %v1679 = vadd.f32 %v1266, %v1645
        %v1680 = vadd.f32 %v1267, %v1647
        %s1681 = scalar_lea.vmem %s224, 12
        %v1682 = vld [vmem:[%s1681] sm:$0xf]
        %v1683 = vld [vmem:[%s1681 + $0x4] sm:$0xf]
        %v1684 = vld [vmem:[%s1681 + $0xc] sm:$0xf]
        %v1685 = vld [vmem:[%s1681 + $0x10] sm:$0xf]
        %v1686 = vld [vmem:[%s1681 + $0x18] sm:$0xf]
        %v1687 = vld [vmem:[%s1681 + $0x1c] sm:$0xf]
        %v1688 = vld [vmem:[%s1681 + $0x24] sm:$0xf]
        %v1689 = vld [vmem:[%s1681 + $0x28] sm:$0xf]
        %v1690 = vld [vmem:[%s1681 + $0x30] sm:$0xf]
        %v1691 = vld [vmem:[%s1681 + $0x34] sm:$0xf]
        %v1692 = vld [vmem:[%s1681 + $0x3c] sm:$0xf]
        %v1693 = vld [vmem:[%s1681 + $0x40] sm:$0xf]
        %v1694 = vld [vmem:[%s1681 + $0x48] sm:$0xf]
        %v1695 = vld [vmem:[%s1681 + $0x4c] sm:$0xf]
        %v1696 = vld [vmem:[%s1681 + $0x54] sm:$0xf]
        %v1697 = vld [vmem:[%s1681 + $0x58] sm:$0xf]
        %v1698 = vld [vmem:[%s1681 + $0x60] sm:$0xf]
        %v1699 = vld [vmem:[%s1681 + $0x64] sm:$0xf]
        %v1700 = vld [vmem:[%s1681 + $0x6c] sm:$0xf]
        %v1701 = vld [vmem:[%s1681 + $0x70] sm:$0xf]
        %v1702 = vld [vmem:[%s1681 + $0x78] sm:$0xf]
        %v1703 = vld [vmem:[%s1681 + $0x7c] sm:$0xf]
        %v1704 = vld [vmem:[%s1681 + $0x84] sm:$0xf]
        %v1705 = vld [vmem:[%s1681 + $0x88] sm:$0xf]
        %v1706 = vld [vmem:[%s1681 + $0x90] sm:$0xf]
        %v1707 = vld [vmem:[%s1681 + $0x94] sm:$0xf]
        %v1708 = vld [vmem:[%s1681 + $0x9c] sm:$0xf]
        %v1709 = vld [vmem:[%s1681 + $0xa0] sm:$0xf]
        %v1710 = vld [vmem:[%s1681 + $0xa8] sm:$0xf]
        %v1711 = vld [vmem:[%s1681 + $0xac] sm:$0xf]
        %v1712 = vld [vmem:[%s1681 + $0xb4] sm:$0xf]
        %v1713 = vld [vmem:[%s1681 + $0xb8] sm:$0xf]
        %s1714 = scalar_lea.vmem %s230, 48
        %v1715 = vld [vmem:[%s1714] sm:$0xf]
        %v1716 = vld [vmem:[%s1714 + $0x4] sm:$0xf]
        %v1717 = vld [vmem:[%s1714 + $0x8] sm:$0xf]
        %v1718 = vld [vmem:[%s1714 + $0xc] sm:$0xf]
        %v1751 = vunpack.c.l.b16 %v1682
        %v1752 = vunpack.c.l.b16 %v1683
        %v1753 = vunpack.c.l.b16 %v1684
        %v1754 = vunpack.c.l.b16 %v1685
        %v1755 = vunpack.c.l.b16 %v1686
        %v1756 = vunpack.c.l.b16 %v1687
        %v1757 = vunpack.c.l.b16 %v1688
        %v1758 = vunpack.c.l.b16 %v1689
        %v1759 = vunpack.c.l.b16 %v1690
        %v1760 = vunpack.c.l.b16 %v1691
        %v1761 = vunpack.c.l.b16 %v1692
        %v1762 = vunpack.c.l.b16 %v1693
        %v1763 = vunpack.c.l.b16 %v1694
        %v1764 = vunpack.c.l.b16 %v1695
        %v1765 = vunpack.c.l.b16 %v1696
        %v1766 = vunpack.c.l.b16 %v1697
        %v1767 = vunpack.c.l.b16 %v1698
        %v1768 = vunpack.c.l.b16 %v1699
        %v1769 = vunpack.c.l.b16 %v1700
        %v1770 = vunpack.c.l.b16 %v1701
        %v1771 = vunpack.c.l.b16 %v1702
        %v1772 = vunpack.c.l.b16 %v1703
        %v1773 = vunpack.c.l.b16 %v1704
        %v1774 = vunpack.c.l.b16 %v1705
        %v1775 = vunpack.c.l.b16 %v1706
        %v1776 = vunpack.c.l.b16 %v1707
        %v1777 = vunpack.c.l.b16 %v1708
        %v1778 = vunpack.c.l.b16 %v1709
        %v1779 = vunpack.c.l.b16 %v1710
        %v1780 = vunpack.c.l.b16 %v1711
        %v1781 = vunpack.c.l.b16 %v1712
        %v1782 = vunpack.c.l.b16 %v1713
        %v1783 = vpack.c.b16 %v1752, %v1751
        %v1784 = vpack.c.b16 %v1754, %v1753
        %v1785 = vpack.c.b16 %v1756, %v1755
        %v1786 = vpack.c.b16 %v1758, %v1757
        %v1787 = vpack.c.b16 %v1760, %v1759
        %v1788 = vpack.c.b16 %v1762, %v1761
        %v1789 = vpack.c.b16 %v1764, %v1763
        %v1790 = vpack.c.b16 %v1766, %v1765
        %v1791 = vpack.c.b16 %v1768, %v1767
        %v1792 = vpack.c.b16 %v1770, %v1769
        %v1793 = vpack.c.b16 %v1772, %v1771
        %v1794 = vpack.c.b16 %v1774, %v1773
        %v1795 = vpack.c.b16 %v1776, %v1775
        %v1796 = vpack.c.b16 %v1778, %v1777
        %v1797 = vpack.c.b16 %v1780, %v1779
        %v1798 = vpack.c.b16 %v1782, %v1781
        %v1803 = vunpack.c.l.b16 %v1715
        %v1804 = vunpack.c.l.b16 %v1716
        %v1805 = vunpack.c.l.b16 %v1717
        %v1806 = vunpack.c.l.b16 %v1718
        %v1807 = vpack.c.b16 %v1804, %v1803
        %v1808 = vpack.c.b16 %v1806, %v1805
        %v1812 = vsel %vm429, %v1783, 0
        %v1815 = vsel %vm429, %v1784, 0
        %v1818 = vsel %vm429, %v1785, 0
        %v1821 = vsel %vm429, %v1786, 0
        %v1824 = vsel %vm429, %v1787, 0
        %v1827 = vsel %vm429, %v1788, 0
        %v1830 = vsel %vm429, %v1789, 0
        %v1833 = vsel %vm429, %v1790, 0
        %v1836 = vsel %vm429, %v1791, 0
        %v1839 = vsel %vm429, %v1792, 0
        %v1842 = vsel %vm429, %v1793, 0
        %v1845 = vsel %vm429, %v1794, 0
        %v1848 = vsel %vm429, %v1795, 0
        %v1851 = vsel %vm429, %v1796, 0
        %v1854 = vsel %vm429, %v1797, 0
        %v1857 = vsel %vm429, %v1798, 0
        %1859 = vmatpush.bf16.msra.mxu0 0
        %1860 = vmatpush.bf16.msra.mxu0 0
        %1861 = vmatpush.bf16.msra.mxu0 0
        %1862 = vmatpush.bf16.msra.mxu0 0
        %1863 = vmatpush.bf16.msra.mxu0 0
        %1864 = vmatpush.bf16.msra.mxu0 0
        %1865 = vmatpush.bf16.msra.mxu0 %v1808
        %1866 = vmatpush.bf16.msra.mxu0 %v1807
        %1867 = vmatmul.bf16.gmra.mxu0 %v1812
        %v1868 = vpop.f32.mrf.mxu0
        %v1869 = vadd.f32 0.0, %v1868
        %v1870 = vpop.f32.mrf.mxu0
        %v1871 = vadd.f32 0.0, %v1870
        %1872 = vmatmul.bf16.gmra.mxu0 %v1815
        %v1873 = vpop.f32.mrf.mxu0
        %v1874 = vadd.f32 0.0, %v1873
        %v1875 = vpop.f32.mrf.mxu0
        %v1876 = vadd.f32 0.0, %v1875
        %1877 = vmatmul.bf16.gmra.mxu0 %v1818
        %v1878 = vpop.f32.mrf.mxu0
        %v1879 = vadd.f32 0.0, %v1878
        %v1880 = vpop.f32.mrf.mxu0
        %v1881 = vadd.f32 0.0, %v1880
        %1882 = vmatmul.bf16.gmra.mxu0 %v1821
        %v1883 = vpop.f32.mrf.mxu0
        %v1884 = vadd.f32 0.0, %v1883
        %v1885 = vpop.f32.mrf.mxu0
        %v1886 = vadd.f32 0.0, %v1885
        %1887 = vmatmul.bf16.gmra.mxu0 %v1824
        %v1888 = vpop.f32.mrf.mxu0
        %v1889 = vadd.f32 0.0, %v1888
        %v1890 = vpop.f32.mrf.mxu0
        %v1891 = vadd.f32 0.0, %v1890
        %1892 = vmatmul.bf16.gmra.mxu0 %v1827
        %v1893 = vpop.f32.mrf.mxu0
        %v1894 = vadd.f32 0.0, %v1893
        %v1895 = vpop.f32.mrf.mxu0
        %v1896 = vadd.f32 0.0, %v1895
        %1897 = vmatmul.bf16.gmra.mxu0 %v1830
        %v1898 = vpop.f32.mrf.mxu0
        %v1899 = vadd.f32 0.0, %v1898
        %v1900 = vpop.f32.mrf.mxu0
        %v1901 = vadd.f32 0.0, %v1900
        %1902 = vmatmul.bf16.gmra.mxu0 %v1833
        %v1903 = vpop.f32.mrf.mxu0
        %v1904 = vadd.f32 0.0, %v1903
        %v1905 = vpop.f32.mrf.mxu0
        %v1906 = vadd.f32 0.0, %v1905
        %1907 = vmatmul.bf16.gmra.mxu0 %v1836
        %v1908 = vpop.f32.mrf.mxu0
        %v1909 = vadd.f32 0.0, %v1908
        %v1910 = vpop.f32.mrf.mxu0
        %v1911 = vadd.f32 0.0, %v1910
        %1912 = vmatmul.bf16.gmra.mxu0 %v1839
        %v1913 = vpop.f32.mrf.mxu0
        %v1914 = vadd.f32 0.0, %v1913
        %v1915 = vpop.f32.mrf.mxu0
        %v1916 = vadd.f32 0.0, %v1915
        %1917 = vmatmul.bf16.gmra.mxu0 %v1842
        %v1918 = vpop.f32.mrf.mxu0
        %v1919 = vadd.f32 0.0, %v1918
        %v1920 = vpop.f32.mrf.mxu0
        %v1921 = vadd.f32 0.0, %v1920
        %1922 = vmatmul.bf16.gmra.mxu0 %v1845
        %v1923 = vpop.f32.mrf.mxu0
        %v1924 = vadd.f32 0.0, %v1923
        %v1925 = vpop.f32.mrf.mxu0
        %v1926 = vadd.f32 0.0, %v1925
        %1927 = vmatmul.bf16.gmra.mxu0 %v1848
        %v1928 = vpop.f32.mrf.mxu0
        %v1929 = vadd.f32 0.0, %v1928
        %v1930 = vpop.f32.mrf.mxu0
        %v1931 = vadd.f32 0.0, %v1930
        %1932 = vmatmul.bf16.gmra.mxu0 %v1851
        %v1933 = vpop.f32.mrf.mxu0
        %v1934 = vadd.f32 0.0, %v1933
        %v1935 = vpop.f32.mrf.mxu0
        %v1936 = vadd.f32 0.0, %v1935
        %1937 = vmatmul.bf16.gmra.mxu0 %v1854
        %v1938 = vpop.f32.mrf.mxu0
        %v1939 = vadd.f32 0.0, %v1938
        %v1940 = vpop.f32.mrf.mxu0
        %v1941 = vadd.f32 0.0, %v1940
        %1942 = vmatmul.bf16.gmra.mxu0 %v1857
        %v1943 = vpop.f32.mrf.mxu0
        %v1944 = vadd.f32 0.0, %v1943
        %v1945 = vpop.f32.mrf.mxu0
        %v1946 = vadd.f32 0.0, %v1945
        %1947 = vdwg.mxu0
        %v1948 = vadd.f32 %v1649, %v1869
        %v1949 = vadd.f32 %v1650, %v1871
        %v1950 = vadd.f32 %v1651, %v1874
        %v1951 = vadd.f32 %v1652, %v1876
        %v1952 = vadd.f32 %v1653, %v1879
        %v1953 = vadd.f32 %v1654, %v1881
        %v1954 = vadd.f32 %v1655, %v1884
        %v1955 = vadd.f32 %v1656, %v1886
        %v1956 = vadd.f32 %v1657, %v1889
        %v1957 = vadd.f32 %v1658, %v1891
        %v1958 = vadd.f32 %v1659, %v1894
        %v1959 = vadd.f32 %v1660, %v1896
        %v1960 = vadd.f32 %v1661, %v1899
        %v1961 = vadd.f32 %v1662, %v1901
        %v1962 = vadd.f32 %v1663, %v1904
        %v1963 = vadd.f32 %v1664, %v1906
        %v1964 = vadd.f32 %v1665, %v1909
        %v1965 = vadd.f32 %v1666, %v1911
        %v1966 = vadd.f32 %v1667, %v1914
        %v1967 = vadd.f32 %v1668, %v1916
        %v1968 = vadd.f32 %v1669, %v1919
        %v1969 = vadd.f32 %v1670, %v1921
        %v1970 = vadd.f32 %v1671, %v1924
        %v1971 = vadd.f32 %v1672, %v1926
        %v1972 = vadd.f32 %v1673, %v1929
        %v1973 = vadd.f32 %v1674, %v1931
        %v1974 = vadd.f32 %v1675, %v1934
        %v1975 = vadd.f32 %v1676, %v1936
        %v1976 = vadd.f32 %v1677, %v1939
        %v1977 = vadd.f32 %v1678, %v1941
        %v1978 = vadd.f32 %v1679, %v1944
        %v1979 = vadd.f32 %v1680, %v1946
        %v1980 = vld [vmem:[%s1681] sm:$0xf]
        %v1981 = vld [vmem:[%s1681 + $0x4] sm:$0xf]
        %v1982 = vld [vmem:[%s1681 + $0x8] sm:$0x1]
        %v1983 = vld [vmem:[%s1681 + $0xc] sm:$0xf]
        %v1984 = vld [vmem:[%s1681 + $0x10] sm:$0xf]
        %v1985 = vld [vmem:[%s1681 + $0x14] sm:$0x1]
        %v1986 = vld [vmem:[%s1681 + $0x18] sm:$0xf]
        %v1987 = vld [vmem:[%s1681 + $0x1c] sm:$0xf]
        %v1988 = vld [vmem:[%s1681 + $0x20] sm:$0x1]
        %v1989 = vld [vmem:[%s1681 + $0x24] sm:$0xf]
        %v1990 = vld [vmem:[%s1681 + $0x28] sm:$0xf]
        %v1991 = vld [vmem:[%s1681 + $0x2c] sm:$0x1]
        %v1992 = vld [vmem:[%s1681 + $0x30] sm:$0xf]
        %v1993 = vld [vmem:[%s1681 + $0x34] sm:$0xf]
        %v1994 = vld [vmem:[%s1681 + $0x38] sm:$0x1]
        %v1995 = vld [vmem:[%s1681 + $0x3c] sm:$0xf]
        %v1996 = vld [vmem:[%s1681 + $0x40] sm:$0xf]
        %v1997 = vld [vmem:[%s1681 + $0x44] sm:$0x1]
        %v1998 = vld [vmem:[%s1681 + $0x48] sm:$0xf]
        %v1999 = vld [vmem:[%s1681 + $0x4c] sm:$0xf]
        %v2000 = vld [vmem:[%s1681 + $0x50] sm:$0x1]
        %v2001 = vld [vmem:[%s1681 + $0x54] sm:$0xf]
        %v2002 = vld [vmem:[%s1681 + $0x58] sm:$0xf]
        %v2003 = vld [vmem:[%s1681 + $0x5c] sm:$0x1]
        %v2004 = vld [vmem:[%s1681 + $0x60] sm:$0xf]
        %v2005 = vld [vmem:[%s1681 + $0x64] sm:$0xf]
        %v2006 = vld [vmem:[%s1681 + $0x68] sm:$0x1]
        %v2007 = vld [vmem:[%s1681 + $0x6c] sm:$0xf]
        %v2008 = vld [vmem:[%s1681 + $0x70] sm:$0xf]
        %v2009 = vld [vmem:[%s1681 + $0x74] sm:$0x1]
        %v2010 = vld [vmem:[%s1681 + $0x78] sm:$0xf]
        %v2011 = vld [vmem:[%s1681 + $0x7c] sm:$0xf]
        %v2012 = vld [vmem:[%s1681 + $0x80] sm:$0x1]
        %v2013 = vld [vmem:[%s1681 + $0x84] sm:$0xf]
        %v2014 = vld [vmem:[%s1681 + $0x88] sm:$0xf]
        %v2015 = vld [vmem:[%s1681 + $0x8c] sm:$0x1]
        %v2016 = vld [vmem:[%s1681 + $0x90] sm:$0xf]
        %v2017 = vld [vmem:[%s1681 + $0x94] sm:$0xf]
        %v2018 = vld [vmem:[%s1681 + $0x98] sm:$0x1]
        %v2019 = vld [vmem:[%s1681 + $0x9c] sm:$0xf]
        %v2020 = vld [vmem:[%s1681 + $0xa0] sm:$0xf]
        %v2021 = vld [vmem:[%s1681 + $0xa4] sm:$0x1]
        %v2022 = vld [vmem:[%s1681 + $0xa8] sm:$0xf]
        %v2023 = vld [vmem:[%s1681 + $0xac] sm:$0xf]
        %v2024 = vld [vmem:[%s1681 + $0xb0] sm:$0x1]
        %v2025 = vld [vmem:[%s1681 + $0xb4] sm:$0xf]
        %v2026 = vld [vmem:[%s1681 + $0xb8] sm:$0xf]
        %v2027 = vld [vmem:[%s1681 + $0xbc] sm:$0x1]
        %v2029 = vshrl.u32 %v1980, 16
        %v2031 = vrot.slane %v2029, 4
        %v2032 = vshll.u32 %v1980, 16
        %v2034 = vrot.slane %v2032, 5
        %v2035 = vor.u32 %v2031, %v2034
        %v2036 = vrot.slane %v2035, 4
        %v2038 = vshll.u32 %v1981, 16
        %v2040 = vrot.slane %v2038, 5
        %v2041 = vsel %vm649, %v2036, %v2040
        %v2042 = vshrl.u32 %v1981, 16
        %v2044 = vrot.slane %v2042, 4
        %v2045 = vor.u32 %v2044, %v2040
        %v2046 = vrot.slane %v2045, 4
        %v2048 = vshll.u32 %v1982, 16
        %v2050 = vrot.slane %v2048, 5
        %v2051 = vsel %vm649, %v2046, %v2050
        %v2053 = vshrl.u32 %v1983, 16
        %v2055 = vrot.slane %v2053, 4
        %v2056 = vshll.u32 %v1983, 16
        %v2058 = vrot.slane %v2056, 5
        %v2059 = vor.u32 %v2055, %v2058
        %v2060 = vrot.slane %v2059, 4
        %v2062 = vshll.u32 %v1984, 16
        %v2064 = vrot.slane %v2062, 5
        %v2065 = vsel %vm649, %v2060, %v2064
        %v2066 = vshrl.u32 %v1984, 16
        %v2068 = vrot.slane %v2066, 4
        %v2069 = vor.u32 %v2068, %v2064
        %v2070 = vrot.slane %v2069, 4
        %v2072 = vshll.u32 %v1985, 16
        %v2074 = vrot.slane %v2072, 5
        %v2075 = vsel %vm649, %v2070, %v2074
        %v2077 = vshrl.u32 %v1986, 16
        %v2079 = vrot.slane %v2077, 4
        %v2080 = vshll.u32 %v1986, 16
        %v2082 = vrot.slane %v2080, 5
        %v2083 = vor.u32 %v2079, %v2082
        %v2084 = vrot.slane %v2083, 4
        %v2086 = vshll.u32 %v1987, 16
        %v2088 = vrot.slane %v2086, 5
        %v2089 = vsel %vm649, %v2084, %v2088
        %v2090 = vshrl.u32 %v1987, 16
        %v2092 = vrot.slane %v2090, 4
        %v2093 = vor.u32 %v2092, %v2088
        %v2094 = vrot.slane %v2093, 4
        %v2096 = vshll.u32 %v1988, 16
        %v2098 = vrot.slane %v2096, 5
        %v2099 = vsel %vm649, %v2094, %v2098
        %v2101 = vshrl.u32 %v1989, 16
        %v2103 = vrot.slane %v2101, 4
        %v2104 = vshll.u32 %v1989, 16
        %v2106 = vrot.slane %v2104, 5
        %v2107 = vor.u32 %v2103, %v2106
        %v2108 = vrot.slane %v2107, 4
        %v2110 = vshll.u32 %v1990, 16
        %v2112 = vrot.slane %v2110, 5
        %v2113 = vsel %vm649, %v2108, %v2112
        %v2114 = vshrl.u32 %v1990, 16
        %v2116 = vrot.slane %v2114, 4
        %v2117 = vor.u32 %v2116, %v2112
        %v2118 = vrot.slane %v2117, 4
        %v2120 = vshll.u32 %v1991, 16
        %v2122 = vrot.slane %v2120, 5
        %v2123 = vsel %vm649, %v2118, %v2122
        %v2125 = vshrl.u32 %v1992, 16
        %v2127 = vrot.slane %v2125, 4
        %v2128 = vshll.u32 %v1992, 16
        %v2130 = vrot.slane %v2128, 5
        %v2131 = vor.u32 %v2127, %v2130
        %v2132 = vrot.slane %v2131, 4
        %v2134 = vshll.u32 %v1993, 16
        %v2136 = vrot.slane %v2134, 5
        %v2137 = vsel %vm649, %v2132, %v2136
        %v2138 = vshrl.u32 %v1993, 16
        %v2140 = vrot.slane %v2138, 4
        %v2141 = vor.u32 %v2140, %v2136
        %v2142 = vrot.slane %v2141, 4
        %v2144 = vshll.u32 %v1994, 16
        %v2146 = vrot.slane %v2144, 5
        %v2147 = vsel %vm649, %v2142, %v2146
        %v2149 = vshrl.u32 %v1995, 16
        %v2151 = vrot.slane %v2149, 4
        %v2152 = vshll.u32 %v1995, 16
        %v2154 = vrot.slane %v2152, 5
        %v2155 = vor.u32 %v2151, %v2154
        %v2156 = vrot.slane %v2155, 4
        %v2158 = vshll.u32 %v1996, 16
        %v2160 = vrot.slane %v2158, 5
        %v2161 = vsel %vm649, %v2156, %v2160
        %v2162 = vshrl.u32 %v1996, 16
        %v2164 = vrot.slane %v2162, 4
        %v2165 = vor.u32 %v2164, %v2160
        %v2166 = vrot.slane %v2165, 4
        %v2168 = vshll.u32 %v1997, 16
        %v2170 = vrot.slane %v2168, 5
        %v2171 = vsel %vm649, %v2166, %v2170
        %v2173 = vshrl.u32 %v1998, 16
        %v2175 = vrot.slane %v2173, 4
        %v2176 = vshll.u32 %v1998, 16
        %v2178 = vrot.slane %v2176, 5
        %v2179 = vor.u32 %v2175, %v2178
        %v2180 = vrot.slane %v2179, 4
        %v2182 = vshll.u32 %v1999, 16
        %v2184 = vrot.slane %v2182, 5
        %v2185 = vsel %vm649, %v2180, %v2184
        %v2186 = vshrl.u32 %v1999, 16
        %v2188 = vrot.slane %v2186, 4
        %v2189 = vor.u32 %v2188, %v2184
        %v2190 = vrot.slane %v2189, 4
        %v2192 = vshll.u32 %v2000, 16
        %v2194 = vrot.slane %v2192, 5
        %v2195 = vsel %vm649, %v2190, %v2194
        %v2197 = vshrl.u32 %v2001, 16
        %v2199 = vrot.slane %v2197, 4
        %v2200 = vshll.u32 %v2001, 16
        %v2202 = vrot.slane %v2200, 5
        %v2203 = vor.u32 %v2199, %v2202
        %v2204 = vrot.slane %v2203, 4
        %v2206 = vshll.u32 %v2002, 16
        %v2208 = vrot.slane %v2206, 5
        %v2209 = vsel %vm649, %v2204, %v2208
        %v2210 = vshrl.u32 %v2002, 16
        %v2212 = vrot.slane %v2210, 4
        %v2213 = vor.u32 %v2212, %v2208
        %v2214 = vrot.slane %v2213, 4
        %v2216 = vshll.u32 %v2003, 16
        %v2218 = vrot.slane %v2216, 5
        %v2219 = vsel %vm649, %v2214, %v2218
        %v2221 = vshrl.u32 %v2004, 16
        %v2223 = vrot.slane %v2221, 4
        %v2224 = vshll.u32 %v2004, 16
        %v2226 = vrot.slane %v2224, 5
        %v2227 = vor.u32 %v2223, %v2226
        %v2228 = vrot.slane %v2227, 4
        %v2230 = vshll.u32 %v2005, 16
        %v2232 = vrot.slane %v2230, 5
        %v2233 = vsel %vm649, %v2228, %v2232
        %v2234 = vshrl.u32 %v2005, 16
        %v2236 = vrot.slane %v2234, 4
        %v2237 = vor.u32 %v2236, %v2232
        %v2238 = vrot.slane %v2237, 4
        %v2240 = vshll.u32 %v2006, 16
        %v2242 = vrot.slane %v2240, 5
        %v2243 = vsel %vm649, %v2238, %v2242
        %v2245 = vshrl.u32 %v2007, 16
        %v2247 = vrot.slane %v2245, 4
        %v2248 = vshll.u32 %v2007, 16
        %v2250 = vrot.slane %v2248, 5
        %v2251 = vor.u32 %v2247, %v2250
        %v2252 = vrot.slane %v2251, 4
        %v2254 = vshll.u32 %v2008, 16
        %v2256 = vrot.slane %v2254, 5
        %v2257 = vsel %vm649, %v2252, %v2256
        %v2258 = vshrl.u32 %v2008, 16
        %v2260 = vrot.slane %v2258, 4
        %v2261 = vor.u32 %v2260, %v2256
        %v2262 = vrot.slane %v2261, 4
        %v2264 = vshll.u32 %v2009, 16
        %v2266 = vrot.slane %v2264, 5
        %v2267 = vsel %vm649, %v2262, %v2266
        %v2269 = vshrl.u32 %v2010, 16
        %v2271 = vrot.slane %v2269, 4
        %v2272 = vshll.u32 %v2010, 16
        %v2274 = vrot.slane %v2272, 5
        %v2275 = vor.u32 %v2271, %v2274
        %v2276 = vrot.slane %v2275, 4
        %v2278 = vshll.u32 %v2011, 16
        %v2280 = vrot.slane %v2278, 5
        %v2281 = vsel %vm649, %v2276, %v2280
        %v2282 = vshrl.u32 %v2011, 16
        %v2284 = vrot.slane %v2282, 4
        %v2285 = vor.u32 %v2284, %v2280
        %v2286 = vrot.slane %v2285, 4
        %v2288 = vshll.u32 %v2012, 16
        %v2290 = vrot.slane %v2288, 5
        %v2291 = vsel %vm649, %v2286, %v2290
        %v2293 = vshrl.u32 %v2013, 16
        %v2295 = vrot.slane %v2293, 4
        %v2296 = vshll.u32 %v2013, 16
        %v2298 = vrot.slane %v2296, 5
        %v2299 = vor.u32 %v2295, %v2298
        %v2300 = vrot.slane %v2299, 4
        %v2302 = vshll.u32 %v2014, 16
        %v2304 = vrot.slane %v2302, 5
        %v2305 = vsel %vm649, %v2300, %v2304
        %v2306 = vshrl.u32 %v2014, 16
        %v2308 = vrot.slane %v2306, 4
        %v2309 = vor.u32 %v2308, %v2304
        %v2310 = vrot.slane %v2309, 4
        %v2312 = vshll.u32 %v2015, 16
        %v2314 = vrot.slane %v2312, 5
        %v2315 = vsel %vm649, %v2310, %v2314
        %v2317 = vshrl.u32 %v2016, 16
        %v2319 = vrot.slane %v2317, 4
        %v2320 = vshll.u32 %v2016, 16
        %v2322 = vrot.slane %v2320, 5
        %v2323 = vor.u32 %v2319, %v2322
        %v2324 = vrot.slane %v2323, 4
        %v2326 = vshll.u32 %v2017, 16
        %v2328 = vrot.slane %v2326, 5
        %v2329 = vsel %vm649, %v2324, %v2328
        %v2330 = vshrl.u32 %v2017, 16
        %v2332 = vrot.slane %v2330, 4
        %v2333 = vor.u32 %v2332, %v2328
        %v2334 = vrot.slane %v2333, 4
        %v2336 = vshll.u32 %v2018, 16
        %v2338 = vrot.slane %v2336, 5
        %v2339 = vsel %vm649, %v2334, %v2338
        %v2341 = vshrl.u32 %v2019, 16
        %v2343 = vrot.slane %v2341, 4
        %v2344 = vshll.u32 %v2019, 16
        %v2346 = vrot.slane %v2344, 5
        %v2347 = vor.u32 %v2343, %v2346
        %v2348 = vrot.slane %v2347, 4
        %v2350 = vshll.u32 %v2020, 16
        %v2352 = vrot.slane %v2350, 5
        %v2353 = vsel %vm649, %v2348, %v2352
        %v2354 = vshrl.u32 %v2020, 16
        %v2356 = vrot.slane %v2354, 4
        %v2357 = vor.u32 %v2356, %v2352
        %v2358 = vrot.slane %v2357, 4
        %v2360 = vshll.u32 %v2021, 16
        %v2362 = vrot.slane %v2360, 5
        %v2363 = vsel %vm649, %v2358, %v2362
        %v2365 = vshrl.u32 %v2022, 16
        %v2367 = vrot.slane %v2365, 4
        %v2368 = vshll.u32 %v2022, 16
        %v2370 = vrot.slane %v2368, 5
        %v2371 = vor.u32 %v2367, %v2370
        %v2372 = vrot.slane %v2371, 4
        %v2374 = vshll.u32 %v2023, 16
        %v2376 = vrot.slane %v2374, 5
        %v2377 = vsel %vm649, %v2372, %v2376
        %v2378 = vshrl.u32 %v2023, 16
        %v2380 = vrot.slane %v2378, 4
        %v2381 = vor.u32 %v2380, %v2376
        %v2382 = vrot.slane %v2381, 4
        %v2384 = vshll.u32 %v2024, 16
        %v2386 = vrot.slane %v2384, 5
        %v2387 = vsel %vm649, %v2382, %v2386
        %v2389 = vshrl.u32 %v2025, 16
        %v2391 = vrot.slane %v2389, 4
        %v2392 = vshll.u32 %v2025, 16
        %v2394 = vrot.slane %v2392, 5
        %v2395 = vor.u32 %v2391, %v2394
        %v2396 = vrot.slane %v2395, 4
        %v2398 = vshll.u32 %v2026, 16
        %v2400 = vrot.slane %v2398, 5
        %v2401 = vsel %vm649, %v2396, %v2400
        %v2402 = vshrl.u32 %v2026, 16
        %v2404 = vrot.slane %v2402, 4
        %v2405 = vor.u32 %v2404, %v2400
        %v2406 = vrot.slane %v2405, 4
        %v2408 = vshll.u32 %v2027, 16
        %v2410 = vrot.slane %v2408, 5
        %v2411 = vsel %vm649, %v2406, %v2410
        %s2412 = scalar_lea.vmem %s230, 64
        %v2413 = vld [vmem:[%s2412] sm:$0xf]
        %v2414 = vld [vmem:[%s2412 + $0x4] sm:$0xf]
        %v2415 = vld [vmem:[%s2412 + $0x8] sm:$0xf]
        %v2416 = vld [vmem:[%s2412 + $0xc] sm:$0xf]
        %v2417 = vunpack.c.l.b16 %v2041
        %v2418 = vunpack.c.l.b16 %v2051
        %v2419 = vunpack.c.l.b16 %v2065
        %v2420 = vunpack.c.l.b16 %v2075
        %v2421 = vunpack.c.l.b16 %v2089
        %v2422 = vunpack.c.l.b16 %v2099
        %v2423 = vunpack.c.l.b16 %v2113
        %v2424 = vunpack.c.l.b16 %v2123
        %v2425 = vunpack.c.l.b16 %v2137
        %v2426 = vunpack.c.l.b16 %v2147
        %v2427 = vunpack.c.l.b16 %v2161
        %v2428 = vunpack.c.l.b16 %v2171
        %v2429 = vunpack.c.l.b16 %v2185
        %v2430 = vunpack.c.l.b16 %v2195
        %v2431 = vunpack.c.l.b16 %v2209
        %v2432 = vunpack.c.l.b16 %v2219
        %v2433 = vunpack.c.l.b16 %v2233
        %v2434 = vunpack.c.l.b16 %v2243
        %v2435 = vunpack.c.l.b16 %v2257
        %v2436 = vunpack.c.l.b16 %v2267
        %v2437 = vunpack.c.l.b16 %v2281
        %v2438 = vunpack.c.l.b16 %v2291
        %v2439 = vunpack.c.l.b16 %v2305
        %v2440 = vunpack.c.l.b16 %v2315
        %v2441 = vunpack.c.l.b16 %v2329
        %v2442 = vunpack.c.l.b16 %v2339
        %v2443 = vunpack.c.l.b16 %v2353
        %v2444 = vunpack.c.l.b16 %v2363
        %v2445 = vunpack.c.l.b16 %v2377
        %v2446 = vunpack.c.l.b16 %v2387
        %v2447 = vunpack.c.l.b16 %v2401
        %v2448 = vunpack.c.l.b16 %v2411
        %v2449 = vpack.c.b16 %v2418, %v2417
        %v2450 = vpack.c.b16 %v2420, %v2419
        %v2451 = vpack.c.b16 %v2422, %v2421
        %v2452 = vpack.c.b16 %v2424, %v2423
        %v2453 = vpack.c.b16 %v2426, %v2425
        %v2454 = vpack.c.b16 %v2428, %v2427
        %v2455 = vpack.c.b16 %v2430, %v2429
        %v2456 = vpack.c.b16 %v2432, %v2431
        %v2457 = vpack.c.b16 %v2434, %v2433
        %v2458 = vpack.c.b16 %v2436, %v2435
        %v2459 = vpack.c.b16 %v2438, %v2437
        %v2460 = vpack.c.b16 %v2440, %v2439
        %v2461 = vpack.c.b16 %v2442, %v2441
        %v2462 = vpack.c.b16 %v2444, %v2443
        %v2463 = vpack.c.b16 %v2446, %v2445
        %v2464 = vpack.c.b16 %v2448, %v2447
        %v2469 = vunpack.c.l.b16 %v2413
        %v2470 = vunpack.c.l.b16 %v2414
        %v2471 = vunpack.c.l.b16 %v2415
        %v2472 = vunpack.c.l.b16 %v2416
        %v2473 = vpack.c.b16 %v2470, %v2469
        %v2474 = vpack.c.b16 %v2472, %v2471
        %v2478 = vsel %vm429, %v2449, 0
        %v2481 = vsel %vm429, %v2450, 0
        %v2484 = vsel %vm429, %v2451, 0
        %v2487 = vsel %vm429, %v2452, 0
        %v2490 = vsel %vm429, %v2453, 0
        %v2493 = vsel %vm429, %v2454, 0
        %v2496 = vsel %vm429, %v2455, 0
        %v2499 = vsel %vm429, %v2456, 0
        %v2502 = vsel %vm429, %v2457, 0
        %v2505 = vsel %vm429, %v2458, 0
        %v2508 = vsel %vm429, %v2459, 0
        %v2511 = vsel %vm429, %v2460, 0
        %v2514 = vsel %vm429, %v2461, 0
        %v2517 = vsel %vm429, %v2462, 0
        %v2520 = vsel %vm429, %v2463, 0
        %v2523 = vsel %vm429, %v2464, 0
        %2525 = vmatpush.bf16.msra.mxu0 0
        %2526 = vmatpush.bf16.msra.mxu0 0
        %2527 = vmatpush.bf16.msra.mxu0 0
        %2528 = vmatpush.bf16.msra.mxu0 0
        %2529 = vmatpush.bf16.msra.mxu0 0
        %2530 = vmatpush.bf16.msra.mxu0 0
        %2531 = vmatpush.bf16.msra.mxu0 %v2474
        %2532 = vmatpush.bf16.msra.mxu0 %v2473
        %2533 = vmatmul.bf16.gmra.mxu0 %v2478
        %v2534 = vpop.f32.mrf.mxu0
        %v2535 = vadd.f32 0.0, %v2534
        %v2536 = vpop.f32.mrf.mxu0
        %v2537 = vadd.f32 0.0, %v2536
        %2538 = vmatmul.bf16.gmra.mxu0 %v2481
        %v2539 = vpop.f32.mrf.mxu0
        %v2540 = vadd.f32 0.0, %v2539
        %v2541 = vpop.f32.mrf.mxu0
        %v2542 = vadd.f32 0.0, %v2541
        %2543 = vmatmul.bf16.gmra.mxu0 %v2484
        %v2544 = vpop.f32.mrf.mxu0
        %v2545 = vadd.f32 0.0, %v2544
        %v2546 = vpop.f32.mrf.mxu0
        %v2547 = vadd.f32 0.0, %v2546
        %2548 = vmatmul.bf16.gmra.mxu0 %v2487
        %v2549 = vpop.f32.mrf.mxu0
        %v2550 = vadd.f32 0.0, %v2549
        %v2551 = vpop.f32.mrf.mxu0
        %v2552 = vadd.f32 0.0, %v2551
        %2553 = vmatmul.bf16.gmra.mxu0 %v2490
        %v2554 = vpop.f32.mrf.mxu0
        %v2555 = vadd.f32 0.0, %v2554
        %v2556 = vpop.f32.mrf.mxu0
        %v2557 = vadd.f32 0.0, %v2556
        %2558 = vmatmul.bf16.gmra.mxu0 %v2493
        %v2559 = vpop.f32.mrf.mxu0
        %v2560 = vadd.f32 0.0, %v2559
        %v2561 = vpop.f32.mrf.mxu0
        %v2562 = vadd.f32 0.0, %v2561
        %2563 = vmatmul.bf16.gmra.mxu0 %v2496
        %v2564 = vpop.f32.mrf.mxu0
        %v2565 = vadd.f32 0.0, %v2564
        %v2566 = vpop.f32.mrf.mxu0
        %v2567 = vadd.f32 0.0, %v2566
        %2568 = vmatmul.bf16.gmra.mxu0 %v2499
        %v2569 = vpop.f32.mrf.mxu0
        %v2570 = vadd.f32 0.0, %v2569
        %v2571 = vpop.f32.mrf.mxu0
        %v2572 = vadd.f32 0.0, %v2571
        %2573 = vmatmul.bf16.gmra.mxu0 %v2502
        %v2574 = vpop.f32.mrf.mxu0
        %v2575 = vadd.f32 0.0, %v2574
        %v2576 = vpop.f32.mrf.mxu0
        %v2577 = vadd.f32 0.0, %v2576
        %2578 = vmatmul.bf16.gmra.mxu0 %v2505
        %v2579 = vpop.f32.mrf.mxu0
        %v2580 = vadd.f32 0.0, %v2579
        %v2581 = vpop.f32.mrf.mxu0
        %v2582 = vadd.f32 0.0, %v2581
        %2583 = vmatmul.bf16.gmra.mxu0 %v2508
        %v2584 = vpop.f32.mrf.mxu0
        %v2585 = vadd.f32 0.0, %v2584
        %v2586 = vpop.f32.mrf.mxu0
        %v2587 = vadd.f32 0.0, %v2586
        %2588 = vmatmul.bf16.gmra.mxu0 %v2511
        %v2589 = vpop.f32.mrf.mxu0
        %v2590 = vadd.f32 0.0, %v2589
        %v2591 = vpop.f32.mrf.mxu0
        %v2592 = vadd.f32 0.0, %v2591
        %2593 = vmatmul.bf16.gmra.mxu0 %v2514
        %v2594 = vpop.f32.mrf.mxu0
        %v2595 = vadd.f32 0.0, %v2594
        %v2596 = vpop.f32.mrf.mxu0
        %v2597 = vadd.f32 0.0, %v2596
        %2598 = vmatmul.bf16.gmra.mxu0 %v2517
        %v2599 = vpop.f32.mrf.mxu0
        %v2600 = vadd.f32 0.0, %v2599
        %v2601 = vpop.f32.mrf.mxu0
        %v2602 = vadd.f32 0.0, %v2601
        %2603 = vmatmul.bf16.gmra.mxu0 %v2520
        %v2604 = vpop.f32.mrf.mxu0
        %v2605 = vadd.f32 0.0, %v2604
        %v2606 = vpop.f32.mrf.mxu0
        %v2607 = vadd.f32 0.0, %v2606
        %2608 = vmatmul.bf16.gmra.mxu0 %v2523
        %v2609 = vpop.f32.mrf.mxu0
        %v2610 = vadd.f32 0.0, %v2609
        %v2611 = vpop.f32.mrf.mxu0
        %v2612 = vadd.f32 0.0, %v2611
        %2613 = vdwg.mxu0
        %v2614 = vadd.f32 %v1948, %v2535
        %v2615 = vadd.f32 %v1949, %v2537
        %v2616 = vadd.f32 %v1950, %v2540
        %v2617 = vadd.f32 %v1951, %v2542
        %v2618 = vadd.f32 %v1952, %v2545
        %v2619 = vadd.f32 %v1953, %v2547
        %v2620 = vadd.f32 %v1954, %v2550
        %v2621 = vadd.f32 %v1955, %v2552
        %v2622 = vadd.f32 %v1956, %v2555
        %v2623 = vadd.f32 %v1957, %v2557
        %v2624 = vadd.f32 %v1958, %v2560
        %v2625 = vadd.f32 %v1959, %v2562
        %v2626 = vadd.f32 %v1960, %v2565
        %v2627 = vadd.f32 %v1961, %v2567
        %v2628 = vadd.f32 %v1962, %v2570
        %v2629 = vadd.f32 %v1963, %v2572
        %v2630 = vadd.f32 %v1964, %v2575
        %v2631 = vadd.f32 %v1965, %v2577
        %v2632 = vadd.f32 %v1966, %v2580
        %v2633 = vadd.f32 %v1967, %v2582
        %v2634 = vadd.f32 %v1968, %v2585
        %v2635 = vadd.f32 %v1969, %v2587
        %v2636 = vadd.f32 %v1970, %v2590
        %v2637 = vadd.f32 %v1971, %v2592
        %v2638 = vadd.f32 %v1972, %v2595
        %v2639 = vadd.f32 %v1973, %v2597
        %v2640 = vadd.f32 %v1974, %v2600
        %v2641 = vadd.f32 %v1975, %v2602
        %v2642 = vadd.f32 %v1976, %v2605
        %v2643 = vadd.f32 %v1977, %v2607
        %v2644 = vadd.f32 %v1978, %v2610
        %v2645 = vadd.f32 %v1979, %v2612
        %v2646 = vld [vmem:[%s1681] sm:$0xe]
        %v2647 = vld [vmem:[%s1681 + $0xc] sm:$0xe]
        %v2648 = vld [vmem:[%s1681 + $0x18] sm:$0xe]
        %v2649 = vld [vmem:[%s1681 + $0x24] sm:$0xe]
        %v2650 = vld [vmem:[%s1681 + $0x30] sm:$0xe]
        %v2651 = vld [vmem:[%s1681 + $0x3c] sm:$0xe]
        %v2652 = vld [vmem:[%s1681 + $0x48] sm:$0xe]
        %v2653 = vld [vmem:[%s1681 + $0x54] sm:$0xe]
        %v2654 = vld [vmem:[%s1681 + $0x60] sm:$0xe]
        %v2655 = vld [vmem:[%s1681 + $0x6c] sm:$0xe]
        %v2656 = vld [vmem:[%s1681 + $0x78] sm:$0xe]
        %v2657 = vld [vmem:[%s1681 + $0x84] sm:$0xe]
        %v2658 = vld [vmem:[%s1681 + $0x90] sm:$0xe]
        %v2659 = vld [vmem:[%s1681 + $0x9c] sm:$0xe]
        %v2660 = vld [vmem:[%s1681 + $0xa8] sm:$0xe]
        %v2661 = vld [vmem:[%s1681 + $0xb4] sm:$0xe]
        %v2710 = vrot.slane %v2646, 5
        %v2711 = vrot.slane %v2710, 4
        %v2712 = vrot.slane %v1981, 5
        %v2713 = vsel %vm1334, %v2711, %v2712
        %v2714 = vrot.slane %v2712, 4
        %v2715 = vrot.slane %v1982, 5
        %v2716 = vsel %vm1334, %v2714, %v2715
        %v2717 = vrot.slane %v2647, 5
        %v2718 = vrot.slane %v2717, 4
        %v2719 = vrot.slane %v1984, 5
        %v2720 = vsel %vm1334, %v2718, %v2719
        %v2721 = vrot.slane %v2719, 4
        %v2722 = vrot.slane %v1985, 5
        %v2723 = vsel %vm1334, %v2721, %v2722
        %v2724 = vrot.slane %v2648, 5
        %v2725 = vrot.slane %v2724, 4
        %v2726 = vrot.slane %v1987, 5
        %v2727 = vsel %vm1334, %v2725, %v2726
        %v2728 = vrot.slane %v2726, 4
        %v2729 = vrot.slane %v1988, 5
        %v2730 = vsel %vm1334, %v2728, %v2729
        %v2731 = vrot.slane %v2649, 5
        %v2732 = vrot.slane %v2731, 4
        %v2733 = vrot.slane %v1990, 5
        %v2734 = vsel %vm1334, %v2732, %v2733
        %v2735 = vrot.slane %v2733, 4
        %v2736 = vrot.slane %v1991, 5
        %v2737 = vsel %vm1334, %v2735, %v2736
        %v2738 = vrot.slane %v2650, 5
        %v2739 = vrot.slane %v2738, 4
        %v2740 = vrot.slane %v1993, 5
        %v2741 = vsel %vm1334, %v2739, %v2740
        %v2742 = vrot.slane %v2740, 4
        %v2743 = vrot.slane %v1994, 5
        %v2744 = vsel %vm1334, %v2742, %v2743
        %v2745 = vrot.slane %v2651, 5
        %v2746 = vrot.slane %v2745, 4
        %v2747 = vrot.slane %v1996, 5
        %v2748 = vsel %vm1334, %v2746, %v2747
        %v2749 = vrot.slane %v2747, 4
        %v2750 = vrot.slane %v1997, 5
        %v2751 = vsel %vm1334, %v2749, %v2750
        %v2752 = vrot.slane %v2652, 5
        %v2753 = vrot.slane %v2752, 4
        %v2754 = vrot.slane %v1999, 5
        %v2755 = vsel %vm1334, %v2753, %v2754
        %v2756 = vrot.slane %v2754, 4
        %v2757 = vrot.slane %v2000, 5
        %v2758 = vsel %vm1334, %v2756, %v2757
        %v2759 = vrot.slane %v2653, 5
        %v2760 = vrot.slane %v2759, 4
        %v2761 = vrot.slane %v2002, 5
        %v2762 = vsel %vm1334, %v2760, %v2761
        %v2763 = vrot.slane %v2761, 4
        %v2764 = vrot.slane %v2003, 5
        %v2765 = vsel %vm1334, %v2763, %v2764
        %v2766 = vrot.slane %v2654, 5
        %v2767 = vrot.slane %v2766, 4
        %v2768 = vrot.slane %v2005, 5
        %v2769 = vsel %vm1334, %v2767, %v2768
        %v2770 = vrot.slane %v2768, 4
        %v2771 = vrot.slane %v2006, 5
        %v2772 = vsel %vm1334, %v2770, %v2771
        %v2773 = vrot.slane %v2655, 5
        %v2774 = vrot.slane %v2773, 4
        %v2775 = vrot.slane %v2008, 5
        %v2776 = vsel %vm1334, %v2774, %v2775
        %v2777 = vrot.slane %v2775, 4
        %v2778 = vrot.slane %v2009, 5
        %v2779 = vsel %vm1334, %v2777, %v2778
        %v2780 = vrot.slane %v2656, 5
        %v2781 = vrot.slane %v2780, 4
        %v2782 = vrot.slane %v2011, 5
        %v2783 = vsel %vm1334, %v2781, %v2782
        %v2784 = vrot.slane %v2782, 4
        %v2785 = vrot.slane %v2012, 5
        %v2786 = vsel %vm1334, %v2784, %v2785
        %v2787 = vrot.slane %v2657, 5
        %v2788 = vrot.slane %v2787, 4
        %v2789 = vrot.slane %v2014, 5
        %v2790 = vsel %vm1334, %v2788, %v2789
        %v2791 = vrot.slane %v2789, 4
        %v2792 = vrot.slane %v2015, 5
        %v2793 = vsel %vm1334, %v2791, %v2792
        %v2794 = vrot.slane %v2658, 5
        %v2795 = vrot.slane %v2794, 4
        %v2796 = vrot.slane %v2017, 5
        %v2797 = vsel %vm1334, %v2795, %v2796
        %v2798 = vrot.slane %v2796, 4
        %v2799 = vrot.slane %v2018, 5
        %v2800 = vsel %vm1334, %v2798, %v2799
        %v2801 = vrot.slane %v2659, 5
        %v2802 = vrot.slane %v2801, 4
        %v2803 = vrot.slane %v2020, 5
        %v2804 = vsel %vm1334, %v2802, %v2803
        %v2805 = vrot.slane %v2803, 4
        %v2806 = vrot.slane %v2021, 5
        %v2807 = vsel %vm1334, %v2805, %v2806
        %v2808 = vrot.slane %v2660, 5
        %v2809 = vrot.slane %v2808, 4
        %v2810 = vrot.slane %v2023, 5
        %v2811 = vsel %vm1334, %v2809, %v2810
        %v2812 = vrot.slane %v2810, 4
        %v2813 = vrot.slane %v2024, 5
        %v2814 = vsel %vm1334, %v2812, %v2813
        %v2815 = vrot.slane %v2661, 5
        %v2816 = vrot.slane %v2815, 4
        %v2817 = vrot.slane %v2026, 5
        %v2818 = vsel %vm1334, %v2816, %v2817
        %v2819 = vrot.slane %v2817, 4
        %v2820 = vrot.slane %v2027, 5
        %v2821 = vsel %vm1334, %v2819, %v2820
        %s2822 = scalar_lea.vmem %s230, 80
        %v2823 = vld [vmem:[%s2822] sm:$0xf]
        %v2824 = vld [vmem:[%s2822 + $0x4] sm:$0xf]
        %v2825 = vld [vmem:[%s2822 + $0x8] sm:$0xf]
        %v2826 = vld [vmem:[%s2822 + $0xc] sm:$0xf]
        %v2827 = vunpack.c.l.b16 %v2713
        %v2828 = vunpack.c.l.b16 %v2716
        %v2829 = vunpack.c.l.b16 %v2720
        %v2830 = vunpack.c.l.b16 %v2723
        %v2831 = vunpack.c.l.b16 %v2727
        %v2832 = vunpack.c.l.b16 %v2730
        %v2833 = vunpack.c.l.b16 %v2734
        %v2834 = vunpack.c.l.b16 %v2737
        %v2835 = vunpack.c.l.b16 %v2741
        %v2836 = vunpack.c.l.b16 %v2744
        %v2837 = vunpack.c.l.b16 %v2748
        %v2838 = vunpack.c.l.b16 %v2751
        %v2839 = vunpack.c.l.b16 %v2755
        %v2840 = vunpack.c.l.b16 %v2758
        %v2841 = vunpack.c.l.b16 %v2762
        %v2842 = vunpack.c.l.b16 %v2765
        %v2843 = vunpack.c.l.b16 %v2769
        %v2844 = vunpack.c.l.b16 %v2772
        %v2845 = vunpack.c.l.b16 %v2776
        %v2846 = vunpack.c.l.b16 %v2779
        %v2847 = vunpack.c.l.b16 %v2783
        %v2848 = vunpack.c.l.b16 %v2786
        %v2849 = vunpack.c.l.b16 %v2790
        %v2850 = vunpack.c.l.b16 %v2793
        %v2851 = vunpack.c.l.b16 %v2797
        %v2852 = vunpack.c.l.b16 %v2800
        %v2853 = vunpack.c.l.b16 %v2804
        %v2854 = vunpack.c.l.b16 %v2807
        %v2855 = vunpack.c.l.b16 %v2811
        %v2856 = vunpack.c.l.b16 %v2814
        %v2857 = vunpack.c.l.b16 %v2818
        %v2858 = vunpack.c.l.b16 %v2821
        %v2859 = vpack.c.b16 %v2828, %v2827
        %v2860 = vpack.c.b16 %v2830, %v2829
        %v2861 = vpack.c.b16 %v2832, %v2831
        %v2862 = vpack.c.b16 %v2834, %v2833
        %v2863 = vpack.c.b16 %v2836, %v2835
        %v2864 = vpack.c.b16 %v2838, %v2837
        %v2865 = vpack.c.b16 %v2840, %v2839
        %v2866 = vpack.c.b16 %v2842, %v2841
        %v2867 = vpack.c.b16 %v2844, %v2843
        %v2868 = vpack.c.b16 %v2846, %v2845
        %v2869 = vpack.c.b16 %v2848, %v2847
        %v2870 = vpack.c.b16 %v2850, %v2849
        %v2871 = vpack.c.b16 %v2852, %v2851
        %v2872 = vpack.c.b16 %v2854, %v2853
        %v2873 = vpack.c.b16 %v2856, %v2855
        %v2874 = vpack.c.b16 %v2858, %v2857
        %v2879 = vunpack.c.l.b16 %v2823
        %v2880 = vunpack.c.l.b16 %v2824
        %v2881 = vunpack.c.l.b16 %v2825
        %v2882 = vunpack.c.l.b16 %v2826
        %v2883 = vpack.c.b16 %v2880, %v2879
        %v2884 = vpack.c.b16 %v2882, %v2881
        %v2888 = vsel %vm429, %v2859, 0
        %v2891 = vsel %vm429, %v2860, 0
        %v2894 = vsel %vm429, %v2861, 0
        %v2897 = vsel %vm429, %v2862, 0
        %v2900 = vsel %vm429, %v2863, 0
        %v2903 = vsel %vm429, %v2864, 0
        %v2906 = vsel %vm429, %v2865, 0
        %v2909 = vsel %vm429, %v2866, 0
        %v2912 = vsel %vm429, %v2867, 0
        %v2915 = vsel %vm429, %v2868, 0
        %v2918 = vsel %vm429, %v2869, 0
        %v2921 = vsel %vm429, %v2870, 0
        %v2924 = vsel %vm429, %v2871, 0
        %v2927 = vsel %vm429, %v2872, 0
        %v2930 = vsel %vm429, %v2873, 0
        %v2933 = vsel %vm429, %v2874, 0
        %2935 = vmatpush.bf16.msra.mxu0 0
        %2936 = vmatpush.bf16.msra.mxu0 0
        %2937 = vmatpush.bf16.msra.mxu0 0
        %2938 = vmatpush.bf16.msra.mxu0 0
        %2939 = vmatpush.bf16.msra.mxu0 0
        %2940 = vmatpush.bf16.msra.mxu0 0
        %2941 = vmatpush.bf16.msra.mxu0 %v2884
        %2942 = vmatpush.bf16.msra.mxu0 %v2883
        %2943 = vmatmul.bf16.gmra.mxu0 %v2888
        %v2944 = vpop.f32.mrf.mxu0
        %v2945 = vadd.f32 0.0, %v2944
        %v2946 = vpop.f32.mrf.mxu0
        %v2947 = vadd.f32 0.0, %v2946
        %2948 = vmatmul.bf16.gmra.mxu0 %v2891
        %v2949 = vpop.f32.mrf.mxu0
        %v2950 = vadd.f32 0.0, %v2949
        %v2951 = vpop.f32.mrf.mxu0
        %v2952 = vadd.f32 0.0, %v2951
        %2953 = vmatmul.bf16.gmra.mxu0 %v2894
        %v2954 = vpop.f32.mrf.mxu0
        %v2955 = vadd.f32 0.0, %v2954
        %v2956 = vpop.f32.mrf.mxu0
        %v2957 = vadd.f32 0.0, %v2956
        %2958 = vmatmul.bf16.gmra.mxu0 %v2897
        %v2959 = vpop.f32.mrf.mxu0
        %v2960 = vadd.f32 0.0, %v2959
        %v2961 = vpop.f32.mrf.mxu0
        %v2962 = vadd.f32 0.0, %v2961
        %2963 = vmatmul.bf16.gmra.mxu0 %v2900
        %v2964 = vpop.f32.mrf.mxu0
        %v2965 = vadd.f32 0.0, %v2964
        %v2966 = vpop.f32.mrf.mxu0
        %v2967 = vadd.f32 0.0, %v2966
        %2968 = vmatmul.bf16.gmra.mxu0 %v2903
        %v2969 = vpop.f32.mrf.mxu0
        %v2970 = vadd.f32 0.0, %v2969
        %v2971 = vpop.f32.mrf.mxu0
        %v2972 = vadd.f32 0.0, %v2971
        %2973 = vmatmul.bf16.gmra.mxu0 %v2906
        %v2974 = vpop.f32.mrf.mxu0
        %v2975 = vadd.f32 0.0, %v2974
        %v2976 = vpop.f32.mrf.mxu0
        %v2977 = vadd.f32 0.0, %v2976
        %2978 = vmatmul.bf16.gmra.mxu0 %v2909
        %v2979 = vpop.f32.mrf.mxu0
        %v2980 = vadd.f32 0.0, %v2979
        %v2981 = vpop.f32.mrf.mxu0
        %v2982 = vadd.f32 0.0, %v2981
        %2983 = vmatmul.bf16.gmra.mxu0 %v2912
        %v2984 = vpop.f32.mrf.mxu0
        %v2985 = vadd.f32 0.0, %v2984
        %v2986 = vpop.f32.mrf.mxu0
        %v2987 = vadd.f32 0.0, %v2986
        %2988 = vmatmul.bf16.gmra.mxu0 %v2915
        %v2989 = vpop.f32.mrf.mxu0
        %v2990 = vadd.f32 0.0, %v2989
        %v2991 = vpop.f32.mrf.mxu0
        %v2992 = vadd.f32 0.0, %v2991
        %2993 = vmatmul.bf16.gmra.mxu0 %v2918
        %v2994 = vpop.f32.mrf.mxu0
        %v2995 = vadd.f32 0.0, %v2994
        %v2996 = vpop.f32.mrf.mxu0
        %v2997 = vadd.f32 0.0, %v2996
        %2998 = vmatmul.bf16.gmra.mxu0 %v2921
        %v2999 = vpop.f32.mrf.mxu0
        %v3000 = vadd.f32 0.0, %v2999
        %v3001 = vpop.f32.mrf.mxu0
        %v3002 = vadd.f32 0.0, %v3001
        %3003 = vmatmul.bf16.gmra.mxu0 %v2924
        %v3004 = vpop.f32.mrf.mxu0
        %v3005 = vadd.f32 0.0, %v3004
        %v3006 = vpop.f32.mrf.mxu0
        %v3007 = vadd.f32 0.0, %v3006
        %3008 = vmatmul.bf16.gmra.mxu0 %v2927
        %v3009 = vpop.f32.mrf.mxu0
        %v3010 = vadd.f32 0.0, %v3009
        %v3011 = vpop.f32.mrf.mxu0
        %v3012 = vadd.f32 0.0, %v3011
        %3013 = vmatmul.bf16.gmra.mxu0 %v2930
        %v3014 = vpop.f32.mrf.mxu0
        %v3015 = vadd.f32 0.0, %v3014
        %v3016 = vpop.f32.mrf.mxu0
        %v3017 = vadd.f32 0.0, %v3016
        %3018 = vmatmul.bf16.gmra.mxu0 %v2933
        %v3019 = vpop.f32.mrf.mxu0
        %v3020 = vadd.f32 0.0, %v3019
        %v3021 = vpop.f32.mrf.mxu0
        %v3022 = vadd.f32 0.0, %v3021
        %3023 = vdwg.mxu0
        %v3024 = vadd.f32 %v2614, %v2945
        %v3025 = vadd.f32 %v2615, %v2947
        %v3026 = vadd.f32 %v2616, %v2950
        %v3027 = vadd.f32 %v2617, %v2952
        %v3028 = vadd.f32 %v2618, %v2955
        %v3029 = vadd.f32 %v2619, %v2957
        %v3030 = vadd.f32 %v2620, %v2960
        %v3031 = vadd.f32 %v2621, %v2962
        %v3032 = vadd.f32 %v2622, %v2965
        %v3033 = vadd.f32 %v2623, %v2967
        %v3034 = vadd.f32 %v2624, %v2970
        %v3035 = vadd.f32 %v2625, %v2972
        %v3036 = vadd.f32 %v2626, %v2975
        %v3037 = vadd.f32 %v2627, %v2977
        %v3038 = vadd.f32 %v2628, %v2980
        %v3039 = vadd.f32 %v2629, %v2982
        %v3040 = vadd.f32 %v2630, %v2985
        %v3041 = vadd.f32 %v2631, %v2987
        %v3042 = vadd.f32 %v2632, %v2990
        %v3043 = vadd.f32 %v2633, %v2992
        %v3044 = vadd.f32 %v2634, %v2995
        %v3045 = vadd.f32 %v2635, %v2997
        %v3046 = vadd.f32 %v2636, %v3000
        %v3047 = vadd.f32 %v2637, %v3002
        %v3048 = vadd.f32 %v2638, %v3005
        %v3049 = vadd.f32 %v2639, %v3007
        %v3050 = vadd.f32 %v2640, %v3010
        %v3051 = vadd.f32 %v2641, %v3012
        %v3052 = vadd.f32 %v2642, %v3015
        %v3053 = vadd.f32 %v2643, %v3017
        %v3054 = vadd.f32 %v2644, %v3020
        %v3055 = vadd.f32 %v2645, %v3022
        %s3056 = scalar_lea.vmem %s224, 24
        %v3057 = vld [vmem:[%s3056] sm:$0xf]
        %v3058 = vld [vmem:[%s3056 + $0x4] sm:$0xf]
        %v3059 = vld [vmem:[%s3056 + $0xc] sm:$0xf]
        %v3060 = vld [vmem:[%s3056 + $0x10] sm:$0xf]
        %v3061 = vld [vmem:[%s3056 + $0x18] sm:$0xf]
        %v3062 = vld [vmem:[%s3056 + $0x1c] sm:$0xf]
        %v3063 = vld [vmem:[%s3056 + $0x24] sm:$0xf]
        %v3064 = vld [vmem:[%s3056 + $0x28] sm:$0xf]
        %v3065 = vld [vmem:[%s3056 + $0x30] sm:$0xf]
        %v3066 = vld [vmem:[%s3056 + $0x34] sm:$0xf]
        %v3067 = vld [vmem:[%s3056 + $0x3c] sm:$0xf]
        %v3068 = vld [vmem:[%s3056 + $0x40] sm:$0xf]
        %v3069 = vld [vmem:[%s3056 + $0x48] sm:$0xf]
        %v3070 = vld [vmem:[%s3056 + $0x4c] sm:$0xf]
        %v3071 = vld [vmem:[%s3056 + $0x54] sm:$0xf]
        %v3072 = vld [vmem:[%s3056 + $0x58] sm:$0xf]
        %v3073 = vld [vmem:[%s3056 + $0x60] sm:$0xf]
        %v3074 = vld [vmem:[%s3056 + $0x64] sm:$0xf]
        %v3075 = vld [vmem:[%s3056 + $0x6c] sm:$0xf]
        %v3076 = vld [vmem:[%s3056 + $0x70] sm:$0xf]
        %v3077 = vld [vmem:[%s3056 + $0x78] sm:$0xf]
        %v3078 = vld [vmem:[%s3056 + $0x7c] sm:$0xf]
        %v3079 = vld [vmem:[%s3056 + $0x84] sm:$0xf]
        %v3080 = vld [vmem:[%s3056 + $0x88] sm:$0xf]
        %v3081 = vld [vmem:[%s3056 + $0x90] sm:$0xf]
        %v3082 = vld [vmem:[%s3056 + $0x94] sm:$0xf]
        %v3083 = vld [vmem:[%s3056 + $0x9c] sm:$0xf]
        %v3084 = vld [vmem:[%s3056 + $0xa0] sm:$0xf]
        %v3085 = vld [vmem:[%s3056 + $0xa8] sm:$0xf]
        %v3086 = vld [vmem:[%s3056 + $0xac] sm:$0xf]
        %v3087 = vld [vmem:[%s3056 + $0xb4] sm:$0xf]
        %v3088 = vld [vmem:[%s3056 + $0xb8] sm:$0xf]
        %s3089 = scalar_lea.vmem %s230, 96
        %v3090 = vld [vmem:[%s3089] sm:$0xf]
        %v3091 = vld [vmem:[%s3089 + $0x4] sm:$0xf]
        %v3092 = vld [vmem:[%s3089 + $0x8] sm:$0xf]
        %v3093 = vld [vmem:[%s3089 + $0xc] sm:$0xf]
        %v3126 = vunpack.c.l.b16 %v3057
        %v3127 = vunpack.c.l.b16 %v3058
        %v3128 = vunpack.c.l.b16 %v3059
        %v3129 = vunpack.c.l.b16 %v3060
        %v3130 = vunpack.c.l.b16 %v3061
        %v3131 = vunpack.c.l.b16 %v3062
        %v3132 = vunpack.c.l.b16 %v3063
        %v3133 = vunpack.c.l.b16 %v3064
        %v3134 = vunpack.c.l.b16 %v3065
        %v3135 = vunpack.c.l.b16 %v3066
        %v3136 = vunpack.c.l.b16 %v3067
        %v3137 = vunpack.c.l.b16 %v3068
        %v3138 = vunpack.c.l.b16 %v3069
        %v3139 = vunpack.c.l.b16 %v3070
        %v3140 = vunpack.c.l.b16 %v3071
        %v3141 = vunpack.c.l.b16 %v3072
        %v3142 = vunpack.c.l.b16 %v3073
        %v3143 = vunpack.c.l.b16 %v3074
        %v3144 = vunpack.c.l.b16 %v3075
        %v3145 = vunpack.c.l.b16 %v3076
        %v3146 = vunpack.c.l.b16 %v3077
        %v3147 = vunpack.c.l.b16 %v3078
        %v3148 = vunpack.c.l.b16 %v3079
        %v3149 = vunpack.c.l.b16 %v3080
        %v3150 = vunpack.c.l.b16 %v3081
        %v3151 = vunpack.c.l.b16 %v3082
        %v3152 = vunpack.c.l.b16 %v3083
        %v3153 = vunpack.c.l.b16 %v3084
        %v3154 = vunpack.c.l.b16 %v3085
        %v3155 = vunpack.c.l.b16 %v3086
        %v3156 = vunpack.c.l.b16 %v3087
        %v3157 = vunpack.c.l.b16 %v3088
        %v3158 = vpack.c.b16 %v3127, %v3126
        %v3159 = vpack.c.b16 %v3129, %v3128
        %v3160 = vpack.c.b16 %v3131, %v3130
        %v3161 = vpack.c.b16 %v3133, %v3132
        %v3162 = vpack.c.b16 %v3135, %v3134
        %v3163 = vpack.c.b16 %v3137, %v3136
        %v3164 = vpack.c.b16 %v3139, %v3138
        %v3165 = vpack.c.b16 %v3141, %v3140
        %v3166 = vpack.c.b16 %v3143, %v3142
        %v3167 = vpack.c.b16 %v3145, %v3144
        %v3168 = vpack.c.b16 %v3147, %v3146
        %v3169 = vpack.c.b16 %v3149, %v3148
        %v3170 = vpack.c.b16 %v3151, %v3150
        %v3171 = vpack.c.b16 %v3153, %v3152
        %v3172 = vpack.c.b16 %v3155, %v3154
        %v3173 = vpack.c.b16 %v3157, %v3156
        %v3178 = vunpack.c.l.b16 %v3090
        %v3179 = vunpack.c.l.b16 %v3091
        %v3180 = vunpack.c.l.b16 %v3092
        %v3181 = vunpack.c.l.b16 %v3093
        %v3182 = vpack.c.b16 %v3179, %v3178
        %v3183 = vpack.c.b16 %v3181, %v3180
        %v3187 = vsel %vm429, %v3158, 0
        %v3190 = vsel %vm429, %v3159, 0
        %v3193 = vsel %vm429, %v3160, 0
        %v3196 = vsel %vm429, %v3161, 0
        %v3199 = vsel %vm429, %v3162, 0
        %v3202 = vsel %vm429, %v3163, 0
        %v3205 = vsel %vm429, %v3164, 0
        %v3208 = vsel %vm429, %v3165, 0
        %v3211 = vsel %vm429, %v3166, 0
        %v3214 = vsel %vm429, %v3167, 0
        %v3217 = vsel %vm429, %v3168, 0
        %v3220 = vsel %vm429, %v3169, 0
        %v3223 = vsel %vm429, %v3170, 0
        %v3226 = vsel %vm429, %v3171, 0
        %v3229 = vsel %vm429, %v3172, 0
        %v3232 = vsel %vm429, %v3173, 0
        %3234 = vmatpush.bf16.msra.mxu0 0
        %3235 = vmatpush.bf16.msra.mxu0 0
        %3236 = vmatpush.bf16.msra.mxu0 0
        %3237 = vmatpush.bf16.msra.mxu0 0
        %3238 = vmatpush.bf16.msra.mxu0 0
        %3239 = vmatpush.bf16.msra.mxu0 0
        %3240 = vmatpush.bf16.msra.mxu0 %v3183
        %3241 = vmatpush.bf16.msra.mxu0 %v3182
        %3242 = vmatmul.bf16.gmra.mxu0 %v3187
        %v3243 = vpop.f32.mrf.mxu0
        %v3244 = vadd.f32 0.0, %v3243
        %v3245 = vpop.f32.mrf.mxu0
        %v3246 = vadd.f32 0.0, %v3245
        %3247 = vmatmul.bf16.gmra.mxu0 %v3190
        %v3248 = vpop.f32.mrf.mxu0
        %v3249 = vadd.f32 0.0, %v3248
        %v3250 = vpop.f32.mrf.mxu0
        %v3251 = vadd.f32 0.0, %v3250
        %3252 = vmatmul.bf16.gmra.mxu0 %v3193
        %v3253 = vpop.f32.mrf.mxu0
        %v3254 = vadd.f32 0.0, %v3253
        %v3255 = vpop.f32.mrf.mxu0
        %v3256 = vadd.f32 0.0, %v3255
        %3257 = vmatmul.bf16.gmra.mxu0 %v3196
        %v3258 = vpop.f32.mrf.mxu0
        %v3259 = vadd.f32 0.0, %v3258
        %v3260 = vpop.f32.mrf.mxu0
        %v3261 = vadd.f32 0.0, %v3260
        %3262 = vmatmul.bf16.gmra.mxu0 %v3199
        %v3263 = vpop.f32.mrf.mxu0
        %v3264 = vadd.f32 0.0, %v3263
        %v3265 = vpop.f32.mrf.mxu0
        %v3266 = vadd.f32 0.0, %v3265
        %3267 = vmatmul.bf16.gmra.mxu0 %v3202
        %v3268 = vpop.f32.mrf.mxu0
        %v3269 = vadd.f32 0.0, %v3268
        %v3270 = vpop.f32.mrf.mxu0
        %v3271 = vadd.f32 0.0, %v3270
        %3272 = vmatmul.bf16.gmra.mxu0 %v3205
        %v3273 = vpop.f32.mrf.mxu0
        %v3274 = vadd.f32 0.0, %v3273
        %v3275 = vpop.f32.mrf.mxu0
        %v3276 = vadd.f32 0.0, %v3275
        %3277 = vmatmul.bf16.gmra.mxu0 %v3208
        %v3278 = vpop.f32.mrf.mxu0
        %v3279 = vadd.f32 0.0, %v3278
        %v3280 = vpop.f32.mrf.mxu0
        %v3281 = vadd.f32 0.0, %v3280
        %3282 = vmatmul.bf16.gmra.mxu0 %v3211
        %v3283 = vpop.f32.mrf.mxu0
        %v3284 = vadd.f32 0.0, %v3283
        %v3285 = vpop.f32.mrf.mxu0
        %v3286 = vadd.f32 0.0, %v3285
        %3287 = vmatmul.bf16.gmra.mxu0 %v3214
        %v3288 = vpop.f32.mrf.mxu0
        %v3289 = vadd.f32 0.0, %v3288
        %v3290 = vpop.f32.mrf.mxu0
        %v3291 = vadd.f32 0.0, %v3290
        %3292 = vmatmul.bf16.gmra.mxu0 %v3217
        %v3293 = vpop.f32.mrf.mxu0
        %v3294 = vadd.f32 0.0, %v3293
        %v3295 = vpop.f32.mrf.mxu0
        %v3296 = vadd.f32 0.0, %v3295
        %3297 = vmatmul.bf16.gmra.mxu0 %v3220
        %v3298 = vpop.f32.mrf.mxu0
        %v3299 = vadd.f32 0.0, %v3298
        %v3300 = vpop.f32.mrf.mxu0
        %v3301 = vadd.f32 0.0, %v3300
        %3302 = vmatmul.bf16.gmra.mxu0 %v3223
        %v3303 = vpop.f32.mrf.mxu0
        %v3304 = vadd.f32 0.0, %v3303
        %v3305 = vpop.f32.mrf.mxu0
        %v3306 = vadd.f32 0.0, %v3305
        %3307 = vmatmul.bf16.gmra.mxu0 %v3226
        %v3308 = vpop.f32.mrf.mxu0
        %v3309 = vadd.f32 0.0, %v3308
        %v3310 = vpop.f32.mrf.mxu0
        %v3311 = vadd.f32 0.0, %v3310
        %3312 = vmatmul.bf16.gmra.mxu0 %v3229
        %v3313 = vpop.f32.mrf.mxu0
        %v3314 = vadd.f32 0.0, %v3313
        %v3315 = vpop.f32.mrf.mxu0
        %v3316 = vadd.f32 0.0, %v3315
        %3317 = vmatmul.bf16.gmra.mxu0 %v3232
        %v3318 = vpop.f32.mrf.mxu0
        %v3319 = vadd.f32 0.0, %v3318
        %v3320 = vpop.f32.mrf.mxu0
        %v3321 = vadd.f32 0.0, %v3320
        %3322 = vdwg.mxu0
        %v3323 = vadd.f32 %v3024, %v3244
        %v3324 = vadd.f32 %v3025, %v3246
        %v3325 = vadd.f32 %v3026, %v3249
        %v3326 = vadd.f32 %v3027, %v3251
        %v3327 = vadd.f32 %v3028, %v3254
        %v3328 = vadd.f32 %v3029, %v3256
        %v3329 = vadd.f32 %v3030, %v3259
        %v3330 = vadd.f32 %v3031, %v3261
        %v3331 = vadd.f32 %v3032, %v3264
        %v3332 = vadd.f32 %v3033, %v3266
        %v3333 = vadd.f32 %v3034, %v3269
        %v3334 = vadd.f32 %v3035, %v3271
        %v3335 = vadd.f32 %v3036, %v3274
        %v3336 = vadd.f32 %v3037, %v3276
        %v3337 = vadd.f32 %v3038, %v3279
        %v3338 = vadd.f32 %v3039, %v3281
        %v3339 = vadd.f32 %v3040, %v3284
        %v3340 = vadd.f32 %v3041, %v3286
        %v3341 = vadd.f32 %v3042, %v3289
        %v3342 = vadd.f32 %v3043, %v3291
        %v3343 = vadd.f32 %v3044, %v3294
        %v3344 = vadd.f32 %v3045, %v3296
        %v3345 = vadd.f32 %v3046, %v3299
        %v3346 = vadd.f32 %v3047, %v3301
        %v3347 = vadd.f32 %v3048, %v3304
        %v3348 = vadd.f32 %v3049, %v3306
        %v3349 = vadd.f32 %v3050, %v3309
        %v3350 = vadd.f32 %v3051, %v3311
        %v3351 = vadd.f32 %v3052, %v3314
        %v3352 = vadd.f32 %v3053, %v3316
        %v3353 = vadd.f32 %v3054, %v3319
        %v3354 = vadd.f32 %v3055, %v3321
        %v3355 = vld [vmem:[%s3056] sm:$0xf]
        %v3356 = vld [vmem:[%s3056 + $0x4] sm:$0xf]
        %v3357 = vld [vmem:[%s3056 + $0x8] sm:$0x1]
        %v3358 = vld [vmem:[%s3056 + $0xc] sm:$0xf]
        %v3359 = vld [vmem:[%s3056 + $0x10] sm:$0xf]
        %v3360 = vld [vmem:[%s3056 + $0x14] sm:$0x1]
        %v3361 = vld [vmem:[%s3056 + $0x18] sm:$0xf]
        %v3362 = vld [vmem:[%s3056 + $0x1c] sm:$0xf]
        %v3363 = vld [vmem:[%s3056 + $0x20] sm:$0x1]
        %v3364 = vld [vmem:[%s3056 + $0x24] sm:$0xf]
        %v3365 = vld [vmem:[%s3056 + $0x28] sm:$0xf]
        %v3366 = vld [vmem:[%s3056 + $0x2c] sm:$0x1]
        %v3367 = vld [vmem:[%s3056 + $0x30] sm:$0xf]
        %v3368 = vld [vmem:[%s3056 + $0x34] sm:$0xf]
        %v3369 = vld [vmem:[%s3056 + $0x38] sm:$0x1]
        %v3370 = vld [vmem:[%s3056 + $0x3c] sm:$0xf]
        %v3371 = vld [vmem:[%s3056 + $0x40] sm:$0xf]
        %v3372 = vld [vmem:[%s3056 + $0x44] sm:$0x1]
        %v3373 = vld [vmem:[%s3056 + $0x48] sm:$0xf]
        %v3374 = vld [vmem:[%s3056 + $0x4c] sm:$0xf]
        %v3375 = vld [vmem:[%s3056 + $0x50] sm:$0x1]
        %v3376 = vld [vmem:[%s3056 + $0x54] sm:$0xf]
        %v3377 = vld [vmem:[%s3056 + $0x58] sm:$0xf]
        %v3378 = vld [vmem:[%s3056 + $0x5c] sm:$0x1]
        %v3379 = vld [vmem:[%s3056 + $0x60] sm:$0xf]
        %v3380 = vld [vmem:[%s3056 + $0x64] sm:$0xf]
        %v3381 = vld [vmem:[%s3056 + $0x68] sm:$0x1]
        %v3382 = vld [vmem:[%s3056 + $0x6c] sm:$0xf]
        %v3383 = vld [vmem:[%s3056 + $0x70] sm:$0xf]
        %v3384 = vld [vmem:[%s3056 + $0x74] sm:$0x1]
        %v3385 = vld [vmem:[%s3056 + $0x78] sm:$0xf]
        %v3386 = vld [vmem:[%s3056 + $0x7c] sm:$0xf]
        %v3387 = vld [vmem:[%s3056 + $0x80] sm:$0x1]
        %v3388 = vld [vmem:[%s3056 + $0x84] sm:$0xf]
        %v3389 = vld [vmem:[%s3056 + $0x88] sm:$0xf]
        %v3390 = vld [vmem:[%s3056 + $0x8c] sm:$0x1]
        %v3391 = vld [vmem:[%s3056 + $0x90] sm:$0xf]
        %v3392 = vld [vmem:[%s3056 + $0x94] sm:$0xf]
        %v3393 = vld [vmem:[%s3056 + $0x98] sm:$0x1]
        %v3394 = vld [vmem:[%s3056 + $0x9c] sm:$0xf]
        %v3395 = vld [vmem:[%s3056 + $0xa0] sm:$0xf]
        %v3396 = vld [vmem:[%s3056 + $0xa4] sm:$0x1]
        %v3397 = vld [vmem:[%s3056 + $0xa8] sm:$0xf]
        %v3398 = vld [vmem:[%s3056 + $0xac] sm:$0xf]
        %v3399 = vld [vmem:[%s3056 + $0xb0] sm:$0x1]
        %v3400 = vld [vmem:[%s3056 + $0xb4] sm:$0xf]
        %v3401 = vld [vmem:[%s3056 + $0xb8] sm:$0xf]
        %v3402 = vld [vmem:[%s3056 + $0xbc] sm:$0x1]
        %v3404 = vshrl.u32 %v3355, 16
        %v3406 = vrot.slane %v3404, 4
        %v3407 = vshll.u32 %v3355, 16
        %v3409 = vrot.slane %v3407, 5
        %v3410 = vor.u32 %v3406, %v3409
        %v3411 = vrot.slane %v3410, 4
        %v3413 = vshll.u32 %v3356, 16
        %v3415 = vrot.slane %v3413, 5
        %v3416 = vsel %vm649, %v3411, %v3415
        %v3417 = vshrl.u32 %v3356, 16
        %v3419 = vrot.slane %v3417, 4
        %v3420 = vor.u32 %v3419, %v3415
        %v3421 = vrot.slane %v3420, 4
        %v3423 = vshll.u32 %v3357, 16
        %v3425 = vrot.slane %v3423, 5
        %v3426 = vsel %vm649, %v3421, %v3425
        %v3428 = vshrl.u32 %v3358, 16
        %v3430 = vrot.slane %v3428, 4
        %v3431 = vshll.u32 %v3358, 16
        %v3433 = vrot.slane %v3431, 5
        %v3434 = vor.u32 %v3430, %v3433
        %v3435 = vrot.slane %v3434, 4
        %v3437 = vshll.u32 %v3359, 16
        %v3439 = vrot.slane %v3437, 5
        %v3440 = vsel %vm649, %v3435, %v3439
        %v3441 = vshrl.u32 %v3359, 16
        %v3443 = vrot.slane %v3441, 4
        %v3444 = vor.u32 %v3443, %v3439
        %v3445 = vrot.slane %v3444, 4
        %v3447 = vshll.u32 %v3360, 16
        %v3449 = vrot.slane %v3447, 5
        %v3450 = vsel %vm649, %v3445, %v3449
        %v3452 = vshrl.u32 %v3361, 16
        %v3454 = vrot.slane %v3452, 4
        %v3455 = vshll.u32 %v3361, 16
        %v3457 = vrot.slane %v3455, 5
        %v3458 = vor.u32 %v3454, %v3457
        %v3459 = vrot.slane %v3458, 4
        %v3461 = vshll.u32 %v3362, 16
        %v3463 = vrot.slane %v3461, 5
        %v3464 = vsel %vm649, %v3459, %v3463
        %v3465 = vshrl.u32 %v3362, 16
        %v3467 = vrot.slane %v3465, 4
        %v3468 = vor.u32 %v3467, %v3463
        %v3469 = vrot.slane %v3468, 4
        %v3471 = vshll.u32 %v3363, 16
        %v3473 = vrot.slane %v3471, 5
        %v3474 = vsel %vm649, %v3469, %v3473
        %v3476 = vshrl.u32 %v3364, 16
        %v3478 = vrot.slane %v3476, 4
        %v3479 = vshll.u32 %v3364, 16
        %v3481 = vrot.slane %v3479, 5
        %v3482 = vor.u32 %v3478, %v3481
        %v3483 = vrot.slane %v3482, 4
        %v3485 = vshll.u32 %v3365, 16
        %v3487 = vrot.slane %v3485, 5
        %v3488 = vsel %vm649, %v3483, %v3487
        %v3489 = vshrl.u32 %v3365, 16
        %v3491 = vrot.slane %v3489, 4
        %v3492 = vor.u32 %v3491, %v3487
        %v3493 = vrot.slane %v3492, 4
        %v3495 = vshll.u32 %v3366, 16
        %v3497 = vrot.slane %v3495, 5
        %v3498 = vsel %vm649, %v3493, %v3497
        %v3500 = vshrl.u32 %v3367, 16
        %v3502 = vrot.slane %v3500, 4
        %v3503 = vshll.u32 %v3367, 16
        %v3505 = vrot.slane %v3503, 5
        %v3506 = vor.u32 %v3502, %v3505
        %v3507 = vrot.slane %v3506, 4
        %v3509 = vshll.u32 %v3368, 16
        %v3511 = vrot.slane %v3509, 5
        %v3512 = vsel %vm649, %v3507, %v3511
        %v3513 = vshrl.u32 %v3368, 16
        %v3515 = vrot.slane %v3513, 4
        %v3516 = vor.u32 %v3515, %v3511
        %v3517 = vrot.slane %v3516, 4
        %v3519 = vshll.u32 %v3369, 16
        %v3521 = vrot.slane %v3519, 5
        %v3522 = vsel %vm649, %v3517, %v3521
        %v3524 = vshrl.u32 %v3370, 16
        %v3526 = vrot.slane %v3524, 4
        %v3527 = vshll.u32 %v3370, 16
        %v3529 = vrot.slane %v3527, 5
        %v3530 = vor.u32 %v3526, %v3529
        %v3531 = vrot.slane %v3530, 4
        %v3533 = vshll.u32 %v3371, 16
        %v3535 = vrot.slane %v3533, 5
        %v3536 = vsel %vm649, %v3531, %v3535
        %v3537 = vshrl.u32 %v3371, 16
        %v3539 = vrot.slane %v3537, 4
        %v3540 = vor.u32 %v3539, %v3535
        %v3541 = vrot.slane %v3540, 4
        %v3543 = vshll.u32 %v3372, 16
        %v3545 = vrot.slane %v3543, 5
        %v3546 = vsel %vm649, %v3541, %v3545
        %v3548 = vshrl.u32 %v3373, 16
        %v3550 = vrot.slane %v3548, 4
        %v3551 = vshll.u32 %v3373, 16
        %v3553 = vrot.slane %v3551, 5
        %v3554 = vor.u32 %v3550, %v3553
        %v3555 = vrot.slane %v3554, 4
        %v3557 = vshll.u32 %v3374, 16
        %v3559 = vrot.slane %v3557, 5
        %v3560 = vsel %vm649, %v3555, %v3559
        %v3561 = vshrl.u32 %v3374, 16
        %v3563 = vrot.slane %v3561, 4
        %v3564 = vor.u32 %v3563, %v3559
        %v3565 = vrot.slane %v3564, 4
        %v3567 = vshll.u32 %v3375, 16
        %v3569 = vrot.slane %v3567, 5
        %v3570 = vsel %vm649, %v3565, %v3569
        %v3572 = vshrl.u32 %v3376, 16
        %v3574 = vrot.slane %v3572, 4
        %v3575 = vshll.u32 %v3376, 16
        %v3577 = vrot.slane %v3575, 5
        %v3578 = vor.u32 %v3574, %v3577
        %v3579 = vrot.slane %v3578, 4
        %v3581 = vshll.u32 %v3377, 16
        %v3583 = vrot.slane %v3581, 5
        %v3584 = vsel %vm649, %v3579, %v3583
        %v3585 = vshrl.u32 %v3377, 16
        %v3587 = vrot.slane %v3585, 4
        %v3588 = vor.u32 %v3587, %v3583
        %v3589 = vrot.slane %v3588, 4
        %v3591 = vshll.u32 %v3378, 16
        %v3593 = vrot.slane %v3591, 5
        %v3594 = vsel %vm649, %v3589, %v3593
        %v3596 = vshrl.u32 %v3379, 16
        %v3598 = vrot.slane %v3596, 4
        %v3599 = vshll.u32 %v3379, 16
        %v3601 = vrot.slane %v3599, 5
        %v3602 = vor.u32 %v3598, %v3601
        %v3603 = vrot.slane %v3602, 4
        %v3605 = vshll.u32 %v3380, 16
        %v3607 = vrot.slane %v3605, 5
        %v3608 = vsel %vm649, %v3603, %v3607
        %v3609 = vshrl.u32 %v3380, 16
        %v3611 = vrot.slane %v3609, 4
        %v3612 = vor.u32 %v3611, %v3607
        %v3613 = vrot.slane %v3612, 4
        %v3615 = vshll.u32 %v3381, 16
        %v3617 = vrot.slane %v3615, 5
        %v3618 = vsel %vm649, %v3613, %v3617
        %v3620 = vshrl.u32 %v3382, 16
        %v3622 = vrot.slane %v3620, 4
        %v3623 = vshll.u32 %v3382, 16
        %v3625 = vrot.slane %v3623, 5
        %v3626 = vor.u32 %v3622, %v3625
        %v3627 = vrot.slane %v3626, 4
        %v3629 = vshll.u32 %v3383, 16
        %v3631 = vrot.slane %v3629, 5
        %v3632 = vsel %vm649, %v3627, %v3631
        %v3633 = vshrl.u32 %v3383, 16
        %v3635 = vrot.slane %v3633, 4
        %v3636 = vor.u32 %v3635, %v3631
        %v3637 = vrot.slane %v3636, 4
        %v3639 = vshll.u32 %v3384, 16
        %v3641 = vrot.slane %v3639, 5
        %v3642 = vsel %vm649, %v3637, %v3641
        %v3644 = vshrl.u32 %v3385, 16
        %v3646 = vrot.slane %v3644, 4
        %v3647 = vshll.u32 %v3385, 16
        %v3649 = vrot.slane %v3647, 5
        %v3650 = vor.u32 %v3646, %v3649
        %v3651 = vrot.slane %v3650, 4
        %v3653 = vshll.u32 %v3386, 16
        %v3655 = vrot.slane %v3653, 5
        %v3656 = vsel %vm649, %v3651, %v3655
        %v3657 = vshrl.u32 %v3386, 16
        %v3659 = vrot.slane %v3657, 4
        %v3660 = vor.u32 %v3659, %v3655
        %v3661 = vrot.slane %v3660, 4
        %v3663 = vshll.u32 %v3387, 16
        %v3665 = vrot.slane %v3663, 5
        %v3666 = vsel %vm649, %v3661, %v3665
        %v3668 = vshrl.u32 %v3388, 16
        %v3670 = vrot.slane %v3668, 4
        %v3671 = vshll.u32 %v3388, 16
        %v3673 = vrot.slane %v3671, 5
        %v3674 = vor.u32 %v3670, %v3673
        %v3675 = vrot.slane %v3674, 4
        %v3677 = vshll.u32 %v3389, 16
        %v3679 = vrot.slane %v3677, 5
        %v3680 = vsel %vm649, %v3675, %v3679
        %v3681 = vshrl.u32 %v3389, 16
        %v3683 = vrot.slane %v3681, 4
        %v3684 = vor.u32 %v3683, %v3679
        %v3685 = vrot.slane %v3684, 4
        %v3687 = vshll.u32 %v3390, 16
        %v3689 = vrot.slane %v3687, 5
        %v3690 = vsel %vm649, %v3685, %v3689
        %v3692 = vshrl.u32 %v3391, 16
        %v3694 = vrot.slane %v3692, 4
        %v3695 = vshll.u32 %v3391, 16
        %v3697 = vrot.slane %v3695, 5
        %v3698 = vor.u32 %v3694, %v3697
        %v3699 = vrot.slane %v3698, 4
        %v3701 = vshll.u32 %v3392, 16
        %v3703 = vrot.slane %v3701, 5
        %v3704 = vsel %vm649, %v3699, %v3703
        %v3705 = vshrl.u32 %v3392, 16
        %v3707 = vrot.slane %v3705, 4
        %v3708 = vor.u32 %v3707, %v3703
        %v3709 = vrot.slane %v3708, 4
        %v3711 = vshll.u32 %v3393, 16
        %v3713 = vrot.slane %v3711, 5
        %v3714 = vsel %vm649, %v3709, %v3713
        %v3716 = vshrl.u32 %v3394, 16
        %v3718 = vrot.slane %v3716, 4
        %v3719 = vshll.u32 %v3394, 16
        %v3721 = vrot.slane %v3719, 5
        %v3722 = vor.u32 %v3718, %v3721
        %v3723 = vrot.slane %v3722, 4
        %v3725 = vshll.u32 %v3395, 16
        %v3727 = vrot.slane %v3725, 5
        %v3728 = vsel %vm649, %v3723, %v3727
        %v3729 = vshrl.u32 %v3395, 16
        %v3731 = vrot.slane %v3729, 4
        %v3732 = vor.u32 %v3731, %v3727
        %v3733 = vrot.slane %v3732, 4
        %v3735 = vshll.u32 %v3396, 16
        %v3737 = vrot.slane %v3735, 5
        %v3738 = vsel %vm649, %v3733, %v3737
        %v3740 = vshrl.u32 %v3397, 16
        %v3742 = vrot.slane %v3740, 4
        %v3743 = vshll.u32 %v3397, 16
        %v3745 = vrot.slane %v3743, 5
        %v3746 = vor.u32 %v3742, %v3745
        %v3747 = vrot.slane %v3746, 4
        %v3749 = vshll.u32 %v3398, 16
        %v3751 = vrot.slane %v3749, 5
        %v3752 = vsel %vm649, %v3747, %v3751
        %v3753 = vshrl.u32 %v3398, 16
        %v3755 = vrot.slane %v3753, 4
        %v3756 = vor.u32 %v3755, %v3751
        %v3757 = vrot.slane %v3756, 4
        %v3759 = vshll.u32 %v3399, 16
        %v3761 = vrot.slane %v3759, 5
        %v3762 = vsel %vm649, %v3757, %v3761
        %v3764 = vshrl.u32 %v3400, 16
        %v3766 = vrot.slane %v3764, 4
        %v3767 = vshll.u32 %v3400, 16
        %v3769 = vrot.slane %v3767, 5
        %v3770 = vor.u32 %v3766, %v3769
        %v3771 = vrot.slane %v3770, 4
        %v3773 = vshll.u32 %v3401, 16
        %v3775 = vrot.slane %v3773, 5
        %v3776 = vsel %vm649, %v3771, %v3775
        %v3777 = vshrl.u32 %v3401, 16
        %v3779 = vrot.slane %v3777, 4
        %v3780 = vor.u32 %v3779, %v3775
        %v3781 = vrot.slane %v3780, 4
        %v3783 = vshll.u32 %v3402, 16
        %v3785 = vrot.slane %v3783, 5
        %v3786 = vsel %vm649, %v3781, %v3785
        %s3787 = scalar_lea.vmem %s230, 112
        %v3788 = vld [vmem:[%s3787] sm:$0xf]
        %v3789 = vld [vmem:[%s3787 + $0x4] sm:$0xf]
        %v3790 = vld [vmem:[%s3787 + $0x8] sm:$0xf]
        %v3791 = vld [vmem:[%s3787 + $0xc] sm:$0xf]
        %v3792 = vunpack.c.l.b16 %v3416
        %v3793 = vunpack.c.l.b16 %v3426
        %v3794 = vunpack.c.l.b16 %v3440
        %v3795 = vunpack.c.l.b16 %v3450
        %v3796 = vunpack.c.l.b16 %v3464
        %v3797 = vunpack.c.l.b16 %v3474
        %v3798 = vunpack.c.l.b16 %v3488
        %v3799 = vunpack.c.l.b16 %v3498
        %v3800 = vunpack.c.l.b16 %v3512
        %v3801 = vunpack.c.l.b16 %v3522
        %v3802 = vunpack.c.l.b16 %v3536
        %v3803 = vunpack.c.l.b16 %v3546
        %v3804 = vunpack.c.l.b16 %v3560
        %v3805 = vunpack.c.l.b16 %v3570
        %v3806 = vunpack.c.l.b16 %v3584
        %v3807 = vunpack.c.l.b16 %v3594
        %v3808 = vunpack.c.l.b16 %v3608
        %v3809 = vunpack.c.l.b16 %v3618
        %v3810 = vunpack.c.l.b16 %v3632
        %v3811 = vunpack.c.l.b16 %v3642
        %v3812 = vunpack.c.l.b16 %v3656
        %v3813 = vunpack.c.l.b16 %v3666
        %v3814 = vunpack.c.l.b16 %v3680
        %v3815 = vunpack.c.l.b16 %v3690
        %v3816 = vunpack.c.l.b16 %v3704
        %v3817 = vunpack.c.l.b16 %v3714
        %v3818 = vunpack.c.l.b16 %v3728
        %v3819 = vunpack.c.l.b16 %v3738
        %v3820 = vunpack.c.l.b16 %v3752
        %v3821 = vunpack.c.l.b16 %v3762
        %v3822 = vunpack.c.l.b16 %v3776
        %v3823 = vunpack.c.l.b16 %v3786
        %v3824 = vpack.c.b16 %v3793, %v3792
        %v3825 = vpack.c.b16 %v3795, %v3794
        %v3826 = vpack.c.b16 %v3797, %v3796
        %v3827 = vpack.c.b16 %v3799, %v3798
        %v3828 = vpack.c.b16 %v3801, %v3800
        %v3829 = vpack.c.b16 %v3803, %v3802
        %v3830 = vpack.c.b16 %v3805, %v3804
        %v3831 = vpack.c.b16 %v3807, %v3806
        %v3832 = vpack.c.b16 %v3809, %v3808
        %v3833 = vpack.c.b16 %v3811, %v3810
        %v3834 = vpack.c.b16 %v3813, %v3812
        %v3835 = vpack.c.b16 %v3815, %v3814
        %v3836 = vpack.c.b16 %v3817, %v3816
        %v3837 = vpack.c.b16 %v3819, %v3818
        %v3838 = vpack.c.b16 %v3821, %v3820
        %v3839 = vpack.c.b16 %v3823, %v3822
        %v3844 = vunpack.c.l.b16 %v3788
        %v3845 = vunpack.c.l.b16 %v3789
        %v3846 = vunpack.c.l.b16 %v3790
        %v3847 = vunpack.c.l.b16 %v3791
        %v3848 = vpack.c.b16 %v3845, %v3844
        %v3849 = vpack.c.b16 %v3847, %v3846
        %v3853 = vsel %vm429, %v3824, 0
        %v3856 = vsel %vm429, %v3825, 0
        %v3859 = vsel %vm429, %v3826, 0
        %v3862 = vsel %vm429, %v3827, 0
        %v3865 = vsel %vm429, %v3828, 0
        %v3868 = vsel %vm429, %v3829, 0
        %v3871 = vsel %vm429, %v3830, 0
        %v3874 = vsel %vm429, %v3831, 0
        %v3877 = vsel %vm429, %v3832, 0
        %v3880 = vsel %vm429, %v3833, 0
        %v3883 = vsel %vm429, %v3834, 0
        %v3886 = vsel %vm429, %v3835, 0
        %v3889 = vsel %vm429, %v3836, 0
        %v3892 = vsel %vm429, %v3837, 0
        %v3895 = vsel %vm429, %v3838, 0
        %v3898 = vsel %vm429, %v3839, 0
        %3900 = vmatpush.bf16.msra.mxu0 0
        %3901 = vmatpush.bf16.msra.mxu0 0
        %3902 = vmatpush.bf16.msra.mxu0 0
        %3903 = vmatpush.bf16.msra.mxu0 0
        %3904 = vmatpush.bf16.msra.mxu0 0
        %3905 = vmatpush.bf16.msra.mxu0 0
        %3906 = vmatpush.bf16.msra.mxu0 %v3849
        %3907 = vmatpush.bf16.msra.mxu0 %v3848
        %3908 = vmatmul.bf16.gmra.mxu0 %v3853
        %v3909 = vpop.f32.mrf.mxu0
        %v3910 = vadd.f32 0.0, %v3909
        %v3911 = vpop.f32.mrf.mxu0
        %v3912 = vadd.f32 0.0, %v3911
        %3913 = vmatmul.bf16.gmra.mxu0 %v3856
        %v3914 = vpop.f32.mrf.mxu0
        %v3915 = vadd.f32 0.0, %v3914
        %v3916 = vpop.f32.mrf.mxu0
        %v3917 = vadd.f32 0.0, %v3916
        %3918 = vmatmul.bf16.gmra.mxu0 %v3859
        %v3919 = vpop.f32.mrf.mxu0
        %v3920 = vadd.f32 0.0, %v3919
        %v3921 = vpop.f32.mrf.mxu0
        %v3922 = vadd.f32 0.0, %v3921
        %3923 = vmatmul.bf16.gmra.mxu0 %v3862
        %v3924 = vpop.f32.mrf.mxu0
        %v3925 = vadd.f32 0.0, %v3924
        %v3926 = vpop.f32.mrf.mxu0
        %v3927 = vadd.f32 0.0, %v3926
        %3928 = vmatmul.bf16.gmra.mxu0 %v3865
        %v3929 = vpop.f32.mrf.mxu0
        %v3930 = vadd.f32 0.0, %v3929
        %v3931 = vpop.f32.mrf.mxu0
        %v3932 = vadd.f32 0.0, %v3931
        %3933 = vmatmul.bf16.gmra.mxu0 %v3868
        %v3934 = vpop.f32.mrf.mxu0
        %v3935 = vadd.f32 0.0, %v3934
        %v3936 = vpop.f32.mrf.mxu0
        %v3937 = vadd.f32 0.0, %v3936
        %3938 = vmatmul.bf16.gmra.mxu0 %v3871
        %v3939 = vpop.f32.mrf.mxu0
        %v3940 = vadd.f32 0.0, %v3939
        %v3941 = vpop.f32.mrf.mxu0
        %v3942 = vadd.f32 0.0, %v3941
        %3943 = vmatmul.bf16.gmra.mxu0 %v3874
        %v3944 = vpop.f32.mrf.mxu0
        %v3945 = vadd.f32 0.0, %v3944
        %v3946 = vpop.f32.mrf.mxu0
        %v3947 = vadd.f32 0.0, %v3946
        %3948 = vmatmul.bf16.gmra.mxu0 %v3877
        %v3949 = vpop.f32.mrf.mxu0
        %v3950 = vadd.f32 0.0, %v3949
        %v3951 = vpop.f32.mrf.mxu0
        %v3952 = vadd.f32 0.0, %v3951
        %3953 = vmatmul.bf16.gmra.mxu0 %v3880
        %v3954 = vpop.f32.mrf.mxu0
        %v3955 = vadd.f32 0.0, %v3954
        %v3956 = vpop.f32.mrf.mxu0
        %v3957 = vadd.f32 0.0, %v3956
        %3958 = vmatmul.bf16.gmra.mxu0 %v3883
        %v3959 = vpop.f32.mrf.mxu0
        %v3960 = vadd.f32 0.0, %v3959
        %v3961 = vpop.f32.mrf.mxu0
        %v3962 = vadd.f32 0.0, %v3961
        %3963 = vmatmul.bf16.gmra.mxu0 %v3886
        %v3964 = vpop.f32.mrf.mxu0
        %v3965 = vadd.f32 0.0, %v3964
        %v3966 = vpop.f32.mrf.mxu0
        %v3967 = vadd.f32 0.0, %v3966
        %3968 = vmatmul.bf16.gmra.mxu0 %v3889
        %v3969 = vpop.f32.mrf.mxu0
        %v3970 = vadd.f32 0.0, %v3969
        %v3971 = vpop.f32.mrf.mxu0
        %v3972 = vadd.f32 0.0, %v3971
        %3973 = vmatmul.bf16.gmra.mxu0 %v3892
        %v3974 = vpop.f32.mrf.mxu0
        %v3975 = vadd.f32 0.0, %v3974
        %v3976 = vpop.f32.mrf.mxu0
        %v3977 = vadd.f32 0.0, %v3976
        %3978 = vmatmul.bf16.gmra.mxu0 %v3895
        %v3979 = vpop.f32.mrf.mxu0
        %v3980 = vadd.f32 0.0, %v3979
        %v3981 = vpop.f32.mrf.mxu0
        %v3982 = vadd.f32 0.0, %v3981
        %3983 = vmatmul.bf16.gmra.mxu0 %v3898
        %v3984 = vpop.f32.mrf.mxu0
        %v3985 = vadd.f32 0.0, %v3984
        %v3986 = vpop.f32.mrf.mxu0
        %v3987 = vadd.f32 0.0, %v3986
        %3988 = vdwg.mxu0
        %v3989 = vadd.f32 %v3323, %v3910
        %v3990 = vadd.f32 %v3324, %v3912
        %v3991 = vadd.f32 %v3325, %v3915
        %v3992 = vadd.f32 %v3326, %v3917
        %v3993 = vadd.f32 %v3327, %v3920
        %v3994 = vadd.f32 %v3328, %v3922
        %v3995 = vadd.f32 %v3329, %v3925
        %v3996 = vadd.f32 %v3330, %v3927
        %v3997 = vadd.f32 %v3331, %v3930
        %v3998 = vadd.f32 %v3332, %v3932
        %v3999 = vadd.f32 %v3333, %v3935
        %v4000 = vadd.f32 %v3334, %v3937
        %v4001 = vadd.f32 %v3335, %v3940
        %v4002 = vadd.f32 %v3336, %v3942
        %v4003 = vadd.f32 %v3337, %v3945
        %v4004 = vadd.f32 %v3338, %v3947
        %v4005 = vadd.f32 %v3339, %v3950
        %v4006 = vadd.f32 %v3340, %v3952
        %v4007 = vadd.f32 %v3341, %v3955
        %v4008 = vadd.f32 %v3342, %v3957
        %v4009 = vadd.f32 %v3343, %v3960
        %v4010 = vadd.f32 %v3344, %v3962
        %v4011 = vadd.f32 %v3345, %v3965
        %v4012 = vadd.f32 %v3346, %v3967
        %v4013 = vadd.f32 %v3347, %v3970
        %v4014 = vadd.f32 %v3348, %v3972
        %v4015 = vadd.f32 %v3349, %v3975
        %v4016 = vadd.f32 %v3350, %v3977
        %v4017 = vadd.f32 %v3351, %v3980
        %v4018 = vadd.f32 %v3352, %v3982
        %v4019 = vadd.f32 %v3353, %v3985
        %v4020 = vadd.f32 %v3354, %v3987
        %v4021 = vld [vmem:[%s3056] sm:$0xe]
        %v4022 = vld [vmem:[%s3056 + $0xc] sm:$0xe]
        %v4023 = vld [vmem:[%s3056 + $0x18] sm:$0xe]
        %v4024 = vld [vmem:[%s3056 + $0x24] sm:$0xe]
        %v4025 = vld [vmem:[%s3056 + $0x30] sm:$0xe]
        %v4026 = vld [vmem:[%s3056 + $0x3c] sm:$0xe]
        %v4027 = vld [vmem:[%s3056 + $0x48] sm:$0xe]
        %v4028 = vld [vmem:[%s3056 + $0x54] sm:$0xe]
        %v4029 = vld [vmem:[%s3056 + $0x60] sm:$0xe]
        %v4030 = vld [vmem:[%s3056 + $0x6c] sm:$0xe]
        %v4031 = vld [vmem:[%s3056 + $0x78] sm:$0xe]
        %v4032 = vld [vmem:[%s3056 + $0x84] sm:$0xe]
        %v4033 = vld [vmem:[%s3056 + $0x90] sm:$0xe]
        %v4034 = vld [vmem:[%s3056 + $0x9c] sm:$0xe]
        %v4035 = vld [vmem:[%s3056 + $0xa8] sm:$0xe]
        %v4036 = vld [vmem:[%s3056 + $0xb4] sm:$0xe]
        %v4085 = vrot.slane %v4021, 5
        %v4086 = vrot.slane %v4085, 4
        %v4087 = vrot.slane %v3356, 5
        %v4088 = vsel %vm1334, %v4086, %v4087
        %v4089 = vrot.slane %v4087, 4
        %v4090 = vrot.slane %v3357, 5
        %v4091 = vsel %vm1334, %v4089, %v4090
        %v4092 = vrot.slane %v4022, 5
        %v4093 = vrot.slane %v4092, 4
        %v4094 = vrot.slane %v3359, 5
        %v4095 = vsel %vm1334, %v4093, %v4094
        %v4096 = vrot.slane %v4094, 4
        %v4097 = vrot.slane %v3360, 5
        %v4098 = vsel %vm1334, %v4096, %v4097
        %v4099 = vrot.slane %v4023, 5
        %v4100 = vrot.slane %v4099, 4
        %v4101 = vrot.slane %v3362, 5
        %v4102 = vsel %vm1334, %v4100, %v4101
        %v4103 = vrot.slane %v4101, 4
        %v4104 = vrot.slane %v3363, 5
        %v4105 = vsel %vm1334, %v4103, %v4104
        %v4106 = vrot.slane %v4024, 5
        %v4107 = vrot.slane %v4106, 4
        %v4108 = vrot.slane %v3365, 5
        %v4109 = vsel %vm1334, %v4107, %v4108
        %v4110 = vrot.slane %v4108, 4
        %v4111 = vrot.slane %v3366, 5
        %v4112 = vsel %vm1334, %v4110, %v4111
        %v4113 = vrot.slane %v4025, 5
        %v4114 = vrot.slane %v4113, 4
        %v4115 = vrot.slane %v3368, 5
        %v4116 = vsel %vm1334, %v4114, %v4115
        %v4117 = vrot.slane %v4115, 4
        %v4118 = vrot.slane %v3369, 5
        %v4119 = vsel %vm1334, %v4117, %v4118
        %v4120 = vrot.slane %v4026, 5
        %v4121 = vrot.slane %v4120, 4
        %v4122 = vrot.slane %v3371, 5
        %v4123 = vsel %vm1334, %v4121, %v4122
        %v4124 = vrot.slane %v4122, 4
        %v4125 = vrot.slane %v3372, 5
        %v4126 = vsel %vm1334, %v4124, %v4125
        %v4127 = vrot.slane %v4027, 5
        %v4128 = vrot.slane %v4127, 4
        %v4129 = vrot.slane %v3374, 5
        %v4130 = vsel %vm1334, %v4128, %v4129
        %v4131 = vrot.slane %v4129, 4
        %v4132 = vrot.slane %v3375, 5
        %v4133 = vsel %vm1334, %v4131, %v4132
        %v4134 = vrot.slane %v4028, 5
        %v4135 = vrot.slane %v4134, 4
        %v4136 = vrot.slane %v3377, 5
        %v4137 = vsel %vm1334, %v4135, %v4136
        %v4138 = vrot.slane %v4136, 4
        %v4139 = vrot.slane %v3378, 5
        %v4140 = vsel %vm1334, %v4138, %v4139
        %v4141 = vrot.slane %v4029, 5
        %v4142 = vrot.slane %v4141, 4
        %v4143 = vrot.slane %v3380, 5
        %v4144 = vsel %vm1334, %v4142, %v4143
        %v4145 = vrot.slane %v4143, 4
        %v4146 = vrot.slane %v3381, 5
        %v4147 = vsel %vm1334, %v4145, %v4146
        %v4148 = vrot.slane %v4030, 5
        %v4149 = vrot.slane %v4148, 4
        %v4150 = vrot.slane %v3383, 5
        %v4151 = vsel %vm1334, %v4149, %v4150
        %v4152 = vrot.slane %v4150, 4
        %v4153 = vrot.slane %v3384, 5
        %v4154 = vsel %vm1334, %v4152, %v4153
        %v4155 = vrot.slane %v4031, 5
        %v4156 = vrot.slane %v4155, 4
        %v4157 = vrot.slane %v3386, 5
        %v4158 = vsel %vm1334, %v4156, %v4157
        %v4159 = vrot.slane %v4157, 4
        %v4160 = vrot.slane %v3387, 5
        %v4161 = vsel %vm1334, %v4159, %v4160
        %v4162 = vrot.slane %v4032, 5
        %v4163 = vrot.slane %v4162, 4
        %v4164 = vrot.slane %v3389, 5
        %v4165 = vsel %vm1334, %v4163, %v4164
        %v4166 = vrot.slane %v4164, 4
        %v4167 = vrot.slane %v3390, 5
        %v4168 = vsel %vm1334, %v4166, %v4167
        %v4169 = vrot.slane %v4033, 5
        %v4170 = vrot.slane %v4169, 4
        %v4171 = vrot.slane %v3392, 5
        %v4172 = vsel %vm1334, %v4170, %v4171
        %v4173 = vrot.slane %v4171, 4
        %v4174 = vrot.slane %v3393, 5
        %v4175 = vsel %vm1334, %v4173, %v4174
        %v4176 = vrot.slane %v4034, 5
        %v4177 = vrot.slane %v4176, 4
        %v4178 = vrot.slane %v3395, 5
        %v4179 = vsel %vm1334, %v4177, %v4178
        %v4180 = vrot.slane %v4178, 4
        %v4181 = vrot.slane %v3396, 5
        %v4182 = vsel %vm1334, %v4180, %v4181
        %v4183 = vrot.slane %v4035, 5
        %v4184 = vrot.slane %v4183, 4
        %v4185 = vrot.slane %v3398, 5
        %v4186 = vsel %vm1334, %v4184, %v4185
        %v4187 = vrot.slane %v4185, 4
        %v4188 = vrot.slane %v3399, 5
        %v4189 = vsel %vm1334, %v4187, %v4188
        %v4190 = vrot.slane %v4036, 5
        %v4191 = vrot.slane %v4190, 4
        %v4192 = vrot.slane %v3401, 5
        %v4193 = vsel %vm1334, %v4191, %v4192
        %v4194 = vrot.slane %v4192, 4
        %v4195 = vrot.slane %v3402, 5
        %v4196 = vsel %vm1334, %v4194, %v4195
        %s4197 = scalar_lea.vmem %s230, 128
        %v4198 = vld [vmem:[%s4197] sm:$0xf]
        %v4199 = vld [vmem:[%s4197 + $0x4] sm:$0xf]
        %v4200 = vld [vmem:[%s4197 + $0x8] sm:$0xf]
        %v4201 = vld [vmem:[%s4197 + $0xc] sm:$0xf]
        %v4202 = vunpack.c.l.b16 %v4088
        %v4203 = vunpack.c.l.b16 %v4091
        %v4204 = vunpack.c.l.b16 %v4095
        %v4205 = vunpack.c.l.b16 %v4098
        %v4206 = vunpack.c.l.b16 %v4102
        %v4207 = vunpack.c.l.b16 %v4105
        %v4208 = vunpack.c.l.b16 %v4109
        %v4209 = vunpack.c.l.b16 %v4112
        %v4210 = vunpack.c.l.b16 %v4116
        %v4211 = vunpack.c.l.b16 %v4119
        %v4212 = vunpack.c.l.b16 %v4123
        %v4213 = vunpack.c.l.b16 %v4126
        %v4214 = vunpack.c.l.b16 %v4130
        %v4215 = vunpack.c.l.b16 %v4133
        %v4216 = vunpack.c.l.b16 %v4137
        %v4217 = vunpack.c.l.b16 %v4140
        %v4218 = vunpack.c.l.b16 %v4144
        %v4219 = vunpack.c.l.b16 %v4147
        %v4220 = vunpack.c.l.b16 %v4151
        %v4221 = vunpack.c.l.b16 %v4154
        %v4222 = vunpack.c.l.b16 %v4158
        %v4223 = vunpack.c.l.b16 %v4161
        %v4224 = vunpack.c.l.b16 %v4165
        %v4225 = vunpack.c.l.b16 %v4168
        %v4226 = vunpack.c.l.b16 %v4172
        %v4227 = vunpack.c.l.b16 %v4175
        %v4228 = vunpack.c.l.b16 %v4179
        %v4229 = vunpack.c.l.b16 %v4182
        %v4230 = vunpack.c.l.b16 %v4186
        %v4231 = vunpack.c.l.b16 %v4189
        %v4232 = vunpack.c.l.b16 %v4193
        %v4233 = vunpack.c.l.b16 %v4196
        %v4234 = vpack.c.b16 %v4203, %v4202
        %v4235 = vpack.c.b16 %v4205, %v4204
        %v4236 = vpack.c.b16 %v4207, %v4206
        %v4237 = vpack.c.b16 %v4209, %v4208
        %v4238 = vpack.c.b16 %v4211, %v4210
        %v4239 = vpack.c.b16 %v4213, %v4212
        %v4240 = vpack.c.b16 %v4215, %v4214
        %v4241 = vpack.c.b16 %v4217, %v4216
        %v4242 = vpack.c.b16 %v4219, %v4218
        %v4243 = vpack.c.b16 %v4221, %v4220
        %v4244 = vpack.c.b16 %v4223, %v4222
        %v4245 = vpack.c.b16 %v4225, %v4224
        %v4246 = vpack.c.b16 %v4227, %v4226
        %v4247 = vpack.c.b16 %v4229, %v4228
        %v4248 = vpack.c.b16 %v4231, %v4230
        %v4249 = vpack.c.b16 %v4233, %v4232
        %v4254 = vunpack.c.l.b16 %v4198
        %v4255 = vunpack.c.l.b16 %v4199
        %v4256 = vunpack.c.l.b16 %v4200
        %v4257 = vunpack.c.l.b16 %v4201
        %v4258 = vpack.c.b16 %v4255, %v4254
        %v4259 = vpack.c.b16 %v4257, %v4256
        %v4263 = vsel %vm429, %v4234, 0
        %v4266 = vsel %vm429, %v4235, 0
        %v4269 = vsel %vm429, %v4236, 0
        %v4272 = vsel %vm429, %v4237, 0
        %v4275 = vsel %vm429, %v4238, 0
        %v4278 = vsel %vm429, %v4239, 0
        %v4281 = vsel %vm429, %v4240, 0
        %v4284 = vsel %vm429, %v4241, 0
        %v4287 = vsel %vm429, %v4242, 0
        %v4290 = vsel %vm429, %v4243, 0
        %v4293 = vsel %vm429, %v4244, 0
        %v4296 = vsel %vm429, %v4245, 0
        %v4299 = vsel %vm429, %v4246, 0
        %v4302 = vsel %vm429, %v4247, 0
        %v4305 = vsel %vm429, %v4248, 0
        %v4308 = vsel %vm429, %v4249, 0
        %4310 = vmatpush.bf16.msra.mxu0 0
        %4311 = vmatpush.bf16.msra.mxu0 0
        %4312 = vmatpush.bf16.msra.mxu0 0
        %4313 = vmatpush.bf16.msra.mxu0 0
        %4314 = vmatpush.bf16.msra.mxu0 0
        %4315 = vmatpush.bf16.msra.mxu0 0
        %4316 = vmatpush.bf16.msra.mxu0 %v4259
        %4317 = vmatpush.bf16.msra.mxu0 %v4258
        %4318 = vmatmul.bf16.gmra.mxu0 %v4263
        %v4319 = vpop.f32.mrf.mxu0
        %v4320 = vadd.f32 0.0, %v4319
        %v4321 = vpop.f32.mrf.mxu0
        %v4322 = vadd.f32 0.0, %v4321
        %4323 = vmatmul.bf16.gmra.mxu0 %v4266
        %v4324 = vpop.f32.mrf.mxu0
        %v4325 = vadd.f32 0.0, %v4324
        %v4326 = vpop.f32.mrf.mxu0
        %v4327 = vadd.f32 0.0, %v4326
        %4328 = vmatmul.bf16.gmra.mxu0 %v4269
        %v4329 = vpop.f32.mrf.mxu0
        %v4330 = vadd.f32 0.0, %v4329
        %v4331 = vpop.f32.mrf.mxu0
        %v4332 = vadd.f32 0.0, %v4331
        %4333 = vmatmul.bf16.gmra.mxu0 %v4272
        %v4334 = vpop.f32.mrf.mxu0
        %v4335 = vadd.f32 0.0, %v4334
        %v4336 = vpop.f32.mrf.mxu0
        %v4337 = vadd.f32 0.0, %v4336
        %4338 = vmatmul.bf16.gmra.mxu0 %v4275
        %v4339 = vpop.f32.mrf.mxu0
        %v4340 = vadd.f32 0.0, %v4339
        %v4341 = vpop.f32.mrf.mxu0
        %v4342 = vadd.f32 0.0, %v4341
        %4343 = vmatmul.bf16.gmra.mxu0 %v4278
        %v4344 = vpop.f32.mrf.mxu0
        %v4345 = vadd.f32 0.0, %v4344
        %v4346 = vpop.f32.mrf.mxu0
        %v4347 = vadd.f32 0.0, %v4346
        %4348 = vmatmul.bf16.gmra.mxu0 %v4281
        %v4349 = vpop.f32.mrf.mxu0
        %v4350 = vadd.f32 0.0, %v4349
        %v4351 = vpop.f32.mrf.mxu0
        %v4352 = vadd.f32 0.0, %v4351
        %4353 = vmatmul.bf16.gmra.mxu0 %v4284
        %v4354 = vpop.f32.mrf.mxu0
        %v4355 = vadd.f32 0.0, %v4354
        %v4356 = vpop.f32.mrf.mxu0
        %v4357 = vadd.f32 0.0, %v4356
        %4358 = vmatmul.bf16.gmra.mxu0 %v4287
        %v4359 = vpop.f32.mrf.mxu0
        %v4360 = vadd.f32 0.0, %v4359
        %v4361 = vpop.f32.mrf.mxu0
        %v4362 = vadd.f32 0.0, %v4361
        %4363 = vmatmul.bf16.gmra.mxu0 %v4290
        %v4364 = vpop.f32.mrf.mxu0
        %v4365 = vadd.f32 0.0, %v4364
        %v4366 = vpop.f32.mrf.mxu0
        %v4367 = vadd.f32 0.0, %v4366
        %4368 = vmatmul.bf16.gmra.mxu0 %v4293
        %v4369 = vpop.f32.mrf.mxu0
        %v4370 = vadd.f32 0.0, %v4369
        %v4371 = vpop.f32.mrf.mxu0
        %v4372 = vadd.f32 0.0, %v4371
        %4373 = vmatmul.bf16.gmra.mxu0 %v4296
        %v4374 = vpop.f32.mrf.mxu0
        %v4375 = vadd.f32 0.0, %v4374
        %v4376 = vpop.f32.mrf.mxu0
        %v4377 = vadd.f32 0.0, %v4376
        %4378 = vmatmul.bf16.gmra.mxu0 %v4299
        %v4379 = vpop.f32.mrf.mxu0
        %v4380 = vadd.f32 0.0, %v4379
        %v4381 = vpop.f32.mrf.mxu0
        %v4382 = vadd.f32 0.0, %v4381
        %4383 = vmatmul.bf16.gmra.mxu0 %v4302
        %v4384 = vpop.f32.mrf.mxu0
        %v4385 = vadd.f32 0.0, %v4384
        %v4386 = vpop.f32.mrf.mxu0
        %v4387 = vadd.f32 0.0, %v4386
        %4388 = vmatmul.bf16.gmra.mxu0 %v4305
        %v4389 = vpop.f32.mrf.mxu0
        %v4390 = vadd.f32 0.0, %v4389
        %v4391 = vpop.f32.mrf.mxu0
        %v4392 = vadd.f32 0.0, %v4391
        %4393 = vmatmul.bf16.gmra.mxu0 %v4308
        %v4394 = vpop.f32.mrf.mxu0
        %v4395 = vadd.f32 0.0, %v4394
        %v4396 = vpop.f32.mrf.mxu0
        %v4397 = vadd.f32 0.0, %v4396
        %4398 = vdwg.mxu0
        %v4399 = vadd.f32 %v3989, %v4320
        %v4400 = vadd.f32 %v3990, %v4322
        %v4401 = vadd.f32 %v3991, %v4325
        %v4402 = vadd.f32 %v3992, %v4327
        %v4403 = vadd.f32 %v3993, %v4330
        %v4404 = vadd.f32 %v3994, %v4332
        %v4405 = vadd.f32 %v3995, %v4335
        %v4406 = vadd.f32 %v3996, %v4337
        %v4407 = vadd.f32 %v3997, %v4340
        %v4408 = vadd.f32 %v3998, %v4342
        %v4409 = vadd.f32 %v3999, %v4345
        %v4410 = vadd.f32 %v4000, %v4347
        %v4411 = vadd.f32 %v4001, %v4350
        %v4412 = vadd.f32 %v4002, %v4352
        %v4413 = vadd.f32 %v4003, %v4355
        %v4414 = vadd.f32 %v4004, %v4357
        %v4415 = vadd.f32 %v4005, %v4360
        %v4416 = vadd.f32 %v4006, %v4362
        %v4417 = vadd.f32 %v4007, %v4365
        %v4418 = vadd.f32 %v4008, %v4367
        %v4419 = vadd.f32 %v4009, %v4370
        %v4420 = vadd.f32 %v4010, %v4372
        %v4421 = vadd.f32 %v4011, %v4375
        %v4422 = vadd.f32 %v4012, %v4377
        %v4423 = vadd.f32 %v4013, %v4380
        %v4424 = vadd.f32 %v4014, %v4382
        %v4425 = vadd.f32 %v4015, %v4385
        %v4426 = vadd.f32 %v4016, %v4387
        %v4427 = vadd.f32 %v4017, %v4390
        %v4428 = vadd.f32 %v4018, %v4392
        %v4429 = vadd.f32 %v4019, %v4395
        %v4430 = vadd.f32 %v4020, %v4397
        %4431 = vst.msk [vmem:[#allocation2] sm:$0xff] %vm429, %v4399
        %4432 = vst.msk [vmem:[#allocation2 + $0x8] sm:$0xff] %vm429, %v4400
        %4433 = vst.msk [vmem:[#allocation2 + $0x10] sm:$0xff] %vm429, %v4401
        %4434 = vst.msk [vmem:[#allocation2 + $0x18] sm:$0xff] %vm429, %v4402
        %4435 = vst.msk [vmem:[#allocation2 + $0x20] sm:$0xff] %vm429, %v4403
        %4436 = vst.msk [vmem:[#allocation2 + $0x28] sm:$0xff] %vm429, %v4404
        %4437 = vst.msk [vmem:[#allocation2 + $0x30] sm:$0xff] %vm429, %v4405
        %4438 = vst.msk [vmem:[#allocation2 + $0x38] sm:$0xff] %vm429, %v4406
        %4439 = vst.msk [vmem:[#allocation2 + $0x40] sm:$0xff] %vm429, %v4407
        %4440 = vst.msk [vmem:[#allocation2 + $0x48] sm:$0xff] %vm429, %v4408
        %4441 = vst.msk [vmem:[#allocation2 + $0x50] sm:$0xff] %vm429, %v4409
        %4442 = vst.msk [vmem:[#allocation2 + $0x58] sm:$0xff] %vm429, %v4410
        %4443 = vst.msk [vmem:[#allocation2 + $0x60] sm:$0xff] %vm429, %v4411
        %4444 = vst.msk [vmem:[#allocation2 + $0x68] sm:$0xff] %vm429, %v4412
        %4445 = vst.msk [vmem:[#allocation2 + $0x70] sm:$0xff] %vm429, %v4413
        %4446 = vst.msk [vmem:[#allocation2 + $0x78] sm:$0xff] %vm429, %v4414
        %4447 = vst.msk [vmem:[#allocation2 + $0x80] sm:$0xff] %vm429, %v4415
        %4448 = vst.msk [vmem:[#allocation2 + $0x88] sm:$0xff] %vm429, %v4416
        %4449 = vst.msk [vmem:[#allocation2 + $0x90] sm:$0xff] %vm429, %v4417
        %4450 = vst.msk [vmem:[#allocation2 + $0x98] sm:$0xff] %vm429, %v4418
        %4451 = vst.msk [vmem:[#allocation2 + $0xa0] sm:$0xff] %vm429, %v4419
        %4452 = vst.msk [vmem:[#allocation2 + $0xa8] sm:$0xff] %vm429, %v4420
        %4453 = vst.msk [vmem:[#allocation2 + $0xb0] sm:$0xff] %vm429, %v4421
        %4454 = vst.msk [vmem:[#allocation2 + $0xb8] sm:$0xff] %vm429, %v4422
        %4455 = vst.msk [vmem:[#allocation2 + $0xc0] sm:$0xff] %vm429, %v4423
        %4456 = vst.msk [vmem:[#allocation2 + $0xc8] sm:$0xff] %vm429, %v4424
        %4457 = vst.msk [vmem:[#allocation2 + $0xd0] sm:$0xff] %vm429, %v4425
        %4458 = vst.msk [vmem:[#allocation2 + $0xd8] sm:$0xff] %vm429, %v4426
        %4459 = vst.msk [vmem:[#allocation2 + $0xe0] sm:$0xff] %vm429, %v4427
        %4460 = vst.msk [vmem:[#allocation2 + $0xe8] sm:$0xff] %vm429, %v4428
        %4461 = vst.msk [vmem:[#allocation2 + $0xf0] sm:$0xff] %vm429, %v4429
        %4462 = vst.msk [vmem:[#allocation2 + $0xf8] sm:$0xff] %vm429, %v4430
        %p4463 = scmp.eq.s32.totalorder %s24, 2
        // Predicated region
        $region37: #{apply.3} parent=31 // pred_check
          %p4464 = pneg %p4463
        $region38: #{apply.3} parent=31 // pred_check_branch
          %4466 = sbr.rel (%p4464) target = $region40
        $region39: #{apply.3} parent=31 // pred_region
          %v4467 = vld [vmem:[#allocation2] sm:$0xff]
          %v4468 = vld [vmem:[#allocation2 + $0x8] sm:$0xff]
          %v4469 = vld [vmem:[#allocation2 + $0x10] sm:$0xff]
          %v4470 = vld [vmem:[#allocation2 + $0x18] sm:$0xff]
          %v4471 = vld [vmem:[#allocation2 + $0x20] sm:$0xff]
          %v4472 = vld [vmem:[#allocation2 + $0x28] sm:$0xff]
          %v4473 = vld [vmem:[#allocation2 + $0x30] sm:$0xff]
          %v4474 = vld [vmem:[#allocation2 + $0x38] sm:$0xff]
          %v4475 = vld [vmem:[#allocation2 + $0x40] sm:$0xff]
          %v4476 = vld [vmem:[#allocation2 + $0x48] sm:$0xff]
          %v4477 = vld [vmem:[#allocation2 + $0x50] sm:$0xff]
          %v4478 = vld [vmem:[#allocation2 + $0x58] sm:$0xff]
          %v4479 = vld [vmem:[#allocation2 + $0x60] sm:$0xff]
          %v4480 = vld [vmem:[#allocation2 + $0x68] sm:$0xff]
          %v4481 = vld [vmem:[#allocation2 + $0x70] sm:$0xff]
          %v4482 = vld [vmem:[#allocation2 + $0x78] sm:$0xff]
          %v4483 = vld [vmem:[#allocation2 + $0x80] sm:$0xff]
          %v4484 = vld [vmem:[#allocation2 + $0x88] sm:$0xff]
          %v4485 = vld [vmem:[#allocation2 + $0x90] sm:$0xff]
          %v4486 = vld [vmem:[#allocation2 + $0x98] sm:$0xff]
          %v4487 = vld [vmem:[#allocation2 + $0xa0] sm:$0xff]
          %v4488 = vld [vmem:[#allocation2 + $0xa8] sm:$0xff]
          %v4489 = vld [vmem:[#allocation2 + $0xb0] sm:$0xff]
          %v4490 = vld [vmem:[#allocation2 + $0xb8] sm:$0xff]
          %v4491 = vld [vmem:[#allocation2 + $0xc0] sm:$0xff]
          %v4492 = vld [vmem:[#allocation2 + $0xc8] sm:$0xff]
          %v4493 = vld [vmem:[#allocation2 + $0xd0] sm:$0xff]
          %v4494 = vld [vmem:[#allocation2 + $0xd8] sm:$0xff]
          %v4495 = vld [vmem:[#allocation2 + $0xe0] sm:$0xff]
          %v4496 = vld [vmem:[#allocation2 + $0xe8] sm:$0xff]
          %v4497 = vld [vmem:[#allocation2 + $0xf0] sm:$0xff]
          %v4498 = vld [vmem:[#allocation2 + $0xf8] sm:$0xff]
          %v4499 = vld [vmem:[%s2] sm:$0x1]
          %v4501 = vperm.slane %v4499, 0
          %v4503 = vadd.f32 %v4467, %v4501
          %v4504 = vadd.f32 %v4468, %v4501
          %v4505 = vadd.f32 %v4469, %v4501
          %v4506 = vadd.f32 %v4470, %v4501
          %v4507 = vadd.f32 %v4471, %v4501
          %v4508 = vadd.f32 %v4472, %v4501
          %v4509 = vadd.f32 %v4473, %v4501
          %v4510 = vadd.f32 %v4474, %v4501
          %v4511 = vadd.f32 %v4475, %v4501
          %v4512 = vadd.f32 %v4476, %v4501
          %v4513 = vadd.f32 %v4477, %v4501
          %v4514 = vadd.f32 %v4478, %v4501
          %v4515 = vadd.f32 %v4479, %v4501
          %v4516 = vadd.f32 %v4480, %v4501
          %v4517 = vadd.f32 %v4481, %v4501
          %v4518 = vadd.f32 %v4482, %v4501
          %v4519 = vadd.f32 %v4483, %v4501
          %v4520 = vadd.f32 %v4484, %v4501
          %v4521 = vadd.f32 %v4485, %v4501
          %v4522 = vadd.f32 %v4486, %v4501
          %v4523 = vadd.f32 %v4487, %v4501
          %v4524 = vadd.f32 %v4488, %v4501
          %v4525 = vadd.f32 %v4489, %v4501
          %v4526 = vadd.f32 %v4490, %v4501
          %v4527 = vadd.f32 %v4491, %v4501
          %v4528 = vadd.f32 %v4492, %v4501
          %v4529 = vadd.f32 %v4493, %v4501
          %v4530 = vadd.f32 %v4494, %v4501
          %v4531 = vadd.f32 %v4495, %v4501
          %v4532 = vadd.f32 %v4496, %v4501
          %v4533 = vadd.f32 %v4497, %v4501
          %v4534 = vadd.f32 %v4498, %v4501
          %v4535 = vmax.f32 %v4503, 0.0
          %v4536 = vmax.f32 %v4504, 0.0
          %v4537 = vmax.f32 %v4505, 0.0
          %v4538 = vmax.f32 %v4506, 0.0
          %v4539 = vmax.f32 %v4507, 0.0
          %v4540 = vmax.f32 %v4508, 0.0
          %v4541 = vmax.f32 %v4509, 0.0
          %v4542 = vmax.f32 %v4510, 0.0
          %v4543 = vmax.f32 %v4511, 0.0
          %v4544 = vmax.f32 %v4512, 0.0
          %v4545 = vmax.f32 %v4513, 0.0
          %v4546 = vmax.f32 %v4514, 0.0
          %v4547 = vmax.f32 %v4515, 0.0
          %v4548 = vmax.f32 %v4516, 0.0
          %v4549 = vmax.f32 %v4517, 0.0
          %v4550 = vmax.f32 %v4518, 0.0
          %v4551 = vmax.f32 %v4519, 0.0
          %v4552 = vmax.f32 %v4520, 0.0
          %v4553 = vmax.f32 %v4521, 0.0
          %v4554 = vmax.f32 %v4522, 0.0
          %v4555 = vmax.f32 %v4523, 0.0
          %v4556 = vmax.f32 %v4524, 0.0
          %v4557 = vmax.f32 %v4525, 0.0
          %v4558 = vmax.f32 %v4526, 0.0
          %v4559 = vmax.f32 %v4527, 0.0
          %v4560 = vmax.f32 %v4528, 0.0
          %v4561 = vmax.f32 %v4529, 0.0
          %v4562 = vmax.f32 %v4530, 0.0
          %v4563 = vmax.f32 %v4531, 0.0
          %v4564 = vmax.f32 %v4532, 0.0
          %v4565 = vmax.f32 %v4533, 0.0
          %v4566 = vmax.f32 %v4534, 0.0
          %4567 = vst.msk [vmem:[%s214] sm:$0xff] %vm429, %v4535
          %4568 = vst.msk [vmem:[%s214 + $0x8] sm:$0xff] %vm429, %v4536
          %4569 = vst.msk [vmem:[%s214 + $0x10] sm:$0xff] %vm429, %v4537
          %4570 = vst.msk [vmem:[%s214 + $0x18] sm:$0xff] %vm429, %v4538
          %4571 = vst.msk [vmem:[%s214 + $0x20] sm:$0xff] %vm429, %v4539
          %4572 = vst.msk [vmem:[%s214 + $0x28] sm:$0xff] %vm429, %v4540
          %4573 = vst.msk [vmem:[%s214 + $0x30] sm:$0xff] %vm429, %v4541
          %4574 = vst.msk [vmem:[%s214 + $0x38] sm:$0xff] %vm429, %v4542
          %4575 = vst.msk [vmem:[%s214 + $0x40] sm:$0xff] %vm429, %v4543
          %4576 = vst.msk [vmem:[%s214 + $0x48] sm:$0xff] %vm429, %v4544
          %4577 = vst.msk [vmem:[%s214 + $0x50] sm:$0xff] %vm429, %v4545
          %4578 = vst.msk [vmem:[%s214 + $0x58] sm:$0xff] %vm429, %v4546
          %4579 = vst.msk [vmem:[%s214 + $0x60] sm:$0xff] %vm429, %v4547
          %4580 = vst.msk [vmem:[%s214 + $0x68] sm:$0xff] %vm429, %v4548
          %4581 = vst.msk [vmem:[%s214 + $0x70] sm:$0xff] %vm429, %v4549
          %4582 = vst.msk [vmem:[%s214 + $0x78] sm:$0xff] %vm429, %v4550
          %4583 = vst.msk [vmem:[%s214 + $0x80] sm:$0xff] %vm429, %v4551
          %4584 = vst.msk [vmem:[%s214 + $0x88] sm:$0xff] %vm429, %v4552
          %4585 = vst.msk [vmem:[%s214 + $0x90] sm:$0xff] %vm429, %v4553
          %4586 = vst.msk [vmem:[%s214 + $0x98] sm:$0xff] %vm429, %v4554
          %4587 = vst.msk [vmem:[%s214 + $0xa0] sm:$0xff] %vm429, %v4555
          %4588 = vst.msk [vmem:[%s214 + $0xa8] sm:$0xff] %vm429, %v4556
          %4589 = vst.msk [vmem:[%s214 + $0xb0] sm:$0xff] %vm429, %v4557
          %4590 = vst.msk [vmem:[%s214 + $0xb8] sm:$0xff] %vm429, %v4558
          %4591 = vst.msk [vmem:[%s214 + $0xc0] sm:$0xff] %vm429, %v4559
          %4592 = vst.msk [vmem:[%s214 + $0xc8] sm:$0xff] %vm429, %v4560
          %4593 = vst.msk [vmem:[%s214 + $0xd0] sm:$0xff] %vm429, %v4561
          %4594 = vst.msk [vmem:[%s214 + $0xd8] sm:$0xff] %vm429, %v4562
          %4595 = vst.msk [vmem:[%s214 + $0xe0] sm:$0xff] %vm429, %v4563
          %4596 = vst.msk [vmem:[%s214 + $0xe8] sm:$0xff] %vm429, %v4564
          %4597 = vst.msk [vmem:[%s214 + $0xf0] sm:$0xff] %vm429, %v4565
          %4598 = vst.msk [vmem:[%s214 + $0xf8] sm:$0xff] %vm429, %v4566
        $region40: #{apply.3} parent=31 // pred_fallthru
          _
        %s4599 = sand.u32 %s123, 1
        %s4600 = scalar_lea.sflag [#allocation4], %s4599
        %s4601 = sand.u32 %s123, 1
        %s4602 = smul.addr %s4601, 256
        %s4603 = scalar_lea.vmem [#allocation3], %s4602
        // Predicated region
        $region41: #{apply.3} parent=31 // pred_check
          %p4604 = pneg %p133
        $region42: #{apply.3} parent=31 // pred_check_branch
          %4606 = sbr.rel (%p4604) target = $region44
        $region43: #{apply.3} parent=31 // pred_region
          %4608 = vsyncadd %s4600, 0
          %s4609 = smul.addr %s23, 32
          %s4610 = smul.addr %s22, 256
          %s4611 = sadd.s32 %s4609, %s4610
          %s4612 = smul.addr %s4611, 8
          %s4613 = scalar_lea.hbm %s3, %s4612
          %s4614 = sshll.u32 %s4603, 4
          %s4615 = int_to_ptr.vmem [resolvable:$true] %s4614
          %s4616 = sshll.u32 %s4613, 4
          %s4617 = int_to_ptr.hbm [resolvable:$true] %s4616
          %4622 = dma.vmem_to_hbm [thread:$0]  %s4615, 4096, %s4617, %s4600, 128, 128, 8
        $region44: #{apply.3} parent=31 // pred_fallthru
          _
      $region32: #{apply.3} parent=5 // pred_fallthru
        _
      %p4623 = scmp.le.s32.totalorder 2, %s12
      // Predicated region
      $region45: #{apply.3} parent=5 // pred_check
        %p4624 = pneg %p4623
      $region46: #{apply.3} parent=5 // pred_check_branch
        %4626 = sbr.rel (%p4624) target = $region48
      $region47: #{apply.3} parent=5 // pred_region
        %s4627 = ssub.s32 %s12, 2
        // Predicated region
        $region49: #{apply.3} parent=47 // pred_check
          %p4628 = pneg %p139
        $region50: #{apply.3} parent=47 // pred_check_branch
          %4630 = sbr.rel (%p4628) target = $region52
        $region51: #{apply.3} parent=47 // pred_region
          %s4631 = sand.u32 %s124, 1
          %s4632 = scalar_lea.sflag [#allocation4], %s4631
          %s4633 = sand.u32 %s124, 1
          %s4634 = smul.addr %s4633, 256
          %s4635 = scalar_lea.vmem [#allocation3], %s4634
          %4637 = dma.done %s4632, 4096
        $region52: #{apply.3} parent=47 // pred_fallthru
          _
      $region48: #{apply.3} parent=5 // pred_fallthru
        _
    $region6: #{apply.3} parent=1 // loop_footer
      %s16 = sadd.s32 1, %s12
    $region7: #{apply.3} parent=1 // loop_footer_branch
      %11 = sbr.rel target = $region3
    $region8: #{apply.3} parent=1 // loop_exit
      _
    %4638 = vsyncpa [#allocation4], 1
    %s4639 = scalar_lea.sflag [#allocation4], 1
    %4640 = vsyncpa %s4639, 1

</llo_original>
